<compile_context>
chip_gen: v6e
topology: v6e:2x2x1
jax: 0.10.0
libtpu: 0.0.40
codegen_flags: <defaults>
</compile_context>

<pallas_src>
import functools
import math

import numpy as np
import jax
import jax.numpy as jnp
from jax.experimental import pallas as pl
from jax.experimental.pallas import tpu as pltpu

MAX_LENGTH = 32
COMPUTE_DTYPE = jnp.bfloat16      # MXU input dtype; LN/softmax math stays f32
NEG_INF = -1e30


# --------------------------- per-generation budgets ---------------------------

def _vmem_capacity_bytes():
    try:
        cap = getattr(pltpu.get_tpu_info(), "vmem_capacity_bytes", None)
        if cap:
            return int(cap)
    except Exception:
        pass
    return 128 * 1024 * 1024


_VMEM_CAP = _vmem_capacity_bytes()
_SMALL_VMEM = _VMEM_CAP <= 64 * 1024 * 1024               # v7x-class: 64 MiB per TensorCore
VMEM_LIMIT = (32 if _SMALL_VMEM else 64) * 1024 * 1024    # scoped-VMEM cap per generation
MM_TM, MM_TN, MM_TK = (128, 256, 256) if _SMALL_VMEM else (256, 512, 512)
LN_TM, LN_TK = (128, 256) if _SMALL_VMEM else (256, 512)
ATTN_TQ, ATTN_TK = 256, 256


def _round_up(x, m):
    return (x + m - 1) // m * m


def _pick_tile(dim, target):
    """Largest tile <= target (multiple of 128) that divides dim; else the full dim."""
    if dim <= target:
        return dim
    t = target
    while t >= 128:
        if dim % t == 0:
            return t
        t -= 128
    return dim


# --------------------------- tiled matmul kernels ---------------------------


def _matmul_bias_kernel(x_ref, w_ref, b_ref, o_ref, acc_ref, *, activation):
    """out = act(x @ w + b), accumulated over the K grid axis in an f32 VMEM scratch."""
    @pl.when(pl.program_id(2) == 0)
    def _():
        acc_ref[...] = jnp.zeros(acc_ref.shape, jnp.float32)

    acc_ref[...] += jnp.dot(x_ref[...], w_ref[...], preferred_element_type=jnp.float32)

    @pl.when(pl.program_id(2) == pl.num_programs(2) - 1)
    def _():
        y = acc_ref[...] + b_ref[...].astype(jnp.float32)
        if activation == "relu":
            y = jnp.maximum(y, 0.0)
        o_ref[...] = y.astype(o_ref.dtype)


def linear(x, w, b, *, activation="none", out_dtype=None, tm=None, tn=None, tk=None):
    """x: [M, K] @ w: [K, N] + b: [N]; tiled over (M, N, K) with a resident f32 accumulator."""
    M, K = x.shape
    assert w.shape[0] == K, (x.shape, w.shape)
    N = w.shape[1]
    out_dtype = x.dtype if out_dtype is None else out_dtype

    # Pad non-128-multiple output dims (e.g. vocab=50257) so tiles stay lane-dense.
    N_pad = _round_up(N, 128)
    if N_pad != N:
        w = jnp.pad(w, ((0, 0), (0, N_pad - N)))
        b = jnp.pad(b, (0, N_pad - N))

    tm = _pick_tile(M, MM_TM if tm is None else tm)
    tn = _pick_tile(N_pad, MM_TN if tn is None else tn)
    tk = _pick_tile(K, MM_TK if tk is None else tk)

    out = pl.pallas_call(
        functools.partial(_matmul_bias_kernel, activation=activation),
        out_shape=jax.ShapeDtypeStruct((M, N_pad), out_dtype),
        grid=(M // tm, N_pad // tn, K // tk),
        in_specs=[
            pl.BlockSpec((tm, tk), lambda i, j, k: (i, k)),
            pl.BlockSpec((tk, tn), lambda i, j, k: (k, j)),
            pl.BlockSpec((1, tn), lambda i, j, k: (0, j)),
        ],
        out_specs=pl.BlockSpec((tm, tn), lambda i, j, k: (i, j)),
        scratch_shapes=[pltpu.VMEM((tm, tn), jnp.float32)],
        compiler_params=pltpu.CompilerParams(
            dimension_semantics=("parallel", "parallel", "arbitrary"),
            vmem_limit_bytes=VMEM_LIMIT),
    )(x, w, b.reshape(1, N_pad))
    return out if N_pad == N else out[:, :N]


def _matmul_add_ln_kernel(x_ref, w_ref, b_ref, r_ref, g_ref, bt_ref, o_ref, acc_ref, *, eps):
    """out = LayerNorm((x @ w + b) + residual), residual-add + LN fused into the epilogue.
    Requires the full N (= d_model) extent in one block so the LN reduction sees every feature."""
    @pl.when(pl.program_id(1) == 0)
    def _():
        acc_ref[...] = jnp.zeros(acc_ref.shape, jnp.float32)

    acc_ref[...] += jnp.dot(x_ref[...], w_ref[...], preferred_element_type=jnp.float32)

    @pl.when(pl.program_id(1) == pl.num_programs(1) - 1)
    def _():
        y = acc_ref[...] + b_ref[...].astype(jnp.float32) + r_ref[...].astype(jnp.float32)
        mean = jnp.mean(y, axis=-1, keepdims=True)
        yc = y - mean
        var = jnp.mean(yc * yc, axis=-1, keepdims=True)
        inv = jax.lax.rsqrt(var + eps)
        o_ref[...] = (yc * inv * g_ref[...].astype(jnp.float32)
                      + bt_ref[...].astype(jnp.float32)).astype(o_ref.dtype)


def linear_add_layernorm(x, w, b, residual, gamma, beta, *, eps=1e-5, out_dtype=None):
    """Fused (x @ w + b + residual) -> LayerNorm over the feature dim. Grid: (M tiles, K tiles).
    Residual is expected in bf16 (halves the VMEM working set on 64-MiB-VMEM chips)."""
    M, K = x.shape
    N = w.shape[1]
    assert residual.shape == (M, N), (residual.shape, (M, N))
    out_dtype = COMPUTE_DTYPE if out_dtype is None else out_dtype
    tm = _pick_tile(M, LN_TM)
    tk = _pick_tile(K, LN_TK)
    return pl.pallas_call(
        functools.partial(_matmul_add_ln_kernel, eps=eps),
        out_shape=jax.ShapeDtypeStruct((M, N), out_dtype),
        grid=(M // tm, K // tk),
        in_specs=[
            pl.BlockSpec((tm, tk), lambda i, k: (i, k)),
            pl.BlockSpec((tk, N), lambda i, k: (k, 0)),
            pl.BlockSpec((1, N), lambda i, k: (0, 0)),
            pl.BlockSpec((tm, N), lambda i, k: (i, 0)),
            pl.BlockSpec((1, N), lambda i, k: (0, 0)),
            pl.BlockSpec((1, N), lambda i, k: (0, 0)),
        ],
        out_specs=pl.BlockSpec((tm, N), lambda i, k: (i, 0)),
        scratch_shapes=[pltpu.VMEM((tm, N), jnp.float32)],
        compiler_params=pltpu.CompilerParams(
            dimension_semantics=("parallel", "arbitrary"),
            vmem_limit_bytes=VMEM_LIMIT),
    )(x, w, b.reshape(1, N), residual, gamma.reshape(1, N), beta.reshape(1, N))


# --------------------- head-major flash attention (causal) ---------------------


def _flash_mha_kernel(q_ref, k_ref, v_ref, o_ref, qs_ref, m_ref, l_ref, acc_ref,
                      *, scale, block_q, block_k):
    """One (q-tile, batch, head) program iterating kv tiles with online softmax.
    q/k/v blocks are lane-contiguous [t, head_dim] tiles selected by BlockSpec column offsets;
    the causal mask is built from iotas (no [S, S] mask operand) and fully-masked kv tiles
    skip all compute (their DMA is still issued by the pipeline)."""
    qi = pl.program_id(0)
    ki = pl.program_id(3)

    @pl.when(ki == 0)
    def _():
        qs_ref[...] = q_ref[0] * scale                 # fold 1/sqrt(head_dim) into q once
        m_ref[...] = jnp.full(m_ref.shape, NEG_INF, jnp.float32)
        l_ref[...] = jnp.zeros(l_ref.shape, jnp.float32)
        acc_ref[...] = jnp.zeros(acc_ref.shape, jnp.float32)

    # Skip kv tiles strictly above the diagonal (fully masked under the causal mask).
    @pl.when(ki * block_k <= qi * block_q + (block_q - 1))
    def _():
        s = jax.lax.dot_general(qs_ref[...], k_ref[0], (((1,), (1,)), ((), ())),
                                preferred_element_type=jnp.float32)          # [tq, tk]
        q_pos = qi * block_q + jax.lax.broadcasted_iota(jnp.int32, (block_q, block_k), 0)
        k_pos = ki * block_k + jax.lax.broadcasted_iota(jnp.int32, (block_q, block_k), 1)
        s = jnp.where(q_pos >= k_pos, s, NEG_INF)

        m_prev = m_ref[...]
        m_new = jnp.maximum(m_prev, jnp.max(s, axis=-1, keepdims=True))
        alpha = jnp.exp(m_prev - m_new)
        p = jnp.exp(s - m_new)                         # masked entries underflow to exactly 0
        l_ref[...] = alpha * l_ref[...] + jnp.sum(p, axis=-1, keepdims=True)
        acc_ref[...] = alpha * acc_ref[...] + jax.lax.dot_general(
            p.astype(v_ref.dtype), v_ref[0], (((1,), (0,)), ((), ())),
            preferred_element_type=jnp.float32)
        m_ref[...] = m_new

    @pl.when(ki == pl.num_programs(3) - 1)
    def _():
        inv = pl.reciprocal(l_ref[...], approx=True)   # EUP reciprocal: near-free
        o_ref[0] = (acc_ref[...] * inv).astype(o_ref.dtype)   # single lane-dense store


def flash_attention(q_src, k_src, v_src, *, n_heads, head_dim, q_blk, k_blk, v_blk,
                    block_q=None, block_k=None):
    """Head-major causal attention reading directly from fused projection tensors.

    q_src: [B, Sq, *] — head h's queries live at columns [(q_blk+h)*head_dim : ...+head_dim]
    k_src/v_src: [B, Sk, *] with column block offsets k_blk / v_blk (in head_dim units).
    Output: [B, Sq, n_heads*head_dim] with heads concatenated along the last axis
    (same layout PyTorch MHA feeds to out_proj), so no wrapper head merge is needed.
    """
    B, Sq, Fq = q_src.shape
    _, Sk, Fk = k_src.shape
    assert head_dim % 128 == 0, "head-major column blocking needs head_dim % 128 == 0"
    assert Fq >= (q_blk + n_heads) * head_dim
    assert Fk >= (k_blk + n_heads) * head_dim
    assert v_src.shape[-1] >= (v_blk + n_heads) * head_dim

    bq = _pick_tile(Sq, ATTN_TQ if block_q is None else block_q)
    bk = _pick_tile(Sk, ATTN_TK if block_k is None else block_k)
    scale = 1.0 / math.sqrt(head_dim)

    return pl.pallas_call(
        functools.partial(_flash_mha_kernel, scale=scale, block_q=bq, block_k=bk),
        out_shape=jax.ShapeDtypeStruct((B, Sq, n_heads * head_dim), q_src.dtype),
        # q-tile axis leads so a 2-TensorCore chip gets a parallel axis even when B == 1.
        grid=(Sq // bq, B, n_heads, Sk // bk),
        in_specs=[
            pl.BlockSpec((1, bq, head_dim), lambda qi, b, h, ki: (b, qi, q_blk + h)),
            pl.BlockSpec((1, bk, head_dim), lambda qi, b, h, ki: (b, ki, k_blk + h)),
            pl.BlockSpec((1, bk, head_dim), lambda qi, b, h, ki: (b, ki, v_blk + h)),
        ],
        out_specs=pl.BlockSpec((1, bq, head_dim), lambda qi, b, h, ki: (b, qi, h)),
        scratch_shapes=[
            pltpu.VMEM((bq, head_dim), q_src.dtype),   # pre-scaled q tile
            pltpu.VMEM((bq, 1), jnp.float32),          # running max m
            pltpu.VMEM((bq, 1), jnp.float32),          # running denom l
            pltpu.VMEM((bq, head_dim), jnp.float32),   # output accumulator
        ],
        compiler_params=pltpu.CompilerParams(
            dimension_semantics=("parallel", "parallel", "parallel", "arbitrary"),
            vmem_limit_bytes=VMEM_LIMIT),
    )(q_src, k_src, v_src)


# ------------------------------ model glue ---------------------------------


def sinusoidal_pe(max_len, d_model):
    pos = np.arange(max_len, dtype=np.float32)[:, None]
    div = np.exp(np.arange(0, d_model, 2, dtype=np.float32) * (-np.log(10000.0) / d_model))
    pe = np.zeros((max_len, d_model), dtype=np.float32)
    pe[:, 0::2] = np.sin(pos * div)
    pe[:, 1::2] = np.cos(pos * div)
    return jnp.asarray(pe)


def init_params(key, vocab, d_model, n_heads, d_ff, max_len):
    ks = iter(jax.random.split(key, 16))

    def w(shape):
        return (0.02 * jax.random.normal(next(ks), shape, dtype=jnp.float32)).astype(COMPUTE_DTYPE)

    def zeros(n):
        return jnp.zeros((n,), jnp.float32)

    def ones(n):
        return jnp.ones((n,), jnp.float32)

    return {
        "embed": 0.02 * jax.random.normal(next(ks), (vocab, d_model), dtype=jnp.float32),
        "pe": sinusoidal_pe(max_len, d_model),
        "self_attn": {
            "wqkv": w((d_model, 3 * d_model)), "bqkv": zeros(3 * d_model),   # fused Q|K|V
            "wo": w((d_model, d_model)), "bo": zeros(d_model),
        },
        "cross_attn": {
            "wq": w((d_model, d_model)), "bq": zeros(d_model),
            "wkv": w((d_model, 2 * d_model)), "bkv": zeros(2 * d_model),     # fused K|V
            "wo": w((d_model, d_model)), "bo": zeros(d_model),
        },
        "ln1_g": ones(d_model), "ln1_b": zeros(d_model),
        "ln2_g": ones(d_model), "ln2_b": zeros(d_model),
        "ln3_g": ones(d_model), "ln3_b": zeros(d_model),
        "w1": w((d_model, d_ff)), "b1": zeros(d_ff),
        "w2": w((d_ff, d_model)), "b2": zeros(d_model),
        "wc": w((d_model, vocab)), "bc": zeros(vocab),
    }


def gpt_like_forward(params, ids, n_heads):
    B, S = ids.shape
    D = params["embed"].shape[1]
    vocab = params["wc"].shape[1]
    H = n_heads
    hd = D // H

    # Embedding lookup (data-dependent gather, kept in plain JAX) + broadcast PE add.
    emb_f32 = jnp.take(params["embed"], ids.reshape(-1), axis=0).reshape(B, S, D)
    emb_f32 = emb_f32 + params["pe"][None, :S, :]
    emb = emb_f32.astype(COMPUTE_DTYPE).reshape(B * S, D)        # bf16 everywhere downstream

    # --- self-attention: fused QKV proj -> head-major flash attn -> fused out-proj+add+LN ---
    sa = params["self_attn"]
    qkv = linear(emb, sa["wqkv"], sa["bqkv"]).reshape(B, S, 3 * D)   # no wrapper column slices
    attn = flash_attention(qkv, qkv, qkv, n_heads=H, head_dim=hd,
                           q_blk=0, k_blk=H, v_blk=2 * H).reshape(B * S, D)
    x = linear_add_layernorm(attn, sa["wo"], sa["bo"], emb,
                             params["ln1_g"], params["ln1_b"])

    # --- cross-attention block (memory = emb, causal memory mask) ---
    ca = params["cross_attn"]
    q = linear(x, ca["wq"], ca["bq"]).reshape(B, S, D)
    kv = linear(emb, ca["wkv"], ca["bkv"]).reshape(B, S, 2 * D)
    attn = flash_attention(q, kv, kv, n_heads=H, head_dim=hd,
                           q_blk=0, k_blk=0, v_blk=H).reshape(B * S, D)
    x = linear_add_layernorm(attn, ca["wo"], ca["bo"], x,
                             params["ln2_g"], params["ln2_b"])

    # --- feed-forward: matmul+ReLU fused, then matmul+residual+LN fused ---
    h = linear(x, params["w1"], params["b1"], activation="relu")
    x = linear_add_layernorm(h, params["w2"], params["b2"], x,
                             params["ln3_g"], params["ln3_b"])

    # --- classifier (vocab padded to a 128 multiple inside `linear` if needed) ---
    logits = linear(x, params["wc"], params["bc"], out_dtype=jnp.float32)
    return logits.reshape(B, S, vocab)


if __name__ == "__main__":
    # Small but lane-friendly shapes: head_dim = 256/2 = 128 keeps every attention tile
    # lane-dense; vocab=1000 exercises the non-128-multiple padding path in `linear`.
    B, S = 2, 8
    VOCAB, D_MODEL, N_HEADS, D_FF = 1000, 256, 2, 512
    assert S <= MAX_LENGTH and D_MODEL % N_HEADS == 0 and (D_MODEL // N_HEADS) % 128 == 0

    key = jax.random.PRNGKey(0)
    pkey, xkey = jax.random.split(key)
    params = init_params(pkey, VOCAB, D_MODEL, N_HEADS, D_FF, MAX_LENGTH)
    ids = jax.random.randint(xkey, (B, S), 0, VOCAB, dtype=jnp.int32)

    fwd = jax.jit(functools.partial(gpt_like_forward, n_heads=N_HEADS))
    logits = fwd(params, ids)
    jax.block_until_ready(logits)

    assert logits.shape == (B, S, VOCAB), logits.shape
    assert bool(jnp.all(jnp.isfinite(logits)))
    print("KERNEL_OK")
</pallas_src>

<mosaic_0001>
module attributes {stable_mosaic.version = 11 : i64} {
  func.func @_matmul_bias_kernel(%arg0: i32, %arg1: i32, %arg2: i32, %arg3: memref<16x256xbf16, #tpu.memory_space<vmem>>, %arg4: memref<256x384xbf16, #tpu.memory_space<vmem>>, %arg5: memref<1x384xf32, #tpu.memory_space<vmem>>, %arg6: memref<16x384xbf16, #tpu.memory_space<vmem>>, %arg7: memref<16x384xf32, #tpu.memory_space<vmem>>) attributes {dimension_semantics = [#tpu.dimension_semantics<parallel>, #tpu.dimension_semantics<parallel>, #tpu.dimension_semantics<arbitrary>], iteration_bounds = array<i64: 1, 2, 1>, scalar_prefetch = 0 : i64, scratch_operands = 1 : i64, tpu.core_type = #tpu.core_type<tc>, window_params = [{transform_indices = @transform_0, window_bounds = array<i64: 16, 256>}, {transform_indices = @transform_1, window_bounds = array<i64: 256, 384>}, {transform_indices = @transform_2, window_bounds = array<i64: 1, 384>}, {transform_indices = @transform_3, window_bounds = array<i64: 16, 384>}]} {
    %c0_i32 = arith.constant 0 : i32
    %0 = arith.cmpi eq, %arg2, %c0_i32 : i32
    %1 = arith.extui %0 : i1 to i32
    %c0_i32_0 = arith.constant 0 : i32
    %2 = arith.cmpi ne, %1, %c0_i32_0 : i32
    scf.if %2 {
      %cst_10 = arith.constant 0.000000e+00 : f32
      %12 = vector.broadcast %cst_10 : f32 to vector<16x384xf32>
      %c0_11 = arith.constant 0 : index
      %c0_12 = arith.constant 0 : index
      %13 = vector.load %arg7[%c0_11, %c0_12] : memref<16x384xf32, #tpu.memory_space<vmem>>, vector<16x384xf32>
      tpu.vector_store %arg7[%c0_11, %c0_12], %12 {strides = array<i32>} : memref<16x384xf32, #tpu.memory_space<vmem>>, vector<16x384xf32>,
    } else {
    }
    %c0 = arith.constant 0 : index
    %c0_1 = arith.constant 0 : index
    %3 = vector.load %arg7[%c0, %c0_1] : memref<16x384xf32, #tpu.memory_space<vmem>>, vector<16x384xf32>
    %c0_2 = arith.constant 0 : index
    %c0_3 = arith.constant 0 : index
    %4 = vector.load %arg3[%c0_2, %c0_3] : memref<16x256xbf16, #tpu.memory_space<vmem>>, vector<16x256xbf16>
    %c0_4 = arith.constant 0 : index
    %c0_5 = arith.constant 0 : index
    %5 = vector.load %arg4[%c0_4, %c0_5] : memref<256x384xbf16, #tpu.memory_space<vmem>>, vector<256x384xbf16>
    %cst = arith.constant dense<0.000000e+00> : vector<16x384xf32>
    %6 = tpu.matmul %4, %5, %cst {dimension_numbers = #tpu.dot_dimension_numbers<[1], [0], [0], [1], [0, 0, 1, 1], [], []>} : vector<16x256xbf16>, vector<256x384xbf16>, vector<16x384xf32> -> vector<16x384xf32>
    %7 = arith.addf %3, %6 : vector<16x384xf32>
    %c0_6 = arith.constant 0 : index
    %c0_7 = arith.constant 0 : index
    %8 = vector.load %arg7[%c0_6, %c0_7] : memref<16x384xf32, #tpu.memory_space<vmem>>, vector<16x384xf32>
    tpu.vector_store %arg7[%c0_6, %c0_7], %7 {strides = array<i32>} : memref<16x384xf32, #tpu.memory_space<vmem>>, vector<16x384xf32>,
    %c0_i32_8 = arith.constant 0 : i32
    %9 = arith.cmpi eq, %arg2, %c0_i32_8 : i32
    %10 = arith.extui %9 : i1 to i32
    %c0_i32_9 = arith.constant 0 : i32
    %11 = arith.cmpi ne, %10, %c0_i32_9 : i32
    scf.if %11 {
      %c0_10 = arith.constant 0 : index
      %c0_11 = arith.constant 0 : index
      %12 = vector.load %arg7[%c0_10, %c0_11] : memref<16x384xf32, #tpu.memory_space<vmem>>, vector<16x384xf32>
      %c0_12 = arith.constant 0 : index
      %c0_13 = arith.constant 0 : index
      %13 = vector.load %arg5[%c0_12, %c0_13] : memref<1x384xf32, #tpu.memory_space<vmem>>, vector<1x384xf32>
      %14 = vector.broadcast %13 : vector<1x384xf32> to vector<16x384xf32>
      %15 = arith.addf %12, %14 : vector<16x384xf32>
      %16 = arith.truncf %15 : vector<16x384xf32> to vector<16x384xbf16>
      %c0_14 = arith.constant 0 : index
      %c0_15 = arith.constant 0 : index
      %17 = vector.load %arg6[%c0_14, %c0_15] : memref<16x384xbf16, #tpu.memory_space<vmem>>, vector<16x384xbf16>
      tpu.vector_store %arg6[%c0_14, %c0_15], %16 {strides = array<i32>} : memref<16x384xbf16, #tpu.memory_space<vmem>>, vector<16x384xbf16>,
    } else {
    }
    return
  }
  func.func @transform_0(%arg0: i32, %arg1: i32, %arg2: i32) -> (i32, i32) {
    %c0_i32 = arith.constant 0 : i32
    return %arg0, %arg2 : i32, i32
  }
  func.func @transform_1(%arg0: i32, %arg1: i32, %arg2: i32) -> (i32, i32) {
    %c0_i32 = arith.constant 0 : i32
    return %arg2, %arg1 : i32, i32
  }
  func.func @transform_2(%arg0: i32, %arg1: i32, %arg2: i32) -> (i32, i32) {
    %c0_i32 = arith.constant 0 : i32
    %c0_i32_0 = arith.constant 0 : i32
    return %c0_i32, %arg1 : i32, i32
  }
  func.func @transform_3(%arg0: i32, %arg1: i32, %arg2: i32) -> (i32, i32) {
    %c0_i32 = arith.constant 0 : i32
    return %arg0, %arg1 : i32, i32
  }
}

module attributes {stable_mosaic.version = 11 : i64} {
  func.func @_matmul_add_ln_kernel(%arg0: i32, %arg1: i32, %arg2: memref<16x256xbf16, #tpu.memory_space<vmem>>, %arg3: memref<256x256xbf16, #tpu.memory_space<vmem>>, %arg4: memref<1x256xf32, #tpu.memory_space<vmem>>, %arg5: memref<16x256xbf16, #tpu.memory_space<vmem>>, %arg6: memref<1x256xf32, #tpu.memory_space<vmem>>, %arg7: memref<1x256xf32, #tpu.memory_space<vmem>>, %arg8: memref<16x256xbf16, #tpu.memory_space<vmem>>, %arg9: memref<16x256xf32, #tpu.memory_space<vmem>>) attributes {dimension_semantics = [#tpu.dimension_semantics<parallel>, #tpu.dimension_semantics<arbitrary>], iteration_bounds = array<i64: 1, 1>, scalar_prefetch = 0 : i64, scratch_operands = 1 : i64, tpu.core_type = #tpu.core_type<tc>, window_params = [{transform_indices = @transform_0, window_bounds = array<i64: 16, 256>}, {transform_indices = @transform_1, window_bounds = array<i64: 256, 256>}, {pipeline_mode = #tpu.pipeline_mode<synchronous>, transform_indices = @transform_2, window_bounds = array<i64: 1, 256>}, {transform_indices = @transform_3, window_bounds = array<i64: 16, 256>}, {pipeline_mode = #tpu.pipeline_mode<synchronous>, transform_indices = @transform_4, window_bounds = array<i64: 1, 256>}, {pipeline_mode = #tpu.pipeline_mode<synchronous>, transform_indices = @transform_5, window_bounds = array<i64: 1, 256>}, {transform_indices = @transform_6, window_bounds = array<i64: 16, 256>}]} {
    %c0_i32 = arith.constant 0 : i32
    %0 = arith.cmpi eq, %arg1, %c0_i32 : i32
    %1 = arith.extui %0 : i1 to i32
    %c0_i32_0 = arith.constant 0 : i32
    %2 = arith.cmpi ne, %1, %c0_i32_0 : i32
    scf.if %2 {
      %cst_10 = arith.constant 0.000000e+00 : f32
      %12 = vector.broadcast %cst_10 : f32 to vector<16x256xf32>
      %c0_11 = arith.constant 0 : index
      %c0_12 = arith.constant 0 : index
      %13 = vector.load %arg9[%c0_11, %c0_12] : memref<16x256xf32, #tpu.memory_space<vmem>>, vector<16x256xf32>
      tpu.vector_store %arg9[%c0_11, %c0_12], %12 {strides = array<i32>} : memref<16x256xf32, #tpu.memory_space<vmem>>, vector<16x256xf32>,
    } else {
    }
    %c0 = arith.constant 0 : index
    %c0_1 = arith.constant 0 : index
    %3 = vector.load %arg9[%c0, %c0_1] : memref<16x256xf32, #tpu.memory_space<vmem>>, vector<16x256xf32>
    %c0_2 = arith.constant 0 : index
    %c0_3 = arith.constant 0 : index
    %4 = vector.load %arg2[%c0_2, %c0_3] : memref<16x256xbf16, #tpu.memory_space<vmem>>, vector<16x256xbf16>
    %c0_4 = arith.constant 0 : index
    %c0_5 = arith.constant 0 : index
    %5 = vector.load %arg3[%c0_4, %c0_5] : memref<256x256xbf16, #tpu.memory_space<vmem>>, vector<256x256xbf16>
    %cst = arith.constant dense<0.000000e+00> : vector<16x256xf32>
    %6 = tpu.matmul %4, %5, %cst {dimension_numbers = #tpu.dot_dimension_numbers<[1], [0], [0], [1], [0, 0, 1, 1], [], []>} : vector<16x256xbf16>, vector<256x256xbf16>, vector<16x256xf32> -> vector<16x256xf32>
    %7 = arith.addf %3, %6 : vector<16x256xf32>
    %c0_6 = arith.constant 0 : index
    %c0_7 = arith.constant 0 : index
    %8 = vector.load %arg9[%c0_6, %c0_7] : memref<16x256xf32, #tpu.memory_space<vmem>>, vector<16x256xf32>
    tpu.vector_store %arg9[%c0_6, %c0_7], %7 {strides = array<i32>} : memref<16x256xf32, #tpu.memory_space<vmem>>, vector<16x256xf32>,
    %c0_i32_8 = arith.constant 0 : i32
    %9 = arith.cmpi eq, %arg1, %c0_i32_8 : i32
    %10 = arith.extui %9 : i1 to i32
    %c0_i32_9 = arith.constant 0 : i32
    %11 = arith.cmpi ne, %10, %c0_i32_9 : i32
    scf.if %11 {
      %c0_10 = arith.constant 0 : index
      %c0_11 = arith.constant 0 : index
      %12 = vector.load %arg9[%c0_10, %c0_11] : memref<16x256xf32, #tpu.memory_space<vmem>>, vector<16x256xf32>
      %c0_12 = arith.constant 0 : index
      %c0_13 = arith.constant 0 : index
      %13 = vector.load %arg4[%c0_12, %c0_13] : memref<1x256xf32, #tpu.memory_space<vmem>>, vector<1x256xf32>
      %14 = vector.broadcast %13 : vector<1x256xf32> to vector<16x256xf32>
      %15 = arith.addf %12, %14 : vector<16x256xf32>
      %c0_14 = arith.constant 0 : index
      %c0_15 = arith.constant 0 : index
      %16 = vector.load %arg5[%c0_14, %c0_15] : memref<16x256xbf16, #tpu.memory_space<vmem>>, vector<16x256xbf16>
      %17 = arith.extf %16 : vector<16x256xbf16> to vector<16x256xf32>
      %18 = arith.addf %15, %17 : vector<16x256xf32>
      %cst_16 = arith.constant dense<0.000000e+00> : vector<16xf32>
      %19 = vector.multi_reduction <add>, %18, %cst_16 [1] : vector<16x256xf32> to vector<16xf32>
      %20 = vector.shape_cast %19 : vector<16xf32> to vector<16x1xf32>
      %cst_17 = arith.constant 2.560000e+02 : f32
      %21 = vector.broadcast %cst_17 : f32 to vector<16x1xf32>
      %22 = arith.divf %20, %21 : vector<16x1xf32>
      %23 = vector.broadcast %22 : vector<16x1xf32> to vector<16x256xf32>
      %24 = arith.subf %18, %23 : vector<16x256xf32>
      %25 = arith.mulf %24, %24 : vector<16x256xf32>
      %cst_18 = arith.constant dense<0.000000e+00> : vector<16xf32>
      %26 = vector.multi_reduction <add>, %25, %cst_18 [1] : vector<16x256xf32> to vector<16xf32>
      %27 = vector.shape_cast %26 : vector<16xf32> to vector<16x1xf32>
      %cst_19 = arith.constant 2.560000e+02 : f32
      %28 = vector.broadcast %cst_19 : f32 to vector<16x1xf32>
      %29 = arith.divf %27, %28 : vector<16x1xf32>
      %cst_20 = arith.constant 9.99999974E-6 : f32
      %30 = vector.broadcast %cst_20 : f32 to vector<16x1xf32>
      %31 = arith.addf %29, %30 : vector<16x1xf32>
      %32 = math.rsqrt %31 : vector<16x1xf32>
      %33 = vector.broadcast %32 : vector<16x1xf32> to vector<16x256xf32>
      %34 = arith.mulf %24, %33 : vector<16x256xf32>
      %c0_21 = arith.constant 0 : index
      %c0_22 = arith.constant 0 : index
      %35 = vector.load %arg6[%c0_21, %c0_22] : memref<1x256xf32, #tpu.memory_space<vmem>>, vector<1x256xf32>
      %36 = vector.broadcast %35 : vector<1x256xf32> to vector<16x256xf32>
      %37 = arith.mulf %34, %36 : vector<16x256xf32>
      %c0_23 = arith.constant 0 : index
      %c0_24 = arith.constant 0 : index
      %38 = vector.load %arg7[%c0_23, %c0_24] : memref<1x256xf32, #tpu.memory_space<vmem>>, vector<1x256xf32>
      %39 = vector.broadcast %38 : vector<1x256xf32> to vector<16x256xf32>
      %40 = arith.addf %37, %39 : vector<16x256xf32>
      %41 = arith.truncf %40 : vector<16x256xf32> to vector<16x256xbf16>
      %c0_25 = arith.constant 0 : index
      %c0_26 = arith.constant 0 : index
      %42 = vector.load %arg8[%c0_25, %c0_26] : memref<16x256xbf16, #tpu.memory_space<vmem>>, vector<16x256xbf16>
      tpu.vector_store %arg8[%c0_25, %c0_26], %41 {strides = array<i32>} : memref<16x256xbf16, #tpu.memory_space<vmem>>, vector<16x256xbf16>,
    } else {
    }
    return
  }
  func.func @transform_0(%arg0: i32, %arg1: i32) -> (i32, i32) {
    %c0_i32 = arith.constant 0 : i32
    return %arg0, %arg1 : i32, i32
  }
  func.func @transform_1(%arg0: i32, %arg1: i32) -> (i32, i32) {
    %c0_i32 = arith.constant 0 : i32
    %c0_i32_0 = arith.constant 0 : i32
    return %arg1, %c0_i32 : i32, i32
  }
  func.func @transform_2(%arg0: i32, %arg1: i32) -> (i32, i32) {
    %c0_i32 = arith.constant 0 : i32
    %c0_i32_0 = arith.constant 0 : i32
    %c0_i32_1 = arith.constant 0 : i32
    return %c0_i32, %c0_i32_0 : i32, i32
  }
  func.func @transform_3(%arg0: i32, %arg1: i32) -> (i32, i32) {
    %c0_i32 = arith.constant 0 : i32
    %c0_i32_0 = arith.constant 0 : i32
    return %arg0, %c0_i32 : i32, i32
  }
  func.func @transform_4(%arg0: i32, %arg1: i32) -> (i32, i32) {
    %c0_i32 = arith.constant 0 : i32
    %c0_i32_0 = arith.constant 0 : i32
    %c0_i32_1 = arith.constant 0 : i32
    return %c0_i32, %c0_i32_0 : i32, i32
  }
  func.func @transform_5(%arg0: i32, %arg1: i32) -> (i32, i32) {
    %c0_i32 = arith.constant 0 : i32
    %c0_i32_0 = arith.constant 0 : i32
    %c0_i32_1 = arith.constant 0 : i32
    return %c0_i32, %c0_i32_0 : i32, i32
  }
  func.func @transform_6(%arg0: i32, %arg1: i32) -> (i32, i32) {
    %c0_i32 = arith.constant 0 : i32
    %c0_i32_0 = arith.constant 0 : i32
    return %arg0, %c0_i32 : i32, i32
  }
}

module attributes {stable_mosaic.version = 11 : i64} {
  func.func @_flash_mha_kernel(%arg0: i32, %arg1: i32, %arg2: i32, %arg3: i32, %arg4: memref<1x8x128xbf16, #tpu.memory_space<vmem>>, %arg5: memref<1x8x128xbf16, #tpu.memory_space<vmem>>, %arg6: memref<1x8x128xbf16, #tpu.memory_space<vmem>>, %arg7: memref<1x8x128xbf16, #tpu.memory_space<vmem>>, %arg8: memref<8x128xbf16, #tpu.memory_space<vmem>>, %arg9: memref<8x1xf32, #tpu.memory_space<vmem>>, %arg10: memref<8x1xf32, #tpu.memory_space<vmem>>, %arg11: memref<8x128xf32, #tpu.memory_space<vmem>>) attributes {dimension_semantics = [#tpu.dimension_semantics<parallel>, #tpu.dimension_semantics<parallel>, #tpu.dimension_semantics<parallel>, #tpu.dimension_semantics<arbitrary>], iteration_bounds = array<i64: 1, 2, 2, 1>, scalar_prefetch = 0 : i64, scratch_operands = 4 : i64, tpu.core_type = #tpu.core_type<tc>, window_params = [{transform_indices = @transform_0, window_bounds = array<i64: 1, 8, 128>}, {transform_indices = @transform_1, window_bounds = array<i64: 1, 8, 128>}, {transform_indices = @transform_2, window_bounds = array<i64: 1, 8, 128>}, {transform_indices = @transform_3, window_bounds = array<i64: 1, 8, 128>}]} {
    %c0_i32 = arith.constant 0 : i32
    %0 = arith.cmpi eq, %arg3, %c0_i32 : i32
    %1 = arith.extui %0 : i1 to i32
    %c0_i32_0 = arith.constant 0 : i32
    %2 = arith.cmpi ne, %1, %c0_i32_0 : i32
    scf.if %2 {
      %c0 = arith.constant 0 : index
      %c0_5 = arith.constant 0 : index
      %c0_6 = arith.constant 0 : index
      %12 = vector.load %arg4[%c0, %c0_5, %c0_6] : memref<1x8x128xbf16, #tpu.memory_space<vmem>>, vector<1x8x128xbf16>
      %13 = vector.shape_cast %12 : vector<1x8x128xbf16> to vector<8x128xbf16>
      %cst = arith.constant 8.837890e-02 : bf16
      %14 = vector.broadcast %cst : bf16 to vector<8x128xbf16>
      %15 = arith.mulf %13, %14 : vector<8x128xbf16>
      %c0_7 = arith.constant 0 : index
      %c0_8 = arith.constant 0 : index
      %16 = vector.load %arg8[%c0_7, %c0_8] : memref<8x128xbf16, #tpu.memory_space<vmem>>, vector<8x128xbf16>
      tpu.vector_store %arg8[%c0_7, %c0_8], %15 {strides = array<i32>} : memref<8x128xbf16, #tpu.memory_space<vmem>>, vector<8x128xbf16>,
      %cst_9 = arith.constant -1.000000e+30 : f32
      %17 = vector.broadcast %cst_9 : f32 to vector<8x1xf32>
      %c0_10 = arith.constant 0 : index
      %c0_11 = arith.constant 0 : index
      %18 = vector.load %arg9[%c0_10, %c0_11] : memref<8x1xf32, #tpu.memory_space<vmem>>, vector<8x1xf32>
      tpu.vector_store %arg9[%c0_10, %c0_11], %17 {strides = array<i32>} : memref<8x1xf32, #tpu.memory_space<vmem>>, vector<8x1xf32>,
      %cst_12 = arith.constant 0.000000e+00 : f32
      %19 = vector.broadcast %cst_12 : f32 to vector<8x1xf32>
      %c0_13 = arith.constant 0 : index
      %c0_14 = arith.constant 0 : index
      %20 = vector.load %arg10[%c0_13, %c0_14] : memref<8x1xf32, #tpu.memory_space<vmem>>, vector<8x1xf32>
      tpu.vector_store %arg10[%c0_13, %c0_14], %19 {strides = array<i32>} : memref<8x1xf32, #tpu.memory_space<vmem>>, vector<8x1xf32>,
      %cst_15 = arith.constant 0.000000e+00 : f32
      %21 = vector.broadcast %cst_15 : f32 to vector<8x128xf32>
      %c0_16 = arith.constant 0 : index
      %c0_17 = arith.constant 0 : index
      %22 = vector.load %arg11[%c0_16, %c0_17] : memref<8x128xf32, #tpu.memory_space<vmem>>, vector<8x128xf32>
      tpu.vector_store %arg11[%c0_16, %c0_17], %21 {strides = array<i32>} : memref<8x128xf32, #tpu.memory_space<vmem>>, vector<8x128xf32>,
    } else {
    }
    %c8_i32 = arith.constant 8 : i32
    %3 = arith.muli %arg3, %c8_i32 : i32
    %c8_i32_1 = arith.constant 8 : i32
    %4 = arith.muli %arg0, %c8_i32_1 : i32
    %c7_i32 = arith.constant 7 : i32
    %5 = arith.addi %4, %c7_i32 : i32
    %6 = arith.cmpi sle, %3, %5 : i32
    %7 = arith.extui %6 : i1 to i32
    %c0_i32_2 = arith.constant 0 : i32
    %8 = arith.cmpi ne, %7, %c0_i32_2 : i32
    scf.if %8 {
      %c0 = arith.constant 0 : index
      %c0_5 = arith.constant 0 : index
      %12 = vector.load %arg8[%c0, %c0_5] : memref<8x128xbf16, #tpu.memory_space<vmem>>, vector<8x128xbf16>
      %c0_6 = arith.constant 0 : index
      %c0_7 = arith.constant 0 : index
      %c0_8 = arith.constant 0 : index
      %13 = vector.load %arg5[%c0_6, %c0_7, %c0_8] : memref<1x8x128xbf16, #tpu.memory_space<vmem>>, vector<1x8x128xbf16>
      %14 = vector.shape_cast %13 : vector<1x8x128xbf16> to vector<8x128xbf16>
      %cst = arith.constant dense<0.000000e+00> : vector<8x8xf32>
      %15 = tpu.matmul %12, %14, %cst {dimension_numbers = #tpu.dot_dimension_numbers<[1], [1], [0], [0], [0, 0, 1, 0], [], []>} : vector<8x128xbf16>, vector<8x128xbf16>, vector<8x8xf32> -> vector<8x8xf32>
      %c8_i32_9 = arith.constant 8 : i32
      %16 = arith.muli %arg0, %c8_i32_9 : i32
      %17 = tpu.iota {dimensions = array<i32: 0>} : vector<8x8xi32>
      %18 = vector.broadcast %16 : i32 to vector<8x8xi32>
      %19 = arith.addi %18, %17 : vector<8x8xi32>
      %c8_i32_10 = arith.constant 8 : i32
      %20 = arith.muli %arg3, %c8_i32_10 : i32
      %21 = tpu.iota {dimensions = array<i32: 1>} : vector<8x8xi32>
      %22 = vector.broadcast %20 : i32 to vector<8x8xi32>
      %23 = arith.addi %22, %21 : vector<8x8xi32>
      %24 = arith.cmpi sge, %19, %23 : vector<8x8xi32>
      %cst_11 = arith.constant -1.000000e+30 : f32
      %25 = vector.broadcast %cst_11 : f32 to vector<8x8xf32>
      %26 = arith.select %24, %15, %25 : vector<8x8xi1>, vector<8x8xf32>
      %c0_12 = arith.constant 0 : index
      %c0_13 = arith.constant 0 : index
      %27 = vector.load %arg9[%c0_12, %c0_13] : memref<8x1xf32, #tpu.memory_space<vmem>>, vector<8x1xf32>
      %cst_14 = arith.constant dense<0xFF800000> : vector<8xf32>
      %28 = vector.multi_reduction <maximumf>, %26, %cst_14 [1] : vector<8x8xf32> to vector<8xf32>
      %29 = vector.shape_cast %28 : vector<8xf32> to vector<8x1xf32>
      %30 = arith.maximumf %27, %29 : vector<8x1xf32>
      %31 = arith.subf %27, %30 : vector<8x1xf32>
      %32 = math.exp %31 : vector<8x1xf32>
      %33 = vector.broadcast %30 : vector<8x1xf32> to vector<8x8xf32>
      %34 = arith.subf %26, %33 : vector<8x8xf32>
      %35 = math.exp %34 : vector<8x8xf32>
      %c0_15 = arith.constant 0 : index
      %c0_16 = arith.constant 0 : index
      %36 = vector.load %arg10[%c0_15, %c0_16] : memref<8x1xf32, #tpu.memory_space<vmem>>, vector<8x1xf32>
      %37 = arith.mulf %32, %36 : vector<8x1xf32>
      %cst_17 = arith.constant dense<0.000000e+00> : vector<8xf32>
      %38 = vector.multi_reduction <add>, %35, %cst_17 [1] : vector<8x8xf32> to vector<8xf32>
      %39 = vector.shape_cast %38 : vector<8xf32> to vector<8x1xf32>
      %40 = arith.addf %37, %39 : vector<8x1xf32>
      %c0_18 = arith.constant 0 : index
      %c0_19 = arith.constant 0 : index
      %41 = vector.load %arg10[%c0_18, %c0_19] : memref<8x1xf32, #tpu.memory_space<vmem>>, vector<8x1xf32>
      tpu.vector_store %arg10[%c0_18, %c0_19], %40 {strides = array<i32>} : memref<8x1xf32, #tpu.memory_space<vmem>>, vector<8x1xf32>,
      %c0_20 = arith.constant 0 : index
      %c0_21 = arith.constant 0 : index
      %42 = vector.load %arg11[%c0_20, %c0_21] : memref<8x128xf32, #tpu.memory_space<vmem>>, vector<8x128xf32>
      %43 = vector.broadcast %32 : vector<8x1xf32> to vector<8x128xf32>
      %44 = arith.mulf %43, %42 : vector<8x128xf32>
      %45 = arith.truncf %35 : vector<8x8xf32> to vector<8x8xbf16>
      %c0_22 = arith.constant 0 : index
      %c0_23 = arith.constant 0 : index
      %c0_24 = arith.constant 0 : index
      %46 = vector.load %arg6[%c0_22, %c0_23, %c0_24] : memref<1x8x128xbf16, #tpu.memory_space<vmem>>, vector<1x8x128xbf16>
      %47 = vector.shape_cast %46 : vector<1x8x128xbf16> to vector<8x128xbf16>
      %cst_25 = arith.constant dense<0.000000e+00> : vector<8x128xf32>
      %48 = tpu.matmul %45, %47, %cst_25 {dimension_numbers = #tpu.dot_dimension_numbers<[1], [0], [0], [1], [0, 0, 1, 1], [], []>} : vector<8x8xbf16>, vector<8x128xbf16>, vector<8x128xf32> -> vector<8x128xf32>
      %49 = arith.addf %44, %48 : vector<8x128xf32>
      %c0_26 = arith.constant 0 : index
      %c0_27 = arith.constant 0 : index
      %50 = vector.load %arg11[%c0_26, %c0_27] : memref<8x128xf32, #tpu.memory_space<vmem>>, vector<8x128xf32>
      tpu.vector_store %arg11[%c0_26, %c0_27], %49 {strides = array<i32>} : memref<8x128xf32, #tpu.memory_space<vmem>>, vector<8x128xf32>,
      %c0_28 = arith.constant 0 : index
      %c0_29 = arith.constant 0 : index
      %51 = vector.load %arg9[%c0_28, %c0_29] : memref<8x1xf32, #tpu.memory_space<vmem>>, vector<8x1xf32>
      tpu.vector_store %arg9[%c0_28, %c0_29], %30 {strides = array<i32>} : memref<8x1xf32, #tpu.memory_space<vmem>>, vector<8x1xf32>,
    } else {
    }
    %c0_i32_3 = arith.constant 0 : i32
    %9 = arith.cmpi eq, %arg3, %c0_i32_3 : i32
    %10 = arith.extui %9 : i1 to i32
    %c0_i32_4 = arith.constant 0 : i32
    %11 = arith.cmpi ne, %10, %c0_i32_4 : i32
    scf.if %11 {
      %c0 = arith.constant 0 : index
      %c0_5 = arith.constant 0 : index
      %12 = vector.load %arg10[%c0, %c0_5] : memref<8x1xf32, #tpu.memory_space<vmem>>, vector<8x1xf32>
      %13 = tpu.reciprocal %12 {approx = true} : vector<8x1xf32> -> vector<8x1xf32>
      %c0_6 = arith.constant 0 : index
      %c0_7 = arith.constant 0 : index
      %14 = vector.load %arg11[%c0_6, %c0_7] : memref<8x128xf32, #tpu.memory_space<vmem>>, vector<8x128xf32>
      %15 = vector.broadcast %13 : vector<8x1xf32> to vector<8x128xf32>
      %16 = arith.mulf %14, %15 : vector<8x128xf32>
      %17 = arith.truncf %16 : vector<8x128xf32> to vector<8x128xbf16>
      %c0_8 = arith.constant 0 : index
      %c0_9 = arith.constant 0 : index
      %c0_10 = arith.constant 0 : index
      %18 = vector.load %arg7[%c0_8, %c0_9, %c0_10] : memref<1x8x128xbf16, #tpu.memory_space<vmem>>, vector<1x8x128xbf16>
      %19 = vector.shape_cast %18 : vector<1x8x128xbf16> to vector<8x128xbf16>
      %20 = vector.shape_cast %17 : vector<8x128xbf16> to vector<1x8x128xbf16>
      tpu.vector_store %arg7[%c0_8, %c0_9, %c0_10], %20 {strides = array<i32>} : memref<1x8x128xbf16, #tpu.memory_space<vmem>>, vector<1x8x128xbf16>,
    } else {
    }
    return
  }
  func.func @transform_0(%arg0: i32, %arg1: i32, %arg2: i32, %arg3: i32) -> (i32, i32, i32) {
    %c0_i32 = arith.constant 0 : i32
    %0 = arith.addi %c0_i32, %arg2 : i32
    %c0_i32_0 = arith.constant 0 : i32
    return %arg1, %arg0, %0 : i32, i32, i32
  }
  func.func @transform_1(%arg0: i32, %arg1: i32, %arg2: i32, %arg3: i32) -> (i32, i32, i32) {
    %c2_i32 = arith.constant 2 : i32
    %0 = arith.addi %c2_i32, %arg2 : i32
    %c0_i32 = arith.constant 0 : i32
    return %arg1, %arg3, %0 : i32, i32, i32
  }
  func.func @transform_2(%arg0: i32, %arg1: i32, %arg2: i32, %arg3: i32) -> (i32, i32, i32) {
    %c4_i32 = arith.constant 4 : i32
    %0 = arith.addi %c4_i32, %arg2 : i32
    %c0_i32 = arith.constant 0 : i32
    return %arg1, %arg3, %0 : i32, i32, i32
  }
  func.func @transform_3(%arg0: i32, %arg1: i32, %arg2: i32, %arg3: i32) -> (i32, i32, i32) {
    %c0_i32 = arith.constant 0 : i32
    return %arg1, %arg0, %arg2 : i32, i32, i32
  }
}

module attributes {stable_mosaic.version = 11 : i64} {
  func.func @_matmul_bias_kernel(%arg0: i32, %arg1: i32, %arg2: i32, %arg3: memref<16x256xbf16, #tpu.memory_space<vmem>>, %arg4: memref<256x256xbf16, #tpu.memory_space<vmem>>, %arg5: memref<1x256xf32, #tpu.memory_space<vmem>>, %arg6: memref<16x256xbf16, #tpu.memory_space<vmem>>, %arg7: memref<16x256xf32, #tpu.memory_space<vmem>>) attributes {dimension_semantics = [#tpu.dimension_semantics<parallel>, #tpu.dimension_semantics<parallel>, #tpu.dimension_semantics<arbitrary>], iteration_bounds = array<i64: 1, 1, 1>, scalar_prefetch = 0 : i64, scratch_operands = 1 : i64, tpu.core_type = #tpu.core_type<tc>, window_params = [{transform_indices = @transform_0, window_bounds = array<i64: 16, 256>}, {transform_indices = @transform_1, window_bounds = array<i64: 256, 256>}, {transform_indices = @transform_2, window_bounds = array<i64: 1, 256>}, {transform_indices = @transform_3, window_bounds = array<i64: 16, 256>}]} {
    %c0_i32 = arith.constant 0 : i32
    %0 = arith.cmpi eq, %arg2, %c0_i32 : i32
    %1 = arith.extui %0 : i1 to i32
    %c0_i32_0 = arith.constant 0 : i32
    %2 = arith.cmpi ne, %1, %c0_i32_0 : i32
    scf.if %2 {
      %cst_10 = arith.constant 0.000000e+00 : f32
      %12 = vector.broadcast %cst_10 : f32 to vector<16x256xf32>
      %c0_11 = arith.constant 0 : index
      %c0_12 = arith.constant 0 : index
      %13 = vector.load %arg7[%c0_11, %c0_12] : memref<16x256xf32, #tpu.memory_space<vmem>>, vector<16x256xf32>
      tpu.vector_store %arg7[%c0_11, %c0_12], %12 {strides = array<i32>} : memref<16x256xf32, #tpu.memory_space<vmem>>, vector<16x256xf32>,
    } else {
    }
    %c0 = arith.constant 0 : index
    %c0_1 = arith.constant 0 : index
    %3 = vector.load %arg7[%c0, %c0_1] : memref<16x256xf32, #tpu.memory_space<vmem>>, vector<16x256xf32>
    %c0_2 = arith.constant 0 : index
    %c0_3 = arith.constant 0 : index
    %4 = vector.load %arg3[%c0_2, %c0_3] : memref<16x256xbf16, #tpu.memory_space<vmem>>, vector<16x256xbf16>
    %c0_4 = arith.constant 0 : index
    %c0_5 = arith.constant 0 : index
    %5 = vector.load %arg4[%c0_4, %c0_5] : memref<256x256xbf16, #tpu.memory_space<vmem>>, vector<256x256xbf16>
    %cst = arith.constant dense<0.000000e+00> : vector<16x256xf32>
    %6 = tpu.matmul %4, %5, %cst {dimension_numbers = #tpu.dot_dimension_numbers<[1], [0], [0], [1], [0, 0, 1, 1], [], []>} : vector<16x256xbf16>, vector<256x256xbf16>, vector<16x256xf32> -> vector<16x256xf32>
    %7 = arith.addf %3, %6 : vector<16x256xf32>
    %c0_6 = arith.constant 0 : index
    %c0_7 = arith.constant 0 : index
    %8 = vector.load %arg7[%c0_6, %c0_7] : memref<16x256xf32, #tpu.memory_space<vmem>>, vector<16x256xf32>
    tpu.vector_store %arg7[%c0_6, %c0_7], %7 {strides = array<i32>} : memref<16x256xf32, #tpu.memory_space<vmem>>, vector<16x256xf32>,
    %c0_i32_8 = arith.constant 0 : i32
    %9 = arith.cmpi eq, %arg2, %c0_i32_8 : i32
    %10 = arith.extui %9 : i1 to i32
    %c0_i32_9 = arith.constant 0 : i32
    %11 = arith.cmpi ne, %10, %c0_i32_9 : i32
    scf.if %11 {
      %c0_10 = arith.constant 0 : index
      %c0_11 = arith.constant 0 : index
      %12 = vector.load %arg7[%c0_10, %c0_11] : memref<16x256xf32, #tpu.memory_space<vmem>>, vector<16x256xf32>
      %c0_12 = arith.constant 0 : index
      %c0_13 = arith.constant 0 : index
      %13 = vector.load %arg5[%c0_12, %c0_13] : memref<1x256xf32, #tpu.memory_space<vmem>>, vector<1x256xf32>
      %14 = vector.broadcast %13 : vector<1x256xf32> to vector<16x256xf32>
      %15 = arith.addf %12, %14 : vector<16x256xf32>
      %16 = arith.truncf %15 : vector<16x256xf32> to vector<16x256xbf16>
      %c0_14 = arith.constant 0 : index
      %c0_15 = arith.constant 0 : index
      %17 = vector.load %arg6[%c0_14, %c0_15] : memref<16x256xbf16, #tpu.memory_space<vmem>>, vector<16x256xbf16>
      tpu.vector_store %arg6[%c0_14, %c0_15], %16 {strides = array<i32>} : memref<16x256xbf16, #tpu.memory_space<vmem>>, vector<16x256xbf16>,
    } else {
    }
    return
  }
  func.func @transform_0(%arg0: i32, %arg1: i32, %arg2: i32) -> (i32, i32) {
    %c0_i32 = arith.constant 0 : i32
    return %arg0, %arg2 : i32, i32
  }
  func.func @transform_1(%arg0: i32, %arg1: i32, %arg2: i32) -> (i32, i32) {
    %c0_i32 = arith.constant 0 : i32
    return %arg2, %arg1 : i32, i32
  }
  func.func @transform_2(%arg0: i32, %arg1: i32, %arg2: i32) -> (i32, i32) {
    %c0_i32 = arith.constant 0 : i32
    %c0_i32_0 = arith.constant 0 : i32
    return %c0_i32, %arg1 : i32, i32
  }
  func.func @transform_3(%arg0: i32, %arg1: i32, %arg2: i32) -> (i32, i32) {
    %c0_i32 = arith.constant 0 : i32
    return %arg0, %arg1 : i32, i32
  }
}

module attributes {stable_mosaic.version = 11 : i64} {
  func.func @_flash_mha_kernel(%arg0: i32, %arg1: i32, %arg2: i32, %arg3: i32, %arg4: memref<1x8x128xbf16, #tpu.memory_space<vmem>>, %arg5: memref<1x8x128xbf16, #tpu.memory_space<vmem>>, %arg6: memref<1x8x128xbf16, #tpu.memory_space<vmem>>, %arg7: memref<1x8x128xbf16, #tpu.memory_space<vmem>>, %arg8: memref<8x128xbf16, #tpu.memory_space<vmem>>, %arg9: memref<8x1xf32, #tpu.memory_space<vmem>>, %arg10: memref<8x1xf32, #tpu.memory_space<vmem>>, %arg11: memref<8x128xf32, #tpu.memory_space<vmem>>) attributes {dimension_semantics = [#tpu.dimension_semantics<parallel>, #tpu.dimension_semantics<parallel>, #tpu.dimension_semantics<parallel>, #tpu.dimension_semantics<arbitrary>], iteration_bounds = array<i64: 1, 2, 2, 1>, scalar_prefetch = 0 : i64, scratch_operands = 4 : i64, tpu.core_type = #tpu.core_type<tc>, window_params = [{transform_indices = @transform_0, window_bounds = array<i64: 1, 8, 128>}, {transform_indices = @transform_1, window_bounds = array<i64: 1, 8, 128>}, {transform_indices = @transform_2, window_bounds = array<i64: 1, 8, 128>}, {transform_indices = @transform_3, window_bounds = array<i64: 1, 8, 128>}]} {
    %c0_i32 = arith.constant 0 : i32
    %0 = arith.cmpi eq, %arg3, %c0_i32 : i32
    %1 = arith.extui %0 : i1 to i32
    %c0_i32_0 = arith.constant 0 : i32
    %2 = arith.cmpi ne, %1, %c0_i32_0 : i32
    scf.if %2 {
      %c0 = arith.constant 0 : index
      %c0_5 = arith.constant 0 : index
      %c0_6 = arith.constant 0 : index
      %12 = vector.load %arg4[%c0, %c0_5, %c0_6] : memref<1x8x128xbf16, #tpu.memory_space<vmem>>, vector<1x8x128xbf16>
      %13 = vector.shape_cast %12 : vector<1x8x128xbf16> to vector<8x128xbf16>
      %cst = arith.constant 8.837890e-02 : bf16
      %14 = vector.broadcast %cst : bf16 to vector<8x128xbf16>
      %15 = arith.mulf %13, %14 : vector<8x128xbf16>
      %c0_7 = arith.constant 0 : index
      %c0_8 = arith.constant 0 : index
      %16 = vector.load %arg8[%c0_7, %c0_8] : memref<8x128xbf16, #tpu.memory_space<vmem>>, vector<8x128xbf16>
      tpu.vector_store %arg8[%c0_7, %c0_8], %15 {strides = array<i32>} : memref<8x128xbf16, #tpu.memory_space<vmem>>, vector<8x128xbf16>,
      %cst_9 = arith.constant -1.000000e+30 : f32
      %17 = vector.broadcast %cst_9 : f32 to vector<8x1xf32>
      %c0_10 = arith.constant 0 : index
      %c0_11 = arith.constant 0 : index
      %18 = vector.load %arg9[%c0_10, %c0_11] : memref<8x1xf32, #tpu.memory_space<vmem>>, vector<8x1xf32>
      tpu.vector_store %arg9[%c0_10, %c0_11], %17 {strides = array<i32>} : memref<8x1xf32, #tpu.memory_space<vmem>>, vector<8x1xf32>,
      %cst_12 = arith.constant 0.000000e+00 : f32
      %19 = vector.broadcast %cst_12 : f32 to vector<8x1xf32>
      %c0_13 = arith.constant 0 : index
      %c0_14 = arith.constant 0 : index
      %20 = vector.load %arg10[%c0_13, %c0_14] : memref<8x1xf32, #tpu.memory_space<vmem>>, vector<8x1xf32>
      tpu.vector_store %arg10[%c0_13, %c0_14], %19 {strides = array<i32>} : memref<8x1xf32, #tpu.memory_space<vmem>>, vector<8x1xf32>,
      %cst_15 = arith.constant 0.000000e+00 : f32
      %21 = vector.broadcast %cst_15 : f32 to vector<8x128xf32>
      %c0_16 = arith.constant 0 : index
      %c0_17 = arith.constant 0 : index
      %22 = vector.load %arg11[%c0_16, %c0_17] : memref<8x128xf32, #tpu.memory_space<vmem>>, vector<8x128xf32>
      tpu.vector_store %arg11[%c0_16, %c0_17], %21 {strides = array<i32>} : memref<8x128xf32, #tpu.memory_space<vmem>>, vector<8x128xf32>,
    } else {
    }
    %c8_i32 = arith.constant 8 : i32
    %3 = arith.muli %arg3, %c8_i32 : i32
    %c8_i32_1 = arith.constant 8 : i32
    %4 = arith.muli %arg0, %c8_i32_1 : i32
    %c7_i32 = arith.constant 7 : i32
    %5 = arith.addi %4, %c7_i32 : i32
    %6 = arith.cmpi sle, %3, %5 : i32
    %7 = arith.extui %6 : i1 to i32
    %c0_i32_2 = arith.constant 0 : i32
    %8 = arith.cmpi ne, %7, %c0_i32_2 : i32
    scf.if %8 {
      %c0 = arith.constant 0 : index
      %c0_5 = arith.constant 0 : index
      %12 = vector.load %arg8[%c0, %c0_5] : memref<8x128xbf16, #tpu.memory_space<vmem>>, vector<8x128xbf16>
      %c0_6 = arith.constant 0 : index
      %c0_7 = arith.constant 0 : index
      %c0_8 = arith.constant 0 : index
      %13 = vector.load %arg5[%c0_6, %c0_7, %c0_8] : memref<1x8x128xbf16, #tpu.memory_space<vmem>>, vector<1x8x128xbf16>
      %14 = vector.shape_cast %13 : vector<1x8x128xbf16> to vector<8x128xbf16>
      %cst = arith.constant dense<0.000000e+00> : vector<8x8xf32>
      %15 = tpu.matmul %12, %14, %cst {dimension_numbers = #tpu.dot_dimension_numbers<[1], [1], [0], [0], [0, 0, 1, 0], [], []>} : vector<8x128xbf16>, vector<8x128xbf16>, vector<8x8xf32> -> vector<8x8xf32>
      %c8_i32_9 = arith.constant 8 : i32
      %16 = arith.muli %arg0, %c8_i32_9 : i32
      %17 = tpu.iota {dimensions = array<i32: 0>} : vector<8x8xi32>
      %18 = vector.broadcast %16 : i32 to vector<8x8xi32>
      %19 = arith.addi %18, %17 : vector<8x8xi32>
      %c8_i32_10 = arith.constant 8 : i32
      %20 = arith.muli %arg3, %c8_i32_10 : i32
      %21 = tpu.iota {dimensions = array<i32: 1>} : vector<8x8xi32>
      %22 = vector.broadcast %20 : i32 to vector<8x8xi32>
      %23 = arith.addi %22, %21 : vector<8x8xi32>
      %24 = arith.cmpi sge, %19, %23 : vector<8x8xi32>
      %cst_11 = arith.constant -1.000000e+30 : f32
      %25 = vector.broadcast %cst_11 : f32 to vector<8x8xf32>
      %26 = arith.select %24, %15, %25 : vector<8x8xi1>, vector<8x8xf32>
      %c0_12 = arith.constant 0 : index
      %c0_13 = arith.constant 0 : index
      %27 = vector.load %arg9[%c0_12, %c0_13] : memref<8x1xf32, #tpu.memory_space<vmem>>, vector<8x1xf32>
      %cst_14 = arith.constant dense<0xFF800000> : vector<8xf32>
      %28 = vector.multi_reduction <maximumf>, %26, %cst_14 [1] : vector<8x8xf32> to vector<8xf32>
      %29 = vector.shape_cast %28 : vector<8xf32> to vector<8x1xf32>
      %30 = arith.maximumf %27, %29 : vector<8x1xf32>
      %31 = arith.subf %27, %30 : vector<8x1xf32>
      %32 = math.exp %31 : vector<8x1xf32>
      %33 = vector.broadcast %30 : vector<8x1xf32> to vector<8x8xf32>
      %34 = arith.subf %26, %33 : vector<8x8xf32>
      %35 = math.exp %34 : vector<8x8xf32>
      %c0_15 = arith.constant 0 : index
      %c0_16 = arith.constant 0 : index
      %36 = vector.load %arg10[%c0_15, %c0_16] : memref<8x1xf32, #tpu.memory_space<vmem>>, vector<8x1xf32>
      %37 = arith.mulf %32, %36 : vector<8x1xf32>
      %cst_17 = arith.constant dense<0.000000e+00> : vector<8xf32>
      %38 = vector.multi_reduction <add>, %35, %cst_17 [1] : vector<8x8xf32> to vector<8xf32>
      %39 = vector.shape_cast %38 : vector<8xf32> to vector<8x1xf32>
      %40 = arith.addf %37, %39 : vector<8x1xf32>
      %c0_18 = arith.constant 0 : index
      %c0_19 = arith.constant 0 : index
      %41 = vector.load %arg10[%c0_18, %c0_19] : memref<8x1xf32, #tpu.memory_space<vmem>>, vector<8x1xf32>
      tpu.vector_store %arg10[%c0_18, %c0_19], %40 {strides = array<i32>} : memref<8x1xf32, #tpu.memory_space<vmem>>, vector<8x1xf32>,
      %c0_20 = arith.constant 0 : index
      %c0_21 = arith.constant 0 : index
      %42 = vector.load %arg11[%c0_20, %c0_21] : memref<8x128xf32, #tpu.memory_space<vmem>>, vector<8x128xf32>
      %43 = vector.broadcast %32 : vector<8x1xf32> to vector<8x128xf32>
      %44 = arith.mulf %43, %42 : vector<8x128xf32>
      %45 = arith.truncf %35 : vector<8x8xf32> to vector<8x8xbf16>
      %c0_22 = arith.constant 0 : index
      %c0_23 = arith.constant 0 : index
      %c0_24 = arith.constant 0 : index
      %46 = vector.load %arg6[%c0_22, %c0_23, %c0_24] : memref<1x8x128xbf16, #tpu.memory_space<vmem>>, vector<1x8x128xbf16>
      %47 = vector.shape_cast %46 : vector<1x8x128xbf16> to vector<8x128xbf16>
      %cst_25 = arith.constant dense<0.000000e+00> : vector<8x128xf32>
      %48 = tpu.matmul %45, %47, %cst_25 {dimension_numbers = #tpu.dot_dimension_numbers<[1], [0], [0], [1], [0, 0, 1, 1], [], []>} : vector<8x8xbf16>, vector<8x128xbf16>, vector<8x128xf32> -> vector<8x128xf32>
      %49 = arith.addf %44, %48 : vector<8x128xf32>
      %c0_26 = arith.constant 0 : index
      %c0_27 = arith.constant 0 : index
      %50 = vector.load %arg11[%c0_26, %c0_27] : memref<8x128xf32, #tpu.memory_space<vmem>>, vector<8x128xf32>
      tpu.vector_store %arg11[%c0_26, %c0_27], %49 {strides = array<i32>} : memref<8x128xf32, #tpu.memory_space<vmem>>, vector<8x128xf32>,
      %c0_28 = arith.constant 0 : index
      %c0_29 = arith.constant 0 : index
      %51 = vector.load %arg9[%c0_28, %c0_29] : memref<8x1xf32, #tpu.memory_space<vmem>>, vector<8x1xf32>
      tpu.vector_store %arg9[%c0_28, %c0_29], %30 {strides = array<i32>} : memref<8x1xf32, #tpu.memory_space<vmem>>, vector<8x1xf32>,
    } else {
    }
    %c0_i32_3 = arith.constant 0 : i32
    %9 = arith.cmpi eq, %arg3, %c0_i32_3 : i32
    %10 = arith.extui %9 : i1 to i32
    %c0_i32_4 = arith.constant 0 : i32
    %11 = arith.cmpi ne, %10, %c0_i32_4 : i32
    scf.if %11 {
      %c0 = arith.constant 0 : index
      %c0_5 = arith.constant 0 : index
      %12 = vector.load %arg10[%c0, %c0_5] : memref<8x1xf32, #tpu.memory_space<vmem>>, vector<8x1xf32>
      %13 = tpu.reciprocal %12 {approx = true} : vector<8x1xf32> -> vector<8x1xf32>
      %c0_6 = arith.constant 0 : index
      %c0_7 = arith.constant 0 : index
      %14 = vector.load %arg11[%c0_6, %c0_7] : memref<8x128xf32, #tpu.memory_space<vmem>>, vector<8x128xf32>
      %15 = vector.broadcast %13 : vector<8x1xf32> to vector<8x128xf32>
      %16 = arith.mulf %14, %15 : vector<8x128xf32>
      %17 = arith.truncf %16 : vector<8x128xf32> to vector<8x128xbf16>
      %c0_8 = arith.constant 0 : index
      %c0_9 = arith.constant 0 : index
      %c0_10 = arith.constant 0 : index
      %18 = vector.load %arg7[%c0_8, %c0_9, %c0_10] : memref<1x8x128xbf16, #tpu.memory_space<vmem>>, vector<1x8x128xbf16>
      %19 = vector.shape_cast %18 : vector<1x8x128xbf16> to vector<8x128xbf16>
      %20 = vector.shape_cast %17 : vector<8x128xbf16> to vector<1x8x128xbf16>
      tpu.vector_store %arg7[%c0_8, %c0_9, %c0_10], %20 {strides = array<i32>} : memref<1x8x128xbf16, #tpu.memory_space<vmem>>, vector<1x8x128xbf16>,
    } else {
    }
    return
  }
  func.func @transform_0(%arg0: i32, %arg1: i32, %arg2: i32, %arg3: i32) -> (i32, i32, i32) {
    %c0_i32 = arith.constant 0 : i32
    %0 = arith.addi %c0_i32, %arg2 : i32
    %c0_i32_0 = arith.constant 0 : i32
    return %arg1, %arg0, %0 : i32, i32, i32
  }
  func.func @transform_1(%arg0: i32, %arg1: i32, %arg2: i32, %arg3: i32) -> (i32, i32, i32) {
    %c0_i32 = arith.constant 0 : i32
    %0 = arith.addi %c0_i32, %arg2 : i32
    %c0_i32_0 = arith.constant 0 : i32
    return %arg1, %arg3, %0 : i32, i32, i32
  }
  func.func @transform_2(%arg0: i32, %arg1: i32, %arg2: i32, %arg3: i32) -> (i32, i32, i32) {
    %c2_i32 = arith.constant 2 : i32
    %0 = arith.addi %c2_i32, %arg2 : i32
    %c0_i32 = arith.constant 0 : i32
    return %arg1, %arg3, %0 : i32, i32, i32
  }
  func.func @transform_3(%arg0: i32, %arg1: i32, %arg2: i32, %arg3: i32) -> (i32, i32, i32) {
    %c0_i32 = arith.constant 0 : i32
    return %arg1, %arg0, %arg2 : i32, i32, i32
  }
}

module attributes {stable_mosaic.version = 11 : i64} {
  func.func @_matmul_bias_kernel(%arg0: i32, %arg1: i32, %arg2: i32, %arg3: memref<16x256xbf16, #tpu.memory_space<vmem>>, %arg4: memref<256x512xbf16, #tpu.memory_space<vmem>>, %arg5: memref<1x512xf32, #tpu.memory_space<vmem>>, %arg6: memref<16x512xbf16, #tpu.memory_space<vmem>>, %arg7: memref<16x512xf32, #tpu.memory_space<vmem>>) attributes {dimension_semantics = [#tpu.dimension_semantics<parallel>, #tpu.dimension_semantics<parallel>, #tpu.dimension_semantics<arbitrary>], iteration_bounds = array<i64: 1, 1, 1>, scalar_prefetch = 0 : i64, scratch_operands = 1 : i64, tpu.core_type = #tpu.core_type<tc>, window_params = [{transform_indices = @transform_0, window_bounds = array<i64: 16, 256>}, {transform_indices = @transform_1, window_bounds = array<i64: 256, 512>}, {transform_indices = @transform_2, window_bounds = array<i64: 1, 512>}, {transform_indices = @transform_3, window_bounds = array<i64: 16, 512>}]} {
    %c0_i32 = arith.constant 0 : i32
    %0 = arith.cmpi eq, %arg2, %c0_i32 : i32
    %1 = arith.extui %0 : i1 to i32
    %c0_i32_0 = arith.constant 0 : i32
    %2 = arith.cmpi ne, %1, %c0_i32_0 : i32
    scf.if %2 {
      %cst_10 = arith.constant 0.000000e+00 : f32
      %12 = vector.broadcast %cst_10 : f32 to vector<16x512xf32>
      %c0_11 = arith.constant 0 : index
      %c0_12 = arith.constant 0 : index
      %13 = vector.load %arg7[%c0_11, %c0_12] : memref<16x512xf32, #tpu.memory_space<vmem>>, vector<16x512xf32>
      tpu.vector_store %arg7[%c0_11, %c0_12], %12 {strides = array<i32>} : memref<16x512xf32, #tpu.memory_space<vmem>>, vector<16x512xf32>,
    } else {
    }
    %c0 = arith.constant 0 : index
    %c0_1 = arith.constant 0 : index
    %3 = vector.load %arg7[%c0, %c0_1] : memref<16x512xf32, #tpu.memory_space<vmem>>, vector<16x512xf32>
    %c0_2 = arith.constant 0 : index
    %c0_3 = arith.constant 0 : index
    %4 = vector.load %arg3[%c0_2, %c0_3] : memref<16x256xbf16, #tpu.memory_space<vmem>>, vector<16x256xbf16>
    %c0_4 = arith.constant 0 : index
    %c0_5 = arith.constant 0 : index
    %5 = vector.load %arg4[%c0_4, %c0_5] : memref<256x512xbf16, #tpu.memory_space<vmem>>, vector<256x512xbf16>
    %cst = arith.constant dense<0.000000e+00> : vector<16x512xf32>
    %6 = tpu.matmul %4, %5, %cst {dimension_numbers = #tpu.dot_dimension_numbers<[1], [0], [0], [1], [0, 0, 1, 1], [], []>} : vector<16x256xbf16>, vector<256x512xbf16>, vector<16x512xf32> -> vector<16x512xf32>
    %7 = arith.addf %3, %6 : vector<16x512xf32>
    %c0_6 = arith.constant 0 : index
    %c0_7 = arith.constant 0 : index
    %8 = vector.load %arg7[%c0_6, %c0_7] : memref<16x512xf32, #tpu.memory_space<vmem>>, vector<16x512xf32>
    tpu.vector_store %arg7[%c0_6, %c0_7], %7 {strides = array<i32>} : memref<16x512xf32, #tpu.memory_space<vmem>>, vector<16x512xf32>,
    %c0_i32_8 = arith.constant 0 : i32
    %9 = arith.cmpi eq, %arg2, %c0_i32_8 : i32
    %10 = arith.extui %9 : i1 to i32
    %c0_i32_9 = arith.constant 0 : i32
    %11 = arith.cmpi ne, %10, %c0_i32_9 : i32
    scf.if %11 {
      %c0_10 = arith.constant 0 : index
      %c0_11 = arith.constant 0 : index
      %12 = vector.load %arg7[%c0_10, %c0_11] : memref<16x512xf32, #tpu.memory_space<vmem>>, vector<16x512xf32>
      %c0_12 = arith.constant 0 : index
      %c0_13 = arith.constant 0 : index
      %13 = vector.load %arg5[%c0_12, %c0_13] : memref<1x512xf32, #tpu.memory_space<vmem>>, vector<1x512xf32>
      %14 = vector.broadcast %13 : vector<1x512xf32> to vector<16x512xf32>
      %15 = arith.addf %12, %14 : vector<16x512xf32>
      %cst_14 = arith.constant 0.000000e+00 : f32
      %16 = vector.broadcast %cst_14 : f32 to vector<16x512xf32>
      %17 = arith.maximumf %15, %16 : vector<16x512xf32>
      %18 = arith.truncf %17 : vector<16x512xf32> to vector<16x512xbf16>
      %c0_15 = arith.constant 0 : index
      %c0_16 = arith.constant 0 : index
      %19 = vector.load %arg6[%c0_15, %c0_16] : memref<16x512xbf16, #tpu.memory_space<vmem>>, vector<16x512xbf16>
      tpu.vector_store %arg6[%c0_15, %c0_16], %18 {strides = array<i32>} : memref<16x512xbf16, #tpu.memory_space<vmem>>, vector<16x512xbf16>,
    } else {
    }
    return
  }
  func.func @transform_0(%arg0: i32, %arg1: i32, %arg2: i32) -> (i32, i32) {
    %c0_i32 = arith.constant 0 : i32
    return %arg0, %arg2 : i32, i32
  }
  func.func @transform_1(%arg0: i32, %arg1: i32, %arg2: i32) -> (i32, i32) {
    %c0_i32 = arith.constant 0 : i32
    return %arg2, %arg1 : i32, i32
  }
  func.func @transform_2(%arg0: i32, %arg1: i32, %arg2: i32) -> (i32, i32) {
    %c0_i32 = arith.constant 0 : i32
    %c0_i32_0 = arith.constant 0 : i32
    return %c0_i32, %arg1 : i32, i32
  }
  func.func @transform_3(%arg0: i32, %arg1: i32, %arg2: i32) -> (i32, i32) {
    %c0_i32 = arith.constant 0 : i32
    return %arg0, %arg1 : i32, i32
  }
}

module attributes {stable_mosaic.version = 11 : i64} {
  func.func @_matmul_bias_kernel(%arg0: i32, %arg1: i32, %arg2: i32, %arg3: memref<16x256xbf16, #tpu.memory_space<vmem>>, %arg4: memref<256x512xbf16, #tpu.memory_space<vmem>>, %arg5: memref<1x512xf32, #tpu.memory_space<vmem>>, %arg6: memref<16x512xbf16, #tpu.memory_space<vmem>>, %arg7: memref<16x512xf32, #tpu.memory_space<vmem>>) attributes {dimension_semantics = [#tpu.dimension_semantics<parallel>, #tpu.dimension_semantics<parallel>, #tpu.dimension_semantics<arbitrary>], iteration_bounds = array<i64: 1, 1, 1>, scalar_prefetch = 0 : i64, scratch_operands = 1 : i64, tpu.core_type = #tpu.core_type<tc>, window_params = [{transform_indices = @transform_0, window_bounds = array<i64: 16, 256>}, {transform_indices = @transform_1, window_bounds = array<i64: 256, 512>}, {transform_indices = @transform_2, window_bounds = array<i64: 1, 512>}, {transform_indices = @transform_3, window_bounds = array<i64: 16, 512>}]} {
    %c0_i32 = arith.constant 0 : i32
    %0 = arith.cmpi eq, %arg2, %c0_i32 : i32
    %1 = arith.extui %0 : i1 to i32
    %c0_i32_0 = arith.constant 0 : i32
    %2 = arith.cmpi ne, %1, %c0_i32_0 : i32
    scf.if %2 {
      %cst_10 = arith.constant 0.000000e+00 : f32
      %12 = vector.broadcast %cst_10 : f32 to vector<16x512xf32>
      %c0_11 = arith.constant 0 : index
      %c0_12 = arith.constant 0 : index
      %13 = vector.load %arg7[%c0_11, %c0_12] : memref<16x512xf32, #tpu.memory_space<vmem>>, vector<16x512xf32>
      tpu.vector_store %arg7[%c0_11, %c0_12], %12 {strides = array<i32>} : memref<16x512xf32, #tpu.memory_space<vmem>>, vector<16x512xf32>,
    } else {
    }
    %c0 = arith.constant 0 : index
    %c0_1 = arith.constant 0 : index
    %3 = vector.load %arg7[%c0, %c0_1] : memref<16x512xf32, #tpu.memory_space<vmem>>, vector<16x512xf32>
    %c0_2 = arith.constant 0 : index
    %c0_3 = arith.constant 0 : index
    %4 = vector.load %arg3[%c0_2, %c0_3] : memref<16x256xbf16, #tpu.memory_space<vmem>>, vector<16x256xbf16>
    %c0_4 = arith.constant 0 : index
    %c0_5 = arith.constant 0 : index
    %5 = vector.load %arg4[%c0_4, %c0_5] : memref<256x512xbf16, #tpu.memory_space<vmem>>, vector<256x512xbf16>
    %cst = arith.constant dense<0.000000e+00> : vector<16x512xf32>
    %6 = tpu.matmul %4, %5, %cst {dimension_numbers = #tpu.dot_dimension_numbers<[1], [0], [0], [1], [0, 0, 1, 1], [], []>} : vector<16x256xbf16>, vector<256x512xbf16>, vector<16x512xf32> -> vector<16x512xf32>
    %7 = arith.addf %3, %6 : vector<16x512xf32>
    %c0_6 = arith.constant 0 : index
    %c0_7 = arith.constant 0 : index
    %8 = vector.load %arg7[%c0_6, %c0_7] : memref<16x512xf32, #tpu.memory_space<vmem>>, vector<16x512xf32>
    tpu.vector_store %arg7[%c0_6, %c0_7], %7 {strides = array<i32>} : memref<16x512xf32, #tpu.memory_space<vmem>>, vector<16x512xf32>,
    %c0_i32_8 = arith.constant 0 : i32
    %9 = arith.cmpi eq, %arg2, %c0_i32_8 : i32
    %10 = arith.extui %9 : i1 to i32
    %c0_i32_9 = arith.constant 0 : i32
    %11 = arith.cmpi ne, %10, %c0_i32_9 : i32
    scf.if %11 {
      %c0_10 = arith.constant 0 : index
      %c0_11 = arith.constant 0 : index
      %12 = vector.load %arg7[%c0_10, %c0_11] : memref<16x512xf32, #tpu.memory_space<vmem>>, vector<16x512xf32>
      %c0_12 = arith.constant 0 : index
      %c0_13 = arith.constant 0 : index
      %13 = vector.load %arg5[%c0_12, %c0_13] : memref<1x512xf32, #tpu.memory_space<vmem>>, vector<1x512xf32>
      %14 = vector.broadcast %13 : vector<1x512xf32> to vector<16x512xf32>
      %15 = arith.addf %12, %14 : vector<16x512xf32>
      %16 = arith.truncf %15 : vector<16x512xf32> to vector<16x512xbf16>
      %c0_14 = arith.constant 0 : index
      %c0_15 = arith.constant 0 : index
      %17 = vector.load %arg6[%c0_14, %c0_15] : memref<16x512xbf16, #tpu.memory_space<vmem>>, vector<16x512xbf16>
      tpu.vector_store %arg6[%c0_14, %c0_15], %16 {strides = array<i32>} : memref<16x512xbf16, #tpu.memory_space<vmem>>, vector<16x512xbf16>,
    } else {
    }
    return
  }
  func.func @transform_0(%arg0: i32, %arg1: i32, %arg2: i32) -> (i32, i32) {
    %c0_i32 = arith.constant 0 : i32
    return %arg0, %arg2 : i32, i32
  }
  func.func @transform_1(%arg0: i32, %arg1: i32, %arg2: i32) -> (i32, i32) {
    %c0_i32 = arith.constant 0 : i32
    return %arg2, %arg1 : i32, i32
  }
  func.func @transform_2(%arg0: i32, %arg1: i32, %arg2: i32) -> (i32, i32) {
    %c0_i32 = arith.constant 0 : i32
    %c0_i32_0 = arith.constant 0 : i32
    return %c0_i32, %arg1 : i32, i32
  }
  func.func @transform_3(%arg0: i32, %arg1: i32, %arg2: i32) -> (i32, i32) {
    %c0_i32 = arith.constant 0 : i32
    return %arg0, %arg1 : i32, i32
  }
}

module attributes {stable_mosaic.version = 11 : i64} {
  func.func @_matmul_add_ln_kernel(%arg0: i32, %arg1: i32, %arg2: memref<16x512xbf16, #tpu.memory_space<vmem>>, %arg3: memref<512x256xbf16, #tpu.memory_space<vmem>>, %arg4: memref<1x256xf32, #tpu.memory_space<vmem>>, %arg5: memref<16x256xbf16, #tpu.memory_space<vmem>>, %arg6: memref<1x256xf32, #tpu.memory_space<vmem>>, %arg7: memref<1x256xf32, #tpu.memory_space<vmem>>, %arg8: memref<16x256xbf16, #tpu.memory_space<vmem>>, %arg9: memref<16x256xf32, #tpu.memory_space<vmem>>) attributes {dimension_semantics = [#tpu.dimension_semantics<parallel>, #tpu.dimension_semantics<arbitrary>], iteration_bounds = array<i64: 1, 1>, scalar_prefetch = 0 : i64, scratch_operands = 1 : i64, tpu.core_type = #tpu.core_type<tc>, window_params = [{transform_indices = @transform_0, window_bounds = array<i64: 16, 512>}, {transform_indices = @transform_1, window_bounds = array<i64: 512, 256>}, {pipeline_mode = #tpu.pipeline_mode<synchronous>, transform_indices = @transform_2, window_bounds = array<i64: 1, 256>}, {transform_indices = @transform_3, window_bounds = array<i64: 16, 256>}, {pipeline_mode = #tpu.pipeline_mode<synchronous>, transform_indices = @transform_4, window_bounds = array<i64: 1, 256>}, {pipeline_mode = #tpu.pipeline_mode<synchronous>, transform_indices = @transform_5, window_bounds = array<i64: 1, 256>}, {transform_indices = @transform_6, window_bounds = array<i64: 16, 256>}]} {
    %c0_i32 = arith.constant 0 : i32
    %0 = arith.cmpi eq, %arg1, %c0_i32 : i32
    %1 = arith.extui %0 : i1 to i32
    %c0_i32_0 = arith.constant 0 : i32
    %2 = arith.cmpi ne, %1, %c0_i32_0 : i32
    scf.if %2 {
      %cst_10 = arith.constant 0.000000e+00 : f32
      %12 = vector.broadcast %cst_10 : f32 to vector<16x256xf32>
      %c0_11 = arith.constant 0 : index
      %c0_12 = arith.constant 0 : index
      %13 = vector.load %arg9[%c0_11, %c0_12] : memref<16x256xf32, #tpu.memory_space<vmem>>, vector<16x256xf32>
      tpu.vector_store %arg9[%c0_11, %c0_12], %12 {strides = array<i32>} : memref<16x256xf32, #tpu.memory_space<vmem>>, vector<16x256xf32>,
    } else {
    }
    %c0 = arith.constant 0 : index
    %c0_1 = arith.constant 0 : index
    %3 = vector.load %arg9[%c0, %c0_1] : memref<16x256xf32, #tpu.memory_space<vmem>>, vector<16x256xf32>
    %c0_2 = arith.constant 0 : index
    %c0_3 = arith.constant 0 : index
    %4 = vector.load %arg2[%c0_2, %c0_3] : memref<16x512xbf16, #tpu.memory_space<vmem>>, vector<16x512xbf16>
    %c0_4 = arith.constant 0 : index
    %c0_5 = arith.constant 0 : index
    %5 = vector.load %arg3[%c0_4, %c0_5] : memref<512x256xbf16, #tpu.memory_space<vmem>>, vector<512x256xbf16>
    %cst = arith.constant dense<0.000000e+00> : vector<16x256xf32>
    %6 = tpu.matmul %4, %5, %cst {dimension_numbers = #tpu.dot_dimension_numbers<[1], [0], [0], [1], [0, 0, 1, 1], [], []>} : vector<16x512xbf16>, vector<512x256xbf16>, vector<16x256xf32> -> vector<16x256xf32>
    %7 = arith.addf %3, %6 : vector<16x256xf32>
    %c0_6 = arith.constant 0 : index
    %c0_7 = arith.constant 0 : index
    %8 = vector.load %arg9[%c0_6, %c0_7] : memref<16x256xf32, #tpu.memory_space<vmem>>, vector<16x256xf32>
    tpu.vector_store %arg9[%c0_6, %c0_7], %7 {strides = array<i32>} : memref<16x256xf32, #tpu.memory_space<vmem>>, vector<16x256xf32>,
    %c0_i32_8 = arith.constant 0 : i32
    %9 = arith.cmpi eq, %arg1, %c0_i32_8 : i32
    %10 = arith.extui %9 : i1 to i32
    %c0_i32_9 = arith.constant 0 : i32
    %11 = arith.cmpi ne, %10, %c0_i32_9 : i32
    scf.if %11 {
      %c0_10 = arith.constant 0 : index
      %c0_11 = arith.constant 0 : index
      %12 = vector.load %arg9[%c0_10, %c0_11] : memref<16x256xf32, #tpu.memory_space<vmem>>, vector<16x256xf32>
      %c0_12 = arith.constant 0 : index
      %c0_13 = arith.constant 0 : index
      %13 = vector.load %arg4[%c0_12, %c0_13] : memref<1x256xf32, #tpu.memory_space<vmem>>, vector<1x256xf32>
      %14 = vector.broadcast %13 : vector<1x256xf32> to vector<16x256xf32>
      %15 = arith.addf %12, %14 : vector<16x256xf32>
      %c0_14 = arith.constant 0 : index
      %c0_15 = arith.constant 0 : index
      %16 = vector.load %arg5[%c0_14, %c0_15] : memref<16x256xbf16, #tpu.memory_space<vmem>>, vector<16x256xbf16>
      %17 = arith.extf %16 : vector<16x256xbf16> to vector<16x256xf32>
      %18 = arith.addf %15, %17 : vector<16x256xf32>
      %cst_16 = arith.constant dense<0.000000e+00> : vector<16xf32>
      %19 = vector.multi_reduction <add>, %18, %cst_16 [1] : vector<16x256xf32> to vector<16xf32>
      %20 = vector.shape_cast %19 : vector<16xf32> to vector<16x1xf32>
      %cst_17 = arith.constant 2.560000e+02 : f32
      %21 = vector.broadcast %cst_17 : f32 to vector<16x1xf32>
      %22 = arith.divf %20, %21 : vector<16x1xf32>
      %23 = vector.broadcast %22 : vector<16x1xf32> to vector<16x256xf32>
      %24 = arith.subf %18, %23 : vector<16x256xf32>
      %25 = arith.mulf %24, %24 : vector<16x256xf32>
      %cst_18 = arith.constant dense<0.000000e+00> : vector<16xf32>
      %26 = vector.multi_reduction <add>, %25, %cst_18 [1] : vector<16x256xf32> to vector<16xf32>
      %27 = vector.shape_cast %26 : vector<16xf32> to vector<16x1xf32>
      %cst_19 = arith.constant 2.560000e+02 : f32
      %28 = vector.broadcast %cst_19 : f32 to vector<16x1xf32>
      %29 = arith.divf %27, %28 : vector<16x1xf32>
      %cst_20 = arith.constant 9.99999974E-6 : f32
      %30 = vector.broadcast %cst_20 : f32 to vector<16x1xf32>
      %31 = arith.addf %29, %30 : vector<16x1xf32>
      %32 = math.rsqrt %31 : vector<16x1xf32>
      %33 = vector.broadcast %32 : vector<16x1xf32> to vector<16x256xf32>
      %34 = arith.mulf %24, %33 : vector<16x256xf32>
      %c0_21 = arith.constant 0 : index
      %c0_22 = arith.constant 0 : index
      %35 = vector.load %arg6[%c0_21, %c0_22] : memref<1x256xf32, #tpu.memory_space<vmem>>, vector<1x256xf32>
      %36 = vector.broadcast %35 : vector<1x256xf32> to vector<16x256xf32>
      %37 = arith.mulf %34, %36 : vector<16x256xf32>
      %c0_23 = arith.constant 0 : index
      %c0_24 = arith.constant 0 : index
      %38 = vector.load %arg7[%c0_23, %c0_24] : memref<1x256xf32, #tpu.memory_space<vmem>>, vector<1x256xf32>
      %39 = vector.broadcast %38 : vector<1x256xf32> to vector<16x256xf32>
      %40 = arith.addf %37, %39 : vector<16x256xf32>
      %41 = arith.truncf %40 : vector<16x256xf32> to vector<16x256xbf16>
      %c0_25 = arith.constant 0 : index
      %c0_26 = arith.constant 0 : index
      %42 = vector.load %arg8[%c0_25, %c0_26] : memref<16x256xbf16, #tpu.memory_space<vmem>>, vector<16x256xbf16>
      tpu.vector_store %arg8[%c0_25, %c0_26], %41 {strides = array<i32>} : memref<16x256xbf16, #tpu.memory_space<vmem>>, vector<16x256xbf16>,
    } else {
    }
    return
  }
  func.func @transform_0(%arg0: i32, %arg1: i32) -> (i32, i32) {
    %c0_i32 = arith.constant 0 : i32
    return %arg0, %arg1 : i32, i32
  }
  func.func @transform_1(%arg0: i32, %arg1: i32) -> (i32, i32) {
    %c0_i32 = arith.constant 0 : i32
    %c0_i32_0 = arith.constant 0 : i32
    return %arg1, %c0_i32 : i32, i32
  }
  func.func @transform_2(%arg0: i32, %arg1: i32) -> (i32, i32) {
    %c0_i32 = arith.constant 0 : i32
    %c0_i32_0 = arith.constant 0 : i32
    %c0_i32_1 = arith.constant 0 : i32
    return %c0_i32, %c0_i32_0 : i32, i32
  }
  func.func @transform_3(%arg0: i32, %arg1: i32) -> (i32, i32) {
    %c0_i32 = arith.constant 0 : i32
    %c0_i32_0 = arith.constant 0 : i32
    return %arg0, %c0_i32 : i32, i32
  }
  func.func @transform_4(%arg0: i32, %arg1: i32) -> (i32, i32) {
    %c0_i32 = arith.constant 0 : i32
    %c0_i32_0 = arith.constant 0 : i32
    %c0_i32_1 = arith.constant 0 : i32
    return %c0_i32, %c0_i32_0 : i32, i32
  }
  func.func @transform_5(%arg0: i32, %arg1: i32) -> (i32, i32) {
    %c0_i32 = arith.constant 0 : i32
    %c0_i32_0 = arith.constant 0 : i32
    %c0_i32_1 = arith.constant 0 : i32
    return %c0_i32, %c0_i32_0 : i32, i32
  }
  func.func @transform_6(%arg0: i32, %arg1: i32) -> (i32, i32) {
    %c0_i32 = arith.constant 0 : i32
    %c0_i32_0 = arith.constant 0 : i32
    return %arg0, %c0_i32 : i32, i32
  }
}

module attributes {stable_mosaic.version = 11 : i64} {
  func.func @_matmul_bias_kernel(%arg0: i32, %arg1: i32, %arg2: i32, %arg3: memref<16x256xbf16, #tpu.memory_space<vmem>>, %arg4: memref<256x512xbf16, #tpu.memory_space<vmem>>, %arg5: memref<1x512xf32, #tpu.memory_space<vmem>>, %arg6: memref<16x512xf32, #tpu.memory_space<vmem>>, %arg7: memref<16x512xf32, #tpu.memory_space<vmem>>) attributes {dimension_semantics = [#tpu.dimension_semantics<parallel>, #tpu.dimension_semantics<parallel>, #tpu.dimension_semantics<arbitrary>], iteration_bounds = array<i64: 1, 2, 1>, scalar_prefetch = 0 : i64, scratch_operands = 1 : i64, tpu.core_type = #tpu.core_type<tc>, window_params = [{transform_indices = @transform_0, window_bounds = array<i64: 16, 256>}, {transform_indices = @transform_1, window_bounds = array<i64: 256, 512>}, {transform_indices = @transform_2, window_bounds = array<i64: 1, 512>}, {transform_indices = @transform_3, window_bounds = array<i64: 16, 512>}]} {
    %c0_i32 = arith.constant 0 : i32
    %0 = arith.cmpi eq, %arg2, %c0_i32 : i32
    %1 = arith.extui %0 : i1 to i32
    %c0_i32_0 = arith.constant 0 : i32
    %2 = arith.cmpi ne, %1, %c0_i32_0 : i32
    scf.if %2 {
      %cst_10 = arith.constant 0.000000e+00 : f32
      %12 = vector.broadcast %cst_10 : f32 to vector<16x512xf32>
      %c0_11 = arith.constant 0 : index
      %c0_12 = arith.constant 0 : index
      %13 = vector.load %arg7[%c0_11, %c0_12] : memref<16x512xf32, #tpu.memory_space<vmem>>, vector<16x512xf32>
      tpu.vector_store %arg7[%c0_11, %c0_12], %12 {strides = array<i32>} : memref<16x512xf32, #tpu.memory_space<vmem>>, vector<16x512xf32>,
    } else {
    }
    %c0 = arith.constant 0 : index
    %c0_1 = arith.constant 0 : index
    %3 = vector.load %arg7[%c0, %c0_1] : memref<16x512xf32, #tpu.memory_space<vmem>>, vector<16x512xf32>
    %c0_2 = arith.constant 0 : index
    %c0_3 = arith.constant 0 : index
    %4 = vector.load %arg3[%c0_2, %c0_3] : memref<16x256xbf16, #tpu.memory_space<vmem>>, vector<16x256xbf16>
    %c0_4 = arith.constant 0 : index
    %c0_5 = arith.constant 0 : index
    %5 = vector.load %arg4[%c0_4, %c0_5] : memref<256x512xbf16, #tpu.memory_space<vmem>>, vector<256x512xbf16>
    %cst = arith.constant dense<0.000000e+00> : vector<16x512xf32>
    %6 = tpu.matmul %4, %5, %cst {dimension_numbers = #tpu.dot_dimension_numbers<[1], [0], [0], [1], [0, 0, 1, 1], [], []>} : vector<16x256xbf16>, vector<256x512xbf16>, vector<16x512xf32> -> vector<16x512xf32>
    %7 = arith.addf %3, %6 : vector<16x512xf32>
    %c0_6 = arith.constant 0 : index
    %c0_7 = arith.constant 0 : index
    %8 = vector.load %arg7[%c0_6, %c0_7] : memref<16x512xf32, #tpu.memory_space<vmem>>, vector<16x512xf32>
    tpu.vector_store %arg7[%c0_6, %c0_7], %7 {strides = array<i32>} : memref<16x512xf32, #tpu.memory_space<vmem>>, vector<16x512xf32>,
    %c0_i32_8 = arith.constant 0 : i32
    %9 = arith.cmpi eq, %arg2, %c0_i32_8 : i32
    %10 = arith.extui %9 : i1 to i32
    %c0_i32_9 = arith.constant 0 : i32
    %11 = arith.cmpi ne, %10, %c0_i32_9 : i32
    scf.if %11 {
      %c0_10 = arith.constant 0 : index
      %c0_11 = arith.constant 0 : index
      %12 = vector.load %arg7[%c0_10, %c0_11] : memref<16x512xf32, #tpu.memory_space<vmem>>, vector<16x512xf32>
      %c0_12 = arith.constant 0 : index
      %c0_13 = arith.constant 0 : index
      %13 = vector.load %arg5[%c0_12, %c0_13] : memref<1x512xf32, #tpu.memory_space<vmem>>, vector<1x512xf32>
      %14 = vector.broadcast %13 : vector<1x512xf32> to vector<16x512xf32>
      %15 = arith.addf %12, %14 : vector<16x512xf32>
      %c0_14 = arith.constant 0 : index
      %c0_15 = arith.constant 0 : index
      %16 = vector.load %arg6[%c0_14, %c0_15] : memref<16x512xf32, #tpu.memory_space<vmem>>, vector<16x512xf32>
      tpu.vector_store %arg6[%c0_14, %c0_15], %15 {strides = array<i32>} : memref<16x512xf32, #tpu.memory_space<vmem>>, vector<16x512xf32>,
    } else {
    }
    return
  }
  func.func @transform_0(%arg0: i32, %arg1: i32, %arg2: i32) -> (i32, i32) {
    %c0_i32 = arith.constant 0 : i32
    return %arg0, %arg2 : i32, i32
  }
  func.func @transform_1(%arg0: i32, %arg1: i32, %arg2: i32) -> (i32, i32) {
    %c0_i32 = arith.constant 0 : i32
    return %arg2, %arg1 : i32, i32
  }
  func.func @transform_2(%arg0: i32, %arg1: i32, %arg2: i32) -> (i32, i32) {
    %c0_i32 = arith.constant 0 : i32
    %c0_i32_0 = arith.constant 0 : i32
    return %c0_i32, %arg1 : i32, i32
  }
  func.func @transform_3(%arg0: i32, %arg1: i32, %arg2: i32) -> (i32, i32) {
    %c0_i32 = arith.constant 0 : i32
    return %arg0, %arg1 : i32, i32
  }
}

</mosaic_0001>

<llo_original>
// kernel: gpt_like_forward.12
$region0: #{gpt_like_forward.12}
  #allocation0 [shape = 'u32[]', space=smem, size = 0x4, offset = 0x4, fixed_abs, tag = 'smem constant byte address 0x4 - core index']
  #allocation1 [shape = 'u32[144,128]{1,0:T(1,128)}', space=vmem, size = 0x12000, scoped, tag = 'internal scratch']
  #allocation2 [shape = 'f32[16,256]{1,0:T(8,128)}', space=vmem, size = 0x4000, scoped, tag = 'scratch operand']
  %s0 = inlined_call_operand.vmem [shape: bf16[16,256], index: 0, kind: input, shape index: {}]
  %s1 = inlined_call_operand.vmem [shape: bf16[256,256], index: 1, kind: input, shape index: {}]
  %s2 = inlined_call_operand.vmem [shape: f32[1,256], index: 2, kind: input, shape index: {}]
  %s3 = inlined_call_operand.vmem [shape: bf16[16,256], index: 3, kind: input, shape index: {}]
  %s4 = inlined_call_operand.vmem [shape: f32[1,256], index: 4, kind: input, shape index: {}]
  %s5 = inlined_call_operand.vmem [shape: f32[1,256], index: 5, kind: input, shape index: {}]
  %s6 = inlined_call_operand.vmem [shape: bf16[16,256], index: 6, kind: output, shape index: {}]
  %s7 = sld [smem:[#allocation0]]
  $region42: #{gpt_like_forward.12} parent=0
    _
  %s9 = ssub.s32 1, %s7
  %s10 = scalar_select 0, %s9, %s7
  // Predicated region
  $region2: #{gpt_like_forward.12} parent=0 // pred_check
    _
  $region3: #{gpt_like_forward.12} parent=0 // pred_check_branch
    %12 = sbr.rel (0) target = $region5
  $region4: #{gpt_like_forward.12} parent=0 // pred_region
    _
  $region5: #{gpt_like_forward.12} parent=0 // pred_fallthru
    _
  // Predicated region
  $region6: #{gpt_like_forward.12} parent=0 // pred_check
    _
  $region7: #{gpt_like_forward.12} parent=0 // pred_check_branch
    %14 = sbr.rel (0) target = $region9
  $region8: #{gpt_like_forward.12} parent=0 // pred_region
    _
  $region9: #{gpt_like_forward.12} parent=0 // pred_fallthru
    _
  // Predicated region
  $region10: #{gpt_like_forward.12} parent=0 // pred_check
    _
  $region11: #{gpt_like_forward.12} parent=0 // pred_check_branch
    %16 = sbr.rel (0) target = $region13
  $region12: #{gpt_like_forward.12} parent=0 // pred_region
    _
  $region13: #{gpt_like_forward.12} parent=0 // pred_fallthru
    _
  // Predicated region
  $region14: #{gpt_like_forward.12} parent=0 // pred_check
    _
  $region15: #{gpt_like_forward.12} parent=0 // pred_check_branch
    %18 = sbr.rel (0) target = $region17
  $region16: #{gpt_like_forward.12} parent=0 // pred_region
    _
  $region17: #{gpt_like_forward.12} parent=0 // pred_fallthru
    _
  // Predicated region
  $region18: #{gpt_like_forward.12} parent=0 // pred_check
    _
  $region19: #{gpt_like_forward.12} parent=0 // pred_check_branch
    %20 = sbr.rel (0) target = $region21
  $region20: #{gpt_like_forward.12} parent=0 // pred_region
    _
  $region21: #{gpt_like_forward.12} parent=0 // pred_fallthru
    _
  // Predicated region
  $region22: #{gpt_like_forward.12} parent=0 // pred_check
    _
  $region23: #{gpt_like_forward.12} parent=0 // pred_check_branch
    %22 = sbr.rel (0) target = $region25
  $region24: #{gpt_like_forward.12} parent=0 // pred_region
    _
  $region25: #{gpt_like_forward.12} parent=0 // pred_fallthru
    _
  %p23 = scmp.eq.s32.totalorder 0, 0
  // Predicated region
  $region26: #{gpt_like_forward.12} parent=0 // pred_check
    %p24 = pneg %p23
  $region27: #{gpt_like_forward.12} parent=0 // pred_check_branch
    %26 = sbr.rel (%p24) target = $region29
  $region28: #{gpt_like_forward.12} parent=0 // pred_region
    %27 = vst [vmem:[#allocation2] sm:$0xff] 0.0
    %28 = vst [vmem:[#allocation2 + $0x8] sm:$0xff] 0.0
    %29 = vst [vmem:[#allocation2 + $0x10] sm:$0xff] 0.0
    %30 = vst [vmem:[#allocation2 + $0x18] sm:$0xff] 0.0
  $region29: #{gpt_like_forward.12} parent=0 // pred_fallthru
    _
  %v31 = vld [vmem:[#allocation2] sm:$0xff]
  %v32 = vld [vmem:[#allocation2 + $0x8] sm:$0xff]
  %v33 = vld [vmem:[#allocation2 + $0x10] sm:$0xff]
  %v34 = vld [vmem:[#allocation2 + $0x18] sm:$0xff]
  %v35 = vld [vmem:[%s0] sm:$0xff]
  %v36 = vld [vmem:[%s0 + $0x8] sm:$0xff]
  %v37 = vld [vmem:[%s1] sm:$0xff]
  %v38 = vld [vmem:[%s1 + $0x8] sm:$0xff]
  %v39 = vld [vmem:[%s1 + $0x10] sm:$0xff]
  %v40 = vld [vmem:[%s1 + $0x18] sm:$0xff]
  %v41 = vld [vmem:[%s1 + $0x20] sm:$0xff]
  %v42 = vld [vmem:[%s1 + $0x28] sm:$0xff]
  %v43 = vld [vmem:[%s1 + $0x30] sm:$0xff]
  %v44 = vld [vmem:[%s1 + $0x38] sm:$0xff]
  %v45 = vld [vmem:[%s1 + $0x40] sm:$0xff]
  %v46 = vld [vmem:[%s1 + $0x48] sm:$0xff]
  %v47 = vld [vmem:[%s1 + $0x50] sm:$0xff]
  %v48 = vld [vmem:[%s1 + $0x58] sm:$0xff]
  %v49 = vld [vmem:[%s1 + $0x60] sm:$0xff]
  %v50 = vld [vmem:[%s1 + $0x68] sm:$0xff]
  %v51 = vld [vmem:[%s1 + $0x70] sm:$0xff]
  %v52 = vld [vmem:[%s1 + $0x78] sm:$0xff]
  %v53 = vld [vmem:[%s1 + $0x80] sm:$0xff]
  %v54 = vld [vmem:[%s1 + $0x88] sm:$0xff]
  %v55 = vld [vmem:[%s1 + $0x90] sm:$0xff]
  %v56 = vld [vmem:[%s1 + $0x98] sm:$0xff]
  %v57 = vld [vmem:[%s1 + $0xa0] sm:$0xff]
  %v58 = vld [vmem:[%s1 + $0xa8] sm:$0xff]
  %v59 = vld [vmem:[%s1 + $0xb0] sm:$0xff]
  %v60 = vld [vmem:[%s1 + $0xb8] sm:$0xff]
  %v61 = vld [vmem:[%s1 + $0xc0] sm:$0xff]
  %v62 = vld [vmem:[%s1 + $0xc8] sm:$0xff]
  %v63 = vld [vmem:[%s1 + $0xd0] sm:$0xff]
  %v64 = vld [vmem:[%s1 + $0xd8] sm:$0xff]
  %v65 = vld [vmem:[%s1 + $0xe0] sm:$0xff]
  %v66 = vld [vmem:[%s1 + $0xe8] sm:$0xff]
  %v67 = vld [vmem:[%s1 + $0xf0] sm:$0xff]
  %v68 = vld [vmem:[%s1 + $0xf8] sm:$0xff]
  %v71 = vunpack.c.l.b16 %v35
  %v72 = vunpack.c.h.b16 %v35
  %v73 = vunpack.c.l.b16 %v36
  %v74 = vunpack.c.h.b16 %v36
  %v75 = vpack.c.b16 %v73, %v71
  %v76 = vpack.c.b16 %v74, %v72
  %v111 = vunpack.c.l.b16 %v37
  %v112 = vunpack.c.h.b16 %v37
  %v113 = vunpack.c.l.b16 %v38
  %v114 = vunpack.c.h.b16 %v38
  %v115 = vunpack.c.l.b16 %v39
  %v116 = vunpack.c.h.b16 %v39
  %v117 = vunpack.c.l.b16 %v40
  %v118 = vunpack.c.h.b16 %v40
  %v119 = vunpack.c.l.b16 %v41
  %v120 = vunpack.c.h.b16 %v41
  %v121 = vunpack.c.l.b16 %v42
  %v122 = vunpack.c.h.b16 %v42
  %v123 = vunpack.c.l.b16 %v43
  %v124 = vunpack.c.h.b16 %v43
  %v125 = vunpack.c.l.b16 %v44
  %v126 = vunpack.c.h.b16 %v44
  %v127 = vunpack.c.l.b16 %v45
  %v128 = vunpack.c.h.b16 %v45
  %v129 = vunpack.c.l.b16 %v46
  %v130 = vunpack.c.h.b16 %v46
  %v131 = vunpack.c.l.b16 %v47
  %v132 = vunpack.c.h.b16 %v47
  %v133 = vunpack.c.l.b16 %v48
  %v134 = vunpack.c.h.b16 %v48
  %v135 = vunpack.c.l.b16 %v49
  %v136 = vunpack.c.h.b16 %v49
  %v137 = vunpack.c.l.b16 %v50
  %v138 = vunpack.c.h.b16 %v50
  %v139 = vunpack.c.l.b16 %v51
  %v140 = vunpack.c.h.b16 %v51
  %v141 = vunpack.c.l.b16 %v52
  %v142 = vunpack.c.h.b16 %v52
  %v143 = vunpack.c.l.b16 %v53
  %v144 = vunpack.c.h.b16 %v53
  %v145 = vunpack.c.l.b16 %v54
  %v146 = vunpack.c.h.b16 %v54
  %v147 = vunpack.c.l.b16 %v55
  %v148 = vunpack.c.h.b16 %v55
  %v149 = vunpack.c.l.b16 %v56
  %v150 = vunpack.c.h.b16 %v56
  %v151 = vunpack.c.l.b16 %v57
  %v152 = vunpack.c.h.b16 %v57
  %v153 = vunpack.c.l.b16 %v58
  %v154 = vunpack.c.h.b16 %v58
  %v155 = vunpack.c.l.b16 %v59
  %v156 = vunpack.c.h.b16 %v59
  %v157 = vunpack.c.l.b16 %v60
  %v158 = vunpack.c.h.b16 %v60
  %v159 = vunpack.c.l.b16 %v61
  %v160 = vunpack.c.h.b16 %v61
  %v161 = vunpack.c.l.b16 %v62
  %v162 = vunpack.c.h.b16 %v62
  %v163 = vunpack.c.l.b16 %v63
  %v164 = vunpack.c.h.b16 %v63
  %v165 = vunpack.c.l.b16 %v64
  %v166 = vunpack.c.h.b16 %v64
  %v167 = vunpack.c.l.b16 %v65
  %v168 = vunpack.c.h.b16 %v65
  %v169 = vunpack.c.l.b16 %v66
  %v170 = vunpack.c.h.b16 %v66
  %v171 = vunpack.c.l.b16 %v67
  %v172 = vunpack.c.h.b16 %v67
  %v173 = vunpack.c.l.b16 %v68
  %v174 = vunpack.c.h.b16 %v68
  %v175 = vpack.c.b16 %v113, %v111
  %v176 = vpack.c.b16 %v114, %v112
  %v177 = vpack.c.b16 %v117, %v115
  %v178 = vpack.c.b16 %v118, %v116
  %v179 = vpack.c.b16 %v121, %v119
  %v180 = vpack.c.b16 %v122, %v120
  %v181 = vpack.c.b16 %v125, %v123
  %v182 = vpack.c.b16 %v126, %v124
  %v183 = vpack.c.b16 %v129, %v127
  %v184 = vpack.c.b16 %v130, %v128
  %v185 = vpack.c.b16 %v133, %v131
  %v186 = vpack.c.b16 %v134, %v132
  %v187 = vpack.c.b16 %v137, %v135
  %v188 = vpack.c.b16 %v138, %v136
  %v189 = vpack.c.b16 %v141, %v139
  %v190 = vpack.c.b16 %v142, %v140
  %v191 = vpack.c.b16 %v145, %v143
  %v192 = vpack.c.b16 %v146, %v144
  %v193 = vpack.c.b16 %v149, %v147
  %v194 = vpack.c.b16 %v150, %v148
  %v195 = vpack.c.b16 %v153, %v151
  %v196 = vpack.c.b16 %v154, %v152
  %v197 = vpack.c.b16 %v157, %v155
  %v198 = vpack.c.b16 %v158, %v156
  %v199 = vpack.c.b16 %v161, %v159
  %v200 = vpack.c.b16 %v162, %v160
  %v201 = vpack.c.b16 %v165, %v163
  %v202 = vpack.c.b16 %v166, %v164
  %v203 = vpack.c.b16 %v169, %v167
  %v204 = vpack.c.b16 %v170, %v168
  %v205 = vpack.c.b16 %v173, %v171
  %v206 = vpack.c.b16 %v174, %v172
  %239 = vmatprep.subr.bf16.mxu0 %v190
  %240 = vmatpush1.bf16.msra.mxu0 %v189
  %241 = vmatprep.subr.bf16.mxu0 %v188
  %242 = vmatpush1.bf16.msra.mxu0 %v187
  %243 = vmatprep.subr.bf16.mxu0 %v186
  %244 = vmatpush1.bf16.msra.mxu0 %v185
  %245 = vmatprep.subr.bf16.mxu0 %v184
  %246 = vmatpush1.bf16.msra.mxu0 %v183
  %247 = vmatprep.subr.bf16.mxu0 %v182
  %248 = vmatpush1.bf16.msra.mxu0 %v181
  %249 = vmatprep.subr.bf16.mxu0 %v180
  %250 = vmatpush1.bf16.msra.mxu0 %v179
  %251 = vmatprep.subr.bf16.mxu0 %v178
  %252 = vmatpush1.bf16.msra.mxu0 %v177
  %253 = vmatprep.subr.bf16.mxu0 %v176
  %254 = vmatpush1.bf16.msra.mxu0 %v175
  %255 = vmatprep.subr.bf16.mxu0 %v206
  %256 = vmatpush2.bf16.msra.mxu0 %v205
  %257 = vmatprep.subr.bf16.mxu0 %v204
  %258 = vmatpush2.bf16.msra.mxu0 %v203
  %259 = vmatprep.subr.bf16.mxu0 %v202
  %260 = vmatpush2.bf16.msra.mxu0 %v201
  %261 = vmatprep.subr.bf16.mxu0 %v200
  %262 = vmatpush2.bf16.msra.mxu0 %v199
  %263 = vmatprep.subr.bf16.mxu0 %v198
  %264 = vmatpush2.bf16.msra.mxu0 %v197
  %265 = vmatprep.subr.bf16.mxu0 %v196
  %266 = vmatpush2.bf16.msra.mxu0 %v195
  %267 = vmatprep.subr.bf16.mxu0 %v194
  %268 = vmatpush2.bf16.msra.mxu0 %v193
  %269 = vmatprep.subr.bf16.mxu0 %v192
  %270 = vmatpush2.bf16.msra.mxu0 %v191
  %271 = vmatprep.mubr.bf16.mxu0 %v76
  %272 = vmatmul.mubr.bf16.gmra.mxu0 %v75
  %v273 = vpop.f32.mrf.mxu0
  %v274 = vadd.f32 0.0, %v273
  %v275 = vpop.f32.mrf.mxu0
  %v276 = vadd.f32 0.0, %v275
  %v277 = vpop.f32.mrf.mxu0
  %v278 = vadd.f32 0.0, %v277
  %v279 = vpop.f32.mrf.mxu0
  %v280 = vadd.f32 0.0, %v279
  %281 = vdwg.mxu0
  %v282 = vadd.f32 %v31, %v274
  %v283 = vadd.f32 %v32, %v276
  %v284 = vadd.f32 %v33, %v278
  %v285 = vadd.f32 %v34, %v280
  %286 = vst [vmem:[#allocation2] sm:$0xff] %v282
  %287 = vst [vmem:[#allocation2 + $0x8] sm:$0xff] %v283
  %288 = vst [vmem:[#allocation2 + $0x10] sm:$0xff] %v284
  %289 = vst [vmem:[#allocation2 + $0x18] sm:$0xff] %v285
  // Predicated region
  $region30: #{gpt_like_forward.12} parent=0 // pred_check
    %p290 = pneg %p23
  $region31: #{gpt_like_forward.12} parent=0 // pred_check_branch
    %292 = sbr.rel (%p290) target = $region33
  $region32: #{gpt_like_forward.12} parent=0 // pred_region
    %v293 = vld [vmem:[#allocation2] sm:$0xff]
    %v294 = vld [vmem:[#allocation2 + $0x8] sm:$0xff]
    %v295 = vld [vmem:[#allocation2 + $0x10] sm:$0xff]
    %v296 = vld [vmem:[#allocation2 + $0x18] sm:$0xff]
    %v297 = vld [vmem:[%s2] sm:$0x3]
    %v299 = vlaneseq
    %v300 = vshrl.u32 %v299, 7
    %v301 = vsub.s32 0, %v300
    %v302 = vrot.slane %v297, %v301
    %v303 = vlaneseq
    %v304 = vshrl.u32 %v303, 7
    %v305 = vsub.s32 1, %v304
    %v306 = vrot.slane %v297, %v305
    %v309 = vadd.f32 %v293, %v302
    %v310 = vadd.f32 %v294, %v306
    %v311 = vadd.f32 %v295, %v302
    %v312 = vadd.f32 %v296, %v306
    %v313 = vld [vmem:[%s3] sm:$0xff]
    %v314 = vld [vmem:[%s3 + $0x8] sm:$0xff]
    %v315 = vunpack.c.l.bf16 %v313
    %v316 = vunpack.c.h.bf16 %v313
    %v317 = vunpack.c.l.bf16 %v314
    %v318 = vunpack.c.h.bf16 %v314
    %v319 = vadd.f32 %v309, %v315
    %v320 = vadd.f32 %v310, %v316
    %v321 = vadd.f32 %v311, %v317
    %v322 = vadd.f32 %v312, %v318
    %v323 = vadd.f32 %v319, %v320
    %324 = vadd.xlane.f32.xlu0 %v323
    %v325 = vpop.xlane.xlu0 %324
    %v326 = vadd.f32 %v321, %v322
    %327 = vadd.xlane.f32.xlu0 %v326
    %v328 = vpop.xlane.xlu0 %327
    %v329 = vrcp.pop 256.0
    %v330 = vmul.f32 %v325, %v329
    %v331 = vmul.f32 %v328, %v329
    %v332 = vsub.f32 %v319, %v330
    %v333 = vsub.f32 %v320, %v330
    %v334 = vsub.f32 %v321, %v331
    %v335 = vsub.f32 %v322, %v331
    %v336 = vmul.f32 %v332, %v332
    %v337 = vmul.f32 %v333, %v333
    %v338 = vmul.f32 %v334, %v334
    %v339 = vmul.f32 %v335, %v335
    %v340 = vadd.f32 %v336, %v337
    %341 = vadd.xlane.f32.xlu0 %v340
    %v342 = vpop.xlane.xlu0 %341
    %v343 = vadd.f32 %v338, %v339
    %344 = vadd.xlane.f32.xlu0 %v343
    %v345 = vpop.xlane.xlu0 %344
    %v346 = vmul.f32 %v342, %v329
    %v347 = vmul.f32 %v345, %v329
    %v348 = vadd.f32 %v346, 1e-05
    %v349 = vadd.f32 %v347, 1e-05
    %v350 = vrsqrt.pop %v348
    %v351 = vrsqrt.pop %v349
    %v352 = vmul.f32 %v332, %v350
    %v353 = vmul.f32 %v333, %v350
    %v354 = vmul.f32 %v334, %v351
    %v355 = vmul.f32 %v335, %v351
    %v356 = vld [vmem:[%s4] sm:$0x3]
    %v358 = vlaneseq
    %v359 = vshrl.u32 %v358, 7
    %v360 = vsub.s32 0, %v359
    %v361 = vrot.slane %v356, %v360
    %v362 = vlaneseq
    %v363 = vshrl.u32 %v362, 7
    %v364 = vsub.s32 1, %v363
    %v365 = vrot.slane %v356, %v364
    %v368 = vmul.f32 %v352, %v361
    %v369 = vmul.f32 %v353, %v365
    %v370 = vmul.f32 %v354, %v361
    %v371 = vmul.f32 %v355, %v365
    %v372 = vld [vmem:[%s5] sm:$0x3]
    %v374 = vlaneseq
    %v375 = vshrl.u32 %v374, 7
    %v376 = vsub.s32 0, %v375
    %v377 = vrot.slane %v372, %v376
    %v378 = vlaneseq
    %v379 = vshrl.u32 %v378, 7
    %v380 = vsub.s32 1, %v379
    %v381 = vrot.slane %v372, %v380
    %v384 = vadd.f32 %v368, %v377
    %v385 = vadd.f32 %v369, %v381
    %v386 = vadd.f32 %v370, %v377
    %v387 = vadd.f32 %v371, %v381
    %v388 = vpack.c.bf16 %v386, %v384
    %v389 = vpack.c.bf16 %v387, %v385
    %v392 = vunpack.c.l.b16 %v388
    %v393 = vunpack.c.l.b16 %v389
    %v394 = vunpack.c.h.b16 %v388
    %v395 = vunpack.c.h.b16 %v389
    %v396 = vpack.c.b16 %v393, %v392
    %v397 = vpack.c.b16 %v395, %v394
    %400 = vst [vmem:[%s6] sm:$0xff] %v396
    %401 = vst [vmem:[%s6 + $0x8] sm:$0xff] %v397
  $region33: #{gpt_like_forward.12} parent=0 // pred_fallthru
    _
  // Predicated region
  $region34: #{gpt_like_forward.12} parent=0 // pred_check
    _
  $region35: #{gpt_like_forward.12} parent=0 // pred_check_branch
    %403 = sbr.rel (0) target = $region37
  $region36: #{gpt_like_forward.12} parent=0 // pred_region
    _
  $region37: #{gpt_like_forward.12} parent=0 // pred_fallthru
    _
  // Predicated region
  $region38: #{gpt_like_forward.12} parent=0 // pred_check
    _
  $region39: #{gpt_like_forward.12} parent=0 // pred_check_branch
    %405 = sbr.rel (0) target = $region41
  $region40: #{gpt_like_forward.12} parent=0 // pred_region
    _
  $region41: #{gpt_like_forward.12} parent=0 // pred_fallthru
    _

// kernel: gpt_like_forward.10
$region0: #{gpt_like_forward.10}
  #allocation0 [shape = 'u32[]', space=smem, size = 0x4, offset = 0x4, fixed_abs, tag = 'smem constant byte address 0x4 - core index']
  #allocation1 [shape = 'u32[144,128]{1,0:T(1,128)}', space=vmem, size = 0x12000, scoped, tag = 'internal scratch']
  #allocation2 [shape = 'f32[16,384]{1,0:T(8,128)}', space=vmem, size = 0x6000, scoped, tag = 'scratch operand']
  %s0 = inlined_call_operand.vmem [shape: bf16[16,256], index: 0, kind: input, shape index: {}]
  %s1 = inlined_call_operand.hbm [shape: bf16[256,768], index: 1, kind: input, shape index: {}]
  %s2 = inlined_call_operand.vmem [shape: f32[1,768], index: 2, kind: input, shape index: {}]
  %s3 = inlined_call_operand.vmem [shape: bf16[16,768], index: 3, kind: output, shape index: {}]
  %s4 = sld [smem:[#allocation0]]
  $region79: #{gpt_like_forward.10} parent=0
    _
  %s6 = ssub.s32 1, %s4
  %s7 = scalar_select 0, %s6, %s4
  $region1: #{gpt_like_forward.10} parent=0
    #allocation3 [shape = 'u8[393216]{0}', space=vmem, size = 0x60000, scoped, tag = 'input window, operand 1']
    #allocation4 [shape = 's32[2]{0}', space=sflag, size = 0x8, scoped, tag = 'scoped memory for gpt_like_forward.10']
    #allocation5 [shape = 'u8[24576]{0}', space=vmem, size = 0x6000, scoped, tag = 'output window, operand 0']
    %8 = vsyncpa [#allocation4], 0
    %s9 = scalar_lea.sflag [#allocation4], 1
    %10 = vsyncpa %s9, 0
    loop: start=0, step=1, limit=4
    $region2: #{gpt_like_forward.10} parent=1 // loop_pre_header
      _
    $region3: #{gpt_like_forward.10} parent=1 // loop_header
      %s12 = sphi 0, %s16
      %p13 = scmp.ge.s32.totalorder %s12, 4
      %s19 = sphi 0, %s38
      %s20 = sphi 0, %s34
      %s21 = sphi 0, %s30
      %s22 = sphi 0, %s19
      %s23 = sphi 0, %s20
      %s24 = sphi 0, %s21
      %s25 = sphi 0, %s22
      %s26 = sphi 0, %s23
      %s27 = sphi 0, %s24
      %s43 = sphi 0, %s45
      %s46 = sphi 0, %s43
      %s47 = sphi 0, %s46
      %s63 = sphi 0, %s47
      %s71 = sphi 0, %s73
      %s74 = sphi 0, %s71
      %s75 = sphi 0, %s74
      %s91 = sphi 0, %s75
      %s97 = sphi 0, %s99
      %s100 = sphi 0, %s97
      %s101 = sphi 0, %s100
      %s117 = sphi 0, %s101
      %s125 = sphi 0, %s127
      %s128 = sphi 0, %s125
      %s129 = sphi 0, %s128
      %s145 = sphi 0, %s129
    $region4: #{gpt_like_forward.10} parent=1 // loop_header_branch
      %15 = sbr.rel (%p13) target = $region8
    $region5: #{gpt_like_forward.10} parent=1 // loop_body
      %s17 = ssub.s32 %s12, 1
      %s18 = ssub.s32 %s12, 2
      %s28 = sadd.s32 1, %s21
      %p29 = scmp.ge.s32.totalorder %s28, 1
      %s30 = scalar_select %p29, 0, %s28
      %s31 = sadd.s32 1, %s20
      %s32 = scalar_select %p29, %s31, %s20
      %p33 = scmp.ge.s32.totalorder %s32, 2
      %s34 = scalar_select %p33, 0, %s32
      %s35 = sadd.s32 1, %s19
      %s36 = scalar_select %p33, %s35, %s19
      %p37 = scmp.ge.s32.totalorder %s36, 1
      %s38 = scalar_select %p37, 0, %s36
      %s39 = ssub.s32 %s19, %s38
      %s40 = ssub.s32 %s21, %s30
      %s41 = sor.u32 %s39, %s40
      %p42 = scmp.eq.s32.totalorder %s41, 0
      %s44 = sadd.s32 %s43, 1
      %s45 = scalar_select %p42, %s43, %s44
      %p48 = pneg %p42
      %p49 = scmp.eq.s32.totalorder %s12, 1
      %p50 = por %p48, %p49
      %p51 = scmp.ne.s32.totalorder %s43, %s46
      %p52 = scmp.eq.s32.totalorder %s12, 0
      %p53 = por %p51, %p52
      %p54 = scmp.ne.s32.totalorder %s43, %s46
      %p55 = scmp.eq.s32.totalorder %s17, 1
      %p56 = por %p54, %p55
      %p57 = scmp.ne.s32.totalorder %s46, %s47
      %p58 = scmp.eq.s32.totalorder %s17, 0
      %p59 = por %p57, %p58
      %p60 = scmp.ne.s32.totalorder %s46, %s47
      %p61 = scmp.eq.s32.totalorder %s18, 1
      %p62 = por %p60, %p61
      %p64 = scmp.ne.s32.totalorder %s47, %s63
      %p65 = scmp.eq.s32.totalorder %s18, 0
      %p66 = por %p64, %p65
      %s67 = ssub.s32 %s21, %s30
      %s68 = ssub.s32 %s20, %s34
      %s69 = sor.u32 %s67, %s68
      %p70 = scmp.eq.s32.totalorder %s69, 0
      %s72 = sadd.s32 %s71, 1
      %s73 = scalar_select %p70, %s71, %s72
      %p76 = pneg %p70
      %p77 = scmp.eq.s32.totalorder %s12, 1
      %p78 = por %p76, %p77
      %p79 = scmp.ne.s32.totalorder %s71, %s74
      %p80 = scmp.eq.s32.totalorder %s12, 0
      %p81 = por %p79, %p80
      %p82 = scmp.ne.s32.totalorder %s71, %s74
      %p83 = scmp.eq.s32.totalorder %s17, 1
      %p84 = por %p82, %p83
      %p85 = scmp.ne.s32.totalorder %s74, %s75
      %p86 = scmp.eq.s32.totalorder %s17, 0
      %p87 = por %p85, %p86
      %p88 = scmp.ne.s32.totalorder %s74, %s75
      %p89 = scmp.eq.s32.totalorder %s18, 1
      %p90 = por %p88, %p89
      %p92 = scmp.ne.s32.totalorder %s75, %s91
      %p93 = scmp.eq.s32.totalorder %s18, 0
      %p94 = por %p92, %p93
      %s95 = ssub.s32 %s20, %s34
      %p96 = scmp.eq.s32.totalorder %s95, 0
      %s98 = sadd.s32 %s97, 1
      %s99 = scalar_select %p96, %s97, %s98
      %p102 = pneg %p96
      %p103 = scmp.eq.s32.totalorder %s12, 1
      %p104 = por %p102, %p103
      %p105 = scmp.ne.s32.totalorder %s97, %s100
      %p106 = scmp.eq.s32.totalorder %s12, 0
      %p107 = por %p105, %p106
      %p108 = scmp.ne.s32.totalorder %s97, %s100
      %p109 = scmp.eq.s32.totalorder %s17, 1
      %p110 = por %p108, %p109
      %p111 = scmp.ne.s32.totalorder %s100, %s101
      %p112 = scmp.eq.s32.totalorder %s17, 0
      %p113 = por %p111, %p112
      %p114 = scmp.ne.s32.totalorder %s100, %s101
      %p115 = scmp.eq.s32.totalorder %s18, 1
      %p116 = por %p114, %p115
      %p118 = scmp.ne.s32.totalorder %s101, %s117
      %p119 = scmp.eq.s32.totalorder %s18, 0
      %p120 = por %p118, %p119
      %s121 = ssub.s32 %s19, %s38
      %s122 = ssub.s32 %s20, %s34
      %s123 = sor.u32 %s121, %s122
      %p124 = scmp.eq.s32.totalorder %s123, 0
      %s126 = sadd.s32 %s125, 1
      %s127 = scalar_select %p124, %s125, %s126
      %p130 = pneg %p124
      %p131 = scmp.eq.s32.totalorder %s12, 1
      %p132 = por %p130, %p131
      %p133 = scmp.ne.s32.totalorder %s125, %s128
      %p134 = scmp.eq.s32.totalorder %s12, 0
      %p135 = por %p133, %p134
      %p136 = scmp.ne.s32.totalorder %s125, %s128
      %p137 = scmp.eq.s32.totalorder %s17, 1
      %p138 = por %p136, %p137
      %p139 = scmp.ne.s32.totalorder %s128, %s129
      %p140 = scmp.eq.s32.totalorder %s17, 0
      %p141 = por %p139, %p140
      %p142 = scmp.ne.s32.totalorder %s128, %s129
      %p143 = scmp.eq.s32.totalorder %s18, 1
      %p144 = por %p142, %p143
      %p146 = scmp.ne.s32.totalorder %s129, %s145
      %p147 = scmp.eq.s32.totalorder %s18, 0
      %p148 = por %p146, %p147
      %p149 = scmp.le.s32.totalorder 1, %s12
      %p150 = scmp.lt.s32.totalorder %s12, 3
      %p151 = pnand %p149, %p150
      %p152 = pneg %p151
      // Predicated region
      $region9: #{gpt_like_forward.10} parent=5 // pred_check
        _
      $region10: #{gpt_like_forward.10} parent=5 // pred_check_branch
        %154 = sbr.rel (%p151) target = $region12
      $region11: #{gpt_like_forward.10} parent=5 // pred_region
        %s155 = ssub.s32 %s12, 1
        // Predicated region
        $region13: #{gpt_like_forward.10} parent=11 // pred_check
          %p156 = pneg %p59
        $region14: #{gpt_like_forward.10} parent=11 // pred_check_branch
          %158 = sbr.rel (%p156) target = $region16
        $region15: #{gpt_like_forward.10} parent=11 // pred_region
          %s159 = smul.u32 2, %s22
          %s160 = smul.u32 2, %s24
          %p161 = scmp.lt.s32.totalorder %s159, 1
          %s162 = scalar_select %p161, %s159, 1
          %p163 = scmp.lt.s32.totalorder %s160, 1
          %s164 = scalar_select %p163, %s160, 1
          %s165 = smul.addr %s162, 2
          %s166 = sadd.s32 %s164, %s165
          %s167 = smul.addr %s166, 4
          %s168 = scalar_lea.vmem %s0, %s167
          %s169 = smul.u32 2, %s22
          %s170 = smul.u32 2, %s24
        $region16: #{gpt_like_forward.10} parent=11 // pred_fallthru
          _
      $region12: #{gpt_like_forward.10} parent=5 // pred_fallthru
        _
      %p171 = scmp.lt.s32.totalorder %s12, 2
      // Predicated region
      $region17: #{gpt_like_forward.10} parent=5 // pred_check
        %p172 = pneg %p171
      $region18: #{gpt_like_forward.10} parent=5 // pred_check_branch
        %174 = sbr.rel (%p172) target = $region20
      $region19: #{gpt_like_forward.10} parent=5 // pred_region
        // Predicated region
        $region21: #{gpt_like_forward.10} parent=19 // pred_check
          %p175 = pneg %p81
        $region22: #{gpt_like_forward.10} parent=19 // pred_check_branch
          %177 = sbr.rel (%p175) target = $region24
        $region23: #{gpt_like_forward.10} parent=19 // pred_region
          %s178 = sand.u32 %s71, 1
          %s179 = scalar_lea.sflag [#allocation4], %s178
          %s180 = sand.u32 %s71, 1
          %s181 = smul.addr %s180, 384
          %s182 = scalar_lea.vmem [#allocation3], %s181
          %s183 = smul.u32 32, %s21
          %s184 = smul.u32 3, %s20
          %s186 = ssub.s32 6144, 6144
          %187 = vsyncadd %s179, %s186
          %s188 = smul.addr %s183, 6
          %s189 = sadd.s32 %s184, %s188
          %s190 = smul.addr %s189, 64
          %s191 = scalar_lea.hbm %s1, %s190
          %s192 = sshll.u32 %s182, 4
          %s193 = int_to_ptr.vmem [resolvable:$true] %s192
          %198 = dma.hbm_to_vmem [thread:$0]  %s191, 6144, %s193, %s179, 384, 192, 12
        $region24: #{gpt_like_forward.10} parent=19 // pred_fallthru
          _
        // Predicated region
        $region25: #{gpt_like_forward.10} parent=19 // pred_check
          %p199 = pneg %p107
        $region26: #{gpt_like_forward.10} parent=19 // pred_check_branch
          %201 = sbr.rel (%p199) target = $region28
        $region27: #{gpt_like_forward.10} parent=19 // pred_region
          %s202 = smul.u32 3, %s20
          %p203 = scmp.lt.s32.totalorder %s202, 5
          %s204 = scalar_select %p203, %s202, 5
          %s205 = scalar_lea.vmem %s2, %s204
          %s206 = smul.u32 3, %s20
        $region28: #{gpt_like_forward.10} parent=19 // pred_fallthru
          _
      $region20: #{gpt_like_forward.10} parent=5 // pred_fallthru
        _
      %p207 = scmp.le.s32.totalorder 1, %s12
      %p208 = scmp.lt.s32.totalorder %s12, 3
      %p209 = pnand %p207, %p208
      %p210 = pneg %p209
      // Predicated region
      $region29: #{gpt_like_forward.10} parent=5 // pred_check
        _
      $region30: #{gpt_like_forward.10} parent=5 // pred_check_branch
        %212 = sbr.rel (%p209) target = $region32
      $region31: #{gpt_like_forward.10} parent=5 // pred_region
        %s213 = ssub.s32 %s12, 1
        %s214 = sand.u32 %s74, 1
        %s215 = scalar_lea.sflag [#allocation4], %s214
        %s216 = sand.u32 %s74, 1
        %s217 = smul.addr %s216, 384
        %s218 = scalar_lea.vmem [#allocation3], %s217
        // Predicated region
        $region33: #{gpt_like_forward.10} parent=31 // pred_check
          %p219 = pneg %p87
        $region34: #{gpt_like_forward.10} parent=31 // pred_check_branch
          %221 = sbr.rel (%p219) target = $region36
        $region35: #{gpt_like_forward.10} parent=31 // pred_region
          %222 = dma.done %s215, 6144
        $region36: #{gpt_like_forward.10} parent=31 // pred_fallthru
          _
        %s223 = smul.u32 2, %s22
        %s224 = smul.u32 2, %s24
        %p225 = scmp.lt.s32.totalorder %s223, 1
        %s226 = scalar_select %p225, %s223, 1
        %p227 = scmp.lt.s32.totalorder %s224, 1
        %s228 = scalar_select %p227, %s224, 1
        %s229 = smul.addr %s226, 2
        %s230 = sadd.s32 %s228, %s229
        %s231 = smul.addr %s230, 4
        %s232 = scalar_lea.vmem %s0, %s231
        %p233 = pneg %p59
        %p234 = pneg %p56
        %s235 = sand.u32 %s74, 1
        %s236 = scalar_lea.sflag [#allocation4], %s235
        %s237 = sand.u32 %s74, 1
        %s238 = smul.addr %s237, 384
        %s239 = scalar_lea.vmem [#allocation3], %s238
        %p240 = pneg %p87
        %p241 = pneg %p84
        %s242 = smul.u32 3, %s23
        %p243 = scmp.lt.s32.totalorder %s242, 5
        %s244 = scalar_select %p243, %s242, 5
        %s245 = scalar_lea.vmem %s2, %s244
        %p246 = pneg %p113
        %p247 = pneg %p110
        %p248 = pneg %p141
        %p249 = pneg %p138
        %s250 = sand.u32 %s128, 1
        %s251 = sand.u32 %s128, 1
        %s252 = smul.addr %s251, 24
        %s253 = scalar_lea.vmem [#allocation5], %s252
        %s254 = smul.u32 2, %s22
        %s255 = smul.u32 2, %s24
        %p256 = scmp.lt.s32.totalorder %s254, 1
        %s257 = scalar_select %p256, %s254, 1
        %p258 = scmp.lt.s32.totalorder %s255, 1
        %s259 = scalar_select %p258, %s255, 1
        %s260 = smul.addr %s257, 2
        %s261 = sadd.s32 %s259, %s260
        %s262 = smul.addr %s261, 4
        %s263 = scalar_lea.vmem %s0, %s262
        %s264 = smul.u32 2, %s22
        %s265 = smul.u32 2, %s24
        %s266 = smul.u32 32, %s24
        %s267 = smul.u32 3, %s23
        %s268 = smul.u32 3, %s23
        %p269 = scmp.lt.s32.totalorder %s268, 5
        %s270 = scalar_select %p269, %s268, 5
        %s271 = scalar_lea.vmem %s2, %s270
        %s272 = smul.u32 3, %s23
        %s273 = smul.u32 2, %s22
        %s274 = smul.u32 3, %s23
        %p276 = scmp.eq.s32.totalorder %s24, 0
        // Predicated region
        $region37: #{gpt_like_forward.10} parent=31 // pred_check
          %p277 = pneg %p276
        $region38: #{gpt_like_forward.10} parent=31 // pred_check_branch
          %279 = sbr.rel (%p277) target = $region40
        $region39: #{gpt_like_forward.10} parent=31 // pred_region
          %280 = vst [vmem:[#allocation2] sm:$0xff] 0.0
          %281 = vst [vmem:[#allocation2 + $0x8] sm:$0xff] 0.0
          %282 = vst [vmem:[#allocation2 + $0x10] sm:$0xff] 0.0
          %283 = vst [vmem:[#allocation2 + $0x18] sm:$0xff] 0.0
          %284 = vst [vmem:[#allocation2 + $0x20] sm:$0xff] 0.0
          %285 = vst [vmem:[#allocation2 + $0x28] sm:$0xff] 0.0
        $region40: #{gpt_like_forward.10} parent=31 // pred_fallthru
          _
        %v286 = vld [vmem:[#allocation2] sm:$0xff]
        %v287 = vld [vmem:[#allocation2 + $0x8] sm:$0xff]
        %v288 = vld [vmem:[#allocation2 + $0x10] sm:$0xff]
        %v289 = vld [vmem:[#allocation2 + $0x18] sm:$0xff]
        %v290 = vld [vmem:[#allocation2 + $0x20] sm:$0xff]
        %v291 = vld [vmem:[#allocation2 + $0x28] sm:$0xff]
        %v292 = vld [vmem:[%s263] sm:$0xff]
        %v293 = vld [vmem:[%s263 + $0x8] sm:$0xff]
        %v294 = vld [vmem:[%s218] sm:$0xff]
        %v295 = vld [vmem:[%s218 + $0x8] sm:$0xf]
        %v296 = vld [vmem:[%s218 + $0xc] sm:$0xff]
        %v297 = vld [vmem:[%s218 + $0x14] sm:$0xf]
        %v298 = vld [vmem:[%s218 + $0x18] sm:$0xff]
        %v299 = vld [vmem:[%s218 + $0x20] sm:$0xf]
        %v300 = vld [vmem:[%s218 + $0x24] sm:$0xff]
        %v301 = vld [vmem:[%s218 + $0x2c] sm:$0xf]
        %v302 = vld [vmem:[%s218 + $0x30] sm:$0xff]
        %v303 = vld [vmem:[%s218 + $0x38] sm:$0xf]
        %v304 = vld [vmem:[%s218 + $0x3c] sm:$0xff]
        %v305 = vld [vmem:[%s218 + $0x44] sm:$0xf]
        %v306 = vld [vmem:[%s218 + $0x48] sm:$0xff]
        %v307 = vld [vmem:[%s218 + $0x50] sm:$0xf]
        %v308 = vld [vmem:[%s218 + $0x54] sm:$0xff]
        %v309 = vld [vmem:[%s218 + $0x5c] sm:$0xf]
        %v310 = vld [vmem:[%s218 + $0x60] sm:$0xff]
        %v311 = vld [vmem:[%s218 + $0x68] sm:$0xf]
        %v312 = vld [vmem:[%s218 + $0x6c] sm:$0xff]
        %v313 = vld [vmem:[%s218 + $0x74] sm:$0xf]
        %v314 = vld [vmem:[%s218 + $0x78] sm:$0xff]
        %v315 = vld [vmem:[%s218 + $0x80] sm:$0xf]
        %v316 = vld [vmem:[%s218 + $0x84] sm:$0xff]
        %v317 = vld [vmem:[%s218 + $0x8c] sm:$0xf]
        %v318 = vld [vmem:[%s218 + $0x90] sm:$0xff]
        %v319 = vld [vmem:[%s218 + $0x98] sm:$0xf]
        %v320 = vld [vmem:[%s218 + $0x9c] sm:$0xff]
        %v321 = vld [vmem:[%s218 + $0xa4] sm:$0xf]
        %v322 = vld [vmem:[%s218 + $0xa8] sm:$0xff]
        %v323 = vld [vmem:[%s218 + $0xb0] sm:$0xf]
        %v324 = vld [vmem:[%s218 + $0xb4] sm:$0xff]
        %v325 = vld [vmem:[%s218 + $0xbc] sm:$0xf]
        %v326 = vld [vmem:[%s218 + $0xc0] sm:$0xff]
        %v327 = vld [vmem:[%s218 + $0xc8] sm:$0xf]
        %v328 = vld [vmem:[%s218 + $0xcc] sm:$0xff]
        %v329 = vld [vmem:[%s218 + $0xd4] sm:$0xf]
        %v330 = vld [vmem:[%s218 + $0xd8] sm:$0xff]
        %v331 = vld [vmem:[%s218 + $0xe0] sm:$0xf]
        %v332 = vld [vmem:[%s218 + $0xe4] sm:$0xff]
        %v333 = vld [vmem:[%s218 + $0xec] sm:$0xf]
        %v334 = vld [vmem:[%s218 + $0xf0] sm:$0xff]
        %v335 = vld [vmem:[%s218 + $0xf8] sm:$0xf]
        %v336 = vld [vmem:[%s218 + $0xfc] sm:$0xff]
        %v337 = vld [vmem:[%s218 + $0x104] sm:$0xf]
        %v338 = vld [vmem:[%s218 + $0x108] sm:$0xff]
        %v339 = vld [vmem:[%s218 + $0x110] sm:$0xf]
        %v340 = vld [vmem:[%s218 + $0x114] sm:$0xff]
        %v341 = vld [vmem:[%s218 + $0x11c] sm:$0xf]
        %v342 = vld [vmem:[%s218 + $0x120] sm:$0xff]
        %v343 = vld [vmem:[%s218 + $0x128] sm:$0xf]
        %v344 = vld [vmem:[%s218 + $0x12c] sm:$0xff]
        %v345 = vld [vmem:[%s218 + $0x134] sm:$0xf]
        %v346 = vld [vmem:[%s218 + $0x138] sm:$0xff]
        %v347 = vld [vmem:[%s218 + $0x140] sm:$0xf]
        %v348 = vld [vmem:[%s218 + $0x144] sm:$0xff]
        %v349 = vld [vmem:[%s218 + $0x14c] sm:$0xf]
        %v350 = vld [vmem:[%s218 + $0x150] sm:$0xff]
        %v351 = vld [vmem:[%s218 + $0x158] sm:$0xf]
        %v352 = vld [vmem:[%s218 + $0x15c] sm:$0xff]
        %v353 = vld [vmem:[%s218 + $0x164] sm:$0xf]
        %v354 = vld [vmem:[%s218 + $0x168] sm:$0xff]
        %v355 = vld [vmem:[%s218 + $0x170] sm:$0xf]
        %v356 = vld [vmem:[%s218 + $0x174] sm:$0xff]
        %v357 = vld [vmem:[%s218 + $0x17c] sm:$0xf]
        %v360 = vunpack.c.l.b16 %v292
        %v361 = vunpack.c.h.b16 %v292
        %v362 = vunpack.c.l.b16 %v293
        %v363 = vunpack.c.h.b16 %v293
        %v364 = vpack.c.b16 %v362, %v360
        %v365 = vpack.c.b16 %v363, %v361
        %v432 = vunpack.c.l.b16 %v294
        %v433 = vunpack.c.h.b16 %v294
        %v434 = vunpack.c.l.b16 %v295
        %v435 = vunpack.c.l.b16 %v296
        %v436 = vunpack.c.h.b16 %v296
        %v437 = vunpack.c.l.b16 %v297
        %v438 = vunpack.c.l.b16 %v298
        %v439 = vunpack.c.h.b16 %v298
        %v440 = vunpack.c.l.b16 %v299
        %v441 = vunpack.c.l.b16 %v300
        %v442 = vunpack.c.h.b16 %v300
        %v443 = vunpack.c.l.b16 %v301
        %v444 = vunpack.c.l.b16 %v302
        %v445 = vunpack.c.h.b16 %v302
        %v446 = vunpack.c.l.b16 %v303
        %v447 = vunpack.c.l.b16 %v304
        %v448 = vunpack.c.h.b16 %v304
        %v449 = vunpack.c.l.b16 %v305
        %v450 = vunpack.c.l.b16 %v306
        %v451 = vunpack.c.h.b16 %v306
        %v452 = vunpack.c.l.b16 %v307
        %v453 = vunpack.c.l.b16 %v308
        %v454 = vunpack.c.h.b16 %v308
        %v455 = vunpack.c.l.b16 %v309
        %v456 = vunpack.c.l.b16 %v310
        %v457 = vunpack.c.h.b16 %v310
        %v458 = vunpack.c.l.b16 %v311
        %v459 = vunpack.c.l.b16 %v312
        %v460 = vunpack.c.h.b16 %v312
        %v461 = vunpack.c.l.b16 %v313
        %v462 = vunpack.c.l.b16 %v314
        %v463 = vunpack.c.h.b16 %v314
        %v464 = vunpack.c.l.b16 %v315
        %v465 = vunpack.c.l.b16 %v316
        %v466 = vunpack.c.h.b16 %v316
        %v467 = vunpack.c.l.b16 %v317
        %v468 = vunpack.c.l.b16 %v318
        %v469 = vunpack.c.h.b16 %v318
        %v470 = vunpack.c.l.b16 %v319
        %v471 = vunpack.c.l.b16 %v320
        %v472 = vunpack.c.h.b16 %v320
        %v473 = vunpack.c.l.b16 %v321
        %v474 = vunpack.c.l.b16 %v322
        %v475 = vunpack.c.h.b16 %v322
        %v476 = vunpack.c.l.b16 %v323
        %v477 = vunpack.c.l.b16 %v324
        %v478 = vunpack.c.h.b16 %v324
        %v479 = vunpack.c.l.b16 %v325
        %v480 = vunpack.c.l.b16 %v326
        %v481 = vunpack.c.h.b16 %v326
        %v482 = vunpack.c.l.b16 %v327
        %v483 = vunpack.c.l.b16 %v328
        %v484 = vunpack.c.h.b16 %v328
        %v485 = vunpack.c.l.b16 %v329
        %v486 = vunpack.c.l.b16 %v330
        %v487 = vunpack.c.h.b16 %v330
        %v488 = vunpack.c.l.b16 %v331
        %v489 = vunpack.c.l.b16 %v332
        %v490 = vunpack.c.h.b16 %v332
        %v491 = vunpack.c.l.b16 %v333
        %v492 = vunpack.c.l.b16 %v334
        %v493 = vunpack.c.h.b16 %v334
        %v494 = vunpack.c.l.b16 %v335
        %v495 = vunpack.c.l.b16 %v336
        %v496 = vunpack.c.h.b16 %v336
        %v497 = vunpack.c.l.b16 %v337
        %v498 = vunpack.c.l.b16 %v338
        %v499 = vunpack.c.h.b16 %v338
        %v500 = vunpack.c.l.b16 %v339
        %v501 = vunpack.c.l.b16 %v340
        %v502 = vunpack.c.h.b16 %v340
        %v503 = vunpack.c.l.b16 %v341
        %v504 = vunpack.c.l.b16 %v342
        %v505 = vunpack.c.h.b16 %v342
        %v506 = vunpack.c.l.b16 %v343
        %v507 = vunpack.c.l.b16 %v344
        %v508 = vunpack.c.h.b16 %v344
        %v509 = vunpack.c.l.b16 %v345
        %v510 = vunpack.c.l.b16 %v346
        %v511 = vunpack.c.h.b16 %v346
        %v512 = vunpack.c.l.b16 %v347
        %v513 = vunpack.c.l.b16 %v348
        %v514 = vunpack.c.h.b16 %v348
        %v515 = vunpack.c.l.b16 %v349
        %v516 = vunpack.c.l.b16 %v350
        %v517 = vunpack.c.h.b16 %v350
        %v518 = vunpack.c.l.b16 %v351
        %v519 = vunpack.c.l.b16 %v352
        %v520 = vunpack.c.h.b16 %v352
        %v521 = vunpack.c.l.b16 %v353
        %v522 = vunpack.c.l.b16 %v354
        %v523 = vunpack.c.h.b16 %v354
        %v524 = vunpack.c.l.b16 %v355
        %v525 = vunpack.c.l.b16 %v356
        %v526 = vunpack.c.h.b16 %v356
        %v527 = vunpack.c.l.b16 %v357
        %v528 = vpack.c.b16 %v435, %v432
        %v529 = vpack.c.b16 %v436, %v433
        %v530 = vpack.c.b16 %v437, %v434
        %v531 = vpack.c.b16 %v441, %v438
        %v532 = vpack.c.b16 %v442, %v439
        %v533 = vpack.c.b16 %v443, %v440
        %v534 = vpack.c.b16 %v447, %v444
        %v535 = vpack.c.b16 %v448, %v445
        %v536 = vpack.c.b16 %v449, %v446
        %v537 = vpack.c.b16 %v453, %v450
        %v538 = vpack.c.b16 %v454, %v451
        %v539 = vpack.c.b16 %v455, %v452
        %v540 = vpack.c.b16 %v459, %v456
        %v541 = vpack.c.b16 %v460, %v457
        %v542 = vpack.c.b16 %v461, %v458
        %v543 = vpack.c.b16 %v465, %v462
        %v544 = vpack.c.b16 %v466, %v463
        %v545 = vpack.c.b16 %v467, %v464
        %v546 = vpack.c.b16 %v471, %v468
        %v547 = vpack.c.b16 %v472, %v469
        %v548 = vpack.c.b16 %v473, %v470
        %v549 = vpack.c.b16 %v477, %v474
        %v550 = vpack.c.b16 %v478, %v475
        %v551 = vpack.c.b16 %v479, %v476
        %v552 = vpack.c.b16 %v483, %v480
        %v553 = vpack.c.b16 %v484, %v481
        %v554 = vpack.c.b16 %v485, %v482
        %v555 = vpack.c.b16 %v489, %v486
        %v556 = vpack.c.b16 %v490, %v487
        %v557 = vpack.c.b16 %v491, %v488
        %v558 = vpack.c.b16 %v495, %v492
        %v559 = vpack.c.b16 %v496, %v493
        %v560 = vpack.c.b16 %v497, %v494
        %v561 = vpack.c.b16 %v501, %v498
        %v562 = vpack.c.b16 %v502, %v499
        %v563 = vpack.c.b16 %v503, %v500
        %v564 = vpack.c.b16 %v507, %v504
        %v565 = vpack.c.b16 %v508, %v505
        %v566 = vpack.c.b16 %v509, %v506
        %v567 = vpack.c.b16 %v513, %v510
        %v568 = vpack.c.b16 %v514, %v511
        %v569 = vpack.c.b16 %v515, %v512
        %v570 = vpack.c.b16 %v519, %v516
        %v571 = vpack.c.b16 %v520, %v517
        %v572 = vpack.c.b16 %v521, %v518
        %v573 = vpack.c.b16 %v525, %v522
        %v574 = vpack.c.b16 %v526, %v523
        %v575 = vpack.c.b16 %v527, %v524
        %624 = vmatprep.subr.bf16.mxu0 %v550
        %625 = vmatpush1.bf16.msra.mxu0 %v549
        %626 = vmatprep.subr.bf16.mxu0 %v547
        %627 = vmatpush1.bf16.msra.mxu0 %v546
        %628 = vmatprep.subr.bf16.mxu0 %v544
        %629 = vmatpush1.bf16.msra.mxu0 %v543
        %630 = vmatprep.subr.bf16.mxu0 %v541
        %631 = vmatpush1.bf16.msra.mxu0 %v540
        %632 = vmatprep.subr.bf16.mxu0 %v538
        %633 = vmatpush1.bf16.msra.mxu0 %v537
        %634 = vmatprep.subr.bf16.mxu0 %v535
        %635 = vmatpush1.bf16.msra.mxu0 %v534
        %636 = vmatprep.subr.bf16.mxu0 %v532
        %637 = vmatpush1.bf16.msra.mxu0 %v531
        %638 = vmatprep.subr.bf16.mxu0 %v529
        %639 = vmatpush1.bf16.msra.mxu0 %v528
        %640 = vmatprep.subr.bf16.mxu0 %v574
        %641 = vmatpush2.bf16.msra.mxu0 %v573
        %642 = vmatprep.subr.bf16.mxu0 %v571
        %643 = vmatpush2.bf16.msra.mxu0 %v570
        %644 = vmatprep.subr.bf16.mxu0 %v568
        %645 = vmatpush2.bf16.msra.mxu0 %v567
        %646 = vmatprep.subr.bf16.mxu0 %v565
        %647 = vmatpush2.bf16.msra.mxu0 %v564
        %648 = vmatprep.subr.bf16.mxu0 %v562
        %649 = vmatpush2.bf16.msra.mxu0 %v561
        %650 = vmatprep.subr.bf16.mxu0 %v559
        %651 = vmatpush2.bf16.msra.mxu0 %v558
        %652 = vmatprep.subr.bf16.mxu0 %v556
        %653 = vmatpush2.bf16.msra.mxu0 %v555
        %654 = vmatprep.subr.bf16.mxu0 %v553
        %655 = vmatpush2.bf16.msra.mxu0 %v552
        %656 = vmatprep.mubr.bf16.mxu0 %v365
        %657 = vmatmul.mubr.bf16.gmra.mxu0 %v364
        %v658 = vpop.f32.mrf.mxu0
        %v659 = vadd.f32 0.0, %v658
        %v660 = vpop.f32.mrf.mxu0
        %v661 = vadd.f32 0.0, %v660
        %v662 = vpop.f32.mrf.mxu0
        %v663 = vadd.f32 0.0, %v662
        %v664 = vpop.f32.mrf.mxu0
        %v665 = vadd.f32 0.0, %v664
        %666 = vdwg.mxu0
        %667 = vmatprep.subr.bf16.mxu0 0
        %668 = vmatpush1.bf16.msra.mxu0 %v551
        %669 = vmatprep.subr.bf16.mxu0 0
        %670 = vmatpush1.bf16.msra.mxu0 %v548
        %671 = vmatprep.subr.bf16.mxu0 0
        %672 = vmatpush1.bf16.msra.mxu0 %v545
        %673 = vmatprep.subr.bf16.mxu0 0
        %674 = vmatpush1.bf16.msra.mxu0 %v542
        %675 = vmatprep.subr.bf16.mxu0 0
        %676 = vmatpush1.bf16.msra.mxu0 %v539
        %677 = vmatprep.subr.bf16.mxu0 0
        %678 = vmatpush1.bf16.msra.mxu0 %v536
        %679 = vmatprep.subr.bf16.mxu0 0
        %680 = vmatpush1.bf16.msra.mxu0 %v533
        %681 = vmatprep.subr.bf16.mxu0 0
        %682 = vmatpush1.bf16.msra.mxu0 %v530
        %683 = vmatprep.subr.bf16.mxu0 0
        %684 = vmatpush2.bf16.msra.mxu0 %v575
        %685 = vmatprep.subr.bf16.mxu0 0
        %686 = vmatpush2.bf16.msra.mxu0 %v572
        %687 = vmatprep.subr.bf16.mxu0 0
        %688 = vmatpush2.bf16.msra.mxu0 %v569
        %689 = vmatprep.subr.bf16.mxu0 0
        %690 = vmatpush2.bf16.msra.mxu0 %v566
        %691 = vmatprep.subr.bf16.mxu0 0
        %692 = vmatpush2.bf16.msra.mxu0 %v563
        %693 = vmatprep.subr.bf16.mxu0 0
        %694 = vmatpush2.bf16.msra.mxu0 %v560
        %695 = vmatprep.subr.bf16.mxu0 0
        %696 = vmatpush2.bf16.msra.mxu0 %v557
        %697 = vmatprep.subr.bf16.mxu0 0
        %698 = vmatpush2.bf16.msra.mxu0 %v554
        %699 = vmatprep.mubr.bf16.mxu0 %v365
        %700 = vmatmul.mubr.bf16.gmra.mxu0 %v364
        %v701 = vpop.f32.mrf.mxu0
        %v702 = vadd.f32 0.0, %v701
        %v703 = vpop.f32.mrf.mxu0
        %v704 = vpop.f32.mrf.mxu0
        %v705 = vadd.f32 0.0, %v704
        %v706 = vpop.f32.mrf.mxu0
        %707 = vdwg.mxu0
        %v708 = vadd.f32 %v286, %v659
        %v709 = vadd.f32 %v287, %v661
        %v710 = vadd.f32 %v288, %v702
        %v711 = vadd.f32 %v289, %v663
        %v712 = vadd.f32 %v290, %v665
        %v713 = vadd.f32 %v291, %v705
        %714 = vst [vmem:[#allocation2] sm:$0xff] %v708
        %715 = vst [vmem:[#allocation2 + $0x8] sm:$0xff] %v709
        %716 = vst [vmem:[#allocation2 + $0x10] sm:$0xff] %v710
        %717 = vst [vmem:[#allocation2 + $0x18] sm:$0xff] %v711
        %718 = vst [vmem:[#allocation2 + $0x20] sm:$0xff] %v712
        %719 = vst [vmem:[#allocation2 + $0x28] sm:$0xff] %v713
        // Predicated region
        $region41: #{gpt_like_forward.10} parent=31 // pred_check
          %p720 = pneg %p276
        $region42: #{gpt_like_forward.10} parent=31 // pred_check_branch
          %722 = sbr.rel (%p720) target = $region44
        $region43: #{gpt_like_forward.10} parent=31 // pred_region
          %v723 = vld [vmem:[#allocation2] sm:$0xff]
          %v724 = vld [vmem:[#allocation2 + $0x8] sm:$0xff]
          %v725 = vld [vmem:[#allocation2 + $0x10] sm:$0xff]
          %v726 = vld [vmem:[#allocation2 + $0x18] sm:$0xff]
          %v727 = vld [vmem:[#allocation2 + $0x20] sm:$0xff]
          %v728 = vld [vmem:[#allocation2 + $0x28] sm:$0xff]
          %v729 = vld [vmem:[%s271] sm:$0x7]
          %v731 = vlaneseq
          %v732 = vshrl.u32 %v731, 7
          %v733 = vsub.s32 0, %v732
          %v734 = vrot.slane %v729, %v733
          %v735 = vlaneseq
          %v736 = vshrl.u32 %v735, 7
          %v737 = vsub.s32 1, %v736
          %v738 = vrot.slane %v729, %v737
          %v739 = vlaneseq
          %v740 = vshrl.u32 %v739, 7
          %v741 = vsub.s32 2, %v740
          %v742 = vrot.slane %v729, %v741
          %v746 = vadd.f32 %v723, %v734
          %v747 = vadd.f32 %v724, %v738
          %v748 = vadd.f32 %v725, %v742
          %v749 = vadd.f32 %v726, %v734
          %v750 = vadd.f32 %v727, %v738
          %v751 = vadd.f32 %v728, %v742
          %v752 = vpack.c.bf16 %v749, %v746
          %v753 = vpack.c.bf16 %v750, %v747
          %v754 = vpack.c.bf16 %v751, %v748
          %v758 = vunpack.c.l.b16 %v752
          %v759 = vunpack.c.l.b16 %v753
          %v760 = vunpack.c.l.b16 %v754
          %v761 = vunpack.c.h.b16 %v752
          %v762 = vunpack.c.h.b16 %v753
          %v763 = vunpack.c.h.b16 %v754
          %v764 = vpack.c.b16 %v759, %v758
          %v765 = vpack.c.b16 %v760, %v760
          %v766 = vpack.c.b16 %v762, %v761
          %v767 = vpack.c.b16 %v763, %v763
          %772 = vst [vmem:[%s253] sm:$0xff] %v764
          %773 = vst [vmem:[%s253 + $0x8] sm:$0xf] %v765
          %774 = vst [vmem:[%s253 + $0xc] sm:$0xff] %v766
          %775 = vst [vmem:[%s253 + $0x14] sm:$0xf] %v767
        $region44: #{gpt_like_forward.10} parent=31 // pred_fallthru
          _
        %s776 = sand.u32 %s128, 1
        %s777 = sand.u32 %s128, 1
        %s778 = smul.addr %s777, 24
        %s779 = scalar_lea.vmem [#allocation5], %s778
        // Predicated region
        $region45: #{gpt_like_forward.10} parent=31 // pred_check
          %p780 = pneg %p138
        $region46: #{gpt_like_forward.10} parent=31 // pred_check_branch
          %782 = sbr.rel (%p780) target = $region48
        $region47: #{gpt_like_forward.10} parent=31 // pred_region
          %s783 = smul.u32 2, %s22
          %s784 = smul.u32 3, %s23
          %s785 = smul.addr %s783, 6
          %s786 = sadd.s32 %s784, %s785
          %s787 = smul.addr %s786, 4
          %s788 = scalar_lea.vmem %s3, %s787
          // Predicated region
          $region49: #{gpt_like_forward.10} parent=47 // pred_check
            _
          $region50: #{gpt_like_forward.10} parent=47 // pred_check_branch
            %790 = sbr.rel (0) target = $region52
          $region51: #{gpt_like_forward.10} parent=47 // pred_region
            // Predicated region
            $region53: #{gpt_like_forward.10} parent=51 // pred_check
              _
            $region54: #{gpt_like_forward.10} parent=51 // pred_check_branch
              %792 = sbr.rel (0) target = $region56
            $region55: #{gpt_like_forward.10} parent=51 // pred_region
              %s793 = scalar_lea.vmem %s779, 8 [#allocation5]
              %s794 = scalar_lea.vmem %s788, 8
              loop: start=0, step=1, limit=1
              $region57: #{gpt_like_forward.10} parent=55 // loop_pre_header
                _
              $region58: #{gpt_like_forward.10} parent=55 // loop_header
                %s796 = sphi 0, %s800
                %p797 = scmp.ge.s32.totalorder %s796, 1
                %s801 = sphi %s779, %s779
                %s802 = sphi %s788, %s788
              $region59: #{gpt_like_forward.10} parent=55 // loop_header_branch
                %799 = sbr.rel (%p797) target = $region63
              $region60: #{gpt_like_forward.10} parent=55 // loop_body
                %v803 = vld [vmem:[%s801] sm:$0xff]
                %804 = vst [vmem:[%s802] sm:$0xff] %v803
                %v805 = vld [vmem:[%s801 + $0xc] sm:$0xff]
                %806 = vst [vmem:[%s802 + $0x18] sm:$0xff] %v805
              $region61: #{gpt_like_forward.10} parent=55 // loop_footer
                %s800 = sadd.s32 1, %s796
              $region62: #{gpt_like_forward.10} parent=55 // loop_footer_branch
                %795 = sbr.rel target = $region58
              $region63: #{gpt_like_forward.10} parent=55 // loop_exit
                _
              %s808 = ssub.s32 16, 1
              loop: start=0, step=1, limit=1
              $region64: #{gpt_like_forward.10} parent=55 // loop_pre_header
                _
              $region65: #{gpt_like_forward.10} parent=55 // loop_header
                %s810 = sphi 0, %s814
                %p811 = scmp.ge.s32.totalorder %s810, 1
                %s815 = sphi %s793, %s793
                %s816 = sphi %s794, %s794
              $region66: #{gpt_like_forward.10} parent=55 // loop_header_branch
                %813 = sbr.rel (%p811) target = $region70
              $region67: #{gpt_like_forward.10} parent=55 // loop_body
                %v817 = vld [vmem:[%s815] sm:%s808]
                %818 = vst [vmem:[%s816] sm:%s808] %v817
                %v819 = vld [vmem:[%s815 + $0xc] sm:%s808]
                %820 = vst [vmem:[%s816 + $0x18] sm:%s808] %v819
              $region68: #{gpt_like_forward.10} parent=55 // loop_footer
                %s814 = sadd.s32 1, %s810
              $region69: #{gpt_like_forward.10} parent=55 // loop_footer_branch
                %809 = sbr.rel target = $region65
              $region70: #{gpt_like_forward.10} parent=55 // loop_exit
                _
            $region56: #{gpt_like_forward.10} parent=51 // pred_fallthru
              _
          $region52: #{gpt_like_forward.10} parent=47 // pred_fallthru
            _
          %821 = vnop
        $region48: #{gpt_like_forward.10} parent=31 // pred_fallthru
          _
      $region32: #{gpt_like_forward.10} parent=5 // pred_fallthru
        _
      %p822 = scmp.le.s32.totalorder 2, %s12
      // Predicated region
      $region71: #{gpt_like_forward.10} parent=5 // pred_check
        %p823 = pneg %p822
      $region72: #{gpt_like_forward.10} parent=5 // pred_check_branch
        %825 = sbr.rel (%p823) target = $region74
      $region73: #{gpt_like_forward.10} parent=5 // pred_region
        %s826 = ssub.s32 %s12, 2
        // Predicated region
        $region75: #{gpt_like_forward.10} parent=73 // pred_check
          %p827 = pneg %p144
        $region76: #{gpt_like_forward.10} parent=73 // pred_check_branch
          %829 = sbr.rel (%p827) target = $region78
        $region77: #{gpt_like_forward.10} parent=73 // pred_region
          %s830 = sand.u32 %s129, 1
          %s831 = sand.u32 %s129, 1
          %s832 = smul.addr %s831, 24
          %s833 = scalar_lea.vmem [#allocation5], %s832
        $region78: #{gpt_like_forward.10} parent=73 // pred_fallthru
          _
      $region74: #{gpt_like_forward.10} parent=5 // pred_fallthru
        _
    $region6: #{gpt_like_forward.10} parent=1 // loop_footer
      %s16 = sadd.s32 1, %s12
    $region7: #{gpt_like_forward.10} parent=1 // loop_footer_branch
      %11 = sbr.rel target = $region3
    $region8: #{gpt_like_forward.10} parent=1 // loop_exit
      _
    %834 = vsyncpa [#allocation4], 1
    %s835 = scalar_lea.sflag [#allocation4], 1
    %836 = vsyncpa %s835, 1

// kernel: gpt_like_forward.11
$region0: #{gpt_like_forward.11}
  #allocation0 [shape = 'u32[]', space=smem, size = 0x4, offset = 0x4, fixed_abs, tag = 'smem constant byte address 0x4 - core index']
  #allocation1 [shape = 'u32[144,128]{1,0:T(1,128)}', space=vmem, size = 0x12000, scoped, tag = 'internal scratch']
  #allocation2 [shape = 'bf16[8,128]{1,0:T(8,128)(2,1)}', space=vmem, size = 0x800, scoped, tag = 'scratch operand']
  #allocation3 [shape = 'f32[8,1]{1,0:T(8,128)}', space=vmem, size = 0x1000, scoped, tag = 'scratch operand']
  #allocation4 [shape = 'f32[8,1]{1,0:T(8,128)}', space=vmem, size = 0x1000, scoped, tag = 'scratch operand']
  #allocation5 [shape = 'f32[8,128]{1,0:T(8,128)}', space=vmem, size = 0x1000, scoped, tag = 'scratch operand']
  %s0 = inlined_call_operand.vmem [shape: bf16[2,8,768], index: 0, kind: input, shape index: {}, may-alias: {0,1,2}]
  %s1 = inlined_call_operand.vmem [shape: bf16[2,8,768], index: 1, kind: input, shape index: {}, may-alias: {0,1,2}]
  %s2 = inlined_call_operand.vmem [shape: bf16[2,8,768], index: 2, kind: input, shape index: {}, may-alias: {0,1,2}]
  %s3 = inlined_call_operand.vmem [shape: bf16[2,8,256], index: 3, kind: output, shape index: {}]
  %s4 = sld [smem:[#allocation0]]
  $region57: #{gpt_like_forward.11} parent=0
    _
  %s6 = ssub.s32 1, %s4
  %s7 = scalar_select 0, %s6, %s4
  loop: start=0, step=1, limit=6
  $region2: #{gpt_like_forward.11} parent=0 // loop_pre_header
    _
  $region3: #{gpt_like_forward.11} parent=0 // loop_header
    %s9 = sphi 0, %s13
    %p10 = scmp.ge.s32.totalorder %s9, 6
    %s16 = sphi 0, %s42
    %s17 = sphi 0, %s38
    %s18 = sphi 0, %s34
    %s19 = sphi 0, %s30
    %s20 = sphi 0, %s16
    %s21 = sphi 0, %s17
    %s22 = sphi 0, %s18
    %s23 = sphi 0, %s19
    %s24 = sphi 0, %s20
    %s25 = sphi 0, %s21
    %s26 = sphi 0, %s22
    %s27 = sphi 0, %s23
    %s49 = sphi 0, %s51
    %s52 = sphi 0, %s49
    %s53 = sphi 0, %s52
    %s69 = sphi 0, %s53
    %s81 = sphi 0, %s83
    %s84 = sphi 0, %s81
    %s85 = sphi 0, %s84
    %s101 = sphi 0, %s85
    %s113 = sphi 0, %s115
    %s116 = sphi 0, %s113
    %s117 = sphi 0, %s116
    %s133 = sphi 0, %s117
    %s143 = sphi 0, %s145
    %s146 = sphi 0, %s143
    %s147 = sphi 0, %s146
    %s163 = sphi 0, %s147
  $region4: #{gpt_like_forward.11} parent=0 // loop_header_branch
    %12 = sbr.rel (%p10) target = $region8
  $region5: #{gpt_like_forward.11} parent=0 // loop_body
    %s14 = ssub.s32 %s9, 1
    %s15 = ssub.s32 %s9, 2
    %s28 = sadd.s32 1, %s19
    %p29 = scmp.ge.s32.totalorder %s28, 1
    %s30 = scalar_select %p29, 0, %s28
    %s31 = sadd.s32 1, %s18
    %s32 = scalar_select %p29, %s31, %s18
    %p33 = scmp.ge.s32.totalorder %s32, 2
    %s34 = scalar_select %p33, 0, %s32
    %s35 = sadd.s32 1, %s17
    %s36 = scalar_select %p33, %s35, %s17
    %p37 = scmp.ge.s32.totalorder %s36, 2
    %s38 = scalar_select %p37, 0, %s36
    %s39 = sadd.s32 1, %s16
    %s40 = scalar_select %p37, %s39, %s16
    %p41 = scmp.ge.s32.totalorder %s40, 1
    %s42 = scalar_select %p41, 0, %s40
    %s43 = ssub.s32 %s17, %s38
    %s44 = ssub.s32 %s16, %s42
    %s45 = sor.u32 %s43, %s44
    %s46 = ssub.s32 %s18, %s34
    %s47 = sor.u32 %s45, %s46
    %p48 = scmp.eq.s32.totalorder %s47, 0
    %s50 = sadd.s32 %s49, 1
    %s51 = scalar_select %p48, %s49, %s50
    %p54 = pneg %p48
    %p55 = scmp.eq.s32.totalorder %s9, 3
    %p56 = por %p54, %p55
    %p57 = scmp.ne.s32.totalorder %s49, %s52
    %p58 = scmp.eq.s32.totalorder %s9, 0
    %p59 = por %p57, %p58
    %p60 = scmp.ne.s32.totalorder %s49, %s52
    %p61 = scmp.eq.s32.totalorder %s14, 3
    %p62 = por %p60, %p61
    %p63 = scmp.ne.s32.totalorder %s52, %s53
    %p64 = scmp.eq.s32.totalorder %s14, 0
    %p65 = por %p63, %p64
    %p66 = scmp.ne.s32.totalorder %s52, %s53
    %p67 = scmp.eq.s32.totalorder %s15, 3
    %p68 = por %p66, %p67
    %p70 = scmp.ne.s32.totalorder %s53, %s69
    %p71 = scmp.eq.s32.totalorder %s15, 0
    %p72 = por %p70, %p71
    %s73 = sadd.s32 %s18, 2
    %s74 = sadd.s32 %s34, 2
    %s75 = ssub.s32 %s17, %s38
    %s76 = ssub.s32 %s19, %s30
    %s77 = sor.u32 %s75, %s76
    %s78 = ssub.s32 %s73, %s74
    %s79 = sor.u32 %s77, %s78
    %p80 = scmp.eq.s32.totalorder %s79, 0
    %s82 = sadd.s32 %s81, 1
    %s83 = scalar_select %p80, %s81, %s82
    %p86 = pneg %p80
    %p87 = scmp.eq.s32.totalorder %s9, 3
    %p88 = por %p86, %p87
    %p89 = scmp.ne.s32.totalorder %s81, %s84
    %p90 = scmp.eq.s32.totalorder %s9, 0
    %p91 = por %p89, %p90
    %p92 = scmp.ne.s32.totalorder %s81, %s84
    %p93 = scmp.eq.s32.totalorder %s14, 3
    %p94 = por %p92, %p93
    %p95 = scmp.ne.s32.totalorder %s84, %s85
    %p96 = scmp.eq.s32.totalorder %s14, 0
    %p97 = por %p95, %p96
    %p98 = scmp.ne.s32.totalorder %s84, %s85
    %p99 = scmp.eq.s32.totalorder %s15, 3
    %p100 = por %p98, %p99
    %p102 = scmp.ne.s32.totalorder %s85, %s101
    %p103 = scmp.eq.s32.totalorder %s15, 0
    %p104 = por %p102, %p103
    %s105 = sadd.s32 %s18, 4
    %s106 = sadd.s32 %s34, 4
    %s107 = ssub.s32 %s17, %s38
    %s108 = ssub.s32 %s19, %s30
    %s109 = sor.u32 %s107, %s108
    %s110 = ssub.s32 %s105, %s106
    %s111 = sor.u32 %s109, %s110
    %p112 = scmp.eq.s32.totalorder %s111, 0
    %s114 = sadd.s32 %s113, 1
    %s115 = scalar_select %p112, %s113, %s114
    %p118 = pneg %p112
    %p119 = scmp.eq.s32.totalorder %s9, 3
    %p120 = por %p118, %p119
    %p121 = scmp.ne.s32.totalorder %s113, %s116
    %p122 = scmp.eq.s32.totalorder %s9, 0
    %p123 = por %p121, %p122
    %p124 = scmp.ne.s32.totalorder %s113, %s116
    %p125 = scmp.eq.s32.totalorder %s14, 3
    %p126 = por %p124, %p125
    %p127 = scmp.ne.s32.totalorder %s116, %s117
    %p128 = scmp.eq.s32.totalorder %s14, 0
    %p129 = por %p127, %p128
    %p130 = scmp.ne.s32.totalorder %s116, %s117
    %p131 = scmp.eq.s32.totalorder %s15, 3
    %p132 = por %p130, %p131
    %p134 = scmp.ne.s32.totalorder %s117, %s133
    %p135 = scmp.eq.s32.totalorder %s15, 0
    %p136 = por %p134, %p135
    %s137 = ssub.s32 %s17, %s38
    %s138 = ssub.s32 %s16, %s42
    %s139 = sor.u32 %s137, %s138
    %s140 = ssub.s32 %s18, %s34
    %s141 = sor.u32 %s139, %s140
    %p142 = scmp.eq.s32.totalorder %s141, 0
    %s144 = sadd.s32 %s143, 1
    %s145 = scalar_select %p142, %s143, %s144
    %p148 = pneg %p142
    %p149 = scmp.eq.s32.totalorder %s9, 3
    %p150 = por %p148, %p149
    %p151 = scmp.ne.s32.totalorder %s143, %s146
    %p152 = scmp.eq.s32.totalorder %s9, 0
    %p153 = por %p151, %p152
    %p154 = scmp.ne.s32.totalorder %s143, %s146
    %p155 = scmp.eq.s32.totalorder %s14, 3
    %p156 = por %p154, %p155
    %p157 = scmp.ne.s32.totalorder %s146, %s147
    %p158 = scmp.eq.s32.totalorder %s14, 0
    %p159 = por %p157, %p158
    %p160 = scmp.ne.s32.totalorder %s146, %s147
    %p161 = scmp.eq.s32.totalorder %s15, 3
    %p162 = por %p160, %p161
    %p164 = scmp.ne.s32.totalorder %s147, %s163
    %p165 = scmp.eq.s32.totalorder %s15, 0
    %p166 = por %p164, %p165
    %p167 = scmp.le.s32.totalorder 1, %s9
    %p168 = scmp.lt.s32.totalorder %s9, 5
    %p169 = pnand %p167, %p168
    %p170 = pneg %p169
    // Predicated region
    $region9: #{gpt_like_forward.11} parent=5 // pred_check
      _
    $region10: #{gpt_like_forward.11} parent=5 // pred_check_branch
      %172 = sbr.rel (%p169) target = $region12
    $region11: #{gpt_like_forward.11} parent=5 // pred_region
      %s173 = ssub.s32 %s9, 1
    $region12: #{gpt_like_forward.11} parent=5 // pred_fallthru
      _
    %p174 = scmp.lt.s32.totalorder %s9, 4
    // Predicated region
    $region13: #{gpt_like_forward.11} parent=5 // pred_check
      %p175 = pneg %p174
    $region14: #{gpt_like_forward.11} parent=5 // pred_check_branch
      %177 = sbr.rel (%p175) target = $region16
    $region15: #{gpt_like_forward.11} parent=5 // pred_region
      // Predicated region
      $region17: #{gpt_like_forward.11} parent=15 // pred_check
        %p178 = pneg %p59
      $region18: #{gpt_like_forward.11} parent=15 // pred_check_branch
        %180 = sbr.rel (%p178) target = $region20
      $region19: #{gpt_like_forward.11} parent=15 // pred_region
        %p181 = scmp.lt.s32.totalorder %s17, 1
        %s182 = scalar_select %p181, %s17, 1
        %p183 = scmp.lt.s32.totalorder %s16, 0
        %s184 = scalar_select %p183, %s16, 0
        %p185 = scmp.lt.s32.totalorder %s18, 5
        %s186 = scalar_select %p185, %s18, 5
        %s187 = smul.addr %s184, 6
        %s188 = sadd.s32 %s186, %s187
        %s189 = smul.addr %s182, 6
        %s190 = sadd.s32 %s188, %s189
        %s191 = smul.addr %s190, 4
        %s192 = scalar_lea.vmem %s0, %s191
      $region20: #{gpt_like_forward.11} parent=15 // pred_fallthru
        _
      // Predicated region
      $region21: #{gpt_like_forward.11} parent=15 // pred_check
        %p193 = pneg %p91
      $region22: #{gpt_like_forward.11} parent=15 // pred_check_branch
        %195 = sbr.rel (%p193) target = $region24
      $region23: #{gpt_like_forward.11} parent=15 // pred_region
        %s196 = sadd.s32 %s18, 2
        %p197 = scmp.lt.s32.totalorder %s17, 1
        %s198 = scalar_select %p197, %s17, 1
        %p199 = scmp.lt.s32.totalorder %s19, 0
        %s200 = scalar_select %p199, %s19, 0
        %p201 = scmp.lt.s32.totalorder %s196, 5
        %s202 = scalar_select %p201, %s196, 5
        %s203 = smul.addr %s200, 6
        %s204 = sadd.s32 %s202, %s203
        %s205 = smul.addr %s198, 6
        %s206 = sadd.s32 %s204, %s205
        %s207 = smul.addr %s206, 4
        %s208 = scalar_lea.vmem %s1, %s207
        %s209 = sadd.s32 %s18, 2
      $region24: #{gpt_like_forward.11} parent=15 // pred_fallthru
        _
      // Predicated region
      $region25: #{gpt_like_forward.11} parent=15 // pred_check
        %p210 = pneg %p123
      $region26: #{gpt_like_forward.11} parent=15 // pred_check_branch
        %212 = sbr.rel (%p210) target = $region28
      $region27: #{gpt_like_forward.11} parent=15 // pred_region
        %s213 = sadd.s32 %s18, 4
        %p214 = scmp.lt.s32.totalorder %s17, 1
        %s215 = scalar_select %p214, %s17, 1
        %p216 = scmp.lt.s32.totalorder %s19, 0
        %s217 = scalar_select %p216, %s19, 0
        %p218 = scmp.lt.s32.totalorder %s213, 5
        %s219 = scalar_select %p218, %s213, 5
        %s220 = smul.addr %s217, 6
        %s221 = sadd.s32 %s219, %s220
        %s222 = smul.addr %s215, 6
        %s223 = sadd.s32 %s221, %s222
        %s224 = smul.addr %s223, 4
        %s225 = scalar_lea.vmem %s2, %s224
        %s226 = sadd.s32 %s18, 4
      $region28: #{gpt_like_forward.11} parent=15 // pred_fallthru
        _
    $region16: #{gpt_like_forward.11} parent=5 // pred_fallthru
      _
    %p227 = scmp.le.s32.totalorder 1, %s9
    %p228 = scmp.lt.s32.totalorder %s9, 5
    %p229 = pnand %p227, %p228
    %p230 = pneg %p229
    // Predicated region
    $region29: #{gpt_like_forward.11} parent=5 // pred_check
      _
    $region30: #{gpt_like_forward.11} parent=5 // pred_check_branch
      %232 = sbr.rel (%p229) target = $region32
    $region31: #{gpt_like_forward.11} parent=5 // pred_region
      %s233 = ssub.s32 %s9, 1
      %p234 = scmp.lt.s32.totalorder %s21, 1
      %s235 = scalar_select %p234, %s21, 1
      %p236 = scmp.lt.s32.totalorder %s20, 0
      %s237 = scalar_select %p236, %s20, 0
      %p238 = scmp.lt.s32.totalorder %s22, 5
      %s239 = scalar_select %p238, %s22, 5
      %s240 = smul.addr %s237, 6
      %s241 = sadd.s32 %s239, %s240
      %s242 = smul.addr %s235, 6
      %s243 = sadd.s32 %s241, %s242
      %s244 = smul.addr %s243, 4
      %s245 = scalar_lea.vmem %s0, %s244
      %p246 = pneg %p65
      %p247 = pneg %p62
      %s248 = sadd.s32 %s22, 2
      %p249 = scmp.lt.s32.totalorder %s21, 1
      %s250 = scalar_select %p249, %s21, 1
      %p251 = scmp.lt.s32.totalorder %s23, 0
      %s252 = scalar_select %p251, %s23, 0
      %p253 = scmp.lt.s32.totalorder %s248, 5
      %s254 = scalar_select %p253, %s248, 5
      %s255 = smul.addr %s252, 6
      %s256 = sadd.s32 %s254, %s255
      %s257 = smul.addr %s250, 6
      %s258 = sadd.s32 %s256, %s257
      %s259 = smul.addr %s258, 4
      %s260 = scalar_lea.vmem %s1, %s259
      %p261 = pneg %p97
      %p262 = pneg %p94
      %s263 = sadd.s32 %s22, 4
      %p264 = scmp.lt.s32.totalorder %s21, 1
      %s265 = scalar_select %p264, %s21, 1
      %p266 = scmp.lt.s32.totalorder %s23, 0
      %s267 = scalar_select %p266, %s23, 0
      %p268 = scmp.lt.s32.totalorder %s263, 5
      %s269 = scalar_select %p268, %s263, 5
      %s270 = smul.addr %s267, 6
      %s271 = sadd.s32 %s269, %s270
      %s272 = smul.addr %s265, 6
      %s273 = sadd.s32 %s271, %s272
      %s274 = smul.addr %s273, 4
      %s275 = scalar_lea.vmem %s2, %s274
      %p276 = pneg %p129
      %p277 = pneg %p126
      %p278 = pneg %p159
      %p279 = pneg %p156
      %p280 = scmp.lt.s32.totalorder %s21, 1
      %s281 = scalar_select %p280, %s21, 1
      %p282 = scmp.lt.s32.totalorder %s20, 0
      %s283 = scalar_select %p282, %s20, 0
      %p284 = scmp.lt.s32.totalorder %s22, 1
      %s285 = scalar_select %p284, %s22, 1
      %s286 = smul.addr %s283, 2
      %s287 = sadd.s32 %s285, %s286
      %s288 = smul.addr %s281, 2
      %s289 = sadd.s32 %s287, %s288
      %s290 = smul.addr %s289, 4
      %s291 = scalar_lea.vmem %s3, %s290
      %p292 = scmp.lt.s32.totalorder %s21, 1
      %s293 = scalar_select %p292, %s21, 1
      %p294 = scmp.lt.s32.totalorder %s20, 0
      %s295 = scalar_select %p294, %s20, 0
      %p296 = scmp.lt.s32.totalorder %s22, 5
      %s297 = scalar_select %p296, %s22, 5
      %s298 = smul.addr %s295, 6
      %s299 = sadd.s32 %s297, %s298
      %s300 = smul.addr %s293, 6
      %s301 = sadd.s32 %s299, %s300
      %s302 = smul.addr %s301, 4
      %s303 = scalar_lea.vmem %s0, %s302
      %s304 = sadd.s32 %s22, 2
      %p305 = scmp.lt.s32.totalorder %s21, 1
      %s306 = scalar_select %p305, %s21, 1
      %p307 = scmp.lt.s32.totalorder %s23, 0
      %s308 = scalar_select %p307, %s23, 0
      %p309 = scmp.lt.s32.totalorder %s304, 5
      %s310 = scalar_select %p309, %s304, 5
      %s311 = smul.addr %s308, 6
      %s312 = sadd.s32 %s310, %s311
      %s313 = smul.addr %s306, 6
      %s314 = sadd.s32 %s312, %s313
      %s315 = smul.addr %s314, 4
      %s316 = scalar_lea.vmem %s1, %s315
      %s317 = sadd.s32 %s22, 2
      %s318 = sadd.s32 %s22, 4
      %p319 = scmp.lt.s32.totalorder %s21, 1
      %s320 = scalar_select %p319, %s21, 1
      %p321 = scmp.lt.s32.totalorder %s23, 0
      %s322 = scalar_select %p321, %s23, 0
      %p323 = scmp.lt.s32.totalorder %s318, 5
      %s324 = scalar_select %p323, %s318, 5
      %s325 = smul.addr %s322, 6
      %s326 = sadd.s32 %s324, %s325
      %s327 = smul.addr %s320, 6
      %s328 = sadd.s32 %s326, %s327
      %s329 = smul.addr %s328, 4
      %s330 = scalar_lea.vmem %s2, %s329
      %s331 = sadd.s32 %s22, 4
      %p332 = scmp.lt.s32.totalorder %s21, 1
      %s333 = scalar_select %p332, %s21, 1
      %p334 = scmp.lt.s32.totalorder %s20, 0
      %s335 = scalar_select %p334, %s20, 0
      %p336 = scmp.lt.s32.totalorder %s22, 1
      %s337 = scalar_select %p336, %s22, 1
      %s338 = smul.addr %s335, 2
      %s339 = sadd.s32 %s337, %s338
      %s340 = smul.addr %s333, 2
      %s341 = sadd.s32 %s339, %s340
      %s342 = smul.addr %s341, 4
      %s343 = scalar_lea.vmem %s3, %s342
      %p346 = scmp.eq.s32.totalorder %s23, 0
      // Predicated region
      $region33: #{gpt_like_forward.11} parent=31 // pred_check
        %p347 = pneg %p346
      $region34: #{gpt_like_forward.11} parent=31 // pred_check_branch
        %349 = sbr.rel (%p347) target = $region36
      $region35: #{gpt_like_forward.11} parent=31 // pred_region
        %v350 = vld [vmem:[%s303] sm:$0xf]
        %v351 = vmul.bf16 %v350, 1035287989
        %352 = vst [vmem:[#allocation2] sm:$0xf] %v351
        %vm353 = vcmask 7168
        %354 = vst.msk [vmem:[#allocation3] sm:$0xff] %vm353, -1e+30
        %355 = vst.msk [vmem:[#allocation4] sm:$0xff] %vm353, 0.0
        %356 = vst [vmem:[#allocation5] sm:$0xff] 0.0
      $region36: #{gpt_like_forward.11} parent=31 // pred_fallthru
        _
      %s357 = smul.u32 %s23, 8
      %s358 = smul.u32 %s20, 8
      %s359 = sadd.s32 %s358, 7
      %p360 = scmp.le.s32.totalorder %s357, %s359
      // Predicated region
      $region37: #{gpt_like_forward.11} parent=31 // pred_check
        %p361 = pneg %p360
      $region38: #{gpt_like_forward.11} parent=31 // pred_check_branch
        %363 = sbr.rel (%p361) target = $region40
      $region39: #{gpt_like_forward.11} parent=31 // pred_region
        %v364 = vld [vmem:[#allocation2] sm:$0xf]
        %v365 = vld [vmem:[%s316] sm:$0xf]
        %366 = vmatprep.subr.bf16.mxu0 0
        %367 = vmatpush1.bf16.xpose.msra.mxu0 0
        %368 = vmatprep.subr.bf16.mxu0 0
        %369 = vmatpush1.bf16.xpose.msra.mxu0 0
        %370 = vmatprep.subr.bf16.mxu0 0
        %371 = vmatpush1.bf16.xpose.msra.mxu0 0
        %372 = vmatprep.subr.bf16.mxu0 0
        %373 = vmatpush1.bf16.xpose.msra.mxu0 0
        %374 = vmatprep.subr.bf16.mxu0 0
        %375 = vmatpush1.bf16.xpose.msra.mxu0 0
        %376 = vmatprep.subr.bf16.mxu0 0
        %377 = vmatpush1.bf16.xpose.msra.mxu0 0
        %378 = vmatprep.subr.bf16.mxu0 0
        %379 = vmatpush1.bf16.xpose.msra.mxu0 0
        %380 = vmatprep.subr.bf16.mxu0 0
        %381 = vmatpush1.bf16.xpose.msra.mxu0 %v365
        %382 = vmatprep.subr.bf16.mxu0 0
        %383 = vmatpush2.bf16.xpose.msra.mxu0 0
        %384 = vmatprep.subr.bf16.mxu0 0
        %385 = vmatpush2.bf16.xpose.msra.mxu0 0
        %386 = vmatprep.subr.bf16.mxu0 0
        %387 = vmatpush2.bf16.xpose.msra.mxu0 0
        %388 = vmatprep.subr.bf16.mxu0 0
        %389 = vmatpush2.bf16.xpose.msra.mxu0 0
        %390 = vmatprep.subr.bf16.mxu0 0
        %391 = vmatpush2.bf16.xpose.msra.mxu0 0
        %392 = vmatprep.subr.bf16.mxu0 0
        %393 = vmatpush2.bf16.xpose.msra.mxu0 0
        %394 = vmatprep.subr.bf16.mxu0 0
        %395 = vmatpush2.bf16.xpose.msra.mxu0 0
        %396 = vmatprep.subr.bf16.mxu0 0
        %397 = vmatpush2.bf16.xpose.msra.mxu0 0
        %398 = vmatprep.mubr.bf16.mxu0 0
        %399 = vmatmul.mubr.bf16.gmra.mxu0 %v364
        %v400 = vpop.f32.mrf.mxu0
        %v401 = vadd.f32 0.0, %v400
        %v402 = vpop.f32.mrf.mxu0
        %v403 = vpop.f32.mrf.mxu0
        %v404 = vpop.f32.mrf.mxu0
        %405 = vdwg.mxu0
        %v406 = vlaneseq
        %v407 = vshrl.u32 %v406, 7
        %v408 = vstv %s358
        %v409 = vadd.s32 %v408, %v407
        %v410 = vlaneseq
        %v411 = vand.u32 %v410, 127
        %v412 = vstv %s357
        %v413 = vadd.s32 %v412, %v411
        %vm414 = vcmp.ge.s32.totalorder %v409, %v413
        %v415 = vsel %vm414, %v401, -1e+30
        %v416 = vld [vmem:[#allocation3] sm:$0xff]
        %vm417 = vcmask 64512
        %v418 = vsel %vm417, %v415, -inf
        %419 = vmax.xlane.f32.xlu0 %v418
        %v420 = vpop.xlane.xlu0 %419
        %v421 = vmax.f32 %v416, %v420
        %v422 = vsub.f32 %v416, %v421
        %v423 = vmul.f32 %v422, 1.442695
        %v424 = vpow.pop %v423
        %426 = vset.pattern.permute.xlu0 0
        %427 = vperm.xlu0 %426, %v421
        %v428 = vpop.permute.xlu0 %427
        %v430 = vsub.f32 %v415, %v428
        %v431 = vmul.f32 %v430, 1.442695
        %v432 = vpow.pop %v431
        %v433 = vld [vmem:[#allocation4] sm:$0xff]
        %v434 = vmul.f32 %v424, %v433
        %v435 = vsel %vm417, %v432, 0.0
        %436 = vadd.xlane.f32.xlu0 %v435
        %v437 = vpop.xlane.xlu0 %436
        %v438 = vadd.f32 %v434, %v437
        %vm439 = vcmask 7168
        %440 = vst.msk [vmem:[#allocation4] sm:$0xff] %vm439, %v438
        %v441 = vld [vmem:[#allocation5] sm:$0xff]
        %443 = vset.pattern.permute.xlu0 0
        %444 = vperm.xlu0 %443, %v424
        %v445 = vpop.permute.xlu0 %444
        %v447 = vmul.f32 %v445, %v441
        %v448 = vpack.c.bf16 %v432, %v432
        %v449 = vld [vmem:[%s330] sm:$0xf]
        %v451 = vsel %vm417, %v448, 0
        %vm453 = vcmask 1043456
        %v455 = vsel %vm453, %v449, 0
        %457 = vmatprep.subr.bf16.mxu0 0
        %458 = vmatpush1.bf16.msra.mxu0 0
        %459 = vmatprep.subr.bf16.mxu0 0
        %460 = vmatpush1.bf16.msra.mxu0 0
        %461 = vmatprep.subr.bf16.mxu0 0
        %462 = vmatpush1.bf16.msra.mxu0 0
        %463 = vmatprep.subr.bf16.mxu0 0
        %464 = vmatpush1.bf16.msra.mxu0 0
        %465 = vmatprep.subr.bf16.mxu0 0
        %466 = vmatpush1.bf16.msra.mxu0 0
        %467 = vmatprep.subr.bf16.mxu0 0
        %468 = vmatpush1.bf16.msra.mxu0 0
        %469 = vmatprep.subr.bf16.mxu0 0
        %470 = vmatpush1.bf16.msra.mxu0 0
        %471 = vmatprep.subr.bf16.mxu0 0
        %472 = vmatpush1.bf16.msra.mxu0 %v455
        %473 = vmatprep.subr.bf16.mxu0 0
        %474 = vmatpush2.bf16.msra.mxu0 0
        %475 = vmatprep.subr.bf16.mxu0 0
        %476 = vmatpush2.bf16.msra.mxu0 0
        %477 = vmatprep.subr.bf16.mxu0 0
        %478 = vmatpush2.bf16.msra.mxu0 0
        %479 = vmatprep.subr.bf16.mxu0 0
        %480 = vmatpush2.bf16.msra.mxu0 0
        %481 = vmatprep.subr.bf16.mxu0 0
        %482 = vmatpush2.bf16.msra.mxu0 0
        %483 = vmatprep.subr.bf16.mxu0 0
        %484 = vmatpush2.bf16.msra.mxu0 0
        %485 = vmatprep.subr.bf16.mxu0 0
        %486 = vmatpush2.bf16.msra.mxu0 0
        %487 = vmatprep.subr.bf16.mxu0 0
        %488 = vmatpush2.bf16.msra.mxu0 0
        %489 = vmatprep.mubr.bf16.mxu0 0
        %490 = vmatmul.mubr.bf16.gmra.mxu0 %v451
        %v491 = vpop.f32.mrf.mxu0
        %v492 = vadd.f32 0.0, %v491
        %v493 = vpop.f32.mrf.mxu0
        %v494 = vpop.f32.mrf.mxu0
        %v495 = vpop.f32.mrf.mxu0
        %496 = vdwg.mxu0
        %v497 = vadd.f32 %v447, %v492
        %498 = vst [vmem:[#allocation5] sm:$0xff] %v497
        %499 = vst.msk [vmem:[#allocation3] sm:$0xff] %vm439, %v421
      $region40: #{gpt_like_forward.11} parent=31 // pred_fallthru
        _
      // Predicated region
      $region41: #{gpt_like_forward.11} parent=31 // pred_check
        %p500 = pneg %p346
      $region42: #{gpt_like_forward.11} parent=31 // pred_check_branch
        %502 = sbr.rel (%p500) target = $region44
      $region43: #{gpt_like_forward.11} parent=31 // pred_region
        %v503 = vld [vmem:[#allocation4] sm:$0xff]
        %v504 = vrcp.pop %v503
        %v505 = vld [vmem:[#allocation5] sm:$0xff]
        %507 = vset.pattern.permute.xlu0 0
        %508 = vperm.xlu0 %507, %v504
        %v509 = vpop.permute.xlu0 %508
        %v511 = vmul.f32 %v505, %v509
        %v512 = vpack.c.bf16 %v511, %v511
        %513 = vst [vmem:[%s343] sm:$0xf] %v512
      $region44: #{gpt_like_forward.11} parent=31 // pred_fallthru
        _
      %p514 = scmp.lt.s32.totalorder %s21, 1
      %s515 = scalar_select %p514, %s21, 1
      %p516 = scmp.lt.s32.totalorder %s20, 0
      %s517 = scalar_select %p516, %s20, 0
      %p518 = scmp.lt.s32.totalorder %s22, 1
      %s519 = scalar_select %p518, %s22, 1
      %s520 = smul.addr %s517, 2
      %s521 = sadd.s32 %s519, %s520
      %s522 = smul.addr %s515, 2
      %s523 = sadd.s32 %s521, %s522
      %s524 = smul.addr %s523, 4
      %s525 = scalar_lea.vmem %s3, %s524
      // Predicated region
      $region45: #{gpt_like_forward.11} parent=31 // pred_check
        %p526 = pneg %p156
      $region46: #{gpt_like_forward.11} parent=31 // pred_check_branch
        %528 = sbr.rel (%p526) target = $region48
      $region47: #{gpt_like_forward.11} parent=31 // pred_region
        _
      $region48: #{gpt_like_forward.11} parent=31 // pred_fallthru
        _
    $region32: #{gpt_like_forward.11} parent=5 // pred_fallthru
      _
    %p529 = scmp.le.s32.totalorder 2, %s9
    // Predicated region
    $region49: #{gpt_like_forward.11} parent=5 // pred_check
      %p530 = pneg %p529
    $region50: #{gpt_like_forward.11} parent=5 // pred_check_branch
      %532 = sbr.rel (%p530) target = $region52
    $region51: #{gpt_like_forward.11} parent=5 // pred_region
      %s533 = ssub.s32 %s9, 2
      // Predicated region
      $region53: #{gpt_like_forward.11} parent=51 // pred_check
        %p534 = pneg %p162
      $region54: #{gpt_like_forward.11} parent=51 // pred_check_branch
        %536 = sbr.rel (%p534) target = $region56
      $region55: #{gpt_like_forward.11} parent=51 // pred_region
        %p537 = scmp.lt.s32.totalorder %s25, 1
        %s538 = scalar_select %p537, %s25, 1
        %p539 = scmp.lt.s32.totalorder %s24, 0
        %s540 = scalar_select %p539, %s24, 0
        %p541 = scmp.lt.s32.totalorder %s26, 1
        %s542 = scalar_select %p541, %s26, 1
        %s543 = smul.addr %s540, 2
        %s544 = sadd.s32 %s542, %s543
        %s545 = smul.addr %s538, 2
        %s546 = sadd.s32 %s544, %s545
        %s547 = smul.addr %s546, 4
        %s548 = scalar_lea.vmem %s3, %s547
      $region56: #{gpt_like_forward.11} parent=51 // pred_fallthru
        _
    $region52: #{gpt_like_forward.11} parent=5 // pred_fallthru
      _
  $region6: #{gpt_like_forward.11} parent=0 // loop_footer
    %s13 = sadd.s32 1, %s9
  $region7: #{gpt_like_forward.11} parent=0 // loop_footer_branch
    %8 = sbr.rel target = $region3
  $region8: #{gpt_like_forward.11} parent=0 // loop_exit
    _

// kernel: gpt_like_forward.13
$region0: #{gpt_like_forward.13}
  #allocation0 [shape = 'u32[]', space=smem, size = 0x4, offset = 0x4, fixed_abs, tag = 'smem constant byte address 0x4 - core index']
  #allocation1 [shape = 'u32[144,128]{1,0:T(1,128)}', space=vmem, size = 0x12000, scoped, tag = 'internal scratch']
  #allocation2 [shape = 'f32[16,256]{1,0:T(8,128)}', space=vmem, size = 0x4000, scoped, tag = 'scratch operand']
  %s0 = inlined_call_operand.vmem [shape: bf16[16,256], index: 0, kind: input, shape index: {}]
  %s1 = inlined_call_operand.vmem [shape: bf16[256,256], index: 1, kind: input, shape index: {}]
  %s2 = inlined_call_operand.vmem [shape: f32[1,256], index: 2, kind: input, shape index: {}]
  %s3 = inlined_call_operand.vmem [shape: bf16[16,256], index: 3, kind: output, shape index: {}]
  %s4 = sld [smem:[#allocation0]]
  $region30: #{gpt_like_forward.13} parent=0
    _
  %s6 = ssub.s32 1, %s4
  %s7 = scalar_select 0, %s6, %s4
  // Predicated region
  $region2: #{gpt_like_forward.13} parent=0 // pred_check
    _
  $region3: #{gpt_like_forward.13} parent=0 // pred_check_branch
    %9 = sbr.rel (0) target = $region5
  $region4: #{gpt_like_forward.13} parent=0 // pred_region
    _
  $region5: #{gpt_like_forward.13} parent=0 // pred_fallthru
    _
  // Predicated region
  $region6: #{gpt_like_forward.13} parent=0 // pred_check
    _
  $region7: #{gpt_like_forward.13} parent=0 // pred_check_branch
    %11 = sbr.rel (0) target = $region9
  $region8: #{gpt_like_forward.13} parent=0 // pred_region
    _
  $region9: #{gpt_like_forward.13} parent=0 // pred_fallthru
    _
  // Predicated region
  $region10: #{gpt_like_forward.13} parent=0 // pred_check
    _
  $region11: #{gpt_like_forward.13} parent=0 // pred_check_branch
    %13 = sbr.rel (0) target = $region13
  $region12: #{gpt_like_forward.13} parent=0 // pred_region
    _
  $region13: #{gpt_like_forward.13} parent=0 // pred_fallthru
    _
  %p14 = scmp.eq.s32.totalorder 0, 0
  // Predicated region
  $region14: #{gpt_like_forward.13} parent=0 // pred_check
    %p15 = pneg %p14
  $region15: #{gpt_like_forward.13} parent=0 // pred_check_branch
    %17 = sbr.rel (%p15) target = $region17
  $region16: #{gpt_like_forward.13} parent=0 // pred_region
    %18 = vst [vmem:[#allocation2] sm:$0xff] 0.0
    %19 = vst [vmem:[#allocation2 + $0x8] sm:$0xff] 0.0
    %20 = vst [vmem:[#allocation2 + $0x10] sm:$0xff] 0.0
    %21 = vst [vmem:[#allocation2 + $0x18] sm:$0xff] 0.0
  $region17: #{gpt_like_forward.13} parent=0 // pred_fallthru
    _
  %v22 = vld [vmem:[#allocation2] sm:$0xff]
  %v23 = vld [vmem:[#allocation2 + $0x8] sm:$0xff]
  %v24 = vld [vmem:[#allocation2 + $0x10] sm:$0xff]
  %v25 = vld [vmem:[#allocation2 + $0x18] sm:$0xff]
  %v26 = vld [vmem:[%s0] sm:$0xff]
  %v27 = vld [vmem:[%s0 + $0x8] sm:$0xff]
  %v28 = vld [vmem:[%s1] sm:$0xff]
  %v29 = vld [vmem:[%s1 + $0x8] sm:$0xff]
  %v30 = vld [vmem:[%s1 + $0x10] sm:$0xff]
  %v31 = vld [vmem:[%s1 + $0x18] sm:$0xff]
  %v32 = vld [vmem:[%s1 + $0x20] sm:$0xff]
  %v33 = vld [vmem:[%s1 + $0x28] sm:$0xff]
  %v34 = vld [vmem:[%s1 + $0x30] sm:$0xff]
  %v35 = vld [vmem:[%s1 + $0x38] sm:$0xff]
  %v36 = vld [vmem:[%s1 + $0x40] sm:$0xff]
  %v37 = vld [vmem:[%s1 + $0x48] sm:$0xff]
  %v38 = vld [vmem:[%s1 + $0x50] sm:$0xff]
  %v39 = vld [vmem:[%s1 + $0x58] sm:$0xff]
  %v40 = vld [vmem:[%s1 + $0x60] sm:$0xff]
  %v41 = vld [vmem:[%s1 + $0x68] sm:$0xff]
  %v42 = vld [vmem:[%s1 + $0x70] sm:$0xff]
  %v43 = vld [vmem:[%s1 + $0x78] sm:$0xff]
  %v44 = vld [vmem:[%s1 + $0x80] sm:$0xff]
  %v45 = vld [vmem:[%s1 + $0x88] sm:$0xff]
  %v46 = vld [vmem:[%s1 + $0x90] sm:$0xff]
  %v47 = vld [vmem:[%s1 + $0x98] sm:$0xff]
  %v48 = vld [vmem:[%s1 + $0xa0] sm:$0xff]
  %v49 = vld [vmem:[%s1 + $0xa8] sm:$0xff]
  %v50 = vld [vmem:[%s1 + $0xb0] sm:$0xff]
  %v51 = vld [vmem:[%s1 + $0xb8] sm:$0xff]
  %v52 = vld [vmem:[%s1 + $0xc0] sm:$0xff]
  %v53 = vld [vmem:[%s1 + $0xc8] sm:$0xff]
  %v54 = vld [vmem:[%s1 + $0xd0] sm:$0xff]
  %v55 = vld [vmem:[%s1 + $0xd8] sm:$0xff]
  %v56 = vld [vmem:[%s1 + $0xe0] sm:$0xff]
  %v57 = vld [vmem:[%s1 + $0xe8] sm:$0xff]
  %v58 = vld [vmem:[%s1 + $0xf0] sm:$0xff]
  %v59 = vld [vmem:[%s1 + $0xf8] sm:$0xff]
  %v62 = vunpack.c.l.b16 %v26
  %v63 = vunpack.c.h.b16 %v26
  %v64 = vunpack.c.l.b16 %v27
  %v65 = vunpack.c.h.b16 %v27
  %v66 = vpack.c.b16 %v64, %v62
  %v67 = vpack.c.b16 %v65, %v63
  %v102 = vunpack.c.l.b16 %v28
  %v103 = vunpack.c.h.b16 %v28
  %v104 = vunpack.c.l.b16 %v29
  %v105 = vunpack.c.h.b16 %v29
  %v106 = vunpack.c.l.b16 %v30
  %v107 = vunpack.c.h.b16 %v30
  %v108 = vunpack.c.l.b16 %v31
  %v109 = vunpack.c.h.b16 %v31
  %v110 = vunpack.c.l.b16 %v32
  %v111 = vunpack.c.h.b16 %v32
  %v112 = vunpack.c.l.b16 %v33
  %v113 = vunpack.c.h.b16 %v33
  %v114 = vunpack.c.l.b16 %v34
  %v115 = vunpack.c.h.b16 %v34
  %v116 = vunpack.c.l.b16 %v35
  %v117 = vunpack.c.h.b16 %v35
  %v118 = vunpack.c.l.b16 %v36
  %v119 = vunpack.c.h.b16 %v36
  %v120 = vunpack.c.l.b16 %v37
  %v121 = vunpack.c.h.b16 %v37
  %v122 = vunpack.c.l.b16 %v38
  %v123 = vunpack.c.h.b16 %v38
  %v124 = vunpack.c.l.b16 %v39
  %v125 = vunpack.c.h.b16 %v39
  %v126 = vunpack.c.l.b16 %v40
  %v127 = vunpack.c.h.b16 %v40
  %v128 = vunpack.c.l.b16 %v41
  %v129 = vunpack.c.h.b16 %v41
  %v130 = vunpack.c.l.b16 %v42
  %v131 = vunpack.c.h.b16 %v42
  %v132 = vunpack.c.l.b16 %v43
  %v133 = vunpack.c.h.b16 %v43
  %v134 = vunpack.c.l.b16 %v44
  %v135 = vunpack.c.h.b16 %v44
  %v136 = vunpack.c.l.b16 %v45
  %v137 = vunpack.c.h.b16 %v45
  %v138 = vunpack.c.l.b16 %v46
  %v139 = vunpack.c.h.b16 %v46
  %v140 = vunpack.c.l.b16 %v47
  %v141 = vunpack.c.h.b16 %v47
  %v142 = vunpack.c.l.b16 %v48
  %v143 = vunpack.c.h.b16 %v48
  %v144 = vunpack.c.l.b16 %v49
  %v145 = vunpack.c.h.b16 %v49
  %v146 = vunpack.c.l.b16 %v50
  %v147 = vunpack.c.h.b16 %v50
  %v148 = vunpack.c.l.b16 %v51
  %v149 = vunpack.c.h.b16 %v51
  %v150 = vunpack.c.l.b16 %v52
  %v151 = vunpack.c.h.b16 %v52
  %v152 = vunpack.c.l.b16 %v53
  %v153 = vunpack.c.h.b16 %v53
  %v154 = vunpack.c.l.b16 %v54
  %v155 = vunpack.c.h.b16 %v54
  %v156 = vunpack.c.l.b16 %v55
  %v157 = vunpack.c.h.b16 %v55
  %v158 = vunpack.c.l.b16 %v56
  %v159 = vunpack.c.h.b16 %v56
  %v160 = vunpack.c.l.b16 %v57
  %v161 = vunpack.c.h.b16 %v57
  %v162 = vunpack.c.l.b16 %v58
  %v163 = vunpack.c.h.b16 %v58
  %v164 = vunpack.c.l.b16 %v59
  %v165 = vunpack.c.h.b16 %v59
  %v166 = vpack.c.b16 %v104, %v102
  %v167 = vpack.c.b16 %v105, %v103
  %v168 = vpack.c.b16 %v108, %v106
  %v169 = vpack.c.b16 %v109, %v107
  %v170 = vpack.c.b16 %v112, %v110
  %v171 = vpack.c.b16 %v113, %v111
  %v172 = vpack.c.b16 %v116, %v114
  %v173 = vpack.c.b16 %v117, %v115
  %v174 = vpack.c.b16 %v120, %v118
  %v175 = vpack.c.b16 %v121, %v119
  %v176 = vpack.c.b16 %v124, %v122
  %v177 = vpack.c.b16 %v125, %v123
  %v178 = vpack.c.b16 %v128, %v126
  %v179 = vpack.c.b16 %v129, %v127
  %v180 = vpack.c.b16 %v132, %v130
  %v181 = vpack.c.b16 %v133, %v131
  %v182 = vpack.c.b16 %v136, %v134
  %v183 = vpack.c.b16 %v137, %v135
  %v184 = vpack.c.b16 %v140, %v138
  %v185 = vpack.c.b16 %v141, %v139
  %v186 = vpack.c.b16 %v144, %v142
  %v187 = vpack.c.b16 %v145, %v143
  %v188 = vpack.c.b16 %v148, %v146
  %v189 = vpack.c.b16 %v149, %v147
  %v190 = vpack.c.b16 %v152, %v150
  %v191 = vpack.c.b16 %v153, %v151
  %v192 = vpack.c.b16 %v156, %v154
  %v193 = vpack.c.b16 %v157, %v155
  %v194 = vpack.c.b16 %v160, %v158
  %v195 = vpack.c.b16 %v161, %v159
  %v196 = vpack.c.b16 %v164, %v162
  %v197 = vpack.c.b16 %v165, %v163
  %230 = vmatprep.subr.bf16.mxu0 %v181
  %231 = vmatpush1.bf16.msra.mxu0 %v180
  %232 = vmatprep.subr.bf16.mxu0 %v179
  %233 = vmatpush1.bf16.msra.mxu0 %v178
  %234 = vmatprep.subr.bf16.mxu0 %v177
  %235 = vmatpush1.bf16.msra.mxu0 %v176
  %236 = vmatprep.subr.bf16.mxu0 %v175
  %237 = vmatpush1.bf16.msra.mxu0 %v174
  %238 = vmatprep.subr.bf16.mxu0 %v173
  %239 = vmatpush1.bf16.msra.mxu0 %v172
  %240 = vmatprep.subr.bf16.mxu0 %v171
  %241 = vmatpush1.bf16.msra.mxu0 %v170
  %242 = vmatprep.subr.bf16.mxu0 %v169
  %243 = vmatpush1.bf16.msra.mxu0 %v168
  %244 = vmatprep.subr.bf16.mxu0 %v167
  %245 = vmatpush1.bf16.msra.mxu0 %v166
  %246 = vmatprep.subr.bf16.mxu0 %v197
  %247 = vmatpush2.bf16.msra.mxu0 %v196
  %248 = vmatprep.subr.bf16.mxu0 %v195
  %249 = vmatpush2.bf16.msra.mxu0 %v194
  %250 = vmatprep.subr.bf16.mxu0 %v193
  %251 = vmatpush2.bf16.msra.mxu0 %v192
  %252 = vmatprep.subr.bf16.mxu0 %v191
  %253 = vmatpush2.bf16.msra.mxu0 %v190
  %254 = vmatprep.subr.bf16.mxu0 %v189
  %255 = vmatpush2.bf16.msra.mxu0 %v188
  %256 = vmatprep.subr.bf16.mxu0 %v187
  %257 = vmatpush2.bf16.msra.mxu0 %v186
  %258 = vmatprep.subr.bf16.mxu0 %v185
  %259 = vmatpush2.bf16.msra.mxu0 %v184
  %260 = vmatprep.subr.bf16.mxu0 %v183
  %261 = vmatpush2.bf16.msra.mxu0 %v182
  %262 = vmatprep.mubr.bf16.mxu0 %v67
  %263 = vmatmul.mubr.bf16.gmra.mxu0 %v66
  %v264 = vpop.f32.mrf.mxu0
  %v265 = vadd.f32 0.0, %v264
  %v266 = vpop.f32.mrf.mxu0
  %v267 = vadd.f32 0.0, %v266
  %v268 = vpop.f32.mrf.mxu0
  %v269 = vadd.f32 0.0, %v268
  %v270 = vpop.f32.mrf.mxu0
  %v271 = vadd.f32 0.0, %v270
  %272 = vdwg.mxu0
  %v273 = vadd.f32 %v22, %v265
  %v274 = vadd.f32 %v23, %v267
  %v275 = vadd.f32 %v24, %v269
  %v276 = vadd.f32 %v25, %v271
  %277 = vst [vmem:[#allocation2] sm:$0xff] %v273
  %278 = vst [vmem:[#allocation2 + $0x8] sm:$0xff] %v274
  %279 = vst [vmem:[#allocation2 + $0x10] sm:$0xff] %v275
  %280 = vst [vmem:[#allocation2 + $0x18] sm:$0xff] %v276
  // Predicated region
  $region18: #{gpt_like_forward.13} parent=0 // pred_check
    %p281 = pneg %p14
  $region19: #{gpt_like_forward.13} parent=0 // pred_check_branch
    %283 = sbr.rel (%p281) target = $region21
  $region20: #{gpt_like_forward.13} parent=0 // pred_region
    %v284 = vld [vmem:[#allocation2] sm:$0xff]
    %v285 = vld [vmem:[#allocation2 + $0x8] sm:$0xff]
    %v286 = vld [vmem:[#allocation2 + $0x10] sm:$0xff]
    %v287 = vld [vmem:[#allocation2 + $0x18] sm:$0xff]
    %v288 = vld [vmem:[%s2] sm:$0x3]
    %v290 = vlaneseq
    %v291 = vshrl.u32 %v290, 7
    %v292 = vsub.s32 0, %v291
    %v293 = vrot.slane %v288, %v292
    %v294 = vlaneseq
    %v295 = vshrl.u32 %v294, 7
    %v296 = vsub.s32 1, %v295
    %v297 = vrot.slane %v288, %v296
    %v300 = vadd.f32 %v284, %v293
    %v301 = vadd.f32 %v285, %v297
    %v302 = vadd.f32 %v286, %v293
    %v303 = vadd.f32 %v287, %v297
    %v304 = vpack.c.bf16 %v302, %v300
    %v305 = vpack.c.bf16 %v303, %v301
    %v308 = vunpack.c.l.b16 %v304
    %v309 = vunpack.c.l.b16 %v305
    %v310 = vunpack.c.h.b16 %v304
    %v311 = vunpack.c.h.b16 %v305
    %v312 = vpack.c.b16 %v309, %v308
    %v313 = vpack.c.b16 %v311, %v310
    %316 = vst [vmem:[%s3] sm:$0xff] %v312
    %317 = vst [vmem:[%s3 + $0x8] sm:$0xff] %v313
  $region21: #{gpt_like_forward.13} parent=0 // pred_fallthru
    _
  // Predicated region
  $region22: #{gpt_like_forward.13} parent=0 // pred_check
    _
  $region23: #{gpt_like_forward.13} parent=0 // pred_check_branch
    %319 = sbr.rel (0) target = $region25
  $region24: #{gpt_like_forward.13} parent=0 // pred_region
    _
  $region25: #{gpt_like_forward.13} parent=0 // pred_fallthru
    _
  // Predicated region
  $region26: #{gpt_like_forward.13} parent=0 // pred_check
    _
  $region27: #{gpt_like_forward.13} parent=0 // pred_check_branch
    %321 = sbr.rel (0) target = $region29
  $region28: #{gpt_like_forward.13} parent=0 // pred_region
    _
  $region29: #{gpt_like_forward.13} parent=0 // pred_fallthru
    _

// kernel: gpt_like_forward.15
$region0: #{gpt_like_forward.15}
  #allocation0 [shape = 'u32[]', space=smem, size = 0x4, offset = 0x4, fixed_abs, tag = 'smem constant byte address 0x4 - core index']
  #allocation1 [shape = 'u32[144,128]{1,0:T(1,128)}', space=vmem, size = 0x12000, scoped, tag = 'internal scratch']
  #allocation2 [shape = 'bf16[8,128]{1,0:T(8,128)(2,1)}', space=vmem, size = 0x800, scoped, tag = 'scratch operand']
  #allocation3 [shape = 'f32[8,1]{1,0:T(8,128)}', space=vmem, size = 0x1000, scoped, tag = 'scratch operand']
  #allocation4 [shape = 'f32[8,1]{1,0:T(8,128)}', space=vmem, size = 0x1000, scoped, tag = 'scratch operand']
  #allocation5 [shape = 'f32[8,128]{1,0:T(8,128)}', space=vmem, size = 0x1000, scoped, tag = 'scratch operand']
  %s0 = inlined_call_operand.vmem [shape: bf16[2,8,256], index: 0, kind: input, shape index: {}]
  %s1 = inlined_call_operand.vmem [shape: bf16[2,8,512], index: 1, kind: input, shape index: {}, may-alias: {1,2}]
  %s2 = inlined_call_operand.vmem [shape: bf16[2,8,512], index: 2, kind: input, shape index: {}, may-alias: {1,2}]
  %s3 = inlined_call_operand.vmem [shape: bf16[2,8,256], index: 3, kind: output, shape index: {}]
  %s4 = sld [smem:[#allocation0]]
  $region57: #{gpt_like_forward.15} parent=0
    _
  %s6 = ssub.s32 1, %s4
  %s7 = scalar_select 0, %s6, %s4
  loop: start=0, step=1, limit=6
  $region2: #{gpt_like_forward.15} parent=0 // loop_pre_header
    _
  $region3: #{gpt_like_forward.15} parent=0 // loop_header
    %s9 = sphi 0, %s13
    %p10 = scmp.ge.s32.totalorder %s9, 6
    %s16 = sphi 0, %s42
    %s17 = sphi 0, %s38
    %s18 = sphi 0, %s34
    %s19 = sphi 0, %s30
    %s20 = sphi 0, %s16
    %s21 = sphi 0, %s17
    %s22 = sphi 0, %s18
    %s23 = sphi 0, %s19
    %s24 = sphi 0, %s20
    %s25 = sphi 0, %s21
    %s26 = sphi 0, %s22
    %s27 = sphi 0, %s23
    %s49 = sphi 0, %s51
    %s52 = sphi 0, %s49
    %s53 = sphi 0, %s52
    %s69 = sphi 0, %s53
    %s79 = sphi 0, %s81
    %s82 = sphi 0, %s79
    %s83 = sphi 0, %s82
    %s99 = sphi 0, %s83
    %s111 = sphi 0, %s113
    %s114 = sphi 0, %s111
    %s115 = sphi 0, %s114
    %s131 = sphi 0, %s115
    %s141 = sphi 0, %s143
    %s144 = sphi 0, %s141
    %s145 = sphi 0, %s144
    %s161 = sphi 0, %s145
  $region4: #{gpt_like_forward.15} parent=0 // loop_header_branch
    %12 = sbr.rel (%p10) target = $region8
  $region5: #{gpt_like_forward.15} parent=0 // loop_body
    %s14 = ssub.s32 %s9, 1
    %s15 = ssub.s32 %s9, 2
    %s28 = sadd.s32 1, %s19
    %p29 = scmp.ge.s32.totalorder %s28, 1
    %s30 = scalar_select %p29, 0, %s28
    %s31 = sadd.s32 1, %s18
    %s32 = scalar_select %p29, %s31, %s18
    %p33 = scmp.ge.s32.totalorder %s32, 2
    %s34 = scalar_select %p33, 0, %s32
    %s35 = sadd.s32 1, %s17
    %s36 = scalar_select %p33, %s35, %s17
    %p37 = scmp.ge.s32.totalorder %s36, 2
    %s38 = scalar_select %p37, 0, %s36
    %s39 = sadd.s32 1, %s16
    %s40 = scalar_select %p37, %s39, %s16
    %p41 = scmp.ge.s32.totalorder %s40, 1
    %s42 = scalar_select %p41, 0, %s40
    %s43 = ssub.s32 %s17, %s38
    %s44 = ssub.s32 %s16, %s42
    %s45 = sor.u32 %s43, %s44
    %s46 = ssub.s32 %s18, %s34
    %s47 = sor.u32 %s45, %s46
    %p48 = scmp.eq.s32.totalorder %s47, 0
    %s50 = sadd.s32 %s49, 1
    %s51 = scalar_select %p48, %s49, %s50
    %p54 = pneg %p48
    %p55 = scmp.eq.s32.totalorder %s9, 3
    %p56 = por %p54, %p55
    %p57 = scmp.ne.s32.totalorder %s49, %s52
    %p58 = scmp.eq.s32.totalorder %s9, 0
    %p59 = por %p57, %p58
    %p60 = scmp.ne.s32.totalorder %s49, %s52
    %p61 = scmp.eq.s32.totalorder %s14, 3
    %p62 = por %p60, %p61
    %p63 = scmp.ne.s32.totalorder %s52, %s53
    %p64 = scmp.eq.s32.totalorder %s14, 0
    %p65 = por %p63, %p64
    %p66 = scmp.ne.s32.totalorder %s52, %s53
    %p67 = scmp.eq.s32.totalorder %s15, 3
    %p68 = por %p66, %p67
    %p70 = scmp.ne.s32.totalorder %s53, %s69
    %p71 = scmp.eq.s32.totalorder %s15, 0
    %p72 = por %p70, %p71
    %s73 = ssub.s32 %s17, %s38
    %s74 = ssub.s32 %s19, %s30
    %s75 = sor.u32 %s73, %s74
    %s76 = ssub.s32 %s18, %s34
    %s77 = sor.u32 %s75, %s76
    %p78 = scmp.eq.s32.totalorder %s77, 0
    %s80 = sadd.s32 %s79, 1
    %s81 = scalar_select %p78, %s79, %s80
    %p84 = pneg %p78
    %p85 = scmp.eq.s32.totalorder %s9, 3
    %p86 = por %p84, %p85
    %p87 = scmp.ne.s32.totalorder %s79, %s82
    %p88 = scmp.eq.s32.totalorder %s9, 0
    %p89 = por %p87, %p88
    %p90 = scmp.ne.s32.totalorder %s79, %s82
    %p91 = scmp.eq.s32.totalorder %s14, 3
    %p92 = por %p90, %p91
    %p93 = scmp.ne.s32.totalorder %s82, %s83
    %p94 = scmp.eq.s32.totalorder %s14, 0
    %p95 = por %p93, %p94
    %p96 = scmp.ne.s32.totalorder %s82, %s83
    %p97 = scmp.eq.s32.totalorder %s15, 3
    %p98 = por %p96, %p97
    %p100 = scmp.ne.s32.totalorder %s83, %s99
    %p101 = scmp.eq.s32.totalorder %s15, 0
    %p102 = por %p100, %p101
    %s103 = sadd.s32 %s18, 2
    %s104 = sadd.s32 %s34, 2
    %s105 = ssub.s32 %s17, %s38
    %s106 = ssub.s32 %s19, %s30
    %s107 = sor.u32 %s105, %s106
    %s108 = ssub.s32 %s103, %s104
    %s109 = sor.u32 %s107, %s108
    %p110 = scmp.eq.s32.totalorder %s109, 0
    %s112 = sadd.s32 %s111, 1
    %s113 = scalar_select %p110, %s111, %s112
    %p116 = pneg %p110
    %p117 = scmp.eq.s32.totalorder %s9, 3
    %p118 = por %p116, %p117
    %p119 = scmp.ne.s32.totalorder %s111, %s114
    %p120 = scmp.eq.s32.totalorder %s9, 0
    %p121 = por %p119, %p120
    %p122 = scmp.ne.s32.totalorder %s111, %s114
    %p123 = scmp.eq.s32.totalorder %s14, 3
    %p124 = por %p122, %p123
    %p125 = scmp.ne.s32.totalorder %s114, %s115
    %p126 = scmp.eq.s32.totalorder %s14, 0
    %p127 = por %p125, %p126
    %p128 = scmp.ne.s32.totalorder %s114, %s115
    %p129 = scmp.eq.s32.totalorder %s15, 3
    %p130 = por %p128, %p129
    %p132 = scmp.ne.s32.totalorder %s115, %s131
    %p133 = scmp.eq.s32.totalorder %s15, 0
    %p134 = por %p132, %p133
    %s135 = ssub.s32 %s17, %s38
    %s136 = ssub.s32 %s16, %s42
    %s137 = sor.u32 %s135, %s136
    %s138 = ssub.s32 %s18, %s34
    %s139 = sor.u32 %s137, %s138
    %p140 = scmp.eq.s32.totalorder %s139, 0
    %s142 = sadd.s32 %s141, 1
    %s143 = scalar_select %p140, %s141, %s142
    %p146 = pneg %p140
    %p147 = scmp.eq.s32.totalorder %s9, 3
    %p148 = por %p146, %p147
    %p149 = scmp.ne.s32.totalorder %s141, %s144
    %p150 = scmp.eq.s32.totalorder %s9, 0
    %p151 = por %p149, %p150
    %p152 = scmp.ne.s32.totalorder %s141, %s144
    %p153 = scmp.eq.s32.totalorder %s14, 3
    %p154 = por %p152, %p153
    %p155 = scmp.ne.s32.totalorder %s144, %s145
    %p156 = scmp.eq.s32.totalorder %s14, 0
    %p157 = por %p155, %p156
    %p158 = scmp.ne.s32.totalorder %s144, %s145
    %p159 = scmp.eq.s32.totalorder %s15, 3
    %p160 = por %p158, %p159
    %p162 = scmp.ne.s32.totalorder %s145, %s161
    %p163 = scmp.eq.s32.totalorder %s15, 0
    %p164 = por %p162, %p163
    %p165 = scmp.le.s32.totalorder 1, %s9
    %p166 = scmp.lt.s32.totalorder %s9, 5
    %p167 = pnand %p165, %p166
    %p168 = pneg %p167
    // Predicated region
    $region9: #{gpt_like_forward.15} parent=5 // pred_check
      _
    $region10: #{gpt_like_forward.15} parent=5 // pred_check_branch
      %170 = sbr.rel (%p167) target = $region12
    $region11: #{gpt_like_forward.15} parent=5 // pred_region
      %s171 = ssub.s32 %s9, 1
    $region12: #{gpt_like_forward.15} parent=5 // pred_fallthru
      _
    %p172 = scmp.lt.s32.totalorder %s9, 4
    // Predicated region
    $region13: #{gpt_like_forward.15} parent=5 // pred_check
      %p173 = pneg %p172
    $region14: #{gpt_like_forward.15} parent=5 // pred_check_branch
      %175 = sbr.rel (%p173) target = $region16
    $region15: #{gpt_like_forward.15} parent=5 // pred_region
      // Predicated region
      $region17: #{gpt_like_forward.15} parent=15 // pred_check
        %p176 = pneg %p59
      $region18: #{gpt_like_forward.15} parent=15 // pred_check_branch
        %178 = sbr.rel (%p176) target = $region20
      $region19: #{gpt_like_forward.15} parent=15 // pred_region
        %p179 = scmp.lt.s32.totalorder %s17, 1
        %s180 = scalar_select %p179, %s17, 1
        %p181 = scmp.lt.s32.totalorder %s16, 0
        %s182 = scalar_select %p181, %s16, 0
        %p183 = scmp.lt.s32.totalorder %s18, 1
        %s184 = scalar_select %p183, %s18, 1
        %s185 = smul.addr %s182, 2
        %s186 = sadd.s32 %s184, %s185
        %s187 = smul.addr %s180, 2
        %s188 = sadd.s32 %s186, %s187
        %s189 = smul.addr %s188, 4
        %s190 = scalar_lea.vmem %s0, %s189
      $region20: #{gpt_like_forward.15} parent=15 // pred_fallthru
        _
      // Predicated region
      $region21: #{gpt_like_forward.15} parent=15 // pred_check
        %p191 = pneg %p89
      $region22: #{gpt_like_forward.15} parent=15 // pred_check_branch
        %193 = sbr.rel (%p191) target = $region24
      $region23: #{gpt_like_forward.15} parent=15 // pred_region
        %p194 = scmp.lt.s32.totalorder %s17, 1
        %s195 = scalar_select %p194, %s17, 1
        %p196 = scmp.lt.s32.totalorder %s19, 0
        %s197 = scalar_select %p196, %s19, 0
        %p198 = scmp.lt.s32.totalorder %s18, 3
        %s199 = scalar_select %p198, %s18, 3
        %s200 = smul.addr %s197, 4
        %s201 = sadd.s32 %s199, %s200
        %s202 = smul.addr %s195, 4
        %s203 = sadd.s32 %s201, %s202
        %s204 = smul.addr %s203, 4
        %s205 = scalar_lea.vmem %s1, %s204
      $region24: #{gpt_like_forward.15} parent=15 // pred_fallthru
        _
      // Predicated region
      $region25: #{gpt_like_forward.15} parent=15 // pred_check
        %p206 = pneg %p121
      $region26: #{gpt_like_forward.15} parent=15 // pred_check_branch
        %208 = sbr.rel (%p206) target = $region28
      $region27: #{gpt_like_forward.15} parent=15 // pred_region
        %s209 = sadd.s32 %s18, 2
        %p210 = scmp.lt.s32.totalorder %s17, 1
        %s211 = scalar_select %p210, %s17, 1
        %p212 = scmp.lt.s32.totalorder %s19, 0
        %s213 = scalar_select %p212, %s19, 0
        %p214 = scmp.lt.s32.totalorder %s209, 3
        %s215 = scalar_select %p214, %s209, 3
        %s216 = smul.addr %s213, 4
        %s217 = sadd.s32 %s215, %s216
        %s218 = smul.addr %s211, 4
        %s219 = sadd.s32 %s217, %s218
        %s220 = smul.addr %s219, 4
        %s221 = scalar_lea.vmem %s2, %s220
        %s222 = sadd.s32 %s18, 2
      $region28: #{gpt_like_forward.15} parent=15 // pred_fallthru
        _
    $region16: #{gpt_like_forward.15} parent=5 // pred_fallthru
      _
    %p223 = scmp.le.s32.totalorder 1, %s9
    %p224 = scmp.lt.s32.totalorder %s9, 5
    %p225 = pnand %p223, %p224
    %p226 = pneg %p225
    // Predicated region
    $region29: #{gpt_like_forward.15} parent=5 // pred_check
      _
    $region30: #{gpt_like_forward.15} parent=5 // pred_check_branch
      %228 = sbr.rel (%p225) target = $region32
    $region31: #{gpt_like_forward.15} parent=5 // pred_region
      %s229 = ssub.s32 %s9, 1
      %p230 = scmp.lt.s32.totalorder %s21, 1
      %s231 = scalar_select %p230, %s21, 1
      %p232 = scmp.lt.s32.totalorder %s20, 0
      %s233 = scalar_select %p232, %s20, 0
      %p234 = scmp.lt.s32.totalorder %s22, 1
      %s235 = scalar_select %p234, %s22, 1
      %s236 = smul.addr %s233, 2
      %s237 = sadd.s32 %s235, %s236
      %s238 = smul.addr %s231, 2
      %s239 = sadd.s32 %s237, %s238
      %s240 = smul.addr %s239, 4
      %s241 = scalar_lea.vmem %s0, %s240
      %p242 = pneg %p65
      %p243 = pneg %p62
      %p244 = scmp.lt.s32.totalorder %s21, 1
      %s245 = scalar_select %p244, %s21, 1
      %p246 = scmp.lt.s32.totalorder %s23, 0
      %s247 = scalar_select %p246, %s23, 0
      %p248 = scmp.lt.s32.totalorder %s22, 3
      %s249 = scalar_select %p248, %s22, 3
      %s250 = smul.addr %s247, 4
      %s251 = sadd.s32 %s249, %s250
      %s252 = smul.addr %s245, 4
      %s253 = sadd.s32 %s251, %s252
      %s254 = smul.addr %s253, 4
      %s255 = scalar_lea.vmem %s1, %s254
      %p256 = pneg %p95
      %p257 = pneg %p92
      %s258 = sadd.s32 %s22, 2
      %p259 = scmp.lt.s32.totalorder %s21, 1
      %s260 = scalar_select %p259, %s21, 1
      %p261 = scmp.lt.s32.totalorder %s23, 0
      %s262 = scalar_select %p261, %s23, 0
      %p263 = scmp.lt.s32.totalorder %s258, 3
      %s264 = scalar_select %p263, %s258, 3
      %s265 = smul.addr %s262, 4
      %s266 = sadd.s32 %s264, %s265
      %s267 = smul.addr %s260, 4
      %s268 = sadd.s32 %s266, %s267
      %s269 = smul.addr %s268, 4
      %s270 = scalar_lea.vmem %s2, %s269
      %p271 = pneg %p127
      %p272 = pneg %p124
      %p273 = pneg %p157
      %p274 = pneg %p154
      %p275 = scmp.lt.s32.totalorder %s21, 1
      %s276 = scalar_select %p275, %s21, 1
      %p277 = scmp.lt.s32.totalorder %s20, 0
      %s278 = scalar_select %p277, %s20, 0
      %p279 = scmp.lt.s32.totalorder %s22, 1
      %s280 = scalar_select %p279, %s22, 1
      %s281 = smul.addr %s278, 2
      %s282 = sadd.s32 %s280, %s281
      %s283 = smul.addr %s276, 2
      %s284 = sadd.s32 %s282, %s283
      %s285 = smul.addr %s284, 4
      %s286 = scalar_lea.vmem %s3, %s285
      %p287 = scmp.lt.s32.totalorder %s21, 1
      %s288 = scalar_select %p287, %s21, 1
      %p289 = scmp.lt.s32.totalorder %s20, 0
      %s290 = scalar_select %p289, %s20, 0
      %p291 = scmp.lt.s32.totalorder %s22, 1
      %s292 = scalar_select %p291, %s22, 1
      %s293 = smul.addr %s290, 2
      %s294 = sadd.s32 %s292, %s293
      %s295 = smul.addr %s288, 2
      %s296 = sadd.s32 %s294, %s295
      %s297 = smul.addr %s296, 4
      %s298 = scalar_lea.vmem %s0, %s297
      %p299 = scmp.lt.s32.totalorder %s21, 1
      %s300 = scalar_select %p299, %s21, 1
      %p301 = scmp.lt.s32.totalorder %s23, 0
      %s302 = scalar_select %p301, %s23, 0
      %p303 = scmp.lt.s32.totalorder %s22, 3
      %s304 = scalar_select %p303, %s22, 3
      %s305 = smul.addr %s302, 4
      %s306 = sadd.s32 %s304, %s305
      %s307 = smul.addr %s300, 4
      %s308 = sadd.s32 %s306, %s307
      %s309 = smul.addr %s308, 4
      %s310 = scalar_lea.vmem %s1, %s309
      %s311 = sadd.s32 %s22, 2
      %p312 = scmp.lt.s32.totalorder %s21, 1
      %s313 = scalar_select %p312, %s21, 1
      %p314 = scmp.lt.s32.totalorder %s23, 0
      %s315 = scalar_select %p314, %s23, 0
      %p316 = scmp.lt.s32.totalorder %s311, 3
      %s317 = scalar_select %p316, %s311, 3
      %s318 = smul.addr %s315, 4
      %s319 = sadd.s32 %s317, %s318
      %s320 = smul.addr %s313, 4
      %s321 = sadd.s32 %s319, %s320
      %s322 = smul.addr %s321, 4
      %s323 = scalar_lea.vmem %s2, %s322
      %s324 = sadd.s32 %s22, 2
      %p325 = scmp.lt.s32.totalorder %s21, 1
      %s326 = scalar_select %p325, %s21, 1
      %p327 = scmp.lt.s32.totalorder %s20, 0
      %s328 = scalar_select %p327, %s20, 0
      %p329 = scmp.lt.s32.totalorder %s22, 1
      %s330 = scalar_select %p329, %s22, 1
      %s331 = smul.addr %s328, 2
      %s332 = sadd.s32 %s330, %s331
      %s333 = smul.addr %s326, 2
      %s334 = sadd.s32 %s332, %s333
      %s335 = smul.addr %s334, 4
      %s336 = scalar_lea.vmem %s3, %s335
      %p339 = scmp.eq.s32.totalorder %s23, 0
      // Predicated region
      $region33: #{gpt_like_forward.15} parent=31 // pred_check
        %p340 = pneg %p339
      $region34: #{gpt_like_forward.15} parent=31 // pred_check_branch
        %342 = sbr.rel (%p340) target = $region36
      $region35: #{gpt_like_forward.15} parent=31 // pred_region
        %v343 = vld [vmem:[%s298] sm:$0xf]
        %v344 = vmul.bf16 %v343, 1035287989
        %345 = vst [vmem:[#allocation2] sm:$0xf] %v344
        %vm346 = vcmask 7168
        %347 = vst.msk [vmem:[#allocation3] sm:$0xff] %vm346, -1e+30
        %348 = vst.msk [vmem:[#allocation4] sm:$0xff] %vm346, 0.0
        %349 = vst [vmem:[#allocation5] sm:$0xff] 0.0
      $region36: #{gpt_like_forward.15} parent=31 // pred_fallthru
        _
      %s350 = smul.u32 %s23, 8
      %s351 = smul.u32 %s20, 8
      %s352 = sadd.s32 %s351, 7
      %p353 = scmp.le.s32.totalorder %s350, %s352
      // Predicated region
      $region37: #{gpt_like_forward.15} parent=31 // pred_check
        %p354 = pneg %p353
      $region38: #{gpt_like_forward.15} parent=31 // pred_check_branch
        %356 = sbr.rel (%p354) target = $region40
      $region39: #{gpt_like_forward.15} parent=31 // pred_region
        %v357 = vld [vmem:[#allocation2] sm:$0xf]
        %v358 = vld [vmem:[%s310] sm:$0xf]
        %359 = vmatprep.subr.bf16.mxu0 0
        %360 = vmatpush1.bf16.xpose.msra.mxu0 0
        %361 = vmatprep.subr.bf16.mxu0 0
        %362 = vmatpush1.bf16.xpose.msra.mxu0 0
        %363 = vmatprep.subr.bf16.mxu0 0
        %364 = vmatpush1.bf16.xpose.msra.mxu0 0
        %365 = vmatprep.subr.bf16.mxu0 0
        %366 = vmatpush1.bf16.xpose.msra.mxu0 0
        %367 = vmatprep.subr.bf16.mxu0 0
        %368 = vmatpush1.bf16.xpose.msra.mxu0 0
        %369 = vmatprep.subr.bf16.mxu0 0
        %370 = vmatpush1.bf16.xpose.msra.mxu0 0
        %371 = vmatprep.subr.bf16.mxu0 0
        %372 = vmatpush1.bf16.xpose.msra.mxu0 0
        %373 = vmatprep.subr.bf16.mxu0 0
        %374 = vmatpush1.bf16.xpose.msra.mxu0 %v358
        %375 = vmatprep.subr.bf16.mxu0 0
        %376 = vmatpush2.bf16.xpose.msra.mxu0 0
        %377 = vmatprep.subr.bf16.mxu0 0
        %378 = vmatpush2.bf16.xpose.msra.mxu0 0
        %379 = vmatprep.subr.bf16.mxu0 0
        %380 = vmatpush2.bf16.xpose.msra.mxu0 0
        %381 = vmatprep.subr.bf16.mxu0 0
        %382 = vmatpush2.bf16.xpose.msra.mxu0 0
        %383 = vmatprep.subr.bf16.mxu0 0
        %384 = vmatpush2.bf16.xpose.msra.mxu0 0
        %385 = vmatprep.subr.bf16.mxu0 0
        %386 = vmatpush2.bf16.xpose.msra.mxu0 0
        %387 = vmatprep.subr.bf16.mxu0 0
        %388 = vmatpush2.bf16.xpose.msra.mxu0 0
        %389 = vmatprep.subr.bf16.mxu0 0
        %390 = vmatpush2.bf16.xpose.msra.mxu0 0
        %391 = vmatprep.mubr.bf16.mxu0 0
        %392 = vmatmul.mubr.bf16.gmra.mxu0 %v357
        %v393 = vpop.f32.mrf.mxu0
        %v394 = vadd.f32 0.0, %v393
        %v395 = vpop.f32.mrf.mxu0
        %v396 = vpop.f32.mrf.mxu0
        %v397 = vpop.f32.mrf.mxu0
        %398 = vdwg.mxu0
        %v399 = vlaneseq
        %v400 = vshrl.u32 %v399, 7
        %v401 = vstv %s351
        %v402 = vadd.s32 %v401, %v400
        %v403 = vlaneseq
        %v404 = vand.u32 %v403, 127
        %v405 = vstv %s350
        %v406 = vadd.s32 %v405, %v404
        %vm407 = vcmp.ge.s32.totalorder %v402, %v406
        %v408 = vsel %vm407, %v394, -1e+30
        %v409 = vld [vmem:[#allocation3] sm:$0xff]
        %vm410 = vcmask 64512
        %v411 = vsel %vm410, %v408, -inf
        %412 = vmax.xlane.f32.xlu0 %v411
        %v413 = vpop.xlane.xlu0 %412
        %v414 = vmax.f32 %v409, %v413
        %v415 = vsub.f32 %v409, %v414
        %v416 = vmul.f32 %v415, 1.442695
        %v417 = vpow.pop %v416
        %419 = vset.pattern.permute.xlu0 0
        %420 = vperm.xlu0 %419, %v414
        %v421 = vpop.permute.xlu0 %420
        %v423 = vsub.f32 %v408, %v421
        %v424 = vmul.f32 %v423, 1.442695
        %v425 = vpow.pop %v424
        %v426 = vld [vmem:[#allocation4] sm:$0xff]
        %v427 = vmul.f32 %v417, %v426
        %v428 = vsel %vm410, %v425, 0.0
        %429 = vadd.xlane.f32.xlu0 %v428
        %v430 = vpop.xlane.xlu0 %429
        %v431 = vadd.f32 %v427, %v430
        %vm432 = vcmask 7168
        %433 = vst.msk [vmem:[#allocation4] sm:$0xff] %vm432, %v431
        %v434 = vld [vmem:[#allocation5] sm:$0xff]
        %436 = vset.pattern.permute.xlu0 0
        %437 = vperm.xlu0 %436, %v417
        %v438 = vpop.permute.xlu0 %437
        %v440 = vmul.f32 %v438, %v434
        %v441 = vpack.c.bf16 %v425, %v425
        %v442 = vld [vmem:[%s323] sm:$0xf]
        %v444 = vsel %vm410, %v441, 0
        %vm446 = vcmask 1043456
        %v448 = vsel %vm446, %v442, 0
        %450 = vmatprep.subr.bf16.mxu0 0
        %451 = vmatpush1.bf16.msra.mxu0 0
        %452 = vmatprep.subr.bf16.mxu0 0
        %453 = vmatpush1.bf16.msra.mxu0 0
        %454 = vmatprep.subr.bf16.mxu0 0
        %455 = vmatpush1.bf16.msra.mxu0 0
        %456 = vmatprep.subr.bf16.mxu0 0
        %457 = vmatpush1.bf16.msra.mxu0 0
        %458 = vmatprep.subr.bf16.mxu0 0
        %459 = vmatpush1.bf16.msra.mxu0 0
        %460 = vmatprep.subr.bf16.mxu0 0
        %461 = vmatpush1.bf16.msra.mxu0 0
        %462 = vmatprep.subr.bf16.mxu0 0
        %463 = vmatpush1.bf16.msra.mxu0 0
        %464 = vmatprep.subr.bf16.mxu0 0
        %465 = vmatpush1.bf16.msra.mxu0 %v448
        %466 = vmatprep.subr.bf16.mxu0 0
        %467 = vmatpush2.bf16.msra.mxu0 0
        %468 = vmatprep.subr.bf16.mxu0 0
        %469 = vmatpush2.bf16.msra.mxu0 0
        %470 = vmatprep.subr.bf16.mxu0 0
        %471 = vmatpush2.bf16.msra.mxu0 0
        %472 = vmatprep.subr.bf16.mxu0 0
        %473 = vmatpush2.bf16.msra.mxu0 0
        %474 = vmatprep.subr.bf16.mxu0 0
        %475 = vmatpush2.bf16.msra.mxu0 0
        %476 = vmatprep.subr.bf16.mxu0 0
        %477 = vmatpush2.bf16.msra.mxu0 0
        %478 = vmatprep.subr.bf16.mxu0 0
        %479 = vmatpush2.bf16.msra.mxu0 0
        %480 = vmatprep.subr.bf16.mxu0 0
        %481 = vmatpush2.bf16.msra.mxu0 0
        %482 = vmatprep.mubr.bf16.mxu0 0
        %483 = vmatmul.mubr.bf16.gmra.mxu0 %v444
        %v484 = vpop.f32.mrf.mxu0
        %v485 = vadd.f32 0.0, %v484
        %v486 = vpop.f32.mrf.mxu0
        %v487 = vpop.f32.mrf.mxu0
        %v488 = vpop.f32.mrf.mxu0
        %489 = vdwg.mxu0
        %v490 = vadd.f32 %v440, %v485
        %491 = vst [vmem:[#allocation5] sm:$0xff] %v490
        %492 = vst.msk [vmem:[#allocation3] sm:$0xff] %vm432, %v414
      $region40: #{gpt_like_forward.15} parent=31 // pred_fallthru
        _
      // Predicated region
      $region41: #{gpt_like_forward.15} parent=31 // pred_check
        %p493 = pneg %p339
      $region42: #{gpt_like_forward.15} parent=31 // pred_check_branch
        %495 = sbr.rel (%p493) target = $region44
      $region43: #{gpt_like_forward.15} parent=31 // pred_region
        %v496 = vld [vmem:[#allocation4] sm:$0xff]
        %v497 = vrcp.pop %v496
        %v498 = vld [vmem:[#allocation5] sm:$0xff]
        %500 = vset.pattern.permute.xlu0 0
        %501 = vperm.xlu0 %500, %v497
        %v502 = vpop.permute.xlu0 %501
        %v504 = vmul.f32 %v498, %v502
        %v505 = vpack.c.bf16 %v504, %v504
        %506 = vst [vmem:[%s336] sm:$0xf] %v505
      $region44: #{gpt_like_forward.15} parent=31 // pred_fallthru
        _
      %p507 = scmp.lt.s32.totalorder %s21, 1
      %s508 = scalar_select %p507, %s21, 1
      %p509 = scmp.lt.s32.totalorder %s20, 0
      %s510 = scalar_select %p509, %s20, 0
      %p511 = scmp.lt.s32.totalorder %s22, 1
      %s512 = scalar_select %p511, %s22, 1
      %s513 = smul.addr %s510, 2
      %s514 = sadd.s32 %s512, %s513
      %s515 = smul.addr %s508, 2
      %s516 = sadd.s32 %s514, %s515
      %s517 = smul.addr %s516, 4
      %s518 = scalar_lea.vmem %s3, %s517
      // Predicated region
      $region45: #{gpt_like_forward.15} parent=31 // pred_check
        %p519 = pneg %p154
      $region46: #{gpt_like_forward.15} parent=31 // pred_check_branch
        %521 = sbr.rel (%p519) target = $region48
      $region47: #{gpt_like_forward.15} parent=31 // pred_region
        _
      $region48: #{gpt_like_forward.15} parent=31 // pred_fallthru
        _
    $region32: #{gpt_like_forward.15} parent=5 // pred_fallthru
      _
    %p522 = scmp.le.s32.totalorder 2, %s9
    // Predicated region
    $region49: #{gpt_like_forward.15} parent=5 // pred_check
      %p523 = pneg %p522
    $region50: #{gpt_like_forward.15} parent=5 // pred_check_branch
      %525 = sbr.rel (%p523) target = $region52
    $region51: #{gpt_like_forward.15} parent=5 // pred_region
      %s526 = ssub.s32 %s9, 2
      // Predicated region
      $region53: #{gpt_like_forward.15} parent=51 // pred_check
        %p527 = pneg %p160
      $region54: #{gpt_like_forward.15} parent=51 // pred_check_branch
        %529 = sbr.rel (%p527) target = $region56
      $region55: #{gpt_like_forward.15} parent=51 // pred_region
        %p530 = scmp.lt.s32.totalorder %s25, 1
        %s531 = scalar_select %p530, %s25, 1
        %p532 = scmp.lt.s32.totalorder %s24, 0
        %s533 = scalar_select %p532, %s24, 0
        %p534 = scmp.lt.s32.totalorder %s26, 1
        %s535 = scalar_select %p534, %s26, 1
        %s536 = smul.addr %s533, 2
        %s537 = sadd.s32 %s535, %s536
        %s538 = smul.addr %s531, 2
        %s539 = sadd.s32 %s537, %s538
        %s540 = smul.addr %s539, 4
        %s541 = scalar_lea.vmem %s3, %s540
      $region56: #{gpt_like_forward.15} parent=51 // pred_fallthru
        _
    $region52: #{gpt_like_forward.15} parent=5 // pred_fallthru
      _
  $region6: #{gpt_like_forward.15} parent=0 // loop_footer
    %s13 = sadd.s32 1, %s9
  $region7: #{gpt_like_forward.15} parent=0 // loop_footer_branch
    %8 = sbr.rel target = $region3
  $region8: #{gpt_like_forward.15} parent=0 // loop_exit
    _

// kernel: gpt_like_forward.14
$region0: #{gpt_like_forward.14}
  #allocation0 [shape = 'u32[]', space=smem, size = 0x4, offset = 0x4, fixed_abs, tag = 'smem constant byte address 0x4 - core index']
  #allocation1 [shape = 'u32[144,128]{1,0:T(1,128)}', space=vmem, size = 0x12000, scoped, tag = 'internal scratch']
  #allocation2 [shape = 'f32[16,512]{1,0:T(8,128)}', space=vmem, size = 0x8000, scoped, tag = 'scratch operand']
  %s0 = inlined_call_operand.vmem [shape: bf16[16,256], index: 0, kind: input, shape index: {}]
  %s1 = inlined_call_operand.vmem [shape: bf16[256,512], index: 1, kind: input, shape index: {}]
  %s2 = inlined_call_operand.vmem [shape: f32[1,512], index: 2, kind: input, shape index: {}]
  %s3 = inlined_call_operand.vmem [shape: bf16[16,512], index: 3, kind: output, shape index: {}]
  %s4 = sld [smem:[#allocation0]]
  $region30: #{gpt_like_forward.14} parent=0
    _
  %s6 = ssub.s32 1, %s4
  %s7 = scalar_select 0, %s6, %s4
  // Predicated region
  $region2: #{gpt_like_forward.14} parent=0 // pred_check
    _
  $region3: #{gpt_like_forward.14} parent=0 // pred_check_branch
    %9 = sbr.rel (0) target = $region5
  $region4: #{gpt_like_forward.14} parent=0 // pred_region
    _
  $region5: #{gpt_like_forward.14} parent=0 // pred_fallthru
    _
  // Predicated region
  $region6: #{gpt_like_forward.14} parent=0 // pred_check
    _
  $region7: #{gpt_like_forward.14} parent=0 // pred_check_branch
    %11 = sbr.rel (0) target = $region9
  $region8: #{gpt_like_forward.14} parent=0 // pred_region
    _
  $region9: #{gpt_like_forward.14} parent=0 // pred_fallthru
    _
  // Predicated region
  $region10: #{gpt_like_forward.14} parent=0 // pred_check
    _
  $region11: #{gpt_like_forward.14} parent=0 // pred_check_branch
    %13 = sbr.rel (0) target = $region13
  $region12: #{gpt_like_forward.14} parent=0 // pred_region
    _
  $region13: #{gpt_like_forward.14} parent=0 // pred_fallthru
    _
  %p14 = scmp.eq.s32.totalorder 0, 0
  // Predicated region
  $region14: #{gpt_like_forward.14} parent=0 // pred_check
    %p15 = pneg %p14
  $region15: #{gpt_like_forward.14} parent=0 // pred_check_branch
    %17 = sbr.rel (%p15) target = $region17
  $region16: #{gpt_like_forward.14} parent=0 // pred_region
    %18 = vst [vmem:[#allocation2] sm:$0xff] 0.0
    %19 = vst [vmem:[#allocation2 + $0x8] sm:$0xff] 0.0
    %20 = vst [vmem:[#allocation2 + $0x10] sm:$0xff] 0.0
    %21 = vst [vmem:[#allocation2 + $0x18] sm:$0xff] 0.0
    %22 = vst [vmem:[#allocation2 + $0x20] sm:$0xff] 0.0
    %23 = vst [vmem:[#allocation2 + $0x28] sm:$0xff] 0.0
    %24 = vst [vmem:[#allocation2 + $0x30] sm:$0xff] 0.0
    %25 = vst [vmem:[#allocation2 + $0x38] sm:$0xff] 0.0
  $region17: #{gpt_like_forward.14} parent=0 // pred_fallthru
    _
  %v26 = vld [vmem:[#allocation2] sm:$0xff]
  %v27 = vld [vmem:[#allocation2 + $0x8] sm:$0xff]
  %v28 = vld [vmem:[#allocation2 + $0x10] sm:$0xff]
  %v29 = vld [vmem:[#allocation2 + $0x18] sm:$0xff]
  %v30 = vld [vmem:[#allocation2 + $0x20] sm:$0xff]
  %v31 = vld [vmem:[#allocation2 + $0x28] sm:$0xff]
  %v32 = vld [vmem:[#allocation2 + $0x30] sm:$0xff]
  %v33 = vld [vmem:[#allocation2 + $0x38] sm:$0xff]
  %v34 = vld [vmem:[%s0] sm:$0xff]
  %v35 = vld [vmem:[%s0 + $0x8] sm:$0xff]
  %v36 = vld [vmem:[%s1] sm:$0xff]
  %v37 = vld [vmem:[%s1 + $0x8] sm:$0xff]
  %v38 = vld [vmem:[%s1 + $0x10] sm:$0xff]
  %v39 = vld [vmem:[%s1 + $0x18] sm:$0xff]
  %v40 = vld [vmem:[%s1 + $0x20] sm:$0xff]
  %v41 = vld [vmem:[%s1 + $0x28] sm:$0xff]
  %v42 = vld [vmem:[%s1 + $0x30] sm:$0xff]
  %v43 = vld [vmem:[%s1 + $0x38] sm:$0xff]
  %v44 = vld [vmem:[%s1 + $0x40] sm:$0xff]
  %v45 = vld [vmem:[%s1 + $0x48] sm:$0xff]
  %v46 = vld [vmem:[%s1 + $0x50] sm:$0xff]
  %v47 = vld [vmem:[%s1 + $0x58] sm:$0xff]
  %v48 = vld [vmem:[%s1 + $0x60] sm:$0xff]
  %v49 = vld [vmem:[%s1 + $0x68] sm:$0xff]
  %v50 = vld [vmem:[%s1 + $0x70] sm:$0xff]
  %v51 = vld [vmem:[%s1 + $0x78] sm:$0xff]
  %v52 = vld [vmem:[%s1 + $0x80] sm:$0xff]
  %v53 = vld [vmem:[%s1 + $0x88] sm:$0xff]
  %v54 = vld [vmem:[%s1 + $0x90] sm:$0xff]
  %v55 = vld [vmem:[%s1 + $0x98] sm:$0xff]
  %v56 = vld [vmem:[%s1 + $0xa0] sm:$0xff]
  %v57 = vld [vmem:[%s1 + $0xa8] sm:$0xff]
  %v58 = vld [vmem:[%s1 + $0xb0] sm:$0xff]
  %v59 = vld [vmem:[%s1 + $0xb8] sm:$0xff]
  %v60 = vld [vmem:[%s1 + $0xc0] sm:$0xff]
  %v61 = vld [vmem:[%s1 + $0xc8] sm:$0xff]
  %v62 = vld [vmem:[%s1 + $0xd0] sm:$0xff]
  %v63 = vld [vmem:[%s1 + $0xd8] sm:$0xff]
  %v64 = vld [vmem:[%s1 + $0xe0] sm:$0xff]
  %v65 = vld [vmem:[%s1 + $0xe8] sm:$0xff]
  %v66 = vld [vmem:[%s1 + $0xf0] sm:$0xff]
  %v67 = vld [vmem:[%s1 + $0xf8] sm:$0xff]
  %v68 = vld [vmem:[%s1 + $0x100] sm:$0xff]
  %v69 = vld [vmem:[%s1 + $0x108] sm:$0xff]
  %v70 = vld [vmem:[%s1 + $0x110] sm:$0xff]
  %v71 = vld [vmem:[%s1 + $0x118] sm:$0xff]
  %v72 = vld [vmem:[%s1 + $0x120] sm:$0xff]
  %v73 = vld [vmem:[%s1 + $0x128] sm:$0xff]
  %v74 = vld [vmem:[%s1 + $0x130] sm:$0xff]
  %v75 = vld [vmem:[%s1 + $0x138] sm:$0xff]
  %v76 = vld [vmem:[%s1 + $0x140] sm:$0xff]
  %v77 = vld [vmem:[%s1 + $0x148] sm:$0xff]
  %v78 = vld [vmem:[%s1 + $0x150] sm:$0xff]
  %v79 = vld [vmem:[%s1 + $0x158] sm:$0xff]
  %v80 = vld [vmem:[%s1 + $0x160] sm:$0xff]
  %v81 = vld [vmem:[%s1 + $0x168] sm:$0xff]
  %v82 = vld [vmem:[%s1 + $0x170] sm:$0xff]
  %v83 = vld [vmem:[%s1 + $0x178] sm:$0xff]
  %v84 = vld [vmem:[%s1 + $0x180] sm:$0xff]
  %v85 = vld [vmem:[%s1 + $0x188] sm:$0xff]
  %v86 = vld [vmem:[%s1 + $0x190] sm:$0xff]
  %v87 = vld [vmem:[%s1 + $0x198] sm:$0xff]
  %v88 = vld [vmem:[%s1 + $0x1a0] sm:$0xff]
  %v89 = vld [vmem:[%s1 + $0x1a8] sm:$0xff]
  %v90 = vld [vmem:[%s1 + $0x1b0] sm:$0xff]
  %v91 = vld [vmem:[%s1 + $0x1b8] sm:$0xff]
  %v92 = vld [vmem:[%s1 + $0x1c0] sm:$0xff]
  %v93 = vld [vmem:[%s1 + $0x1c8] sm:$0xff]
  %v94 = vld [vmem:[%s1 + $0x1d0] sm:$0xff]
  %v95 = vld [vmem:[%s1 + $0x1d8] sm:$0xff]
  %v96 = vld [vmem:[%s1 + $0x1e0] sm:$0xff]
  %v97 = vld [vmem:[%s1 + $0x1e8] sm:$0xff]
  %v98 = vld [vmem:[%s1 + $0x1f0] sm:$0xff]
  %v99 = vld [vmem:[%s1 + $0x1f8] sm:$0xff]
  %v102 = vunpack.c.l.b16 %v34
  %v103 = vunpack.c.h.b16 %v34
  %v104 = vunpack.c.l.b16 %v35
  %v105 = vunpack.c.h.b16 %v35
  %v106 = vpack.c.b16 %v104, %v102
  %v107 = vpack.c.b16 %v105, %v103
  %v174 = vunpack.c.l.b16 %v36
  %v175 = vunpack.c.h.b16 %v36
  %v176 = vunpack.c.l.b16 %v37
  %v177 = vunpack.c.h.b16 %v37
  %v178 = vunpack.c.l.b16 %v38
  %v179 = vunpack.c.h.b16 %v38
  %v180 = vunpack.c.l.b16 %v39
  %v181 = vunpack.c.h.b16 %v39
  %v182 = vunpack.c.l.b16 %v40
  %v183 = vunpack.c.h.b16 %v40
  %v184 = vunpack.c.l.b16 %v41
  %v185 = vunpack.c.h.b16 %v41
  %v186 = vunpack.c.l.b16 %v42
  %v187 = vunpack.c.h.b16 %v42
  %v188 = vunpack.c.l.b16 %v43
  %v189 = vunpack.c.h.b16 %v43
  %v190 = vunpack.c.l.b16 %v44
  %v191 = vunpack.c.h.b16 %v44
  %v192 = vunpack.c.l.b16 %v45
  %v193 = vunpack.c.h.b16 %v45
  %v194 = vunpack.c.l.b16 %v46
  %v195 = vunpack.c.h.b16 %v46
  %v196 = vunpack.c.l.b16 %v47
  %v197 = vunpack.c.h.b16 %v47
  %v198 = vunpack.c.l.b16 %v48
  %v199 = vunpack.c.h.b16 %v48
  %v200 = vunpack.c.l.b16 %v49
  %v201 = vunpack.c.h.b16 %v49
  %v202 = vunpack.c.l.b16 %v50
  %v203 = vunpack.c.h.b16 %v50
  %v204 = vunpack.c.l.b16 %v51
  %v205 = vunpack.c.h.b16 %v51
  %v206 = vunpack.c.l.b16 %v52
  %v207 = vunpack.c.h.b16 %v52
  %v208 = vunpack.c.l.b16 %v53
  %v209 = vunpack.c.h.b16 %v53
  %v210 = vunpack.c.l.b16 %v54
  %v211 = vunpack.c.h.b16 %v54
  %v212 = vunpack.c.l.b16 %v55
  %v213 = vunpack.c.h.b16 %v55
  %v214 = vunpack.c.l.b16 %v56
  %v215 = vunpack.c.h.b16 %v56
  %v216 = vunpack.c.l.b16 %v57
  %v217 = vunpack.c.h.b16 %v57
  %v218 = vunpack.c.l.b16 %v58
  %v219 = vunpack.c.h.b16 %v58
  %v220 = vunpack.c.l.b16 %v59
  %v221 = vunpack.c.h.b16 %v59
  %v222 = vunpack.c.l.b16 %v60
  %v223 = vunpack.c.h.b16 %v60
  %v224 = vunpack.c.l.b16 %v61
  %v225 = vunpack.c.h.b16 %v61
  %v226 = vunpack.c.l.b16 %v62
  %v227 = vunpack.c.h.b16 %v62
  %v228 = vunpack.c.l.b16 %v63
  %v229 = vunpack.c.h.b16 %v63
  %v230 = vunpack.c.l.b16 %v64
  %v231 = vunpack.c.h.b16 %v64
  %v232 = vunpack.c.l.b16 %v65
  %v233 = vunpack.c.h.b16 %v65
  %v234 = vunpack.c.l.b16 %v66
  %v235 = vunpack.c.h.b16 %v66
  %v236 = vunpack.c.l.b16 %v67
  %v237 = vunpack.c.h.b16 %v67
  %v238 = vunpack.c.l.b16 %v68
  %v239 = vunpack.c.h.b16 %v68
  %v240 = vunpack.c.l.b16 %v69
  %v241 = vunpack.c.h.b16 %v69
  %v242 = vunpack.c.l.b16 %v70
  %v243 = vunpack.c.h.b16 %v70
  %v244 = vunpack.c.l.b16 %v71
  %v245 = vunpack.c.h.b16 %v71
  %v246 = vunpack.c.l.b16 %v72
  %v247 = vunpack.c.h.b16 %v72
  %v248 = vunpack.c.l.b16 %v73
  %v249 = vunpack.c.h.b16 %v73
  %v250 = vunpack.c.l.b16 %v74
  %v251 = vunpack.c.h.b16 %v74
  %v252 = vunpack.c.l.b16 %v75
  %v253 = vunpack.c.h.b16 %v75
  %v254 = vunpack.c.l.b16 %v76
  %v255 = vunpack.c.h.b16 %v76
  %v256 = vunpack.c.l.b16 %v77
  %v257 = vunpack.c.h.b16 %v77
  %v258 = vunpack.c.l.b16 %v78
  %v259 = vunpack.c.h.b16 %v78
  %v260 = vunpack.c.l.b16 %v79
  %v261 = vunpack.c.h.b16 %v79
  %v262 = vunpack.c.l.b16 %v80
  %v263 = vunpack.c.h.b16 %v80
  %v264 = vunpack.c.l.b16 %v81
  %v265 = vunpack.c.h.b16 %v81
  %v266 = vunpack.c.l.b16 %v82
  %v267 = vunpack.c.h.b16 %v82
  %v268 = vunpack.c.l.b16 %v83
  %v269 = vunpack.c.h.b16 %v83
  %v270 = vunpack.c.l.b16 %v84
  %v271 = vunpack.c.h.b16 %v84
  %v272 = vunpack.c.l.b16 %v85
  %v273 = vunpack.c.h.b16 %v85
  %v274 = vunpack.c.l.b16 %v86
  %v275 = vunpack.c.h.b16 %v86
  %v276 = vunpack.c.l.b16 %v87
  %v277 = vunpack.c.h.b16 %v87
  %v278 = vunpack.c.l.b16 %v88
  %v279 = vunpack.c.h.b16 %v88
  %v280 = vunpack.c.l.b16 %v89
  %v281 = vunpack.c.h.b16 %v89
  %v282 = vunpack.c.l.b16 %v90
  %v283 = vunpack.c.h.b16 %v90
  %v284 = vunpack.c.l.b16 %v91
  %v285 = vunpack.c.h.b16 %v91
  %v286 = vunpack.c.l.b16 %v92
  %v287 = vunpack.c.h.b16 %v92
  %v288 = vunpack.c.l.b16 %v93
  %v289 = vunpack.c.h.b16 %v93
  %v290 = vunpack.c.l.b16 %v94
  %v291 = vunpack.c.h.b16 %v94
  %v292 = vunpack.c.l.b16 %v95
  %v293 = vunpack.c.h.b16 %v95
  %v294 = vunpack.c.l.b16 %v96
  %v295 = vunpack.c.h.b16 %v96
  %v296 = vunpack.c.l.b16 %v97
  %v297 = vunpack.c.h.b16 %v97
  %v298 = vunpack.c.l.b16 %v98
  %v299 = vunpack.c.h.b16 %v98
  %v300 = vunpack.c.l.b16 %v99
  %v301 = vunpack.c.h.b16 %v99
  %v302 = vpack.c.b16 %v178, %v174
  %v303 = vpack.c.b16 %v179, %v175
  %v304 = vpack.c.b16 %v180, %v176
  %v305 = vpack.c.b16 %v181, %v177
  %v306 = vpack.c.b16 %v186, %v182
  %v307 = vpack.c.b16 %v187, %v183
  %v308 = vpack.c.b16 %v188, %v184
  %v309 = vpack.c.b16 %v189, %v185
  %v310 = vpack.c.b16 %v194, %v190
  %v311 = vpack.c.b16 %v195, %v191
  %v312 = vpack.c.b16 %v196, %v192
  %v313 = vpack.c.b16 %v197, %v193
  %v314 = vpack.c.b16 %v202, %v198
  %v315 = vpack.c.b16 %v203, %v199
  %v316 = vpack.c.b16 %v204, %v200
  %v317 = vpack.c.b16 %v205, %v201
  %v318 = vpack.c.b16 %v210, %v206
  %v319 = vpack.c.b16 %v211, %v207
  %v320 = vpack.c.b16 %v212, %v208
  %v321 = vpack.c.b16 %v213, %v209
  %v322 = vpack.c.b16 %v218, %v214
  %v323 = vpack.c.b16 %v219, %v215
  %v324 = vpack.c.b16 %v220, %v216
  %v325 = vpack.c.b16 %v221, %v217
  %v326 = vpack.c.b16 %v226, %v222
  %v327 = vpack.c.b16 %v227, %v223
  %v328 = vpack.c.b16 %v228, %v224
  %v329 = vpack.c.b16 %v229, %v225
  %v330 = vpack.c.b16 %v234, %v230
  %v331 = vpack.c.b16 %v235, %v231
  %v332 = vpack.c.b16 %v236, %v232
  %v333 = vpack.c.b16 %v237, %v233
  %v334 = vpack.c.b16 %v242, %v238
  %v335 = vpack.c.b16 %v243, %v239
  %v336 = vpack.c.b16 %v244, %v240
  %v337 = vpack.c.b16 %v245, %v241
  %v338 = vpack.c.b16 %v250, %v246
  %v339 = vpack.c.b16 %v251, %v247
  %v340 = vpack.c.b16 %v252, %v248
  %v341 = vpack.c.b16 %v253, %v249
  %v342 = vpack.c.b16 %v258, %v254
  %v343 = vpack.c.b16 %v259, %v255
  %v344 = vpack.c.b16 %v260, %v256
  %v345 = vpack.c.b16 %v261, %v257
  %v346 = vpack.c.b16 %v266, %v262
  %v347 = vpack.c.b16 %v267, %v263
  %v348 = vpack.c.b16 %v268, %v264
  %v349 = vpack.c.b16 %v269, %v265
  %v350 = vpack.c.b16 %v274, %v270
  %v351 = vpack.c.b16 %v275, %v271
  %v352 = vpack.c.b16 %v276, %v272
  %v353 = vpack.c.b16 %v277, %v273
  %v354 = vpack.c.b16 %v282, %v278
  %v355 = vpack.c.b16 %v283, %v279
  %v356 = vpack.c.b16 %v284, %v280
  %v357 = vpack.c.b16 %v285, %v281
  %v358 = vpack.c.b16 %v290, %v286
  %v359 = vpack.c.b16 %v291, %v287
  %v360 = vpack.c.b16 %v292, %v288
  %v361 = vpack.c.b16 %v293, %v289
  %v362 = vpack.c.b16 %v298, %v294
  %v363 = vpack.c.b16 %v299, %v295
  %v364 = vpack.c.b16 %v300, %v296
  %v365 = vpack.c.b16 %v301, %v297
  %430 = vmatprep.subr.bf16.mxu0 %v331
  %431 = vmatpush1.bf16.msra.mxu0 %v330
  %432 = vmatprep.subr.bf16.mxu0 %v327
  %433 = vmatpush1.bf16.msra.mxu0 %v326
  %434 = vmatprep.subr.bf16.mxu0 %v323
  %435 = vmatpush1.bf16.msra.mxu0 %v322
  %436 = vmatprep.subr.bf16.mxu0 %v319
  %437 = vmatpush1.bf16.msra.mxu0 %v318
  %438 = vmatprep.subr.bf16.mxu0 %v315
  %439 = vmatpush1.bf16.msra.mxu0 %v314
  %440 = vmatprep.subr.bf16.mxu0 %v311
  %441 = vmatpush1.bf16.msra.mxu0 %v310
  %442 = vmatprep.subr.bf16.mxu0 %v307
  %443 = vmatpush1.bf16.msra.mxu0 %v306
  %444 = vmatprep.subr.bf16.mxu0 %v303
  %445 = vmatpush1.bf16.msra.mxu0 %v302
  %446 = vmatprep.subr.bf16.mxu0 %v363
  %447 = vmatpush2.bf16.msra.mxu0 %v362
  %448 = vmatprep.subr.bf16.mxu0 %v359
  %449 = vmatpush2.bf16.msra.mxu0 %v358
  %450 = vmatprep.subr.bf16.mxu0 %v355
  %451 = vmatpush2.bf16.msra.mxu0 %v354
  %452 = vmatprep.subr.bf16.mxu0 %v351
  %453 = vmatpush2.bf16.msra.mxu0 %v350
  %454 = vmatprep.subr.bf16.mxu0 %v347
  %455 = vmatpush2.bf16.msra.mxu0 %v346
  %456 = vmatprep.subr.bf16.mxu0 %v343
  %457 = vmatpush2.bf16.msra.mxu0 %v342
  %458 = vmatprep.subr.bf16.mxu0 %v339
  %459 = vmatpush2.bf16.msra.mxu0 %v338
  %460 = vmatprep.subr.bf16.mxu0 %v335
  %461 = vmatpush2.bf16.msra.mxu0 %v334
  %462 = vmatprep.mubr.bf16.mxu0 %v107
  %463 = vmatmul.mubr.bf16.gmra.mxu0 %v106
  %v464 = vpop.f32.mrf.mxu0
  %v465 = vadd.f32 0.0, %v464
  %v466 = vpop.f32.mrf.mxu0
  %v467 = vadd.f32 0.0, %v466
  %v468 = vpop.f32.mrf.mxu0
  %v469 = vadd.f32 0.0, %v468
  %v470 = vpop.f32.mrf.mxu0
  %v471 = vadd.f32 0.0, %v470
  %472 = vdwg.mxu0
  %473 = vmatprep.subr.bf16.mxu0 %v333
  %474 = vmatpush1.bf16.msra.mxu0 %v332
  %475 = vmatprep.subr.bf16.mxu0 %v329
  %476 = vmatpush1.bf16.msra.mxu0 %v328
  %477 = vmatprep.subr.bf16.mxu0 %v325
  %478 = vmatpush1.bf16.msra.mxu0 %v324
  %479 = vmatprep.subr.bf16.mxu0 %v321
  %480 = vmatpush1.bf16.msra.mxu0 %v320
  %481 = vmatprep.subr.bf16.mxu0 %v317
  %482 = vmatpush1.bf16.msra.mxu0 %v316
  %483 = vmatprep.subr.bf16.mxu0 %v313
  %484 = vmatpush1.bf16.msra.mxu0 %v312
  %485 = vmatprep.subr.bf16.mxu0 %v309
  %486 = vmatpush1.bf16.msra.mxu0 %v308
  %487 = vmatprep.subr.bf16.mxu0 %v305
  %488 = vmatpush1.bf16.msra.mxu0 %v304
  %489 = vmatprep.subr.bf16.mxu0 %v365
  %490 = vmatpush2.bf16.msra.mxu0 %v364
  %491 = vmatprep.subr.bf16.mxu0 %v361
  %492 = vmatpush2.bf16.msra.mxu0 %v360
  %493 = vmatprep.subr.bf16.mxu0 %v357
  %494 = vmatpush2.bf16.msra.mxu0 %v356
  %495 = vmatprep.subr.bf16.mxu0 %v353
  %496 = vmatpush2.bf16.msra.mxu0 %v352
  %497 = vmatprep.subr.bf16.mxu0 %v349
  %498 = vmatpush2.bf16.msra.mxu0 %v348
  %499 = vmatprep.subr.bf16.mxu0 %v345
  %500 = vmatpush2.bf16.msra.mxu0 %v344
  %501 = vmatprep.subr.bf16.mxu0 %v341
  %502 = vmatpush2.bf16.msra.mxu0 %v340
  %503 = vmatprep.subr.bf16.mxu0 %v337
  %504 = vmatpush2.bf16.msra.mxu0 %v336
  %505 = vmatprep.mubr.bf16.mxu0 %v107
  %506 = vmatmul.mubr.bf16.gmra.mxu0 %v106
  %v507 = vpop.f32.mrf.mxu0
  %v508 = vadd.f32 0.0, %v507
  %v509 = vpop.f32.mrf.mxu0
  %v510 = vadd.f32 0.0, %v509
  %v511 = vpop.f32.mrf.mxu0
  %v512 = vadd.f32 0.0, %v511
  %v513 = vpop.f32.mrf.mxu0
  %v514 = vadd.f32 0.0, %v513
  %515 = vdwg.mxu0
  %v516 = vadd.f32 %v26, %v465
  %v517 = vadd.f32 %v27, %v467
  %v518 = vadd.f32 %v28, %v508
  %v519 = vadd.f32 %v29, %v510
  %v520 = vadd.f32 %v30, %v469
  %v521 = vadd.f32 %v31, %v471
  %v522 = vadd.f32 %v32, %v512
  %v523 = vadd.f32 %v33, %v514
  %524 = vst [vmem:[#allocation2] sm:$0xff] %v516
  %525 = vst [vmem:[#allocation2 + $0x8] sm:$0xff] %v517
  %526 = vst [vmem:[#allocation2 + $0x10] sm:$0xff] %v518
  %527 = vst [vmem:[#allocation2 + $0x18] sm:$0xff] %v519
  %528 = vst [vmem:[#allocation2 + $0x20] sm:$0xff] %v520
  %529 = vst [vmem:[#allocation2 + $0x28] sm:$0xff] %v521
  %530 = vst [vmem:[#allocation2 + $0x30] sm:$0xff] %v522
  %531 = vst [vmem:[#allocation2 + $0x38] sm:$0xff] %v523
  // Predicated region
  $region18: #{gpt_like_forward.14} parent=0 // pred_check
    %p532 = pneg %p14
  $region19: #{gpt_like_forward.14} parent=0 // pred_check_branch
    %534 = sbr.rel (%p532) target = $region21
  $region20: #{gpt_like_forward.14} parent=0 // pred_region
    %v535 = vld [vmem:[#allocation2] sm:$0xff]
    %v536 = vld [vmem:[#allocation2 + $0x8] sm:$0xff]
    %v537 = vld [vmem:[#allocation2 + $0x10] sm:$0xff]
    %v538 = vld [vmem:[#allocation2 + $0x18] sm:$0xff]
    %v539 = vld [vmem:[#allocation2 + $0x20] sm:$0xff]
    %v540 = vld [vmem:[#allocation2 + $0x28] sm:$0xff]
    %v541 = vld [vmem:[#allocation2 + $0x30] sm:$0xff]
    %v542 = vld [vmem:[#allocation2 + $0x38] sm:$0xff]
    %v543 = vld [vmem:[%s2] sm:$0xf]
    %v545 = vlaneseq
    %v546 = vshrl.u32 %v545, 7
    %v547 = vsub.s32 0, %v546
    %v548 = vrot.slane %v543, %v547
    %v549 = vlaneseq
    %v550 = vshrl.u32 %v549, 7
    %v551 = vsub.s32 1, %v550
    %v552 = vrot.slane %v543, %v551
    %v553 = vlaneseq
    %v554 = vshrl.u32 %v553, 7
    %v555 = vsub.s32 2, %v554
    %v556 = vrot.slane %v543, %v555
    %v557 = vlaneseq
    %v558 = vshrl.u32 %v557, 7
    %v559 = vsub.s32 3, %v558
    %v560 = vrot.slane %v543, %v559
    %v565 = vadd.f32 %v535, %v548
    %v566 = vadd.f32 %v536, %v552
    %v567 = vadd.f32 %v537, %v556
    %v568 = vadd.f32 %v538, %v560
    %v569 = vadd.f32 %v539, %v548
    %v570 = vadd.f32 %v540, %v552
    %v571 = vadd.f32 %v541, %v556
    %v572 = vadd.f32 %v542, %v560
    %v573 = vpack.c.bf16 %v569, %v565
    %v574 = vpack.c.bf16 %v570, %v566
    %v575 = vpack.c.bf16 %v571, %v567
    %v576 = vpack.c.bf16 %v572, %v568
    %v581 = vunpack.c.l.b16 %v573
    %v582 = vunpack.c.l.b16 %v574
    %v583 = vunpack.c.l.b16 %v575
    %v584 = vunpack.c.l.b16 %v576
    %v585 = vunpack.c.h.b16 %v573
    %v586 = vunpack.c.h.b16 %v574
    %v587 = vunpack.c.h.b16 %v575
    %v588 = vunpack.c.h.b16 %v576
    %v589 = vpack.c.b16 %v582, %v581
    %v590 = vpack.c.b16 %v584, %v583
    %v591 = vpack.c.b16 %v586, %v585
    %v592 = vpack.c.b16 %v588, %v587
    %597 = vst [vmem:[%s3] sm:$0xff] %v589
    %598 = vst [vmem:[%s3 + $0x8] sm:$0xff] %v590
    %599 = vst [vmem:[%s3 + $0x10] sm:$0xff] %v591
    %600 = vst [vmem:[%s3 + $0x18] sm:$0xff] %v592
  $region21: #{gpt_like_forward.14} parent=0 // pred_fallthru
    _
  // Predicated region
  $region22: #{gpt_like_forward.14} parent=0 // pred_check
    _
  $region23: #{gpt_like_forward.14} parent=0 // pred_check_branch
    %602 = sbr.rel (0) target = $region25
  $region24: #{gpt_like_forward.14} parent=0 // pred_region
    _
  $region25: #{gpt_like_forward.14} parent=0 // pred_fallthru
    _
  // Predicated region
  $region26: #{gpt_like_forward.14} parent=0 // pred_check
    _
  $region27: #{gpt_like_forward.14} parent=0 // pred_check_branch
    %604 = sbr.rel (0) target = $region29
  $region28: #{gpt_like_forward.14} parent=0 // pred_region
    _
  $region29: #{gpt_like_forward.14} parent=0 // pred_fallthru
    _

// kernel: gpt_like_forward.17
$region0: #{gpt_like_forward.17}
  #allocation0 [shape = 'u32[]', space=smem, size = 0x4, offset = 0x4, fixed_abs, tag = 'smem constant byte address 0x4 - core index']
  #allocation1 [shape = 'u32[144,128]{1,0:T(1,128)}', space=vmem, size = 0x12000, scoped, tag = 'internal scratch']
  #allocation2 [shape = 'f32[16,512]{1,0:T(8,128)}', space=vmem, size = 0x8000, scoped, tag = 'scratch operand']
  %s0 = inlined_call_operand.vmem [shape: bf16[16,256], index: 0, kind: input, shape index: {}]
  %s1 = inlined_call_operand.vmem [shape: bf16[256,512], index: 1, kind: input, shape index: {}]
  %s2 = inlined_call_operand.vmem [shape: f32[1,512], index: 2, kind: input, shape index: {}]
  %s3 = inlined_call_operand.vmem [shape: bf16[16,512], index: 3, kind: output, shape index: {}]
  %s4 = sld [smem:[#allocation0]]
  $region30: #{gpt_like_forward.17} parent=0
    _
  %s6 = ssub.s32 1, %s4
  %s7 = scalar_select 0, %s6, %s4
  // Predicated region
  $region2: #{gpt_like_forward.17} parent=0 // pred_check
    _
  $region3: #{gpt_like_forward.17} parent=0 // pred_check_branch
    %9 = sbr.rel (0) target = $region5
  $region4: #{gpt_like_forward.17} parent=0 // pred_region
    _
  $region5: #{gpt_like_forward.17} parent=0 // pred_fallthru
    _
  // Predicated region
  $region6: #{gpt_like_forward.17} parent=0 // pred_check
    _
  $region7: #{gpt_like_forward.17} parent=0 // pred_check_branch
    %11 = sbr.rel (0) target = $region9
  $region8: #{gpt_like_forward.17} parent=0 // pred_region
    _
  $region9: #{gpt_like_forward.17} parent=0 // pred_fallthru
    _
  // Predicated region
  $region10: #{gpt_like_forward.17} parent=0 // pred_check
    _
  $region11: #{gpt_like_forward.17} parent=0 // pred_check_branch
    %13 = sbr.rel (0) target = $region13
  $region12: #{gpt_like_forward.17} parent=0 // pred_region
    _
  $region13: #{gpt_like_forward.17} parent=0 // pred_fallthru
    _
  %p14 = scmp.eq.s32.totalorder 0, 0
  // Predicated region
  $region14: #{gpt_like_forward.17} parent=0 // pred_check
    %p15 = pneg %p14
  $region15: #{gpt_like_forward.17} parent=0 // pred_check_branch
    %17 = sbr.rel (%p15) target = $region17
  $region16: #{gpt_like_forward.17} parent=0 // pred_region
    %18 = vst [vmem:[#allocation2] sm:$0xff] 0.0
    %19 = vst [vmem:[#allocation2 + $0x8] sm:$0xff] 0.0
    %20 = vst [vmem:[#allocation2 + $0x10] sm:$0xff] 0.0
    %21 = vst [vmem:[#allocation2 + $0x18] sm:$0xff] 0.0
    %22 = vst [vmem:[#allocation2 + $0x20] sm:$0xff] 0.0
    %23 = vst [vmem:[#allocation2 + $0x28] sm:$0xff] 0.0
    %24 = vst [vmem:[#allocation2 + $0x30] sm:$0xff] 0.0
    %25 = vst [vmem:[#allocation2 + $0x38] sm:$0xff] 0.0
  $region17: #{gpt_like_forward.17} parent=0 // pred_fallthru
    _
  %v26 = vld [vmem:[#allocation2] sm:$0xff]
  %v27 = vld [vmem:[#allocation2 + $0x8] sm:$0xff]
  %v28 = vld [vmem:[#allocation2 + $0x10] sm:$0xff]
  %v29 = vld [vmem:[#allocation2 + $0x18] sm:$0xff]
  %v30 = vld [vmem:[#allocation2 + $0x20] sm:$0xff]
  %v31 = vld [vmem:[#allocation2 + $0x28] sm:$0xff]
  %v32 = vld [vmem:[#allocation2 + $0x30] sm:$0xff]
  %v33 = vld [vmem:[#allocation2 + $0x38] sm:$0xff]
  %v34 = vld [vmem:[%s0] sm:$0xff]
  %v35 = vld [vmem:[%s0 + $0x8] sm:$0xff]
  %v36 = vld [vmem:[%s1] sm:$0xff]
  %v37 = vld [vmem:[%s1 + $0x8] sm:$0xff]
  %v38 = vld [vmem:[%s1 + $0x10] sm:$0xff]
  %v39 = vld [vmem:[%s1 + $0x18] sm:$0xff]
  %v40 = vld [vmem:[%s1 + $0x20] sm:$0xff]
  %v41 = vld [vmem:[%s1 + $0x28] sm:$0xff]
  %v42 = vld [vmem:[%s1 + $0x30] sm:$0xff]
  %v43 = vld [vmem:[%s1 + $0x38] sm:$0xff]
  %v44 = vld [vmem:[%s1 + $0x40] sm:$0xff]
  %v45 = vld [vmem:[%s1 + $0x48] sm:$0xff]
  %v46 = vld [vmem:[%s1 + $0x50] sm:$0xff]
  %v47 = vld [vmem:[%s1 + $0x58] sm:$0xff]
  %v48 = vld [vmem:[%s1 + $0x60] sm:$0xff]
  %v49 = vld [vmem:[%s1 + $0x68] sm:$0xff]
  %v50 = vld [vmem:[%s1 + $0x70] sm:$0xff]
  %v51 = vld [vmem:[%s1 + $0x78] sm:$0xff]
  %v52 = vld [vmem:[%s1 + $0x80] sm:$0xff]
  %v53 = vld [vmem:[%s1 + $0x88] sm:$0xff]
  %v54 = vld [vmem:[%s1 + $0x90] sm:$0xff]
  %v55 = vld [vmem:[%s1 + $0x98] sm:$0xff]
  %v56 = vld [vmem:[%s1 + $0xa0] sm:$0xff]
  %v57 = vld [vmem:[%s1 + $0xa8] sm:$0xff]
  %v58 = vld [vmem:[%s1 + $0xb0] sm:$0xff]
  %v59 = vld [vmem:[%s1 + $0xb8] sm:$0xff]
  %v60 = vld [vmem:[%s1 + $0xc0] sm:$0xff]
  %v61 = vld [vmem:[%s1 + $0xc8] sm:$0xff]
  %v62 = vld [vmem:[%s1 + $0xd0] sm:$0xff]
  %v63 = vld [vmem:[%s1 + $0xd8] sm:$0xff]
  %v64 = vld [vmem:[%s1 + $0xe0] sm:$0xff]
  %v65 = vld [vmem:[%s1 + $0xe8] sm:$0xff]
  %v66 = vld [vmem:[%s1 + $0xf0] sm:$0xff]
  %v67 = vld [vmem:[%s1 + $0xf8] sm:$0xff]
  %v68 = vld [vmem:[%s1 + $0x100] sm:$0xff]
  %v69 = vld [vmem:[%s1 + $0x108] sm:$0xff]
  %v70 = vld [vmem:[%s1 + $0x110] sm:$0xff]
  %v71 = vld [vmem:[%s1 + $0x118] sm:$0xff]
  %v72 = vld [vmem:[%s1 + $0x120] sm:$0xff]
  %v73 = vld [vmem:[%s1 + $0x128] sm:$0xff]
  %v74 = vld [vmem:[%s1 + $0x130] sm:$0xff]
  %v75 = vld [vmem:[%s1 + $0x138] sm:$0xff]
  %v76 = vld [vmem:[%s1 + $0x140] sm:$0xff]
  %v77 = vld [vmem:[%s1 + $0x148] sm:$0xff]
  %v78 = vld [vmem:[%s1 + $0x150] sm:$0xff]
  %v79 = vld [vmem:[%s1 + $0x158] sm:$0xff]
  %v80 = vld [vmem:[%s1 + $0x160] sm:$0xff]
  %v81 = vld [vmem:[%s1 + $0x168] sm:$0xff]
  %v82 = vld [vmem:[%s1 + $0x170] sm:$0xff]
  %v83 = vld [vmem:[%s1 + $0x178] sm:$0xff]
  %v84 = vld [vmem:[%s1 + $0x180] sm:$0xff]
  %v85 = vld [vmem:[%s1 + $0x188] sm:$0xff]
  %v86 = vld [vmem:[%s1 + $0x190] sm:$0xff]
  %v87 = vld [vmem:[%s1 + $0x198] sm:$0xff]
  %v88 = vld [vmem:[%s1 + $0x1a0] sm:$0xff]
  %v89 = vld [vmem:[%s1 + $0x1a8] sm:$0xff]
  %v90 = vld [vmem:[%s1 + $0x1b0] sm:$0xff]
  %v91 = vld [vmem:[%s1 + $0x1b8] sm:$0xff]
  %v92 = vld [vmem:[%s1 + $0x1c0] sm:$0xff]
  %v93 = vld [vmem:[%s1 + $0x1c8] sm:$0xff]
  %v94 = vld [vmem:[%s1 + $0x1d0] sm:$0xff]
  %v95 = vld [vmem:[%s1 + $0x1d8] sm:$0xff]
  %v96 = vld [vmem:[%s1 + $0x1e0] sm:$0xff]
  %v97 = vld [vmem:[%s1 + $0x1e8] sm:$0xff]
  %v98 = vld [vmem:[%s1 + $0x1f0] sm:$0xff]
  %v99 = vld [vmem:[%s1 + $0x1f8] sm:$0xff]
  %v102 = vunpack.c.l.b16 %v34
  %v103 = vunpack.c.h.b16 %v34
  %v104 = vunpack.c.l.b16 %v35
  %v105 = vunpack.c.h.b16 %v35
  %v106 = vpack.c.b16 %v104, %v102
  %v107 = vpack.c.b16 %v105, %v103
  %v174 = vunpack.c.l.b16 %v36
  %v175 = vunpack.c.h.b16 %v36
  %v176 = vunpack.c.l.b16 %v37
  %v177 = vunpack.c.h.b16 %v37
  %v178 = vunpack.c.l.b16 %v38
  %v179 = vunpack.c.h.b16 %v38
  %v180 = vunpack.c.l.b16 %v39
  %v181 = vunpack.c.h.b16 %v39
  %v182 = vunpack.c.l.b16 %v40
  %v183 = vunpack.c.h.b16 %v40
  %v184 = vunpack.c.l.b16 %v41
  %v185 = vunpack.c.h.b16 %v41
  %v186 = vunpack.c.l.b16 %v42
  %v187 = vunpack.c.h.b16 %v42
  %v188 = vunpack.c.l.b16 %v43
  %v189 = vunpack.c.h.b16 %v43
  %v190 = vunpack.c.l.b16 %v44
  %v191 = vunpack.c.h.b16 %v44
  %v192 = vunpack.c.l.b16 %v45
  %v193 = vunpack.c.h.b16 %v45
  %v194 = vunpack.c.l.b16 %v46
  %v195 = vunpack.c.h.b16 %v46
  %v196 = vunpack.c.l.b16 %v47
  %v197 = vunpack.c.h.b16 %v47
  %v198 = vunpack.c.l.b16 %v48
  %v199 = vunpack.c.h.b16 %v48
  %v200 = vunpack.c.l.b16 %v49
  %v201 = vunpack.c.h.b16 %v49
  %v202 = vunpack.c.l.b16 %v50
  %v203 = vunpack.c.h.b16 %v50
  %v204 = vunpack.c.l.b16 %v51
  %v205 = vunpack.c.h.b16 %v51
  %v206 = vunpack.c.l.b16 %v52
  %v207 = vunpack.c.h.b16 %v52
  %v208 = vunpack.c.l.b16 %v53
  %v209 = vunpack.c.h.b16 %v53
  %v210 = vunpack.c.l.b16 %v54
  %v211 = vunpack.c.h.b16 %v54
  %v212 = vunpack.c.l.b16 %v55
  %v213 = vunpack.c.h.b16 %v55
  %v214 = vunpack.c.l.b16 %v56
  %v215 = vunpack.c.h.b16 %v56
  %v216 = vunpack.c.l.b16 %v57
  %v217 = vunpack.c.h.b16 %v57
  %v218 = vunpack.c.l.b16 %v58
  %v219 = vunpack.c.h.b16 %v58
  %v220 = vunpack.c.l.b16 %v59
  %v221 = vunpack.c.h.b16 %v59
  %v222 = vunpack.c.l.b16 %v60
  %v223 = vunpack.c.h.b16 %v60
  %v224 = vunpack.c.l.b16 %v61
  %v225 = vunpack.c.h.b16 %v61
  %v226 = vunpack.c.l.b16 %v62
  %v227 = vunpack.c.h.b16 %v62
  %v228 = vunpack.c.l.b16 %v63
  %v229 = vunpack.c.h.b16 %v63
  %v230 = vunpack.c.l.b16 %v64
  %v231 = vunpack.c.h.b16 %v64
  %v232 = vunpack.c.l.b16 %v65
  %v233 = vunpack.c.h.b16 %v65
  %v234 = vunpack.c.l.b16 %v66
  %v235 = vunpack.c.h.b16 %v66
  %v236 = vunpack.c.l.b16 %v67
  %v237 = vunpack.c.h.b16 %v67
  %v238 = vunpack.c.l.b16 %v68
  %v239 = vunpack.c.h.b16 %v68
  %v240 = vunpack.c.l.b16 %v69
  %v241 = vunpack.c.h.b16 %v69
  %v242 = vunpack.c.l.b16 %v70
  %v243 = vunpack.c.h.b16 %v70
  %v244 = vunpack.c.l.b16 %v71
  %v245 = vunpack.c.h.b16 %v71
  %v246 = vunpack.c.l.b16 %v72
  %v247 = vunpack.c.h.b16 %v72
  %v248 = vunpack.c.l.b16 %v73
  %v249 = vunpack.c.h.b16 %v73
  %v250 = vunpack.c.l.b16 %v74
  %v251 = vunpack.c.h.b16 %v74
  %v252 = vunpack.c.l.b16 %v75
  %v253 = vunpack.c.h.b16 %v75
  %v254 = vunpack.c.l.b16 %v76
  %v255 = vunpack.c.h.b16 %v76
  %v256 = vunpack.c.l.b16 %v77
  %v257 = vunpack.c.h.b16 %v77
  %v258 = vunpack.c.l.b16 %v78
  %v259 = vunpack.c.h.b16 %v78
  %v260 = vunpack.c.l.b16 %v79
  %v261 = vunpack.c.h.b16 %v79
  %v262 = vunpack.c.l.b16 %v80
  %v263 = vunpack.c.h.b16 %v80
  %v264 = vunpack.c.l.b16 %v81
  %v265 = vunpack.c.h.b16 %v81
  %v266 = vunpack.c.l.b16 %v82
  %v267 = vunpack.c.h.b16 %v82
  %v268 = vunpack.c.l.b16 %v83
  %v269 = vunpack.c.h.b16 %v83
  %v270 = vunpack.c.l.b16 %v84
  %v271 = vunpack.c.h.b16 %v84
  %v272 = vunpack.c.l.b16 %v85
  %v273 = vunpack.c.h.b16 %v85
  %v274 = vunpack.c.l.b16 %v86
  %v275 = vunpack.c.h.b16 %v86
  %v276 = vunpack.c.l.b16 %v87
  %v277 = vunpack.c.h.b16 %v87
  %v278 = vunpack.c.l.b16 %v88
  %v279 = vunpack.c.h.b16 %v88
  %v280 = vunpack.c.l.b16 %v89
  %v281 = vunpack.c.h.b16 %v89
  %v282 = vunpack.c.l.b16 %v90
  %v283 = vunpack.c.h.b16 %v90
  %v284 = vunpack.c.l.b16 %v91
  %v285 = vunpack.c.h.b16 %v91
  %v286 = vunpack.c.l.b16 %v92
  %v287 = vunpack.c.h.b16 %v92
  %v288 = vunpack.c.l.b16 %v93
  %v289 = vunpack.c.h.b16 %v93
  %v290 = vunpack.c.l.b16 %v94
  %v291 = vunpack.c.h.b16 %v94
  %v292 = vunpack.c.l.b16 %v95
  %v293 = vunpack.c.h.b16 %v95
  %v294 = vunpack.c.l.b16 %v96
  %v295 = vunpack.c.h.b16 %v96
  %v296 = vunpack.c.l.b16 %v97
  %v297 = vunpack.c.h.b16 %v97
  %v298 = vunpack.c.l.b16 %v98
  %v299 = vunpack.c.h.b16 %v98
  %v300 = vunpack.c.l.b16 %v99
  %v301 = vunpack.c.h.b16 %v99
  %v302 = vpack.c.b16 %v178, %v174
  %v303 = vpack.c.b16 %v179, %v175
  %v304 = vpack.c.b16 %v180, %v176
  %v305 = vpack.c.b16 %v181, %v177
  %v306 = vpack.c.b16 %v186, %v182
  %v307 = vpack.c.b16 %v187, %v183
  %v308 = vpack.c.b16 %v188, %v184
  %v309 = vpack.c.b16 %v189, %v185
  %v310 = vpack.c.b16 %v194, %v190
  %v311 = vpack.c.b16 %v195, %v191
  %v312 = vpack.c.b16 %v196, %v192
  %v313 = vpack.c.b16 %v197, %v193
  %v314 = vpack.c.b16 %v202, %v198
  %v315 = vpack.c.b16 %v203, %v199
  %v316 = vpack.c.b16 %v204, %v200
  %v317 = vpack.c.b16 %v205, %v201
  %v318 = vpack.c.b16 %v210, %v206
  %v319 = vpack.c.b16 %v211, %v207
  %v320 = vpack.c.b16 %v212, %v208
  %v321 = vpack.c.b16 %v213, %v209
  %v322 = vpack.c.b16 %v218, %v214
  %v323 = vpack.c.b16 %v219, %v215
  %v324 = vpack.c.b16 %v220, %v216
  %v325 = vpack.c.b16 %v221, %v217
  %v326 = vpack.c.b16 %v226, %v222
  %v327 = vpack.c.b16 %v227, %v223
  %v328 = vpack.c.b16 %v228, %v224
  %v329 = vpack.c.b16 %v229, %v225
  %v330 = vpack.c.b16 %v234, %v230
  %v331 = vpack.c.b16 %v235, %v231
  %v332 = vpack.c.b16 %v236, %v232
  %v333 = vpack.c.b16 %v237, %v233
  %v334 = vpack.c.b16 %v242, %v238
  %v335 = vpack.c.b16 %v243, %v239
  %v336 = vpack.c.b16 %v244, %v240
  %v337 = vpack.c.b16 %v245, %v241
  %v338 = vpack.c.b16 %v250, %v246
  %v339 = vpack.c.b16 %v251, %v247
  %v340 = vpack.c.b16 %v252, %v248
  %v341 = vpack.c.b16 %v253, %v249
  %v342 = vpack.c.b16 %v258, %v254
  %v343 = vpack.c.b16 %v259, %v255
  %v344 = vpack.c.b16 %v260, %v256
  %v345 = vpack.c.b16 %v261, %v257
  %v346 = vpack.c.b16 %v266, %v262
  %v347 = vpack.c.b16 %v267, %v263
  %v348 = vpack.c.b16 %v268, %v264
  %v349 = vpack.c.b16 %v269, %v265
  %v350 = vpack.c.b16 %v274, %v270
  %v351 = vpack.c.b16 %v275, %v271
  %v352 = vpack.c.b16 %v276, %v272
  %v353 = vpack.c.b16 %v277, %v273
  %v354 = vpack.c.b16 %v282, %v278
  %v355 = vpack.c.b16 %v283, %v279
  %v356 = vpack.c.b16 %v284, %v280
  %v357 = vpack.c.b16 %v285, %v281
  %v358 = vpack.c.b16 %v290, %v286
  %v359 = vpack.c.b16 %v291, %v287
  %v360 = vpack.c.b16 %v292, %v288
  %v361 = vpack.c.b16 %v293, %v289
  %v362 = vpack.c.b16 %v298, %v294
  %v363 = vpack.c.b16 %v299, %v295
  %v364 = vpack.c.b16 %v300, %v296
  %v365 = vpack.c.b16 %v301, %v297
  %430 = vmatprep.subr.bf16.mxu0 %v331
  %431 = vmatpush1.bf16.msra.mxu0 %v330
  %432 = vmatprep.subr.bf16.mxu0 %v327
  %433 = vmatpush1.bf16.msra.mxu0 %v326
  %434 = vmatprep.subr.bf16.mxu0 %v323
  %435 = vmatpush1.bf16.msra.mxu0 %v322
  %436 = vmatprep.subr.bf16.mxu0 %v319
  %437 = vmatpush1.bf16.msra.mxu0 %v318
  %438 = vmatprep.subr.bf16.mxu0 %v315
  %439 = vmatpush1.bf16.msra.mxu0 %v314
  %440 = vmatprep.subr.bf16.mxu0 %v311
  %441 = vmatpush1.bf16.msra.mxu0 %v310
  %442 = vmatprep.subr.bf16.mxu0 %v307
  %443 = vmatpush1.bf16.msra.mxu0 %v306
  %444 = vmatprep.subr.bf16.mxu0 %v303
  %445 = vmatpush1.bf16.msra.mxu0 %v302
  %446 = vmatprep.subr.bf16.mxu0 %v363
  %447 = vmatpush2.bf16.msra.mxu0 %v362
  %448 = vmatprep.subr.bf16.mxu0 %v359
  %449 = vmatpush2.bf16.msra.mxu0 %v358
  %450 = vmatprep.subr.bf16.mxu0 %v355
  %451 = vmatpush2.bf16.msra.mxu0 %v354
  %452 = vmatprep.subr.bf16.mxu0 %v351
  %453 = vmatpush2.bf16.msra.mxu0 %v350
  %454 = vmatprep.subr.bf16.mxu0 %v347
  %455 = vmatpush2.bf16.msra.mxu0 %v346
  %456 = vmatprep.subr.bf16.mxu0 %v343
  %457 = vmatpush2.bf16.msra.mxu0 %v342
  %458 = vmatprep.subr.bf16.mxu0 %v339
  %459 = vmatpush2.bf16.msra.mxu0 %v338
  %460 = vmatprep.subr.bf16.mxu0 %v335
  %461 = vmatpush2.bf16.msra.mxu0 %v334
  %462 = vmatprep.mubr.bf16.mxu0 %v107
  %463 = vmatmul.mubr.bf16.gmra.mxu0 %v106
  %v464 = vpop.f32.mrf.mxu0
  %v465 = vadd.f32 0.0, %v464
  %v466 = vpop.f32.mrf.mxu0
  %v467 = vadd.f32 0.0, %v466
  %v468 = vpop.f32.mrf.mxu0
  %v469 = vadd.f32 0.0, %v468
  %v470 = vpop.f32.mrf.mxu0
  %v471 = vadd.f32 0.0, %v470
  %472 = vdwg.mxu0
  %473 = vmatprep.subr.bf16.mxu0 %v333
  %474 = vmatpush1.bf16.msra.mxu0 %v332
  %475 = vmatprep.subr.bf16.mxu0 %v329
  %476 = vmatpush1.bf16.msra.mxu0 %v328
  %477 = vmatprep.subr.bf16.mxu0 %v325
  %478 = vmatpush1.bf16.msra.mxu0 %v324
  %479 = vmatprep.subr.bf16.mxu0 %v321
  %480 = vmatpush1.bf16.msra.mxu0 %v320
  %481 = vmatprep.subr.bf16.mxu0 %v317
  %482 = vmatpush1.bf16.msra.mxu0 %v316
  %483 = vmatprep.subr.bf16.mxu0 %v313
  %484 = vmatpush1.bf16.msra.mxu0 %v312
  %485 = vmatprep.subr.bf16.mxu0 %v309
  %486 = vmatpush1.bf16.msra.mxu0 %v308
  %487 = vmatprep.subr.bf16.mxu0 %v305
  %488 = vmatpush1.bf16.msra.mxu0 %v304
  %489 = vmatprep.subr.bf16.mxu0 %v365
  %490 = vmatpush2.bf16.msra.mxu0 %v364
  %491 = vmatprep.subr.bf16.mxu0 %v361
  %492 = vmatpush2.bf16.msra.mxu0 %v360
  %493 = vmatprep.subr.bf16.mxu0 %v357
  %494 = vmatpush2.bf16.msra.mxu0 %v356
  %495 = vmatprep.subr.bf16.mxu0 %v353
  %496 = vmatpush2.bf16.msra.mxu0 %v352
  %497 = vmatprep.subr.bf16.mxu0 %v349
  %498 = vmatpush2.bf16.msra.mxu0 %v348
  %499 = vmatprep.subr.bf16.mxu0 %v345
  %500 = vmatpush2.bf16.msra.mxu0 %v344
  %501 = vmatprep.subr.bf16.mxu0 %v341
  %502 = vmatpush2.bf16.msra.mxu0 %v340
  %503 = vmatprep.subr.bf16.mxu0 %v337
  %504 = vmatpush2.bf16.msra.mxu0 %v336
  %505 = vmatprep.mubr.bf16.mxu0 %v107
  %506 = vmatmul.mubr.bf16.gmra.mxu0 %v106
  %v507 = vpop.f32.mrf.mxu0
  %v508 = vadd.f32 0.0, %v507
  %v509 = vpop.f32.mrf.mxu0
  %v510 = vadd.f32 0.0, %v509
  %v511 = vpop.f32.mrf.mxu0
  %v512 = vadd.f32 0.0, %v511
  %v513 = vpop.f32.mrf.mxu0
  %v514 = vadd.f32 0.0, %v513
  %515 = vdwg.mxu0
  %v516 = vadd.f32 %v26, %v465
  %v517 = vadd.f32 %v27, %v467
  %v518 = vadd.f32 %v28, %v508
  %v519 = vadd.f32 %v29, %v510
  %v520 = vadd.f32 %v30, %v469
  %v521 = vadd.f32 %v31, %v471
  %v522 = vadd.f32 %v32, %v512
  %v523 = vadd.f32 %v33, %v514
  %524 = vst [vmem:[#allocation2] sm:$0xff] %v516
  %525 = vst [vmem:[#allocation2 + $0x8] sm:$0xff] %v517
  %526 = vst [vmem:[#allocation2 + $0x10] sm:$0xff] %v518
  %527 = vst [vmem:[#allocation2 + $0x18] sm:$0xff] %v519
  %528 = vst [vmem:[#allocation2 + $0x20] sm:$0xff] %v520
  %529 = vst [vmem:[#allocation2 + $0x28] sm:$0xff] %v521
  %530 = vst [vmem:[#allocation2 + $0x30] sm:$0xff] %v522
  %531 = vst [vmem:[#allocation2 + $0x38] sm:$0xff] %v523
  // Predicated region
  $region18: #{gpt_like_forward.17} parent=0 // pred_check
    %p532 = pneg %p14
  $region19: #{gpt_like_forward.17} parent=0 // pred_check_branch
    %534 = sbr.rel (%p532) target = $region21
  $region20: #{gpt_like_forward.17} parent=0 // pred_region
    %v535 = vld [vmem:[#allocation2] sm:$0xff]
    %v536 = vld [vmem:[#allocation2 + $0x8] sm:$0xff]
    %v537 = vld [vmem:[#allocation2 + $0x10] sm:$0xff]
    %v538 = vld [vmem:[#allocation2 + $0x18] sm:$0xff]
    %v539 = vld [vmem:[#allocation2 + $0x20] sm:$0xff]
    %v540 = vld [vmem:[#allocation2 + $0x28] sm:$0xff]
    %v541 = vld [vmem:[#allocation2 + $0x30] sm:$0xff]
    %v542 = vld [vmem:[#allocation2 + $0x38] sm:$0xff]
    %v543 = vld [vmem:[%s2] sm:$0xf]
    %v545 = vlaneseq
    %v546 = vshrl.u32 %v545, 7
    %v547 = vsub.s32 0, %v546
    %v548 = vrot.slane %v543, %v547
    %v549 = vlaneseq
    %v550 = vshrl.u32 %v549, 7
    %v551 = vsub.s32 1, %v550
    %v552 = vrot.slane %v543, %v551
    %v553 = vlaneseq
    %v554 = vshrl.u32 %v553, 7
    %v555 = vsub.s32 2, %v554
    %v556 = vrot.slane %v543, %v555
    %v557 = vlaneseq
    %v558 = vshrl.u32 %v557, 7
    %v559 = vsub.s32 3, %v558
    %v560 = vrot.slane %v543, %v559
    %v565 = vadd.f32 %v535, %v548
    %v566 = vadd.f32 %v536, %v552
    %v567 = vadd.f32 %v537, %v556
    %v568 = vadd.f32 %v538, %v560
    %v569 = vadd.f32 %v539, %v548
    %v570 = vadd.f32 %v540, %v552
    %v571 = vadd.f32 %v541, %v556
    %v572 = vadd.f32 %v542, %v560
    %v573 = vmax.f32 %v565, 0.0
    %v574 = vmax.f32 %v566, 0.0
    %v575 = vmax.f32 %v567, 0.0
    %v576 = vmax.f32 %v568, 0.0
    %v577 = vmax.f32 %v569, 0.0
    %v578 = vmax.f32 %v570, 0.0
    %v579 = vmax.f32 %v571, 0.0
    %v580 = vmax.f32 %v572, 0.0
    %v581 = vpack.c.bf16 %v577, %v573
    %v582 = vpack.c.bf16 %v578, %v574
    %v583 = vpack.c.bf16 %v579, %v575
    %v584 = vpack.c.bf16 %v580, %v576
    %v589 = vunpack.c.l.b16 %v581
    %v590 = vunpack.c.l.b16 %v582
    %v591 = vunpack.c.l.b16 %v583
    %v592 = vunpack.c.l.b16 %v584
    %v593 = vunpack.c.h.b16 %v581
    %v594 = vunpack.c.h.b16 %v582
    %v595 = vunpack.c.h.b16 %v583
    %v596 = vunpack.c.h.b16 %v584
    %v597 = vpack.c.b16 %v590, %v589
    %v598 = vpack.c.b16 %v592, %v591
    %v599 = vpack.c.b16 %v594, %v593
    %v600 = vpack.c.b16 %v596, %v595
    %605 = vst [vmem:[%s3] sm:$0xff] %v597
    %606 = vst [vmem:[%s3 + $0x8] sm:$0xff] %v598
    %607 = vst [vmem:[%s3 + $0x10] sm:$0xff] %v599
    %608 = vst [vmem:[%s3 + $0x18] sm:$0xff] %v600
  $region21: #{gpt_like_forward.17} parent=0 // pred_fallthru
    _
  // Predicated region
  $region22: #{gpt_like_forward.17} parent=0 // pred_check
    _
  $region23: #{gpt_like_forward.17} parent=0 // pred_check_branch
    %610 = sbr.rel (0) target = $region25
  $region24: #{gpt_like_forward.17} parent=0 // pred_region
    _
  $region25: #{gpt_like_forward.17} parent=0 // pred_fallthru
    _
  // Predicated region
  $region26: #{gpt_like_forward.17} parent=0 // pred_check
    _
  $region27: #{gpt_like_forward.17} parent=0 // pred_check_branch
    %612 = sbr.rel (0) target = $region29
  $region28: #{gpt_like_forward.17} parent=0 // pred_region
    _
  $region29: #{gpt_like_forward.17} parent=0 // pred_fallthru
    _

// kernel: gpt_like_forward.18
$region0: #{gpt_like_forward.18}
  #allocation0 [shape = 'u32[]', space=smem, size = 0x4, offset = 0x4, fixed_abs, tag = 'smem constant byte address 0x4 - core index']
  #allocation1 [shape = 'u32[144,128]{1,0:T(1,128)}', space=vmem, size = 0x12000, scoped, tag = 'internal scratch']
  #allocation2 [shape = 'f32[16,256]{1,0:T(8,128)}', space=vmem, size = 0x4000, scoped, tag = 'scratch operand']
  %s0 = inlined_call_operand.vmem [shape: bf16[16,512], index: 0, kind: input, shape index: {}]
  %s1 = inlined_call_operand.vmem [shape: bf16[512,256], index: 1, kind: input, shape index: {}]
  %s2 = inlined_call_operand.vmem [shape: f32[1,256], index: 2, kind: input, shape index: {}]
  %s3 = inlined_call_operand.vmem [shape: bf16[16,256], index: 3, kind: input, shape index: {}]
  %s4 = inlined_call_operand.vmem [shape: f32[1,256], index: 4, kind: input, shape index: {}]
  %s5 = inlined_call_operand.vmem [shape: f32[1,256], index: 5, kind: input, shape index: {}]
  %s6 = inlined_call_operand.vmem [shape: bf16[16,256], index: 6, kind: output, shape index: {}]
  %s7 = sld [smem:[#allocation0]]
  $region42: #{gpt_like_forward.18} parent=0
    _
  %s9 = ssub.s32 1, %s7
  %s10 = scalar_select 0, %s9, %s7
  // Predicated region
  $region2: #{gpt_like_forward.18} parent=0 // pred_check
    _
  $region3: #{gpt_like_forward.18} parent=0 // pred_check_branch
    %12 = sbr.rel (0) target = $region5
  $region4: #{gpt_like_forward.18} parent=0 // pred_region
    _
  $region5: #{gpt_like_forward.18} parent=0 // pred_fallthru
    _
  // Predicated region
  $region6: #{gpt_like_forward.18} parent=0 // pred_check
    _
  $region7: #{gpt_like_forward.18} parent=0 // pred_check_branch
    %14 = sbr.rel (0) target = $region9
  $region8: #{gpt_like_forward.18} parent=0 // pred_region
    _
  $region9: #{gpt_like_forward.18} parent=0 // pred_fallthru
    _
  // Predicated region
  $region10: #{gpt_like_forward.18} parent=0 // pred_check
    _
  $region11: #{gpt_like_forward.18} parent=0 // pred_check_branch
    %16 = sbr.rel (0) target = $region13
  $region12: #{gpt_like_forward.18} parent=0 // pred_region
    _
  $region13: #{gpt_like_forward.18} parent=0 // pred_fallthru
    _
  // Predicated region
  $region14: #{gpt_like_forward.18} parent=0 // pred_check
    _
  $region15: #{gpt_like_forward.18} parent=0 // pred_check_branch
    %18 = sbr.rel (0) target = $region17
  $region16: #{gpt_like_forward.18} parent=0 // pred_region
    _
  $region17: #{gpt_like_forward.18} parent=0 // pred_fallthru
    _
  // Predicated region
  $region18: #{gpt_like_forward.18} parent=0 // pred_check
    _
  $region19: #{gpt_like_forward.18} parent=0 // pred_check_branch
    %20 = sbr.rel (0) target = $region21
  $region20: #{gpt_like_forward.18} parent=0 // pred_region
    _
  $region21: #{gpt_like_forward.18} parent=0 // pred_fallthru
    _
  // Predicated region
  $region22: #{gpt_like_forward.18} parent=0 // pred_check
    _
  $region23: #{gpt_like_forward.18} parent=0 // pred_check_branch
    %22 = sbr.rel (0) target = $region25
  $region24: #{gpt_like_forward.18} parent=0 // pred_region
    _
  $region25: #{gpt_like_forward.18} parent=0 // pred_fallthru
    _
  %p23 = scmp.eq.s32.totalorder 0, 0
  // Predicated region
  $region26: #{gpt_like_forward.18} parent=0 // pred_check
    %p24 = pneg %p23
  $region27: #{gpt_like_forward.18} parent=0 // pred_check_branch
    %26 = sbr.rel (%p24) target = $region29
  $region28: #{gpt_like_forward.18} parent=0 // pred_region
    %27 = vst [vmem:[#allocation2] sm:$0xff] 0.0
    %28 = vst [vmem:[#allocation2 + $0x8] sm:$0xff] 0.0
    %29 = vst [vmem:[#allocation2 + $0x10] sm:$0xff] 0.0
    %30 = vst [vmem:[#allocation2 + $0x18] sm:$0xff] 0.0
  $region29: #{gpt_like_forward.18} parent=0 // pred_fallthru
    _
  %v31 = vld [vmem:[#allocation2] sm:$0xff]
  %v32 = vld [vmem:[#allocation2 + $0x8] sm:$0xff]
  %v33 = vld [vmem:[#allocation2 + $0x10] sm:$0xff]
  %v34 = vld [vmem:[#allocation2 + $0x18] sm:$0xff]
  %v35 = vld [vmem:[%s0] sm:$0xff]
  %v36 = vld [vmem:[%s0 + $0x8] sm:$0xff]
  %v37 = vld [vmem:[%s0 + $0x10] sm:$0xff]
  %v38 = vld [vmem:[%s0 + $0x18] sm:$0xff]
  %v39 = vld [vmem:[%s1] sm:$0xff]
  %v40 = vld [vmem:[%s1 + $0x8] sm:$0xff]
  %v41 = vld [vmem:[%s1 + $0x10] sm:$0xff]
  %v42 = vld [vmem:[%s1 + $0x18] sm:$0xff]
  %v43 = vld [vmem:[%s1 + $0x20] sm:$0xff]
  %v44 = vld [vmem:[%s1 + $0x28] sm:$0xff]
  %v45 = vld [vmem:[%s1 + $0x30] sm:$0xff]
  %v46 = vld [vmem:[%s1 + $0x38] sm:$0xff]
  %v47 = vld [vmem:[%s1 + $0x40] sm:$0xff]
  %v48 = vld [vmem:[%s1 + $0x48] sm:$0xff]
  %v49 = vld [vmem:[%s1 + $0x50] sm:$0xff]
  %v50 = vld [vmem:[%s1 + $0x58] sm:$0xff]
  %v51 = vld [vmem:[%s1 + $0x60] sm:$0xff]
  %v52 = vld [vmem:[%s1 + $0x68] sm:$0xff]
  %v53 = vld [vmem:[%s1 + $0x70] sm:$0xff]
  %v54 = vld [vmem:[%s1 + $0x78] sm:$0xff]
  %v55 = vld [vmem:[%s1 + $0x80] sm:$0xff]
  %v56 = vld [vmem:[%s1 + $0x88] sm:$0xff]
  %v57 = vld [vmem:[%s1 + $0x90] sm:$0xff]
  %v58 = vld [vmem:[%s1 + $0x98] sm:$0xff]
  %v59 = vld [vmem:[%s1 + $0xa0] sm:$0xff]
  %v60 = vld [vmem:[%s1 + $0xa8] sm:$0xff]
  %v61 = vld [vmem:[%s1 + $0xb0] sm:$0xff]
  %v62 = vld [vmem:[%s1 + $0xb8] sm:$0xff]
  %v63 = vld [vmem:[%s1 + $0xc0] sm:$0xff]
  %v64 = vld [vmem:[%s1 + $0xc8] sm:$0xff]
  %v65 = vld [vmem:[%s1 + $0xd0] sm:$0xff]
  %v66 = vld [vmem:[%s1 + $0xd8] sm:$0xff]
  %v67 = vld [vmem:[%s1 + $0xe0] sm:$0xff]
  %v68 = vld [vmem:[%s1 + $0xe8] sm:$0xff]
  %v69 = vld [vmem:[%s1 + $0xf0] sm:$0xff]
  %v70 = vld [vmem:[%s1 + $0xf8] sm:$0xff]
  %v71 = vld [vmem:[%s1 + $0x100] sm:$0xff]
  %v72 = vld [vmem:[%s1 + $0x108] sm:$0xff]
  %v73 = vld [vmem:[%s1 + $0x110] sm:$0xff]
  %v74 = vld [vmem:[%s1 + $0x118] sm:$0xff]
  %v75 = vld [vmem:[%s1 + $0x120] sm:$0xff]
  %v76 = vld [vmem:[%s1 + $0x128] sm:$0xff]
  %v77 = vld [vmem:[%s1 + $0x130] sm:$0xff]
  %v78 = vld [vmem:[%s1 + $0x138] sm:$0xff]
  %v79 = vld [vmem:[%s1 + $0x140] sm:$0xff]
  %v80 = vld [vmem:[%s1 + $0x148] sm:$0xff]
  %v81 = vld [vmem:[%s1 + $0x150] sm:$0xff]
  %v82 = vld [vmem:[%s1 + $0x158] sm:$0xff]
  %v83 = vld [vmem:[%s1 + $0x160] sm:$0xff]
  %v84 = vld [vmem:[%s1 + $0x168] sm:$0xff]
  %v85 = vld [vmem:[%s1 + $0x170] sm:$0xff]
  %v86 = vld [vmem:[%s1 + $0x178] sm:$0xff]
  %v87 = vld [vmem:[%s1 + $0x180] sm:$0xff]
  %v88 = vld [vmem:[%s1 + $0x188] sm:$0xff]
  %v89 = vld [vmem:[%s1 + $0x190] sm:$0xff]
  %v90 = vld [vmem:[%s1 + $0x198] sm:$0xff]
  %v91 = vld [vmem:[%s1 + $0x1a0] sm:$0xff]
  %v92 = vld [vmem:[%s1 + $0x1a8] sm:$0xff]
  %v93 = vld [vmem:[%s1 + $0x1b0] sm:$0xff]
  %v94 = vld [vmem:[%s1 + $0x1b8] sm:$0xff]
  %v95 = vld [vmem:[%s1 + $0x1c0] sm:$0xff]
  %v96 = vld [vmem:[%s1 + $0x1c8] sm:$0xff]
  %v97 = vld [vmem:[%s1 + $0x1d0] sm:$0xff]
  %v98 = vld [vmem:[%s1 + $0x1d8] sm:$0xff]
  %v99 = vld [vmem:[%s1 + $0x1e0] sm:$0xff]
  %v100 = vld [vmem:[%s1 + $0x1e8] sm:$0xff]
  %v101 = vld [vmem:[%s1 + $0x1f0] sm:$0xff]
  %v102 = vld [vmem:[%s1 + $0x1f8] sm:$0xff]
  %v107 = vunpack.c.l.b16 %v35
  %v108 = vunpack.c.h.b16 %v35
  %v109 = vunpack.c.l.b16 %v36
  %v110 = vunpack.c.h.b16 %v36
  %v111 = vunpack.c.l.b16 %v37
  %v112 = vunpack.c.h.b16 %v37
  %v113 = vunpack.c.l.b16 %v38
  %v114 = vunpack.c.h.b16 %v38
  %v115 = vpack.c.b16 %v111, %v107
  %v116 = vpack.c.b16 %v112, %v108
  %v117 = vpack.c.b16 %v113, %v109
  %v118 = vpack.c.b16 %v114, %v110
  %v187 = vunpack.c.l.b16 %v39
  %v188 = vunpack.c.h.b16 %v39
  %v189 = vunpack.c.l.b16 %v40
  %v190 = vunpack.c.h.b16 %v40
  %v191 = vunpack.c.l.b16 %v41
  %v192 = vunpack.c.h.b16 %v41
  %v193 = vunpack.c.l.b16 %v42
  %v194 = vunpack.c.h.b16 %v42
  %v195 = vunpack.c.l.b16 %v43
  %v196 = vunpack.c.h.b16 %v43
  %v197 = vunpack.c.l.b16 %v44
  %v198 = vunpack.c.h.b16 %v44
  %v199 = vunpack.c.l.b16 %v45
  %v200 = vunpack.c.h.b16 %v45
  %v201 = vunpack.c.l.b16 %v46
  %v202 = vunpack.c.h.b16 %v46
  %v203 = vunpack.c.l.b16 %v47
  %v204 = vunpack.c.h.b16 %v47
  %v205 = vunpack.c.l.b16 %v48
  %v206 = vunpack.c.h.b16 %v48
  %v207 = vunpack.c.l.b16 %v49
  %v208 = vunpack.c.h.b16 %v49
  %v209 = vunpack.c.l.b16 %v50
  %v210 = vunpack.c.h.b16 %v50
  %v211 = vunpack.c.l.b16 %v51
  %v212 = vunpack.c.h.b16 %v51
  %v213 = vunpack.c.l.b16 %v52
  %v214 = vunpack.c.h.b16 %v52
  %v215 = vunpack.c.l.b16 %v53
  %v216 = vunpack.c.h.b16 %v53
  %v217 = vunpack.c.l.b16 %v54
  %v218 = vunpack.c.h.b16 %v54
  %v219 = vunpack.c.l.b16 %v55
  %v220 = vunpack.c.h.b16 %v55
  %v221 = vunpack.c.l.b16 %v56
  %v222 = vunpack.c.h.b16 %v56
  %v223 = vunpack.c.l.b16 %v57
  %v224 = vunpack.c.h.b16 %v57
  %v225 = vunpack.c.l.b16 %v58
  %v226 = vunpack.c.h.b16 %v58
  %v227 = vunpack.c.l.b16 %v59
  %v228 = vunpack.c.h.b16 %v59
  %v229 = vunpack.c.l.b16 %v60
  %v230 = vunpack.c.h.b16 %v60
  %v231 = vunpack.c.l.b16 %v61
  %v232 = vunpack.c.h.b16 %v61
  %v233 = vunpack.c.l.b16 %v62
  %v234 = vunpack.c.h.b16 %v62
  %v235 = vunpack.c.l.b16 %v63
  %v236 = vunpack.c.h.b16 %v63
  %v237 = vunpack.c.l.b16 %v64
  %v238 = vunpack.c.h.b16 %v64
  %v239 = vunpack.c.l.b16 %v65
  %v240 = vunpack.c.h.b16 %v65
  %v241 = vunpack.c.l.b16 %v66
  %v242 = vunpack.c.h.b16 %v66
  %v243 = vunpack.c.l.b16 %v67
  %v244 = vunpack.c.h.b16 %v67
  %v245 = vunpack.c.l.b16 %v68
  %v246 = vunpack.c.h.b16 %v68
  %v247 = vunpack.c.l.b16 %v69
  %v248 = vunpack.c.h.b16 %v69
  %v249 = vunpack.c.l.b16 %v70
  %v250 = vunpack.c.h.b16 %v70
  %v251 = vunpack.c.l.b16 %v71
  %v252 = vunpack.c.h.b16 %v71
  %v253 = vunpack.c.l.b16 %v72
  %v254 = vunpack.c.h.b16 %v72
  %v255 = vunpack.c.l.b16 %v73
  %v256 = vunpack.c.h.b16 %v73
  %v257 = vunpack.c.l.b16 %v74
  %v258 = vunpack.c.h.b16 %v74
  %v259 = vunpack.c.l.b16 %v75
  %v260 = vunpack.c.h.b16 %v75
  %v261 = vunpack.c.l.b16 %v76
  %v262 = vunpack.c.h.b16 %v76
  %v263 = vunpack.c.l.b16 %v77
  %v264 = vunpack.c.h.b16 %v77
  %v265 = vunpack.c.l.b16 %v78
  %v266 = vunpack.c.h.b16 %v78
  %v267 = vunpack.c.l.b16 %v79
  %v268 = vunpack.c.h.b16 %v79
  %v269 = vunpack.c.l.b16 %v80
  %v270 = vunpack.c.h.b16 %v80
  %v271 = vunpack.c.l.b16 %v81
  %v272 = vunpack.c.h.b16 %v81
  %v273 = vunpack.c.l.b16 %v82
  %v274 = vunpack.c.h.b16 %v82
  %v275 = vunpack.c.l.b16 %v83
  %v276 = vunpack.c.h.b16 %v83
  %v277 = vunpack.c.l.b16 %v84
  %v278 = vunpack.c.h.b16 %v84
  %v279 = vunpack.c.l.b16 %v85
  %v280 = vunpack.c.h.b16 %v85
  %v281 = vunpack.c.l.b16 %v86
  %v282 = vunpack.c.h.b16 %v86
  %v283 = vunpack.c.l.b16 %v87
  %v284 = vunpack.c.h.b16 %v87
  %v285 = vunpack.c.l.b16 %v88
  %v286 = vunpack.c.h.b16 %v88
  %v287 = vunpack.c.l.b16 %v89
  %v288 = vunpack.c.h.b16 %v89
  %v289 = vunpack.c.l.b16 %v90
  %v290 = vunpack.c.h.b16 %v90
  %v291 = vunpack.c.l.b16 %v91
  %v292 = vunpack.c.h.b16 %v91
  %v293 = vunpack.c.l.b16 %v92
  %v294 = vunpack.c.h.b16 %v92
  %v295 = vunpack.c.l.b16 %v93
  %v296 = vunpack.c.h.b16 %v93
  %v297 = vunpack.c.l.b16 %v94
  %v298 = vunpack.c.h.b16 %v94
  %v299 = vunpack.c.l.b16 %v95
  %v300 = vunpack.c.h.b16 %v95
  %v301 = vunpack.c.l.b16 %v96
  %v302 = vunpack.c.h.b16 %v96
  %v303 = vunpack.c.l.b16 %v97
  %v304 = vunpack.c.h.b16 %v97
  %v305 = vunpack.c.l.b16 %v98
  %v306 = vunpack.c.h.b16 %v98
  %v307 = vunpack.c.l.b16 %v99
  %v308 = vunpack.c.h.b16 %v99
  %v309 = vunpack.c.l.b16 %v100
  %v310 = vunpack.c.h.b16 %v100
  %v311 = vunpack.c.l.b16 %v101
  %v312 = vunpack.c.h.b16 %v101
  %v313 = vunpack.c.l.b16 %v102
  %v314 = vunpack.c.h.b16 %v102
  %v315 = vpack.c.b16 %v189, %v187
  %v316 = vpack.c.b16 %v190, %v188
  %v317 = vpack.c.b16 %v193, %v191
  %v318 = vpack.c.b16 %v194, %v192
  %v319 = vpack.c.b16 %v197, %v195
  %v320 = vpack.c.b16 %v198, %v196
  %v321 = vpack.c.b16 %v201, %v199
  %v322 = vpack.c.b16 %v202, %v200
  %v323 = vpack.c.b16 %v205, %v203
  %v324 = vpack.c.b16 %v206, %v204
  %v325 = vpack.c.b16 %v209, %v207
  %v326 = vpack.c.b16 %v210, %v208
  %v327 = vpack.c.b16 %v213, %v211
  %v328 = vpack.c.b16 %v214, %v212
  %v329 = vpack.c.b16 %v217, %v215
  %v330 = vpack.c.b16 %v218, %v216
  %v331 = vpack.c.b16 %v221, %v219
  %v332 = vpack.c.b16 %v222, %v220
  %v333 = vpack.c.b16 %v225, %v223
  %v334 = vpack.c.b16 %v226, %v224
  %v335 = vpack.c.b16 %v229, %v227
  %v336 = vpack.c.b16 %v230, %v228
  %v337 = vpack.c.b16 %v233, %v231
  %v338 = vpack.c.b16 %v234, %v232
  %v339 = vpack.c.b16 %v237, %v235
  %v340 = vpack.c.b16 %v238, %v236
  %v341 = vpack.c.b16 %v241, %v239
  %v342 = vpack.c.b16 %v242, %v240
  %v343 = vpack.c.b16 %v245, %v243
  %v344 = vpack.c.b16 %v246, %v244
  %v345 = vpack.c.b16 %v249, %v247
  %v346 = vpack.c.b16 %v250, %v248
  %v347 = vpack.c.b16 %v253, %v251
  %v348 = vpack.c.b16 %v254, %v252
  %v349 = vpack.c.b16 %v257, %v255
  %v350 = vpack.c.b16 %v258, %v256
  %v351 = vpack.c.b16 %v261, %v259
  %v352 = vpack.c.b16 %v262, %v260
  %v353 = vpack.c.b16 %v265, %v263
  %v354 = vpack.c.b16 %v266, %v264
  %v355 = vpack.c.b16 %v269, %v267
  %v356 = vpack.c.b16 %v270, %v268
  %v357 = vpack.c.b16 %v273, %v271
  %v358 = vpack.c.b16 %v274, %v272
  %v359 = vpack.c.b16 %v277, %v275
  %v360 = vpack.c.b16 %v278, %v276
  %v361 = vpack.c.b16 %v281, %v279
  %v362 = vpack.c.b16 %v282, %v280
  %v363 = vpack.c.b16 %v285, %v283
  %v364 = vpack.c.b16 %v286, %v284
  %v365 = vpack.c.b16 %v289, %v287
  %v366 = vpack.c.b16 %v290, %v288
  %v367 = vpack.c.b16 %v293, %v291
  %v368 = vpack.c.b16 %v294, %v292
  %v369 = vpack.c.b16 %v297, %v295
  %v370 = vpack.c.b16 %v298, %v296
  %v371 = vpack.c.b16 %v301, %v299
  %v372 = vpack.c.b16 %v302, %v300
  %v373 = vpack.c.b16 %v305, %v303
  %v374 = vpack.c.b16 %v306, %v304
  %v375 = vpack.c.b16 %v309, %v307
  %v376 = vpack.c.b16 %v310, %v308
  %v377 = vpack.c.b16 %v313, %v311
  %v378 = vpack.c.b16 %v314, %v312
  %443 = vmatprep.subr.bf16.mxu0 %v330
  %444 = vmatpush1.bf16.msra.mxu0 %v329
  %445 = vmatprep.subr.bf16.mxu0 %v328
  %446 = vmatpush1.bf16.msra.mxu0 %v327
  %447 = vmatprep.subr.bf16.mxu0 %v326
  %448 = vmatpush1.bf16.msra.mxu0 %v325
  %449 = vmatprep.subr.bf16.mxu0 %v324
  %450 = vmatpush1.bf16.msra.mxu0 %v323
  %451 = vmatprep.subr.bf16.mxu0 %v322
  %452 = vmatpush1.bf16.msra.mxu0 %v321
  %453 = vmatprep.subr.bf16.mxu0 %v320
  %454 = vmatpush1.bf16.msra.mxu0 %v319
  %455 = vmatprep.subr.bf16.mxu0 %v318
  %456 = vmatpush1.bf16.msra.mxu0 %v317
  %457 = vmatprep.subr.bf16.mxu0 %v316
  %458 = vmatpush1.bf16.msra.mxu0 %v315
  %459 = vmatprep.subr.bf16.mxu0 %v346
  %460 = vmatpush2.bf16.msra.mxu0 %v345
  %461 = vmatprep.subr.bf16.mxu0 %v344
  %462 = vmatpush2.bf16.msra.mxu0 %v343
  %463 = vmatprep.subr.bf16.mxu0 %v342
  %464 = vmatpush2.bf16.msra.mxu0 %v341
  %465 = vmatprep.subr.bf16.mxu0 %v340
  %466 = vmatpush2.bf16.msra.mxu0 %v339
  %467 = vmatprep.subr.bf16.mxu0 %v338
  %468 = vmatpush2.bf16.msra.mxu0 %v337
  %469 = vmatprep.subr.bf16.mxu0 %v336
  %470 = vmatpush2.bf16.msra.mxu0 %v335
  %471 = vmatprep.subr.bf16.mxu0 %v334
  %472 = vmatpush2.bf16.msra.mxu0 %v333
  %473 = vmatprep.subr.bf16.mxu0 %v332
  %474 = vmatpush2.bf16.msra.mxu0 %v331
  %475 = vmatprep.mubr.bf16.mxu0 %v116
  %476 = vmatmul.mubr.bf16.gmra.mxu0 %v115
  %v477 = vpop.f32.mrf.mxu0
  %v478 = vadd.f32 0.0, %v477
  %v479 = vpop.f32.mrf.mxu0
  %v480 = vadd.f32 0.0, %v479
  %v481 = vpop.f32.mrf.mxu0
  %v482 = vadd.f32 0.0, %v481
  %v483 = vpop.f32.mrf.mxu0
  %v484 = vadd.f32 0.0, %v483
  %485 = vdwg.mxu0
  %486 = vmatprep.subr.bf16.mxu0 %v362
  %487 = vmatpush1.bf16.msra.mxu0 %v361
  %488 = vmatprep.subr.bf16.mxu0 %v360
  %489 = vmatpush1.bf16.msra.mxu0 %v359
  %490 = vmatprep.subr.bf16.mxu0 %v358
  %491 = vmatpush1.bf16.msra.mxu0 %v357
  %492 = vmatprep.subr.bf16.mxu0 %v356
  %493 = vmatpush1.bf16.msra.mxu0 %v355
  %494 = vmatprep.subr.bf16.mxu0 %v354
  %495 = vmatpush1.bf16.msra.mxu0 %v353
  %496 = vmatprep.subr.bf16.mxu0 %v352
  %497 = vmatpush1.bf16.msra.mxu0 %v351
  %498 = vmatprep.subr.bf16.mxu0 %v350
  %499 = vmatpush1.bf16.msra.mxu0 %v349
  %500 = vmatprep.subr.bf16.mxu0 %v348
  %501 = vmatpush1.bf16.msra.mxu0 %v347
  %502 = vmatprep.subr.bf16.mxu0 %v378
  %503 = vmatpush2.bf16.msra.mxu0 %v377
  %504 = vmatprep.subr.bf16.mxu0 %v376
  %505 = vmatpush2.bf16.msra.mxu0 %v375
  %506 = vmatprep.subr.bf16.mxu0 %v374
  %507 = vmatpush2.bf16.msra.mxu0 %v373
  %508 = vmatprep.subr.bf16.mxu0 %v372
  %509 = vmatpush2.bf16.msra.mxu0 %v371
  %510 = vmatprep.subr.bf16.mxu0 %v370
  %511 = vmatpush2.bf16.msra.mxu0 %v369
  %512 = vmatprep.subr.bf16.mxu0 %v368
  %513 = vmatpush2.bf16.msra.mxu0 %v367
  %514 = vmatprep.subr.bf16.mxu0 %v366
  %515 = vmatpush2.bf16.msra.mxu0 %v365
  %516 = vmatprep.subr.bf16.mxu0 %v364
  %517 = vmatpush2.bf16.msra.mxu0 %v363
  %518 = vmatprep.mubr.bf16.mxu0 %v118
  %519 = vmatmul.mubr.bf16.gmra.mxu0 %v117
  %v520 = vpop.f32.mrf.mxu0
  %v521 = vadd.f32 %v478, %v520
  %v522 = vpop.f32.mrf.mxu0
  %v523 = vadd.f32 %v480, %v522
  %v524 = vpop.f32.mrf.mxu0
  %v525 = vadd.f32 %v482, %v524
  %v526 = vpop.f32.mrf.mxu0
  %v527 = vadd.f32 %v484, %v526
  %528 = vdwg.mxu0
  %v529 = vadd.f32 %v31, %v521
  %v530 = vadd.f32 %v32, %v523
  %v531 = vadd.f32 %v33, %v525
  %v532 = vadd.f32 %v34, %v527
  %533 = vst [vmem:[#allocation2] sm:$0xff] %v529
  %534 = vst [vmem:[#allocation2 + $0x8] sm:$0xff] %v530
  %535 = vst [vmem:[#allocation2 + $0x10] sm:$0xff] %v531
  %536 = vst [vmem:[#allocation2 + $0x18] sm:$0xff] %v532
  // Predicated region
  $region30: #{gpt_like_forward.18} parent=0 // pred_check
    %p537 = pneg %p23
  $region31: #{gpt_like_forward.18} parent=0 // pred_check_branch
    %539 = sbr.rel (%p537) target = $region33
  $region32: #{gpt_like_forward.18} parent=0 // pred_region
    %v540 = vld [vmem:[#allocation2] sm:$0xff]
    %v541 = vld [vmem:[#allocation2 + $0x8] sm:$0xff]
    %v542 = vld [vmem:[#allocation2 + $0x10] sm:$0xff]
    %v543 = vld [vmem:[#allocation2 + $0x18] sm:$0xff]
    %v544 = vld [vmem:[%s2] sm:$0x3]
    %v546 = vlaneseq
    %v547 = vshrl.u32 %v546, 7
    %v548 = vsub.s32 0, %v547
    %v549 = vrot.slane %v544, %v548
    %v550 = vlaneseq
    %v551 = vshrl.u32 %v550, 7
    %v552 = vsub.s32 1, %v551
    %v553 = vrot.slane %v544, %v552
    %v556 = vadd.f32 %v540, %v549
    %v557 = vadd.f32 %v541, %v553
    %v558 = vadd.f32 %v542, %v549
    %v559 = vadd.f32 %v543, %v553
    %v560 = vld [vmem:[%s3] sm:$0xff]
    %v561 = vld [vmem:[%s3 + $0x8] sm:$0xff]
    %v562 = vunpack.c.l.bf16 %v560
    %v563 = vunpack.c.h.bf16 %v560
    %v564 = vunpack.c.l.bf16 %v561
    %v565 = vunpack.c.h.bf16 %v561
    %v566 = vadd.f32 %v556, %v562
    %v567 = vadd.f32 %v557, %v563
    %v568 = vadd.f32 %v558, %v564
    %v569 = vadd.f32 %v559, %v565
    %v570 = vadd.f32 %v566, %v567
    %571 = vadd.xlane.f32.xlu0 %v570
    %v572 = vpop.xlane.xlu0 %571
    %v573 = vadd.f32 %v568, %v569
    %574 = vadd.xlane.f32.xlu0 %v573
    %v575 = vpop.xlane.xlu0 %574
    %v576 = vrcp.pop 256.0
    %v577 = vmul.f32 %v572, %v576
    %v578 = vmul.f32 %v575, %v576
    %v579 = vsub.f32 %v566, %v577
    %v580 = vsub.f32 %v567, %v577
    %v581 = vsub.f32 %v568, %v578
    %v582 = vsub.f32 %v569, %v578
    %v583 = vmul.f32 %v579, %v579
    %v584 = vmul.f32 %v580, %v580
    %v585 = vmul.f32 %v581, %v581
    %v586 = vmul.f32 %v582, %v582
    %v587 = vadd.f32 %v583, %v584
    %588 = vadd.xlane.f32.xlu0 %v587
    %v589 = vpop.xlane.xlu0 %588
    %v590 = vadd.f32 %v585, %v586
    %591 = vadd.xlane.f32.xlu0 %v590
    %v592 = vpop.xlane.xlu0 %591
    %v593 = vmul.f32 %v589, %v576
    %v594 = vmul.f32 %v592, %v576
    %v595 = vadd.f32 %v593, 1e-05
    %v596 = vadd.f32 %v594, 1e-05
    %v597 = vrsqrt.pop %v595
    %v598 = vrsqrt.pop %v596
    %v599 = vmul.f32 %v579, %v597
    %v600 = vmul.f32 %v580, %v597
    %v601 = vmul.f32 %v581, %v598
    %v602 = vmul.f32 %v582, %v598
    %v603 = vld [vmem:[%s4] sm:$0x3]
    %v605 = vlaneseq
    %v606 = vshrl.u32 %v605, 7
    %v607 = vsub.s32 0, %v606
    %v608 = vrot.slane %v603, %v607
    %v609 = vlaneseq
    %v610 = vshrl.u32 %v609, 7
    %v611 = vsub.s32 1, %v610
    %v612 = vrot.slane %v603, %v611
    %v615 = vmul.f32 %v599, %v608
    %v616 = vmul.f32 %v600, %v612
    %v617 = vmul.f32 %v601, %v608
    %v618 = vmul.f32 %v602, %v612
    %v619 = vld [vmem:[%s5] sm:$0x3]
    %v621 = vlaneseq
    %v622 = vshrl.u32 %v621, 7
    %v623 = vsub.s32 0, %v622
    %v624 = vrot.slane %v619, %v623
    %v625 = vlaneseq
    %v626 = vshrl.u32 %v625, 7
    %v627 = vsub.s32 1, %v626
    %v628 = vrot.slane %v619, %v627
    %v631 = vadd.f32 %v615, %v624
    %v632 = vadd.f32 %v616, %v628
    %v633 = vadd.f32 %v617, %v624
    %v634 = vadd.f32 %v618, %v628
    %v635 = vpack.c.bf16 %v633, %v631
    %v636 = vpack.c.bf16 %v634, %v632
    %v639 = vunpack.c.l.b16 %v635
    %v640 = vunpack.c.l.b16 %v636
    %v641 = vunpack.c.h.b16 %v635
    %v642 = vunpack.c.h.b16 %v636
    %v643 = vpack.c.b16 %v640, %v639
    %v644 = vpack.c.b16 %v642, %v641
    %647 = vst [vmem:[%s6] sm:$0xff] %v643
    %648 = vst [vmem:[%s6 + $0x8] sm:$0xff] %v644
  $region33: #{gpt_like_forward.18} parent=0 // pred_fallthru
    _
  // Predicated region
  $region34: #{gpt_like_forward.18} parent=0 // pred_check
    _
  $region35: #{gpt_like_forward.18} parent=0 // pred_check_branch
    %650 = sbr.rel (0) target = $region37
  $region36: #{gpt_like_forward.18} parent=0 // pred_region
    _
  $region37: #{gpt_like_forward.18} parent=0 // pred_fallthru
    _
  // Predicated region
  $region38: #{gpt_like_forward.18} parent=0 // pred_check
    _
  $region39: #{gpt_like_forward.18} parent=0 // pred_check_branch
    %652 = sbr.rel (0) target = $region41
  $region40: #{gpt_like_forward.18} parent=0 // pred_region
    _
  $region41: #{gpt_like_forward.18} parent=0 // pred_fallthru
    _

// kernel: gpt_like_forward.19
$region0: #{gpt_like_forward.19}
  #allocation0 [shape = 'u32[]', space=smem, size = 0x4, offset = 0x4, fixed_abs, tag = 'smem constant byte address 0x4 - core index']
  #allocation1 [shape = 'u32[144,128]{1,0:T(1,128)}', space=vmem, size = 0x12000, scoped, tag = 'internal scratch']
  #allocation2 [shape = 'f32[16,512]{1,0:T(8,128)}', space=vmem, size = 0x8000, scoped, tag = 'scratch operand']
  %s0 = inlined_call_operand.vmem [shape: bf16[16,256], index: 0, kind: input, shape index: {}]
  %s1 = inlined_call_operand.vmem [shape: bf16[256,1024], index: 1, kind: input, shape index: {}]
  %s2 = inlined_call_operand.vmem [shape: f32[1,1024], index: 2, kind: input, shape index: {}]
  %s3 = inlined_call_operand.vmem [shape: f32[16,1024], index: 3, kind: output, shape index: {}]
  %s4 = sld [smem:[#allocation0]]
  $region95: #{gpt_like_forward.19} parent=0
    _
  %s6 = ssub.s32 1, %s4
  %s7 = scalar_select 0, %s6, %s4
  $region1: #{gpt_like_forward.19} parent=0
    #allocation3 [shape = 'u8[524288]{0}', space=vmem, size = 0x80000, scoped, tag = 'input window, operand 1']
    #allocation4 [shape = 'u8[65536]{0}', space=vmem, size = 0x10000, scoped, tag = 'output window, operand 0']
    loop: start=0, step=1, limit=4
    $region2: #{gpt_like_forward.19} parent=1 // loop_pre_header
      _
    $region3: #{gpt_like_forward.19} parent=1 // loop_header
      %s9 = sphi 0, %s13
      %p10 = scmp.ge.s32.totalorder %s9, 4
      %s16 = sphi 0, %s35
      %s17 = sphi 0, %s31
      %s18 = sphi 0, %s27
      %s19 = sphi 0, %s16
      %s20 = sphi 0, %s17
      %s21 = sphi 0, %s18
      %s22 = sphi 0, %s19
      %s23 = sphi 0, %s20
      %s24 = sphi 0, %s21
      %s40 = sphi 0, %s42
      %s43 = sphi 0, %s40
      %s44 = sphi 0, %s43
      %s60 = sphi 0, %s44
      %s68 = sphi 0, %s70
      %s71 = sphi 0, %s68
      %s72 = sphi 0, %s71
      %s88 = sphi 0, %s72
      %s94 = sphi 0, %s96
      %s97 = sphi 0, %s94
      %s98 = sphi 0, %s97
      %s114 = sphi 0, %s98
      %s122 = sphi 0, %s124
      %s125 = sphi 0, %s122
      %s126 = sphi 0, %s125
      %s142 = sphi 0, %s126
    $region4: #{gpt_like_forward.19} parent=1 // loop_header_branch
      %12 = sbr.rel (%p10) target = $region8
    $region5: #{gpt_like_forward.19} parent=1 // loop_body
      %s14 = ssub.s32 %s9, 1
      %s15 = ssub.s32 %s9, 2
      %s25 = sadd.s32 1, %s18
      %p26 = scmp.ge.s32.totalorder %s25, 1
      %s27 = scalar_select %p26, 0, %s25
      %s28 = sadd.s32 1, %s17
      %s29 = scalar_select %p26, %s28, %s17
      %p30 = scmp.ge.s32.totalorder %s29, 2
      %s31 = scalar_select %p30, 0, %s29
      %s32 = sadd.s32 1, %s16
      %s33 = scalar_select %p30, %s32, %s16
      %p34 = scmp.ge.s32.totalorder %s33, 1
      %s35 = scalar_select %p34, 0, %s33
      %s36 = ssub.s32 %s16, %s35
      %s37 = ssub.s32 %s18, %s27
      %s38 = sor.u32 %s36, %s37
      %p39 = scmp.eq.s32.totalorder %s38, 0
      %s41 = sadd.s32 %s40, 1
      %s42 = scalar_select %p39, %s40, %s41
      %p45 = pneg %p39
      %p46 = scmp.eq.s32.totalorder %s9, 1
      %p47 = por %p45, %p46
      %p48 = scmp.ne.s32.totalorder %s40, %s43
      %p49 = scmp.eq.s32.totalorder %s9, 0
      %p50 = por %p48, %p49
      %p51 = scmp.ne.s32.totalorder %s40, %s43
      %p52 = scmp.eq.s32.totalorder %s14, 1
      %p53 = por %p51, %p52
      %p54 = scmp.ne.s32.totalorder %s43, %s44
      %p55 = scmp.eq.s32.totalorder %s14, 0
      %p56 = por %p54, %p55
      %p57 = scmp.ne.s32.totalorder %s43, %s44
      %p58 = scmp.eq.s32.totalorder %s15, 1
      %p59 = por %p57, %p58
      %p61 = scmp.ne.s32.totalorder %s44, %s60
      %p62 = scmp.eq.s32.totalorder %s15, 0
      %p63 = por %p61, %p62
      %s64 = ssub.s32 %s18, %s27
      %s65 = ssub.s32 %s17, %s31
      %s66 = sor.u32 %s64, %s65
      %p67 = scmp.eq.s32.totalorder %s66, 0
      %s69 = sadd.s32 %s68, 1
      %s70 = scalar_select %p67, %s68, %s69
      %p73 = pneg %p67
      %p74 = scmp.eq.s32.totalorder %s9, 1
      %p75 = por %p73, %p74
      %p76 = scmp.ne.s32.totalorder %s68, %s71
      %p77 = scmp.eq.s32.totalorder %s9, 0
      %p78 = por %p76, %p77
      %p79 = scmp.ne.s32.totalorder %s68, %s71
      %p80 = scmp.eq.s32.totalorder %s14, 1
      %p81 = por %p79, %p80
      %p82 = scmp.ne.s32.totalorder %s71, %s72
      %p83 = scmp.eq.s32.totalorder %s14, 0
      %p84 = por %p82, %p83
      %p85 = scmp.ne.s32.totalorder %s71, %s72
      %p86 = scmp.eq.s32.totalorder %s15, 1
      %p87 = por %p85, %p86
      %p89 = scmp.ne.s32.totalorder %s72, %s88
      %p90 = scmp.eq.s32.totalorder %s15, 0
      %p91 = por %p89, %p90
      %s92 = ssub.s32 %s17, %s31
      %p93 = scmp.eq.s32.totalorder %s92, 0
      %s95 = sadd.s32 %s94, 1
      %s96 = scalar_select %p93, %s94, %s95
      %p99 = pneg %p93
      %p100 = scmp.eq.s32.totalorder %s9, 1
      %p101 = por %p99, %p100
      %p102 = scmp.ne.s32.totalorder %s94, %s97
      %p103 = scmp.eq.s32.totalorder %s9, 0
      %p104 = por %p102, %p103
      %p105 = scmp.ne.s32.totalorder %s94, %s97
      %p106 = scmp.eq.s32.totalorder %s14, 1
      %p107 = por %p105, %p106
      %p108 = scmp.ne.s32.totalorder %s97, %s98
      %p109 = scmp.eq.s32.totalorder %s14, 0
      %p110 = por %p108, %p109
      %p111 = scmp.ne.s32.totalorder %s97, %s98
      %p112 = scmp.eq.s32.totalorder %s15, 1
      %p113 = por %p111, %p112
      %p115 = scmp.ne.s32.totalorder %s98, %s114
      %p116 = scmp.eq.s32.totalorder %s15, 0
      %p117 = por %p115, %p116
      %s118 = ssub.s32 %s16, %s35
      %s119 = ssub.s32 %s17, %s31
      %s120 = sor.u32 %s118, %s119
      %p121 = scmp.eq.s32.totalorder %s120, 0
      %s123 = sadd.s32 %s122, 1
      %s124 = scalar_select %p121, %s122, %s123
      %p127 = pneg %p121
      %p128 = scmp.eq.s32.totalorder %s9, 1
      %p129 = por %p127, %p128
      %p130 = scmp.ne.s32.totalorder %s122, %s125
      %p131 = scmp.eq.s32.totalorder %s9, 0
      %p132 = por %p130, %p131
      %p133 = scmp.ne.s32.totalorder %s122, %s125
      %p134 = scmp.eq.s32.totalorder %s14, 1
      %p135 = por %p133, %p134
      %p136 = scmp.ne.s32.totalorder %s125, %s126
      %p137 = scmp.eq.s32.totalorder %s14, 0
      %p138 = por %p136, %p137
      %p139 = scmp.ne.s32.totalorder %s125, %s126
      %p140 = scmp.eq.s32.totalorder %s15, 1
      %p141 = por %p139, %p140
      %p143 = scmp.ne.s32.totalorder %s126, %s142
      %p144 = scmp.eq.s32.totalorder %s15, 0
      %p145 = por %p143, %p144
      %p146 = scmp.le.s32.totalorder 1, %s9
      %p147 = scmp.lt.s32.totalorder %s9, 3
      %p148 = pnand %p146, %p147
      %p149 = pneg %p148
      // Predicated region
      $region9: #{gpt_like_forward.19} parent=5 // pred_check
        _
      $region10: #{gpt_like_forward.19} parent=5 // pred_check_branch
        %151 = sbr.rel (%p148) target = $region12
      $region11: #{gpt_like_forward.19} parent=5 // pred_region
        %s152 = ssub.s32 %s9, 1
        // Predicated region
        $region13: #{gpt_like_forward.19} parent=11 // pred_check
          %p153 = pneg %p56
        $region14: #{gpt_like_forward.19} parent=11 // pred_check_branch
          %155 = sbr.rel (%p153) target = $region16
        $region15: #{gpt_like_forward.19} parent=11 // pred_region
          %s156 = smul.u32 2, %s19
          %s157 = smul.u32 2, %s21
          %p158 = scmp.lt.s32.totalorder %s156, 1
          %s159 = scalar_select %p158, %s156, 1
          %p160 = scmp.lt.s32.totalorder %s157, 1
          %s161 = scalar_select %p160, %s157, 1
          %s162 = smul.addr %s159, 2
          %s163 = sadd.s32 %s161, %s162
          %s164 = smul.addr %s163, 4
          %s165 = scalar_lea.vmem %s0, %s164
          %s166 = smul.u32 2, %s19
          %s167 = smul.u32 2, %s21
        $region16: #{gpt_like_forward.19} parent=11 // pred_fallthru
          _
      $region12: #{gpt_like_forward.19} parent=5 // pred_fallthru
        _
      %p168 = scmp.lt.s32.totalorder %s9, 2
      // Predicated region
      $region17: #{gpt_like_forward.19} parent=5 // pred_check
        %p169 = pneg %p168
      $region18: #{gpt_like_forward.19} parent=5 // pred_check_branch
        %171 = sbr.rel (%p169) target = $region20
      $region19: #{gpt_like_forward.19} parent=5 // pred_region
        // Predicated region
        $region21: #{gpt_like_forward.19} parent=19 // pred_check
          %p172 = pneg %p78
        $region22: #{gpt_like_forward.19} parent=19 // pred_check_branch
          %174 = sbr.rel (%p172) target = $region24
        $region23: #{gpt_like_forward.19} parent=19 // pred_region
          %s175 = sand.u32 %s68, 1
          %s176 = sand.u32 %s68, 1
          %s177 = smul.addr %s176, 512
          %s178 = scalar_lea.vmem [#allocation3], %s177
          %s179 = smul.u32 32, %s18
          %s180 = smul.u32 4, %s17
          %s181 = smul.addr %s179, 8
          %s182 = sadd.s32 %s180, %s181
          %s183 = smul.addr %s182, 4
          %s184 = scalar_lea.vmem %s1, %s183
          // Predicated region
          $region25: #{gpt_like_forward.19} parent=23 // pred_check
            _
          $region26: #{gpt_like_forward.19} parent=23 // pred_check_branch
            %186 = sbr.rel (0) target = $region28
          $region27: #{gpt_like_forward.19} parent=23 // pred_region
            // Predicated region
            $region29: #{gpt_like_forward.19} parent=27 // pred_check
              _
            $region30: #{gpt_like_forward.19} parent=27 // pred_check_branch
              %188 = sbr.rel (0) target = $region32
            $region31: #{gpt_like_forward.19} parent=27 // pred_region
              loop: start=0, step=1, limit=1
              $region33: #{gpt_like_forward.19} parent=31 // loop_pre_header
                _
              $region34: #{gpt_like_forward.19} parent=31 // loop_header
                %s190 = sphi 0, %s194
                %p191 = scmp.ge.s32.totalorder %s190, 1
                %s195 = sphi %s184, %s184
                %s196 = sphi %s178, %s178
              $region35: #{gpt_like_forward.19} parent=31 // loop_header_branch
                %193 = sbr.rel (%p191) target = $region39
              $region36: #{gpt_like_forward.19} parent=31 // loop_body
                %v197 = vld [vmem:[%s195] sm:$0xff]
                %198 = vst [vmem:[%s196] sm:$0xff] %v197
                %v199 = vld [vmem:[%s195 + $0x8] sm:$0xff]
                %200 = vst [vmem:[%s196 + $0x8] sm:$0xff] %v199
                %v201 = vld [vmem:[%s195 + $0x20] sm:$0xff]
                %202 = vst [vmem:[%s196 + $0x10] sm:$0xff] %v201
                %v203 = vld [vmem:[%s195 + $0x28] sm:$0xff]
                %204 = vst [vmem:[%s196 + $0x18] sm:$0xff] %v203
                %v205 = vld [vmem:[%s195 + $0x40] sm:$0xff]
                %206 = vst [vmem:[%s196 + $0x20] sm:$0xff] %v205
                %v207 = vld [vmem:[%s195 + $0x48] sm:$0xff]
                %208 = vst [vmem:[%s196 + $0x28] sm:$0xff] %v207
                %v209 = vld [vmem:[%s195 + $0x60] sm:$0xff]
                %210 = vst [vmem:[%s196 + $0x30] sm:$0xff] %v209
                %v211 = vld [vmem:[%s195 + $0x68] sm:$0xff]
                %212 = vst [vmem:[%s196 + $0x38] sm:$0xff] %v211
                %v213 = vld [vmem:[%s195 + $0x80] sm:$0xff]
                %214 = vst [vmem:[%s196 + $0x40] sm:$0xff] %v213
                %v215 = vld [vmem:[%s195 + $0x88] sm:$0xff]
                %216 = vst [vmem:[%s196 + $0x48] sm:$0xff] %v215
                %v217 = vld [vmem:[%s195 + $0xa0] sm:$0xff]
                %218 = vst [vmem:[%s196 + $0x50] sm:$0xff] %v217
                %v219 = vld [vmem:[%s195 + $0xa8] sm:$0xff]
                %220 = vst [vmem:[%s196 + $0x58] sm:$0xff] %v219
                %v221 = vld [vmem:[%s195 + $0xc0] sm:$0xff]
                %222 = vst [vmem:[%s196 + $0x60] sm:$0xff] %v221
                %v223 = vld [vmem:[%s195 + $0xc8] sm:$0xff]
                %224 = vst [vmem:[%s196 + $0x68] sm:$0xff] %v223
                %v225 = vld [vmem:[%s195 + $0xe0] sm:$0xff]
                %226 = vst [vmem:[%s196 + $0x70] sm:$0xff] %v225
                %v227 = vld [vmem:[%s195 + $0xe8] sm:$0xff]
                %228 = vst [vmem:[%s196 + $0x78] sm:$0xff] %v227
                %v229 = vld [vmem:[%s195 + $0x100] sm:$0xff]
                %230 = vst [vmem:[%s196 + $0x80] sm:$0xff] %v229
                %v231 = vld [vmem:[%s195 + $0x108] sm:$0xff]
                %232 = vst [vmem:[%s196 + $0x88] sm:$0xff] %v231
                %v233 = vld [vmem:[%s195 + $0x120] sm:$0xff]
                %234 = vst [vmem:[%s196 + $0x90] sm:$0xff] %v233
                %v235 = vld [vmem:[%s195 + $0x128] sm:$0xff]
                %236 = vst [vmem:[%s196 + $0x98] sm:$0xff] %v235
                %v237 = vld [vmem:[%s195 + $0x140] sm:$0xff]
                %238 = vst [vmem:[%s196 + $0xa0] sm:$0xff] %v237
                %v239 = vld [vmem:[%s195 + $0x148] sm:$0xff]
                %240 = vst [vmem:[%s196 + $0xa8] sm:$0xff] %v239
                %v241 = vld [vmem:[%s195 + $0x160] sm:$0xff]
                %242 = vst [vmem:[%s196 + $0xb0] sm:$0xff] %v241
                %v243 = vld [vmem:[%s195 + $0x168] sm:$0xff]
                %244 = vst [vmem:[%s196 + $0xb8] sm:$0xff] %v243
                %v245 = vld [vmem:[%s195 + $0x180] sm:$0xff]
                %246 = vst [vmem:[%s196 + $0xc0] sm:$0xff] %v245
                %v247 = vld [vmem:[%s195 + $0x188] sm:$0xff]
                %248 = vst [vmem:[%s196 + $0xc8] sm:$0xff] %v247
                %v249 = vld [vmem:[%s195 + $0x1a0] sm:$0xff]
                %250 = vst [vmem:[%s196 + $0xd0] sm:$0xff] %v249
                %v251 = vld [vmem:[%s195 + $0x1a8] sm:$0xff]
                %252 = vst [vmem:[%s196 + $0xd8] sm:$0xff] %v251
                %v253 = vld [vmem:[%s195 + $0x1c0] sm:$0xff]
                %254 = vst [vmem:[%s196 + $0xe0] sm:$0xff] %v253
                %v255 = vld [vmem:[%s195 + $0x1c8] sm:$0xff]
                %256 = vst [vmem:[%s196 + $0xe8] sm:$0xff] %v255
                %v257 = vld [vmem:[%s195 + $0x1e0] sm:$0xff]
                %258 = vst [vmem:[%s196 + $0xf0] sm:$0xff] %v257
                %v259 = vld [vmem:[%s195 + $0x1e8] sm:$0xff]
                %260 = vst [vmem:[%s196 + $0xf8] sm:$0xff] %v259
                %v261 = vld [vmem:[%s195 + $0x200] sm:$0xff]
                %262 = vst [vmem:[%s196 + $0x100] sm:$0xff] %v261
                %v263 = vld [vmem:[%s195 + $0x208] sm:$0xff]
                %264 = vst [vmem:[%s196 + $0x108] sm:$0xff] %v263
                %v265 = vld [vmem:[%s195 + $0x220] sm:$0xff]
                %266 = vst [vmem:[%s196 + $0x110] sm:$0xff] %v265
                %v267 = vld [vmem:[%s195 + $0x228] sm:$0xff]
                %268 = vst [vmem:[%s196 + $0x118] sm:$0xff] %v267
                %v269 = vld [vmem:[%s195 + $0x240] sm:$0xff]
                %270 = vst [vmem:[%s196 + $0x120] sm:$0xff] %v269
                %v271 = vld [vmem:[%s195 + $0x248] sm:$0xff]
                %272 = vst [vmem:[%s196 + $0x128] sm:$0xff] %v271
                %v273 = vld [vmem:[%s195 + $0x260] sm:$0xff]
                %274 = vst [vmem:[%s196 + $0x130] sm:$0xff] %v273
                %v275 = vld [vmem:[%s195 + $0x268] sm:$0xff]
                %276 = vst [vmem:[%s196 + $0x138] sm:$0xff] %v275
                %v277 = vld [vmem:[%s195 + $0x280] sm:$0xff]
                %278 = vst [vmem:[%s196 + $0x140] sm:$0xff] %v277
                %v279 = vld [vmem:[%s195 + $0x288] sm:$0xff]
                %280 = vst [vmem:[%s196 + $0x148] sm:$0xff] %v279
                %v281 = vld [vmem:[%s195 + $0x2a0] sm:$0xff]
                %282 = vst [vmem:[%s196 + $0x150] sm:$0xff] %v281
                %v283 = vld [vmem:[%s195 + $0x2a8] sm:$0xff]
                %284 = vst [vmem:[%s196 + $0x158] sm:$0xff] %v283
                %v285 = vld [vmem:[%s195 + $0x2c0] sm:$0xff]
                %286 = vst [vmem:[%s196 + $0x160] sm:$0xff] %v285
                %v287 = vld [vmem:[%s195 + $0x2c8] sm:$0xff]
                %288 = vst [vmem:[%s196 + $0x168] sm:$0xff] %v287
                %v289 = vld [vmem:[%s195 + $0x2e0] sm:$0xff]
                %290 = vst [vmem:[%s196 + $0x170] sm:$0xff] %v289
                %v291 = vld [vmem:[%s195 + $0x2e8] sm:$0xff]
                %292 = vst [vmem:[%s196 + $0x178] sm:$0xff] %v291
                %v293 = vld [vmem:[%s195 + $0x300] sm:$0xff]
                %294 = vst [vmem:[%s196 + $0x180] sm:$0xff] %v293
                %v295 = vld [vmem:[%s195 + $0x308] sm:$0xff]
                %296 = vst [vmem:[%s196 + $0x188] sm:$0xff] %v295
                %v297 = vld [vmem:[%s195 + $0x320] sm:$0xff]
                %298 = vst [vmem:[%s196 + $0x190] sm:$0xff] %v297
                %v299 = vld [vmem:[%s195 + $0x328] sm:$0xff]
                %300 = vst [vmem:[%s196 + $0x198] sm:$0xff] %v299
                %v301 = vld [vmem:[%s195 + $0x340] sm:$0xff]
                %302 = vst [vmem:[%s196 + $0x1a0] sm:$0xff] %v301
                %v303 = vld [vmem:[%s195 + $0x348] sm:$0xff]
                %304 = vst [vmem:[%s196 + $0x1a8] sm:$0xff] %v303
                %v305 = vld [vmem:[%s195 + $0x360] sm:$0xff]
                %306 = vst [vmem:[%s196 + $0x1b0] sm:$0xff] %v305
                %v307 = vld [vmem:[%s195 + $0x368] sm:$0xff]
                %308 = vst [vmem:[%s196 + $0x1b8] sm:$0xff] %v307
                %v309 = vld [vmem:[%s195 + $0x380] sm:$0xff]
                %310 = vst [vmem:[%s196 + $0x1c0] sm:$0xff] %v309
                %v311 = vld [vmem:[%s195 + $0x388] sm:$0xff]
                %312 = vst [vmem:[%s196 + $0x1c8] sm:$0xff] %v311
                %v313 = vld [vmem:[%s195 + $0x3a0] sm:$0xff]
                %314 = vst [vmem:[%s196 + $0x1d0] sm:$0xff] %v313
                %v315 = vld [vmem:[%s195 + $0x3a8] sm:$0xff]
                %316 = vst [vmem:[%s196 + $0x1d8] sm:$0xff] %v315
                %v317 = vld [vmem:[%s195 + $0x3c0] sm:$0xff]
                %318 = vst [vmem:[%s196 + $0x1e0] sm:$0xff] %v317
                %v319 = vld [vmem:[%s195 + $0x3c8] sm:$0xff]
                %320 = vst [vmem:[%s196 + $0x1e8] sm:$0xff] %v319
                %v321 = vld [vmem:[%s195 + $0x3e0] sm:$0xff]
                %322 = vst [vmem:[%s196 + $0x1f0] sm:$0xff] %v321
                %v323 = vld [vmem:[%s195 + $0x3e8] sm:$0xff]
                %324 = vst [vmem:[%s196 + $0x1f8] sm:$0xff] %v323
              $region37: #{gpt_like_forward.19} parent=31 // loop_footer
                %s194 = sadd.s32 1, %s190
              $region38: #{gpt_like_forward.19} parent=31 // loop_footer_branch
                %189 = sbr.rel target = $region34
              $region39: #{gpt_like_forward.19} parent=31 // loop_exit
                _
            $region32: #{gpt_like_forward.19} parent=27 // pred_fallthru
              _
            // Predicated region
            $region40: #{gpt_like_forward.19} parent=27 // pred_check
              _
            $region41: #{gpt_like_forward.19} parent=27 // pred_check_branch
              %326 = sbr.rel target = $region43
            $region42: #{gpt_like_forward.19} parent=27 // pred_region
              _
            $region43: #{gpt_like_forward.19} parent=27 // pred_fallthru
              _
          $region28: #{gpt_like_forward.19} parent=23 // pred_fallthru
            _
          %327 = vnop
        $region24: #{gpt_like_forward.19} parent=19 // pred_fallthru
          _
        // Predicated region
        $region44: #{gpt_like_forward.19} parent=19 // pred_check
          %p328 = pneg %p104
        $region45: #{gpt_like_forward.19} parent=19 // pred_check_branch
          %330 = sbr.rel (%p328) target = $region47
        $region46: #{gpt_like_forward.19} parent=19 // pred_region
          %s331 = smul.u32 4, %s17
          %p332 = scmp.lt.s32.totalorder %s331, 7
          %s333 = scalar_select %p332, %s331, 7
          %s334 = scalar_lea.vmem %s2, %s333
          %s335 = smul.u32 4, %s17
        $region47: #{gpt_like_forward.19} parent=19 // pred_fallthru
          _
      $region20: #{gpt_like_forward.19} parent=5 // pred_fallthru
        _
      %p336 = scmp.le.s32.totalorder 1, %s9
      %p337 = scmp.lt.s32.totalorder %s9, 3
      %p338 = pnand %p336, %p337
      %p339 = pneg %p338
      // Predicated region
      $region48: #{gpt_like_forward.19} parent=5 // pred_check
        _
      $region49: #{gpt_like_forward.19} parent=5 // pred_check_branch
        %341 = sbr.rel (%p338) target = $region51
      $region50: #{gpt_like_forward.19} parent=5 // pred_region
        %s342 = ssub.s32 %s9, 1
        %s343 = sand.u32 %s71, 1
        %s344 = sand.u32 %s71, 1
        %s345 = smul.addr %s344, 512
        %s346 = scalar_lea.vmem [#allocation3], %s345
        // Predicated region
        $region52: #{gpt_like_forward.19} parent=50 // pred_check
          %p347 = pneg %p84
        $region53: #{gpt_like_forward.19} parent=50 // pred_check_branch
          %349 = sbr.rel (%p347) target = $region55
        $region54: #{gpt_like_forward.19} parent=50 // pred_region
          _
        $region55: #{gpt_like_forward.19} parent=50 // pred_fallthru
          _
        %s350 = smul.u32 2, %s19
        %s351 = smul.u32 2, %s21
        %p352 = scmp.lt.s32.totalorder %s350, 1
        %s353 = scalar_select %p352, %s350, 1
        %p354 = scmp.lt.s32.totalorder %s351, 1
        %s355 = scalar_select %p354, %s351, 1
        %s356 = smul.addr %s353, 2
        %s357 = sadd.s32 %s355, %s356
        %s358 = smul.addr %s357, 4
        %s359 = scalar_lea.vmem %s0, %s358
        %p360 = pneg %p56
        %p361 = pneg %p53
        %s362 = sand.u32 %s71, 1
        %s363 = sand.u32 %s71, 1
        %s364 = smul.addr %s363, 512
        %s365 = scalar_lea.vmem [#allocation3], %s364
        %p366 = pneg %p84
        %p367 = pneg %p81
        %s368 = smul.u32 4, %s20
        %p369 = scmp.lt.s32.totalorder %s368, 7
        %s370 = scalar_select %p369, %s368, 7
        %s371 = scalar_lea.vmem %s2, %s370
        %p372 = pneg %p110
        %p373 = pneg %p107
        %p374 = pneg %p138
        %p375 = pneg %p135
        %s376 = sand.u32 %s125, 1
        %s377 = sand.u32 %s125, 1
        %s378 = smul.addr %s377, 64
        %s379 = scalar_lea.vmem [#allocation4], %s378
        %s380 = smul.u32 2, %s19
        %s381 = smul.u32 2, %s21
        %p382 = scmp.lt.s32.totalorder %s380, 1
        %s383 = scalar_select %p382, %s380, 1
        %p384 = scmp.lt.s32.totalorder %s381, 1
        %s385 = scalar_select %p384, %s381, 1
        %s386 = smul.addr %s383, 2
        %s387 = sadd.s32 %s385, %s386
        %s388 = smul.addr %s387, 4
        %s389 = scalar_lea.vmem %s0, %s388
        %s390 = smul.u32 2, %s19
        %s391 = smul.u32 2, %s21
        %s392 = smul.u32 32, %s21
        %s393 = smul.u32 4, %s20
        %s394 = smul.u32 4, %s20
        %p395 = scmp.lt.s32.totalorder %s394, 7
        %s396 = scalar_select %p395, %s394, 7
        %s397 = scalar_lea.vmem %s2, %s396
        %s398 = smul.u32 4, %s20
        %s399 = smul.u32 2, %s19
        %s400 = smul.u32 4, %s20
        %p401 = scmp.eq.s32.totalorder %s21, 0
        // Predicated region
        $region56: #{gpt_like_forward.19} parent=50 // pred_check
          %p402 = pneg %p401
        $region57: #{gpt_like_forward.19} parent=50 // pred_check_branch
          %404 = sbr.rel (%p402) target = $region59
        $region58: #{gpt_like_forward.19} parent=50 // pred_region
          %405 = vst [vmem:[#allocation2] sm:$0xff] 0.0
          %406 = vst [vmem:[#allocation2 + $0x8] sm:$0xff] 0.0
          %407 = vst [vmem:[#allocation2 + $0x10] sm:$0xff] 0.0
          %408 = vst [vmem:[#allocation2 + $0x18] sm:$0xff] 0.0
          %409 = vst [vmem:[#allocation2 + $0x20] sm:$0xff] 0.0
          %410 = vst [vmem:[#allocation2 + $0x28] sm:$0xff] 0.0
          %411 = vst [vmem:[#allocation2 + $0x30] sm:$0xff] 0.0
          %412 = vst [vmem:[#allocation2 + $0x38] sm:$0xff] 0.0
        $region59: #{gpt_like_forward.19} parent=50 // pred_fallthru
          _
        %v413 = vld [vmem:[#allocation2] sm:$0xff]
        %v414 = vld [vmem:[#allocation2 + $0x8] sm:$0xff]
        %v415 = vld [vmem:[#allocation2 + $0x10] sm:$0xff]
        %v416 = vld [vmem:[#allocation2 + $0x18] sm:$0xff]
        %v417 = vld [vmem:[#allocation2 + $0x20] sm:$0xff]
        %v418 = vld [vmem:[#allocation2 + $0x28] sm:$0xff]
        %v419 = vld [vmem:[#allocation2 + $0x30] sm:$0xff]
        %v420 = vld [vmem:[#allocation2 + $0x38] sm:$0xff]
        %v421 = vld [vmem:[%s389] sm:$0xff]
        %v422 = vld [vmem:[%s389 + $0x8] sm:$0xff]
        %v423 = vld [vmem:[%s346] sm:$0xff]
        %v424 = vld [vmem:[%s346 + $0x8] sm:$0xff]
        %v425 = vld [vmem:[%s346 + $0x10] sm:$0xff]
        %v426 = vld [vmem:[%s346 + $0x18] sm:$0xff]
        %v427 = vld [vmem:[%s346 + $0x20] sm:$0xff]
        %v428 = vld [vmem:[%s346 + $0x28] sm:$0xff]
        %v429 = vld [vmem:[%s346 + $0x30] sm:$0xff]
        %v430 = vld [vmem:[%s346 + $0x38] sm:$0xff]
        %v431 = vld [vmem:[%s346 + $0x40] sm:$0xff]
        %v432 = vld [vmem:[%s346 + $0x48] sm:$0xff]
        %v433 = vld [vmem:[%s346 + $0x50] sm:$0xff]
        %v434 = vld [vmem:[%s346 + $0x58] sm:$0xff]
        %v435 = vld [vmem:[%s346 + $0x60] sm:$0xff]
        %v436 = vld [vmem:[%s346 + $0x68] sm:$0xff]
        %v437 = vld [vmem:[%s346 + $0x70] sm:$0xff]
        %v438 = vld [vmem:[%s346 + $0x78] sm:$0xff]
        %v439 = vld [vmem:[%s346 + $0x80] sm:$0xff]
        %v440 = vld [vmem:[%s346 + $0x88] sm:$0xff]
        %v441 = vld [vmem:[%s346 + $0x90] sm:$0xff]
        %v442 = vld [vmem:[%s346 + $0x98] sm:$0xff]
        %v443 = vld [vmem:[%s346 + $0xa0] sm:$0xff]
        %v444 = vld [vmem:[%s346 + $0xa8] sm:$0xff]
        %v445 = vld [vmem:[%s346 + $0xb0] sm:$0xff]
        %v446 = vld [vmem:[%s346 + $0xb8] sm:$0xff]
        %v447 = vld [vmem:[%s346 + $0xc0] sm:$0xff]
        %v448 = vld [vmem:[%s346 + $0xc8] sm:$0xff]
        %v449 = vld [vmem:[%s346 + $0xd0] sm:$0xff]
        %v450 = vld [vmem:[%s346 + $0xd8] sm:$0xff]
        %v451 = vld [vmem:[%s346 + $0xe0] sm:$0xff]
        %v452 = vld [vmem:[%s346 + $0xe8] sm:$0xff]
        %v453 = vld [vmem:[%s346 + $0xf0] sm:$0xff]
        %v454 = vld [vmem:[%s346 + $0xf8] sm:$0xff]
        %v455 = vld [vmem:[%s346 + $0x100] sm:$0xff]
        %v456 = vld [vmem:[%s346 + $0x108] sm:$0xff]
        %v457 = vld [vmem:[%s346 + $0x110] sm:$0xff]
        %v458 = vld [vmem:[%s346 + $0x118] sm:$0xff]
        %v459 = vld [vmem:[%s346 + $0x120] sm:$0xff]
        %v460 = vld [vmem:[%s346 + $0x128] sm:$0xff]
        %v461 = vld [vmem:[%s346 + $0x130] sm:$0xff]
        %v462 = vld [vmem:[%s346 + $0x138] sm:$0xff]
        %v463 = vld [vmem:[%s346 + $0x140] sm:$0xff]
        %v464 = vld [vmem:[%s346 + $0x148] sm:$0xff]
        %v465 = vld [vmem:[%s346 + $0x150] sm:$0xff]
        %v466 = vld [vmem:[%s346 + $0x158] sm:$0xff]
        %v467 = vld [vmem:[%s346 + $0x160] sm:$0xff]
        %v468 = vld [vmem:[%s346 + $0x168] sm:$0xff]
        %v469 = vld [vmem:[%s346 + $0x170] sm:$0xff]
        %v470 = vld [vmem:[%s346 + $0x178] sm:$0xff]
        %v471 = vld [vmem:[%s346 + $0x180] sm:$0xff]
        %v472 = vld [vmem:[%s346 + $0x188] sm:$0xff]
        %v473 = vld [vmem:[%s346 + $0x190] sm:$0xff]
        %v474 = vld [vmem:[%s346 + $0x198] sm:$0xff]
        %v475 = vld [vmem:[%s346 + $0x1a0] sm:$0xff]
        %v476 = vld [vmem:[%s346 + $0x1a8] sm:$0xff]
        %v477 = vld [vmem:[%s346 + $0x1b0] sm:$0xff]
        %v478 = vld [vmem:[%s346 + $0x1b8] sm:$0xff]
        %v479 = vld [vmem:[%s346 + $0x1c0] sm:$0xff]
        %v480 = vld [vmem:[%s346 + $0x1c8] sm:$0xff]
        %v481 = vld [vmem:[%s346 + $0x1d0] sm:$0xff]
        %v482 = vld [vmem:[%s346 + $0x1d8] sm:$0xff]
        %v483 = vld [vmem:[%s346 + $0x1e0] sm:$0xff]
        %v484 = vld [vmem:[%s346 + $0x1e8] sm:$0xff]
        %v485 = vld [vmem:[%s346 + $0x1f0] sm:$0xff]
        %v486 = vld [vmem:[%s346 + $0x1f8] sm:$0xff]
        %v489 = vunpack.c.l.b16 %v421
        %v490 = vunpack.c.h.b16 %v421
        %v491 = vunpack.c.l.b16 %v422
        %v492 = vunpack.c.h.b16 %v422
        %v493 = vpack.c.b16 %v491, %v489
        %v494 = vpack.c.b16 %v492, %v490
        %v561 = vunpack.c.l.b16 %v423
        %v562 = vunpack.c.h.b16 %v423
        %v563 = vunpack.c.l.b16 %v424
        %v564 = vunpack.c.h.b16 %v424
        %v565 = vunpack.c.l.b16 %v425
        %v566 = vunpack.c.h.b16 %v425
        %v567 = vunpack.c.l.b16 %v426
        %v568 = vunpack.c.h.b16 %v426
        %v569 = vunpack.c.l.b16 %v427
        %v570 = vunpack.c.h.b16 %v427
        %v571 = vunpack.c.l.b16 %v428
        %v572 = vunpack.c.h.b16 %v428
        %v573 = vunpack.c.l.b16 %v429
        %v574 = vunpack.c.h.b16 %v429
        %v575 = vunpack.c.l.b16 %v430
        %v576 = vunpack.c.h.b16 %v430
        %v577 = vunpack.c.l.b16 %v431
        %v578 = vunpack.c.h.b16 %v431
        %v579 = vunpack.c.l.b16 %v432
        %v580 = vunpack.c.h.b16 %v432
        %v581 = vunpack.c.l.b16 %v433
        %v582 = vunpack.c.h.b16 %v433
        %v583 = vunpack.c.l.b16 %v434
        %v584 = vunpack.c.h.b16 %v434
        %v585 = vunpack.c.l.b16 %v435
        %v586 = vunpack.c.h.b16 %v435
        %v587 = vunpack.c.l.b16 %v436
        %v588 = vunpack.c.h.b16 %v436
        %v589 = vunpack.c.l.b16 %v437
        %v590 = vunpack.c.h.b16 %v437
        %v591 = vunpack.c.l.b16 %v438
        %v592 = vunpack.c.h.b16 %v438
        %v593 = vunpack.c.l.b16 %v439
        %v594 = vunpack.c.h.b16 %v439
        %v595 = vunpack.c.l.b16 %v440
        %v596 = vunpack.c.h.b16 %v440
        %v597 = vunpack.c.l.b16 %v441
        %v598 = vunpack.c.h.b16 %v441
        %v599 = vunpack.c.l.b16 %v442
        %v600 = vunpack.c.h.b16 %v442
        %v601 = vunpack.c.l.b16 %v443
        %v602 = vunpack.c.h.b16 %v443
        %v603 = vunpack.c.l.b16 %v444
        %v604 = vunpack.c.h.b16 %v444
        %v605 = vunpack.c.l.b16 %v445
        %v606 = vunpack.c.h.b16 %v445
        %v607 = vunpack.c.l.b16 %v446
        %v608 = vunpack.c.h.b16 %v446
        %v609 = vunpack.c.l.b16 %v447
        %v610 = vunpack.c.h.b16 %v447
        %v611 = vunpack.c.l.b16 %v448
        %v612 = vunpack.c.h.b16 %v448
        %v613 = vunpack.c.l.b16 %v449
        %v614 = vunpack.c.h.b16 %v449
        %v615 = vunpack.c.l.b16 %v450
        %v616 = vunpack.c.h.b16 %v450
        %v617 = vunpack.c.l.b16 %v451
        %v618 = vunpack.c.h.b16 %v451
        %v619 = vunpack.c.l.b16 %v452
        %v620 = vunpack.c.h.b16 %v452
        %v621 = vunpack.c.l.b16 %v453
        %v622 = vunpack.c.h.b16 %v453
        %v623 = vunpack.c.l.b16 %v454
        %v624 = vunpack.c.h.b16 %v454
        %v625 = vunpack.c.l.b16 %v455
        %v626 = vunpack.c.h.b16 %v455
        %v627 = vunpack.c.l.b16 %v456
        %v628 = vunpack.c.h.b16 %v456
        %v629 = vunpack.c.l.b16 %v457
        %v630 = vunpack.c.h.b16 %v457
        %v631 = vunpack.c.l.b16 %v458
        %v632 = vunpack.c.h.b16 %v458
        %v633 = vunpack.c.l.b16 %v459
        %v634 = vunpack.c.h.b16 %v459
        %v635 = vunpack.c.l.b16 %v460
        %v636 = vunpack.c.h.b16 %v460
        %v637 = vunpack.c.l.b16 %v461
        %v638 = vunpack.c.h.b16 %v461
        %v639 = vunpack.c.l.b16 %v462
        %v640 = vunpack.c.h.b16 %v462
        %v641 = vunpack.c.l.b16 %v463
        %v642 = vunpack.c.h.b16 %v463
        %v643 = vunpack.c.l.b16 %v464
        %v644 = vunpack.c.h.b16 %v464
        %v645 = vunpack.c.l.b16 %v465
        %v646 = vunpack.c.h.b16 %v465
        %v647 = vunpack.c.l.b16 %v466
        %v648 = vunpack.c.h.b16 %v466
        %v649 = vunpack.c.l.b16 %v467
        %v650 = vunpack.c.h.b16 %v467
        %v651 = vunpack.c.l.b16 %v468
        %v652 = vunpack.c.h.b16 %v468
        %v653 = vunpack.c.l.b16 %v469
        %v654 = vunpack.c.h.b16 %v469
        %v655 = vunpack.c.l.b16 %v470
        %v656 = vunpack.c.h.b16 %v470
        %v657 = vunpack.c.l.b16 %v471
        %v658 = vunpack.c.h.b16 %v471
        %v659 = vunpack.c.l.b16 %v472
        %v660 = vunpack.c.h.b16 %v472
        %v661 = vunpack.c.l.b16 %v473
        %v662 = vunpack.c.h.b16 %v473
        %v663 = vunpack.c.l.b16 %v474
        %v664 = vunpack.c.h.b16 %v474
        %v665 = vunpack.c.l.b16 %v475
        %v666 = vunpack.c.h.b16 %v475
        %v667 = vunpack.c.l.b16 %v476
        %v668 = vunpack.c.h.b16 %v476
        %v669 = vunpack.c.l.b16 %v477
        %v670 = vunpack.c.h.b16 %v477
        %v671 = vunpack.c.l.b16 %v478
        %v672 = vunpack.c.h.b16 %v478
        %v673 = vunpack.c.l.b16 %v479
        %v674 = vunpack.c.h.b16 %v479
        %v675 = vunpack.c.l.b16 %v480
        %v676 = vunpack.c.h.b16 %v480
        %v677 = vunpack.c.l.b16 %v481
        %v678 = vunpack.c.h.b16 %v481
        %v679 = vunpack.c.l.b16 %v482
        %v680 = vunpack.c.h.b16 %v482
        %v681 = vunpack.c.l.b16 %v483
        %v682 = vunpack.c.h.b16 %v483
        %v683 = vunpack.c.l.b16 %v484
        %v684 = vunpack.c.h.b16 %v484
        %v685 = vunpack.c.l.b16 %v485
        %v686 = vunpack.c.h.b16 %v485
        %v687 = vunpack.c.l.b16 %v486
        %v688 = vunpack.c.h.b16 %v486
        %v689 = vpack.c.b16 %v565, %v561
        %v690 = vpack.c.b16 %v566, %v562
        %v691 = vpack.c.b16 %v567, %v563
        %v692 = vpack.c.b16 %v568, %v564
        %v693 = vpack.c.b16 %v573, %v569
        %v694 = vpack.c.b16 %v574, %v570
        %v695 = vpack.c.b16 %v575, %v571
        %v696 = vpack.c.b16 %v576, %v572
        %v697 = vpack.c.b16 %v581, %v577
        %v698 = vpack.c.b16 %v582, %v578
        %v699 = vpack.c.b16 %v583, %v579
        %v700 = vpack.c.b16 %v584, %v580
        %v701 = vpack.c.b16 %v589, %v585
        %v702 = vpack.c.b16 %v590, %v586
        %v703 = vpack.c.b16 %v591, %v587
        %v704 = vpack.c.b16 %v592, %v588
        %v705 = vpack.c.b16 %v597, %v593
        %v706 = vpack.c.b16 %v598, %v594
        %v707 = vpack.c.b16 %v599, %v595
        %v708 = vpack.c.b16 %v600, %v596
        %v709 = vpack.c.b16 %v605, %v601
        %v710 = vpack.c.b16 %v606, %v602
        %v711 = vpack.c.b16 %v607, %v603
        %v712 = vpack.c.b16 %v608, %v604
        %v713 = vpack.c.b16 %v613, %v609
        %v714 = vpack.c.b16 %v614, %v610
        %v715 = vpack.c.b16 %v615, %v611
        %v716 = vpack.c.b16 %v616, %v612
        %v717 = vpack.c.b16 %v621, %v617
        %v718 = vpack.c.b16 %v622, %v618
        %v719 = vpack.c.b16 %v623, %v619
        %v720 = vpack.c.b16 %v624, %v620
        %v721 = vpack.c.b16 %v629, %v625
        %v722 = vpack.c.b16 %v630, %v626
        %v723 = vpack.c.b16 %v631, %v627
        %v724 = vpack.c.b16 %v632, %v628
        %v725 = vpack.c.b16 %v637, %v633
        %v726 = vpack.c.b16 %v638, %v634
        %v727 = vpack.c.b16 %v639, %v635
        %v728 = vpack.c.b16 %v640, %v636
        %v729 = vpack.c.b16 %v645, %v641
        %v730 = vpack.c.b16 %v646, %v642
        %v731 = vpack.c.b16 %v647, %v643
        %v732 = vpack.c.b16 %v648, %v644
        %v733 = vpack.c.b16 %v653, %v649
        %v734 = vpack.c.b16 %v654, %v650
        %v735 = vpack.c.b16 %v655, %v651
        %v736 = vpack.c.b16 %v656, %v652
        %v737 = vpack.c.b16 %v661, %v657
        %v738 = vpack.c.b16 %v662, %v658
        %v739 = vpack.c.b16 %v663, %v659
        %v740 = vpack.c.b16 %v664, %v660
        %v741 = vpack.c.b16 %v669, %v665
        %v742 = vpack.c.b16 %v670, %v666
        %v743 = vpack.c.b16 %v671, %v667
        %v744 = vpack.c.b16 %v672, %v668
        %v745 = vpack.c.b16 %v677, %v673
        %v746 = vpack.c.b16 %v678, %v674
        %v747 = vpack.c.b16 %v679, %v675
        %v748 = vpack.c.b16 %v680, %v676
        %v749 = vpack.c.b16 %v685, %v681
        %v750 = vpack.c.b16 %v686, %v682
        %v751 = vpack.c.b16 %v687, %v683
        %v752 = vpack.c.b16 %v688, %v684
        %817 = vmatprep.subr.bf16.mxu0 %v718
        %818 = vmatpush1.bf16.msra.mxu0 %v717
        %819 = vmatprep.subr.bf16.mxu0 %v714
        %820 = vmatpush1.bf16.msra.mxu0 %v713
        %821 = vmatprep.subr.bf16.mxu0 %v710
        %822 = vmatpush1.bf16.msra.mxu0 %v709
        %823 = vmatprep.subr.bf16.mxu0 %v706
        %824 = vmatpush1.bf16.msra.mxu0 %v705
        %825 = vmatprep.subr.bf16.mxu0 %v702
        %826 = vmatpush1.bf16.msra.mxu0 %v701
        %827 = vmatprep.subr.bf16.mxu0 %v698
        %828 = vmatpush1.bf16.msra.mxu0 %v697
        %829 = vmatprep.subr.bf16.mxu0 %v694
        %830 = vmatpush1.bf16.msra.mxu0 %v693
        %831 = vmatprep.subr.bf16.mxu0 %v690
        %832 = vmatpush1.bf16.msra.mxu0 %v689
        %833 = vmatprep.subr.bf16.mxu0 %v750
        %834 = vmatpush2.bf16.msra.mxu0 %v749
        %835 = vmatprep.subr.bf16.mxu0 %v746
        %836 = vmatpush2.bf16.msra.mxu0 %v745
        %837 = vmatprep.subr.bf16.mxu0 %v742
        %838 = vmatpush2.bf16.msra.mxu0 %v741
        %839 = vmatprep.subr.bf16.mxu0 %v738
        %840 = vmatpush2.bf16.msra.mxu0 %v737
        %841 = vmatprep.subr.bf16.mxu0 %v734
        %842 = vmatpush2.bf16.msra.mxu0 %v733
        %843 = vmatprep.subr.bf16.mxu0 %v730
        %844 = vmatpush2.bf16.msra.mxu0 %v729
        %845 = vmatprep.subr.bf16.mxu0 %v726
        %846 = vmatpush2.bf16.msra.mxu0 %v725
        %847 = vmatprep.subr.bf16.mxu0 %v722
        %848 = vmatpush2.bf16.msra.mxu0 %v721
        %849 = vmatprep.mubr.bf16.mxu0 %v494
        %850 = vmatmul.mubr.bf16.gmra.mxu0 %v493
        %v851 = vpop.f32.mrf.mxu0
        %v852 = vadd.f32 0.0, %v851
        %v853 = vpop.f32.mrf.mxu0
        %v854 = vadd.f32 0.0, %v853
        %v855 = vpop.f32.mrf.mxu0
        %v856 = vadd.f32 0.0, %v855
        %v857 = vpop.f32.mrf.mxu0
        %v858 = vadd.f32 0.0, %v857
        %859 = vdwg.mxu0
        %860 = vmatprep.subr.bf16.mxu0 %v720
        %861 = vmatpush1.bf16.msra.mxu0 %v719
        %862 = vmatprep.subr.bf16.mxu0 %v716
        %863 = vmatpush1.bf16.msra.mxu0 %v715
        %864 = vmatprep.subr.bf16.mxu0 %v712
        %865 = vmatpush1.bf16.msra.mxu0 %v711
        %866 = vmatprep.subr.bf16.mxu0 %v708
        %867 = vmatpush1.bf16.msra.mxu0 %v707
        %868 = vmatprep.subr.bf16.mxu0 %v704
        %869 = vmatpush1.bf16.msra.mxu0 %v703
        %870 = vmatprep.subr.bf16.mxu0 %v700
        %871 = vmatpush1.bf16.msra.mxu0 %v699
        %872 = vmatprep.subr.bf16.mxu0 %v696
        %873 = vmatpush1.bf16.msra.mxu0 %v695
        %874 = vmatprep.subr.bf16.mxu0 %v692
        %875 = vmatpush1.bf16.msra.mxu0 %v691
        %876 = vmatprep.subr.bf16.mxu0 %v752
        %877 = vmatpush2.bf16.msra.mxu0 %v751
        %878 = vmatprep.subr.bf16.mxu0 %v748
        %879 = vmatpush2.bf16.msra.mxu0 %v747
        %880 = vmatprep.subr.bf16.mxu0 %v744
        %881 = vmatpush2.bf16.msra.mxu0 %v743
        %882 = vmatprep.subr.bf16.mxu0 %v740
        %883 = vmatpush2.bf16.msra.mxu0 %v739
        %884 = vmatprep.subr.bf16.mxu0 %v736
        %885 = vmatpush2.bf16.msra.mxu0 %v735
        %886 = vmatprep.subr.bf16.mxu0 %v732
        %887 = vmatpush2.bf16.msra.mxu0 %v731
        %888 = vmatprep.subr.bf16.mxu0 %v728
        %889 = vmatpush2.bf16.msra.mxu0 %v727
        %890 = vmatprep.subr.bf16.mxu0 %v724
        %891 = vmatpush2.bf16.msra.mxu0 %v723
        %892 = vmatprep.mubr.bf16.mxu0 %v494
        %893 = vmatmul.mubr.bf16.gmra.mxu0 %v493
        %v894 = vpop.f32.mrf.mxu0
        %v895 = vadd.f32 0.0, %v894
        %v896 = vpop.f32.mrf.mxu0
        %v897 = vadd.f32 0.0, %v896
        %v898 = vpop.f32.mrf.mxu0
        %v899 = vadd.f32 0.0, %v898
        %v900 = vpop.f32.mrf.mxu0
        %v901 = vadd.f32 0.0, %v900
        %902 = vdwg.mxu0
        %v903 = vadd.f32 %v413, %v852
        %v904 = vadd.f32 %v414, %v854
        %v905 = vadd.f32 %v415, %v895
        %v906 = vadd.f32 %v416, %v897
        %v907 = vadd.f32 %v417, %v856
        %v908 = vadd.f32 %v418, %v858
        %v909 = vadd.f32 %v419, %v899
        %v910 = vadd.f32 %v420, %v901
        %911 = vst [vmem:[#allocation2] sm:$0xff] %v903
        %912 = vst [vmem:[#allocation2 + $0x8] sm:$0xff] %v904
        %913 = vst [vmem:[#allocation2 + $0x10] sm:$0xff] %v905
        %914 = vst [vmem:[#allocation2 + $0x18] sm:$0xff] %v906
        %915 = vst [vmem:[#allocation2 + $0x20] sm:$0xff] %v907
        %916 = vst [vmem:[#allocation2 + $0x28] sm:$0xff] %v908
        %917 = vst [vmem:[#allocation2 + $0x30] sm:$0xff] %v909
        %918 = vst [vmem:[#allocation2 + $0x38] sm:$0xff] %v910
        // Predicated region
        $region60: #{gpt_like_forward.19} parent=50 // pred_check
          %p919 = pneg %p401
        $region61: #{gpt_like_forward.19} parent=50 // pred_check_branch
          %921 = sbr.rel (%p919) target = $region63
        $region62: #{gpt_like_forward.19} parent=50 // pred_region
          %v922 = vld [vmem:[#allocation2] sm:$0xff]
          %v923 = vld [vmem:[#allocation2 + $0x8] sm:$0xff]
          %v924 = vld [vmem:[#allocation2 + $0x10] sm:$0xff]
          %v925 = vld [vmem:[#allocation2 + $0x18] sm:$0xff]
          %v926 = vld [vmem:[#allocation2 + $0x20] sm:$0xff]
          %v927 = vld [vmem:[#allocation2 + $0x28] sm:$0xff]
          %v928 = vld [vmem:[#allocation2 + $0x30] sm:$0xff]
          %v929 = vld [vmem:[#allocation2 + $0x38] sm:$0xff]
          %v930 = vld [vmem:[%s397] sm:$0xf]
          %v932 = vlaneseq
          %v933 = vshrl.u32 %v932, 7
          %v934 = vsub.s32 0, %v933
          %v935 = vrot.slane %v930, %v934
          %v936 = vlaneseq
          %v937 = vshrl.u32 %v936, 7
          %v938 = vsub.s32 1, %v937
          %v939 = vrot.slane %v930, %v938
          %v940 = vlaneseq
          %v941 = vshrl.u32 %v940, 7
          %v942 = vsub.s32 2, %v941
          %v943 = vrot.slane %v930, %v942
          %v944 = vlaneseq
          %v945 = vshrl.u32 %v944, 7
          %v946 = vsub.s32 3, %v945
          %v947 = vrot.slane %v930, %v946
          %v952 = vadd.f32 %v922, %v935
          %v953 = vadd.f32 %v923, %v939
          %v954 = vadd.f32 %v924, %v943
          %v955 = vadd.f32 %v925, %v947
          %v956 = vadd.f32 %v926, %v935
          %v957 = vadd.f32 %v927, %v939
          %v958 = vadd.f32 %v928, %v943
          %v959 = vadd.f32 %v929, %v947
          %960 = vst [vmem:[%s379] sm:$0xff] %v952
          %961 = vst [vmem:[%s379 + $0x8] sm:$0xff] %v953
          %962 = vst [vmem:[%s379 + $0x10] sm:$0xff] %v954
          %963 = vst [vmem:[%s379 + $0x18] sm:$0xff] %v955
          %964 = vst [vmem:[%s379 + $0x20] sm:$0xff] %v956
          %965 = vst [vmem:[%s379 + $0x28] sm:$0xff] %v957
          %966 = vst [vmem:[%s379 + $0x30] sm:$0xff] %v958
          %967 = vst [vmem:[%s379 + $0x38] sm:$0xff] %v959
        $region63: #{gpt_like_forward.19} parent=50 // pred_fallthru
          _
        %s968 = sand.u32 %s125, 1
        %s969 = sand.u32 %s125, 1
        %s970 = smul.addr %s969, 64
        %s971 = scalar_lea.vmem [#allocation4], %s970
        // Predicated region
        $region64: #{gpt_like_forward.19} parent=50 // pred_check
          %p972 = pneg %p135
        $region65: #{gpt_like_forward.19} parent=50 // pred_check_branch
          %974 = sbr.rel (%p972) target = $region67
        $region66: #{gpt_like_forward.19} parent=50 // pred_region
          %s975 = smul.u32 2, %s19
          %s976 = smul.u32 4, %s20
          %s977 = smul.addr %s975, 8
          %s978 = sadd.s32 %s976, %s977
          %s979 = smul.addr %s978, 8
          %s980 = scalar_lea.vmem %s3, %s979
          // Predicated region
          $region68: #{gpt_like_forward.19} parent=66 // pred_check
            _
          $region69: #{gpt_like_forward.19} parent=66 // pred_check_branch
            %982 = sbr.rel (0) target = $region71
          $region70: #{gpt_like_forward.19} parent=66 // pred_region
            // Predicated region
            $region72: #{gpt_like_forward.19} parent=70 // pred_check
              _
            $region73: #{gpt_like_forward.19} parent=70 // pred_check_branch
              %984 = sbr.rel (0) target = $region75
            $region74: #{gpt_like_forward.19} parent=70 // pred_region
              loop: start=0, step=1, limit=1
              $region76: #{gpt_like_forward.19} parent=74 // loop_pre_header
                _
              $region77: #{gpt_like_forward.19} parent=74 // loop_header
                %s986 = sphi 0, %s990
                %p987 = scmp.ge.s32.totalorder %s986, 1
                %s991 = sphi %s971, %s971
                %s992 = sphi %s980, %s980
              $region78: #{gpt_like_forward.19} parent=74 // loop_header_branch
                %989 = sbr.rel (%p987) target = $region82
              $region79: #{gpt_like_forward.19} parent=74 // loop_body
                %v993 = vld [vmem:[%s991] sm:$0xff]
                %994 = vst [vmem:[%s992] sm:$0xff] %v993
                %v995 = vld [vmem:[%s991 + $0x8] sm:$0xff]
                %996 = vst [vmem:[%s992 + $0x8] sm:$0xff] %v995
                %v997 = vld [vmem:[%s991 + $0x10] sm:$0xff]
                %998 = vst [vmem:[%s992 + $0x10] sm:$0xff] %v997
                %v999 = vld [vmem:[%s991 + $0x18] sm:$0xff]
                %1000 = vst [vmem:[%s992 + $0x18] sm:$0xff] %v999
                %v1001 = vld [vmem:[%s991 + $0x20] sm:$0xff]
                %1002 = vst [vmem:[%s992 + $0x40] sm:$0xff] %v1001
                %v1003 = vld [vmem:[%s991 + $0x28] sm:$0xff]
                %1004 = vst [vmem:[%s992 + $0x48] sm:$0xff] %v1003
                %v1005 = vld [vmem:[%s991 + $0x30] sm:$0xff]
                %1006 = vst [vmem:[%s992 + $0x50] sm:$0xff] %v1005
                %v1007 = vld [vmem:[%s991 + $0x38] sm:$0xff]
                %1008 = vst [vmem:[%s992 + $0x58] sm:$0xff] %v1007
              $region80: #{gpt_like_forward.19} parent=74 // loop_footer
                %s990 = sadd.s32 1, %s986
              $region81: #{gpt_like_forward.19} parent=74 // loop_footer_branch
                %985 = sbr.rel target = $region77
              $region82: #{gpt_like_forward.19} parent=74 // loop_exit
                _
            $region75: #{gpt_like_forward.19} parent=70 // pred_fallthru
              _
            // Predicated region
            $region83: #{gpt_like_forward.19} parent=70 // pred_check
              _
            $region84: #{gpt_like_forward.19} parent=70 // pred_check_branch
              %1010 = sbr.rel target = $region86
            $region85: #{gpt_like_forward.19} parent=70 // pred_region
              _
            $region86: #{gpt_like_forward.19} parent=70 // pred_fallthru
              _
          $region71: #{gpt_like_forward.19} parent=66 // pred_fallthru
            _
          %1011 = vnop
        $region67: #{gpt_like_forward.19} parent=50 // pred_fallthru
          _
      $region51: #{gpt_like_forward.19} parent=5 // pred_fallthru
        _
      %p1012 = scmp.le.s32.totalorder 2, %s9
      // Predicated region
      $region87: #{gpt_like_forward.19} parent=5 // pred_check
        %p1013 = pneg %p1012
      $region88: #{gpt_like_forward.19} parent=5 // pred_check_branch
        %1015 = sbr.rel (%p1013) target = $region90
      $region89: #{gpt_like_forward.19} parent=5 // pred_region
        %s1016 = ssub.s32 %s9, 2
        // Predicated region
        $region91: #{gpt_like_forward.19} parent=89 // pred_check
          %p1017 = pneg %p141
        $region92: #{gpt_like_forward.19} parent=89 // pred_check_branch
          %1019 = sbr.rel (%p1017) target = $region94
        $region93: #{gpt_like_forward.19} parent=89 // pred_region
          %s1020 = sand.u32 %s126, 1
          %s1021 = sand.u32 %s126, 1
          %s1022 = smul.addr %s1021, 64
          %s1023 = scalar_lea.vmem [#allocation4], %s1022
        $region94: #{gpt_like_forward.19} parent=89 // pred_fallthru
          _
      $region90: #{gpt_like_forward.19} parent=5 // pred_fallthru
        _
    $region6: #{gpt_like_forward.19} parent=1 // loop_footer
      %s13 = sadd.s32 1, %s9
    $region7: #{gpt_like_forward.19} parent=1 // loop_footer_branch
      %8 = sbr.rel target = $region3
    $region8: #{gpt_like_forward.19} parent=1 // loop_exit
      _

</llo_original>
